<compile_context>
chip_gen: v5e
topology: v5e:2x2
jax: 0.10.0
libtpu: 0.0.40
codegen_flags: <defaults>
</compile_context>

<pallas_src>
import jax
import jax.numpy as jnp
from jax.experimental import pallas as pl
from jax.experimental.pallas import tpu as pltpu


def _round_up(n, m):
    return ((n + m - 1) // m) * m


# ----------------------------------------------------------------------------
# Kernel 1: Conv3x3(1->32, pad=1) + folded BN + ReLU + MaxPool2d(2)
# ----------------------------------------------------------------------------
def conv1_kernel(xp_ref, a_ref, s_ref, t_ref, o_ref):
    # xp_ref : (NB, 30, 30) f32   spatially pre-padded images (no channel dim)
    # a_ref  : (6, 30, 448) f32   banded conv weights; a_ref[p*3 + ky] maps one
    #                             padded input row to the 14 even (p=0) / odd
    #                             (p=1) output columns x 32 channels
    # s_ref  : (1, 448) f32       folded BN scale, tiled over the 14 W slots
    # t_ref  : (1, 448) f32       folded conv-bias + BN shift, tiled likewise
    # o_ref  : (NB, 16, 16, 32) bf16  pooled output with a zero 1-px halo so
    #                                 conv2 needs no wrapper-side re-pad
    NB = xp_ref.shape[0]
    # Zero the whole block once: this produces the halo consumed by conv2.
    o_ref[...] = jnp.zeros(o_ref.shape, o_ref.dtype)
    s = s_ref[...]
    t = t_ref[...]

    def body(i, carry):
        # Per-image work keeps live f32 accumulators at 2 x (28,448) ~ 100 KiB.
        acc_e = jnp.zeros((28, 448), jnp.float32)
        acc_o = jnp.zeros((28, 448), jnp.float32)
        for ky in range(3):
            rows = xp_ref[i, ky:ky + 28, :]                     # (28, 30) f32
            acc_e = acc_e + jnp.dot(rows, a_ref[ky],
                                    preferred_element_type=jnp.float32)
            acc_o = acc_o + jnp.dot(rows, a_ref[3 + ky],
                                    preferred_element_type=jnp.float32)
        # BN affine before the max (scale may be negative); ReLU commutes.
        ye = acc_e * s + t
        yo = acc_o * s + t
        yw = jnp.maximum(jnp.maximum(ye, yo), 0.0)              # W-pooled (28,448)
        yh = jnp.max(yw.reshape(14, 2, 448), axis=1)            # H-pooled (14,448)
        o_ref[i, 1:15, 1:15, :] = yh.reshape(14, 14, 32).astype(o_ref.dtype)
        return carry

    jax.lax.fori_loop(0, NB, body, 0)


def conv1_block(xp, a, s, t, *, nb):
    Bp = xp.shape[0]
    return pl.pallas_call(
        conv1_kernel,
        out_shape=jax.ShapeDtypeStruct((Bp, 16, 16, 32), jnp.bfloat16),
        grid=(Bp // nb,),
        in_specs=[
            pl.BlockSpec((nb, 30, 30), lambda b: (b, 0, 0)),
            pl.BlockSpec((6, 30, 448), lambda b: (0, 0, 0)),
            pl.BlockSpec((1, 448), lambda b: (0, 0)),
            pl.BlockSpec((1, 448), lambda b: (0, 0)),
        ],
        out_specs=pl.BlockSpec((nb, 16, 16, 32), lambda b: (b, 0, 0, 0)),
        compiler_params=pltpu.CompilerParams(
            dimension_semantics=("parallel",)),
    )(xp, a, s, t)


# ----------------------------------------------------------------------------
# Kernel 2: Conv3x3(32->64, pad=1) + folded BN + ReLU + MaxPool2d(2)
# ----------------------------------------------------------------------------
def conv2_kernel(x_ref, w_ref, s_ref, t_ref, o_ref):
    # x_ref : (NB, 16, 16, 32) bf16  conv1 output incl. zero halo
    # w_ref : (288, 64) bf16         9 taps x 32 cin packed for one K=288 matmul
    # s_ref : (1, 64) f32            folded BN scale
    # t_ref : (1, 64) f32            folded conv-bias + BN shift
    # o_ref : (NB, 7, 7, 64) bf16
    NB = x_ref.shape[0]
    s = s_ref[...]
    t = t_ref[...]
    w = w_ref[...]

    def body(i, carry):
        taps = [x_ref[i, ky:ky + 14, kx:kx + 14, :]
                for ky in range(3) for kx in range(3)]           # 9 x (14,14,32)
        patches = jnp.concatenate(taps, axis=-1)                 # (14,14,288) bf16
        acc = jnp.dot(patches.reshape(196, 288), w,
                      preferred_element_type=jnp.float32)        # (196,64) f32
        y = jnp.maximum(acc * s + t, 0.0).reshape(14, 14, 64)
        y = jnp.max(y.reshape(14, 7, 2, 64), axis=2)             # pool W -> (14,7,64)
        y = jnp.max(y.reshape(7, 2, 7, 64), axis=1)              # pool H -> (7,7,64)
        o_ref[i] = y.astype(o_ref.dtype)
        return carry

    jax.lax.fori_loop(0, NB, body, 0)


def conv2_block(x, w288, s, t, *, nb):
    Bp = x.shape[0]
    return pl.pallas_call(
        conv2_kernel,
        out_shape=jax.ShapeDtypeStruct((Bp, 7, 7, 64), jnp.bfloat16),
        grid=(Bp // nb,),
        in_specs=[
            pl.BlockSpec((nb, 16, 16, 32), lambda b: (b, 0, 0, 0)),
            pl.BlockSpec((288, 64), lambda b: (0, 0)),
            pl.BlockSpec((1, 64), lambda b: (0, 0)),
            pl.BlockSpec((1, 64), lambda b: (0, 0)),
        ],
        out_specs=pl.BlockSpec((nb, 7, 7, 64), lambda b: (b, 0, 0, 0)),
        compiler_params=pltpu.CompilerParams(
            dimension_semantics=("parallel",)),
    )(x, w288, s, t)


# ----------------------------------------------------------------------------
# Kernel 3: dense head  (TB,3136)@(3136,64)+b1  ->  @(64,10)+b2   (all bf16 MXU)
# ----------------------------------------------------------------------------
def dense_kernel(x_ref, w1_ref, b1_ref, w2_ref, b2_ref, o_ref):
    h = jnp.dot(x_ref[...], w1_ref[...],
                preferred_element_type=jnp.float32) + b1_ref[...]
    # No activation between `dense` and `last_linear` in MoindrotCNN.
    o_ref[...] = (jnp.dot(h.astype(w2_ref.dtype), w2_ref[...],
                          preferred_element_type=jnp.float32) + b2_ref[...])


def dense_head(x, w1, b1, w2, b2, *, tb_max=512):
    B, K = x.shape
    TB = min(tb_max, _round_up(B, 8))
    # Give v7x's 2 TensorCores at least 2 grid steps when the batch allows.
    if TB > 8 and _round_up(B, TB) // TB < 2:
        TB = _round_up(TB // 2, 8)
    Bp = _round_up(B, TB)
    if Bp != B:
        x = jnp.pad(x, ((0, Bp - B), (0, 0)))
    out = pl.pallas_call(
        dense_kernel,
        out_shape=jax.ShapeDtypeStruct((Bp, 10), jnp.float32),
        grid=(Bp // TB,),
        in_specs=[
            pl.BlockSpec((TB, K), lambda i: (i, 0)),
            pl.BlockSpec(w1.shape, lambda i: (0, 0)),
            pl.BlockSpec(b1.shape, lambda i: (0, 0)),
            pl.BlockSpec(w2.shape, lambda i: (0, 0)),
            pl.BlockSpec(b2.shape, lambda i: (0, 0)),
        ],
        out_specs=pl.BlockSpec((TB, 10), lambda i: (i, 0)),
        compiler_params=pltpu.CompilerParams(
            dimension_semantics=("parallel",)),
    )(x, w1, b1, w2, b2)
    return out[:B] if Bp != B else out


# ----------------------------------------------------------------------------
# Param prep + full forward pass (glue in plain JAX)
# ----------------------------------------------------------------------------
def prepare_params(params):
    """One-time conversion of canonical params into kernel-ready layouts."""
    # conv1: even/odd banded weight matrices.
    # a1[p*3+ky, j, w2*32 + c] = w1[ky*3+kx, 0, c]   with kx = j - (2*w2 + p)
    w1 = params["w1"]                                          # (9, 1, 32)
    a1 = jnp.zeros((2, 3, 30, 14, 32), jnp.float32)
    w_idx = jnp.arange(14)
    for p in range(2):
        for ky in range(3):
            for kx in range(3):
                wk = jnp.broadcast_to(w1[ky * 3 + kx, 0], (14, 32))
                a1 = a1.at[p, ky, 2 * w_idx + p + kx, w_idx, :].set(wk)
    a1 = a1.reshape(6, 30, 448)
    s1 = jnp.tile(params["s1"].astype(jnp.float32), 14).reshape(1, 448)
    t1 = jnp.tile(params["t1"].astype(jnp.float32), 14).reshape(1, 448)

    # conv2: 9 taps packed for a single (.,288)@(288,64) matmul.
    w2p = params["w2"].reshape(288, 64).astype(jnp.bfloat16)   # (9,32,64) taps
    s2 = params["s2"].reshape(1, 64).astype(jnp.float32)
    t2 = params["t2"].reshape(1, 64).astype(jnp.float32)

    # dense head: permute fc1 rows from PyTorch CHW-flatten to NHWC-flatten.
    dw1 = params["dw1"]                                        # (3136, 64)
    dw1 = dw1.reshape(64, 7, 7, 64).transpose(1, 2, 0, 3).reshape(3136, 64)
    return dict(
        a1=a1, s1=s1, t1=t1,
        w2p=w2p, s2=s2, t2=t2,
        dw1=dw1.astype(jnp.bfloat16),
        db1=params["db1"].reshape(1, 64).astype(jnp.float32),
        dw2=params["dw2"].astype(jnp.bfloat16),
        db2=params["db2"].reshape(1, 10).astype(jnp.float32),
    )


def moindrot_cnn_forward(x_nchw, kp):
    B = x_nchw.shape[0]
    x = x_nchw[:, 0, :, :].astype(jnp.float32)                 # (B, 28, 28)
    Bp = _round_up(B, 8)
    # One pad: batch padding + 1-px spatial halo for conv1.
    xp = jnp.pad(x, ((0, Bp - B), (1, 1), (1, 1)))             # (Bp, 30, 30)
    nb = 8 if Bp >= 16 else 4        # >=2 grid steps for v7x's two TCs
    h1 = conv1_block(xp, kp["a1"], kp["s1"], kp["t1"], nb=nb)  # (Bp,16,16,32)
    h2 = conv2_block(h1, kp["w2p"], kp["s2"], kp["t2"], nb=nb)  # (Bp, 7, 7,64)
    flat = h2.reshape(Bp, 3136)      # NHWC flatten; dw1 rows pre-permuted
    out = dense_head(flat, kp["dw1"], kp["db1"], kp["dw2"], kp["db2"])
    return out[:B]


# ----------------------------------------------------------------------------
# Deterministic parameter init (shapes from MoindrotCNN.__init__, n_channels=32
# so that 2*n_channels*7*7 == 3136 as the dense layer requires).
# ----------------------------------------------------------------------------
def init_params(key, n_channels=32):
    assert 2 * n_channels * 7 * 7 == 3136, "dense layer requires n_channels=32"
    keys = jax.random.split(key, 16)
    eps = 1e-5

    def conv_bn(kw, kb, kg, kbe, km, kv, cin, cout):
        w = jax.random.normal(kw, (cout, cin, 3, 3), jnp.float32) * (
            1.0 / (3.0 * float(cin) ** 0.5))
        b = 0.1 * jax.random.normal(kb, (cout,), jnp.float32)
        gamma = 1.0 + 0.1 * jax.random.normal(kg, (cout,), jnp.float32)
        beta = 0.1 * jax.random.normal(kbe, (cout,), jnp.float32)
        rmean = 0.05 * jax.random.normal(km, (cout,), jnp.float32)
        rvar = 1.0 + 0.1 * jnp.abs(jax.random.normal(kv, (cout,), jnp.float32))
        inv = gamma / jnp.sqrt(rvar + eps)
        scale = inv                                  # folded BN scale (eval)
        shift = (b - rmean) * inv + beta             # folded conv-bias + shift
        # kernel tap layout (9, cin, cout), tap index = ky*3 + kx
        w9 = jnp.transpose(w, (2, 3, 1, 0)).reshape(9, cin, cout)
        return w9, scale, shift

    c1, c2 = n_channels, 2 * n_channels
    w1, s1, t1 = conv_bn(*keys[0:6], 1, c1)
    w2, s2, t2 = conv_bn(*keys[6:12], c1, c2)
    dw1 = jax.random.normal(keys[12], (3136, 64), jnp.float32) * 0.02
    db1 = 0.1 * jax.random.normal(keys[13], (64,), jnp.float32)
    dw2 = jax.random.normal(keys[14], (64, 10), jnp.float32) * 0.05
    db2 = 0.1 * jax.random.normal(keys[15], (10,), jnp.float32)
    return dict(w1=w1, s1=s1, t1=t1, w2=w2, s2=s2, t2=t2,
                dw1=dw1, db1=db1, dw2=dw2, db2=db2)


# ----------------------------------------------------------------------------
# Pure-JAX reference (PyTorch conventions: f32, CHW flatten) for a sanity check
# ----------------------------------------------------------------------------
def reference_forward(x_nchw, params):
    x = jnp.transpose(x_nchw, (0, 2, 3, 1)).astype(jnp.float32)

    def block(x, w9, s, t):
        cin, cout = w9.shape[1], w9.shape[2]
        w = w9.reshape(3, 3, cin, cout)  # HWIO
        y = jax.lax.conv_general_dilated(
            x, w, window_strides=(1, 1), padding="SAME",
            dimension_numbers=("NHWC", "HWIO", "NHWC"),
            precision=jax.lax.Precision.HIGHEST)
        y = jnp.maximum(
            y * s.reshape(1, 1, 1, cout) + t.reshape(1, 1, 1, cout), 0.0)
        return jax.lax.reduce_window(y, -jnp.inf, jax.lax.max,
                                     (1, 2, 2, 1), (1, 2, 2, 1), "VALID")

    h = block(x, params["w1"], params["s1"], params["t1"])
    h = block(h, params["w2"], params["s2"], params["t2"])
    flat = jnp.transpose(h, (0, 3, 1, 2)).reshape(x.shape[0], -1)  # CHW flatten
    h = jnp.dot(flat, params["dw1"],
                precision=jax.lax.Precision.HIGHEST) + params["db1"]
    return jnp.dot(h, params["dw2"],
                   precision=jax.lax.Precision.HIGHEST) + params["db2"]


if __name__ == "__main__":
    key = jax.random.PRNGKey(0)
    pkey, xkey = jax.random.split(key)

    n_channels = 32                       # => dense input 64*7*7 = 3136
    params = init_params(pkey, n_channels)
    kparams = prepare_params(params)      # kernel-ready layouts (bf16 MXU ops)

    B = 2
    x = jax.random.normal(xkey, (B, 1, 28, 28), jnp.float32)   # NCHW, MNIST-like

    fwd = jax.jit(moindrot_cnn_forward)
    out = jax.block_until_ready(fwd(x, kparams))
    assert out.shape == (B, 10) and out.dtype == jnp.float32

    ref = jax.block_until_ready(reference_forward(x, params))
    max_err = float(jnp.max(jnp.abs(out - ref)))
    # bf16 activations/weights in conv2 + the dense head vs the f32 HIGHEST
    # reference: expected max-abs error ~1e-2.
    assert max_err < 0.1, f"mismatch vs reference: {max_err}"

    print("KERNEL_OK")
</pallas_src>

<mosaic_0001>
module attributes {stable_mosaic.version = 11 : i64} {
  func.func @conv1_kernel(%arg0: i32, %arg1: memref<4x30x30xf32, #tpu.memory_space<vmem>>, %arg2: memref<6x30x448xf32, #tpu.memory_space<vmem>>, %arg3: memref<1x448xf32, #tpu.memory_space<vmem>>, %arg4: memref<1x448xf32, #tpu.memory_space<vmem>>, %arg5: memref<4x16x16x32xbf16, #tpu.memory_space<vmem>>) attributes {dimension_semantics = [#tpu.dimension_semantics<parallel>], iteration_bounds = array<i64: 2>, scalar_prefetch = 0 : i64, scratch_operands = 0 : i64, tpu.core_type = #tpu.core_type<tc>, window_params = [{transform_indices = @transform_0, window_bounds = array<i64: 4, 30, 30>}, {pipeline_mode = #tpu.pipeline_mode<synchronous>, transform_indices = @transform_1, window_bounds = array<i64: 6, 30, 448>}, {pipeline_mode = #tpu.pipeline_mode<synchronous>, transform_indices = @transform_2, window_bounds = array<i64: 1, 448>}, {pipeline_mode = #tpu.pipeline_mode<synchronous>, transform_indices = @transform_3, window_bounds = array<i64: 1, 448>}, {transform_indices = @transform_4, window_bounds = array<i64: 4, 16, 16, 32>}]} {
    %cst = arith.constant 0.000000e+00 : bf16
    %0 = vector.broadcast %cst : bf16 to vector<4x16x16x32xbf16>
    %c0 = arith.constant 0 : index
    %c0_0 = arith.constant 0 : index
    %c0_1 = arith.constant 0 : index
    %c0_2 = arith.constant 0 : index
    %1 = vector.load %arg5[%c0, %c0_0, %c0_1, %c0_2] : memref<4x16x16x32xbf16, #tpu.memory_space<vmem>>, vector<4x16x16x32xbf16>
    tpu.vector_store %arg5[%c0, %c0_0, %c0_1, %c0_2], %0 {strides = array<i32>} : memref<4x16x16x32xbf16, #tpu.memory_space<vmem>>, vector<4x16x16x32xbf16>,
    %c0_3 = arith.constant 0 : index
    %c0_4 = arith.constant 0 : index
    %2 = vector.load %arg3[%c0_3, %c0_4] : memref<1x448xf32, #tpu.memory_space<vmem>>, vector<1x448xf32>
    %c0_5 = arith.constant 0 : index
    %c0_6 = arith.constant 0 : index
    %3 = vector.load %arg4[%c0_5, %c0_6] : memref<1x448xf32, #tpu.memory_space<vmem>>, vector<1x448xf32>
    %c0_i32 = arith.constant 0 : i32
    %c4_i32 = arith.constant 4 : i32
    %4 = arith.addi %c0_i32, %c4_i32 : i32
    %c1_i32 = arith.constant 1 : i32
    scf.for %arg6 = %c0_i32 to %4 step %c1_i32  : i32 {
      %cst_8 = arith.constant 0.000000e+00 : f32
      %5 = vector.broadcast %cst_8 : f32 to vector<28x448xf32>
      %cst_9 = arith.constant 0.000000e+00 : f32
      %6 = vector.broadcast %cst_9 : f32 to vector<28x448xf32>
      %7 = arith.index_cast %arg6 : i32 to index
      %c0_10 = arith.constant 0 : index
      %c0_11 = arith.constant 0 : index
      %8 = vector.load %arg1[%7, %c0_10, %c0_11] : memref<4x30x30xf32, #tpu.memory_space<vmem>>, vector<1x28x30xf32>
      %9 = vector.shape_cast %8 : vector<1x28x30xf32> to vector<28x30xf32>
      %c0_12 = arith.constant 0 : index
      %c0_13 = arith.constant 0 : index
      %c0_14 = arith.constant 0 : index
      %10 = vector.load %arg2[%c0_12, %c0_13, %c0_14] : memref<6x30x448xf32, #tpu.memory_space<vmem>>, vector<1x30x448xf32>
      %11 = vector.shape_cast %10 : vector<1x30x448xf32> to vector<30x448xf32>
      %cst_15 = arith.constant dense<0.000000e+00> : vector<28x448xf32>
      %12 = tpu.matmul %9, %11, %cst_15 {dimension_numbers = #tpu.dot_dimension_numbers<[1], [0], [0], [1], [0, 0, 1, 1], [], []>} : vector<28x30xf32>, vector<30x448xf32>, vector<28x448xf32> -> vector<28x448xf32>
      %13 = arith.addf %5, %12 : vector<28x448xf32>
      %c3 = arith.constant 3 : index
      %c0_16 = arith.constant 0 : index
      %c0_17 = arith.constant 0 : index
      %14 = vector.load %arg2[%c3, %c0_16, %c0_17] : memref<6x30x448xf32, #tpu.memory_space<vmem>>, vector<1x30x448xf32>
      %15 = vector.shape_cast %14 : vector<1x30x448xf32> to vector<30x448xf32>
      %cst_18 = arith.constant dense<0.000000e+00> : vector<28x448xf32>
      %16 = tpu.matmul %9, %15, %cst_18 {dimension_numbers = #tpu.dot_dimension_numbers<[1], [0], [0], [1], [0, 0, 1, 1], [], []>} : vector<28x30xf32>, vector<30x448xf32>, vector<28x448xf32> -> vector<28x448xf32>
      %17 = arith.addf %6, %16 : vector<28x448xf32>
      %18 = arith.index_cast %arg6 : i32 to index
      %c1 = arith.constant 1 : index
      %c0_19 = arith.constant 0 : index
      %19 = vector.load %arg1[%18, %c1, %c0_19] : memref<4x30x30xf32, #tpu.memory_space<vmem>>, vector<1x28x30xf32>
      %20 = vector.shape_cast %19 : vector<1x28x30xf32> to vector<28x30xf32>
      %c1_20 = arith.constant 1 : index
      %c0_21 = arith.constant 0 : index
      %c0_22 = arith.constant 0 : index
      %21 = vector.load %arg2[%c1_20, %c0_21, %c0_22] : memref<6x30x448xf32, #tpu.memory_space<vmem>>, vector<1x30x448xf32>
      %22 = vector.shape_cast %21 : vector<1x30x448xf32> to vector<30x448xf32>
      %cst_23 = arith.constant dense<0.000000e+00> : vector<28x448xf32>
      %23 = tpu.matmul %20, %22, %cst_23 {dimension_numbers = #tpu.dot_dimension_numbers<[1], [0], [0], [1], [0, 0, 1, 1], [], []>} : vector<28x30xf32>, vector<30x448xf32>, vector<28x448xf32> -> vector<28x448xf32>
      %24 = arith.addf %13, %23 : vector<28x448xf32>
      %c4 = arith.constant 4 : index
      %c0_24 = arith.constant 0 : index
      %c0_25 = arith.constant 0 : index
      %25 = vector.load %arg2[%c4, %c0_24, %c0_25] : memref<6x30x448xf32, #tpu.memory_space<vmem>>, vector<1x30x448xf32>
      %26 = vector.shape_cast %25 : vector<1x30x448xf32> to vector<30x448xf32>
      %cst_26 = arith.constant dense<0.000000e+00> : vector<28x448xf32>
      %27 = tpu.matmul %20, %26, %cst_26 {dimension_numbers = #tpu.dot_dimension_numbers<[1], [0], [0], [1], [0, 0, 1, 1], [], []>} : vector<28x30xf32>, vector<30x448xf32>, vector<28x448xf32> -> vector<28x448xf32>
      %28 = arith.addf %17, %27 : vector<28x448xf32>
      %29 = arith.index_cast %arg6 : i32 to index
      %c2 = arith.constant 2 : index
      %c0_27 = arith.constant 0 : index
      %30 = vector.load %arg1[%29, %c2, %c0_27] : memref<4x30x30xf32, #tpu.memory_space<vmem>>, vector<1x28x30xf32>
      %31 = vector.shape_cast %30 : vector<1x28x30xf32> to vector<28x30xf32>
      %c2_28 = arith.constant 2 : index
      %c0_29 = arith.constant 0 : index
      %c0_30 = arith.constant 0 : index
      %32 = vector.load %arg2[%c2_28, %c0_29, %c0_30] : memref<6x30x448xf32, #tpu.memory_space<vmem>>, vector<1x30x448xf32>
      %33 = vector.shape_cast %32 : vector<1x30x448xf32> to vector<30x448xf32>
      %cst_31 = arith.constant dense<0.000000e+00> : vector<28x448xf32>
      %34 = tpu.matmul %31, %33, %cst_31 {dimension_numbers = #tpu.dot_dimension_numbers<[1], [0], [0], [1], [0, 0, 1, 1], [], []>} : vector<28x30xf32>, vector<30x448xf32>, vector<28x448xf32> -> vector<28x448xf32>
      %35 = arith.addf %24, %34 : vector<28x448xf32>
      %c5 = arith.constant 5 : index
      %c0_32 = arith.constant 0 : index
      %c0_33 = arith.constant 0 : index
      %36 = vector.load %arg2[%c5, %c0_32, %c0_33] : memref<6x30x448xf32, #tpu.memory_space<vmem>>, vector<1x30x448xf32>
      %37 = vector.shape_cast %36 : vector<1x30x448xf32> to vector<30x448xf32>
      %cst_34 = arith.constant dense<0.000000e+00> : vector<28x448xf32>
      %38 = tpu.matmul %31, %37, %cst_34 {dimension_numbers = #tpu.dot_dimension_numbers<[1], [0], [0], [1], [0, 0, 1, 1], [], []>} : vector<28x30xf32>, vector<30x448xf32>, vector<28x448xf32> -> vector<28x448xf32>
      %39 = arith.addf %28, %38 : vector<28x448xf32>
      %40 = vector.broadcast %2 : vector<1x448xf32> to vector<28x448xf32>
      %41 = arith.mulf %35, %40 : vector<28x448xf32>
      %42 = vector.broadcast %3 : vector<1x448xf32> to vector<28x448xf32>
      %43 = arith.addf %41, %42 : vector<28x448xf32>
      %44 = vector.broadcast %2 : vector<1x448xf32> to vector<28x448xf32>
      %45 = arith.mulf %39, %44 : vector<28x448xf32>
      %46 = vector.broadcast %3 : vector<1x448xf32> to vector<28x448xf32>
      %47 = arith.addf %45, %46 : vector<28x448xf32>
      %48 = arith.maximumf %43, %47 : vector<28x448xf32>
      %cst_35 = arith.constant 0.000000e+00 : f32
      %49 = vector.broadcast %cst_35 : f32 to vector<28x448xf32>
      %50 = arith.maximumf %48, %49 : vector<28x448xf32>
      %51 = vector.shape_cast %50 : vector<28x448xf32> to vector<14x2x448xf32>
      %cst_36 = arith.constant dense<0xFF800000> : vector<14x448xf32>
      %52 = vector.multi_reduction <maximumf>, %51, %cst_36 [1] : vector<14x2x448xf32> to vector<14x448xf32>
      %53 = vector.shape_cast %52 : vector<14x448xf32> to vector<14x14x32xf32>
      %54 = arith.truncf %53 : vector<14x14x32xf32> to vector<14x14x32xbf16>
      %55 = arith.index_cast %arg6 : i32 to index
      %c1_37 = arith.constant 1 : index
      %c1_38 = arith.constant 1 : index
      %c0_39 = arith.constant 0 : index
      %56 = vector.load %arg5[%55, %c1_37, %c1_38, %c0_39] : memref<4x16x16x32xbf16, #tpu.memory_space<vmem>>, vector<1x14x14x32xbf16>
      %57 = vector.shape_cast %56 : vector<1x14x14x32xbf16> to vector<14x14x32xbf16>
      %58 = vector.shape_cast %54 : vector<14x14x32xbf16> to vector<1x14x14x32xbf16>
      tpu.vector_store %arg5[%55, %c1_37, %c1_38, %c0_39], %58 {strides = array<i32>} : memref<4x16x16x32xbf16, #tpu.memory_space<vmem>>, vector<1x14x14x32xbf16>,
    }
    %c4_i32_7 = arith.constant 4 : i32
    return
  }
  func.func @transform_0(%arg0: i32) -> (i32, i32, i32) {
    %c0_i32 = arith.constant 0 : i32
    %c0_i32_0 = arith.constant 0 : i32
    %c0_i32_1 = arith.constant 0 : i32
    return %arg0, %c0_i32, %c0_i32_0 : i32, i32, i32
  }
  func.func @transform_1(%arg0: i32) -> (i32, i32, i32) {
    %c0_i32 = arith.constant 0 : i32
    %c0_i32_0 = arith.constant 0 : i32
    %c0_i32_1 = arith.constant 0 : i32
    %c0_i32_2 = arith.constant 0 : i32
    return %c0_i32, %c0_i32_0, %c0_i32_1 : i32, i32, i32
  }
  func.func @transform_2(%arg0: i32) -> (i32, i32) {
    %c0_i32 = arith.constant 0 : i32
    %c0_i32_0 = arith.constant 0 : i32
    %c0_i32_1 = arith.constant 0 : i32
    return %c0_i32, %c0_i32_0 : i32, i32
  }
  func.func @transform_3(%arg0: i32) -> (i32, i32) {
    %c0_i32 = arith.constant 0 : i32
    %c0_i32_0 = arith.constant 0 : i32
    %c0_i32_1 = arith.constant 0 : i32
    return %c0_i32, %c0_i32_0 : i32, i32
  }
  func.func @transform_4(%arg0: i32) -> (i32, i32, i32, i32) {
    %c0_i32 = arith.constant 0 : i32
    %c0_i32_0 = arith.constant 0 : i32
    %c0_i32_1 = arith.constant 0 : i32
    %c0_i32_2 = arith.constant 0 : i32
    return %arg0, %c0_i32, %c0_i32_0, %c0_i32_1 : i32, i32, i32, i32
  }
}

module attributes {stable_mosaic.version = 11 : i64} {
  func.func @conv2_kernel(%arg0: i32, %arg1: memref<4x16x16x32xbf16, #tpu.memory_space<vmem>>, %arg2: memref<288x64xbf16, #tpu.memory_space<vmem>>, %arg3: memref<1x64xf32, #tpu.memory_space<vmem>>, %arg4: memref<1x64xf32, #tpu.memory_space<vmem>>, %arg5: memref<4x7x7x64xbf16, #tpu.memory_space<vmem>>) attributes {dimension_semantics = [#tpu.dimension_semantics<parallel>], iteration_bounds = array<i64: 2>, scalar_prefetch = 0 : i64, scratch_operands = 0 : i64, tpu.core_type = #tpu.core_type<tc>, window_params = [{transform_indices = @transform_0, window_bounds = array<i64: 4, 16, 16, 32>}, {pipeline_mode = #tpu.pipeline_mode<synchronous>, transform_indices = @transform_1, window_bounds = array<i64: 288, 64>}, {pipeline_mode = #tpu.pipeline_mode<synchronous>, transform_indices = @transform_2, window_bounds = array<i64: 1, 64>}, {pipeline_mode = #tpu.pipeline_mode<synchronous>, transform_indices = @transform_3, window_bounds = array<i64: 1, 64>}, {transform_indices = @transform_4, window_bounds = array<i64: 4, 7, 7, 64>}]} {
    %c0 = arith.constant 0 : index
    %c0_0 = arith.constant 0 : index
    %0 = vector.load %arg3[%c0, %c0_0] : memref<1x64xf32, #tpu.memory_space<vmem>>, vector<1x64xf32>
    %c0_1 = arith.constant 0 : index
    %c0_2 = arith.constant 0 : index
    %1 = vector.load %arg4[%c0_1, %c0_2] : memref<1x64xf32, #tpu.memory_space<vmem>>, vector<1x64xf32>
    %c0_3 = arith.constant 0 : index
    %c0_4 = arith.constant 0 : index
    %2 = vector.load %arg2[%c0_3, %c0_4] : memref<288x64xbf16, #tpu.memory_space<vmem>>, vector<288x64xbf16>
    %c0_i32 = arith.constant 0 : i32
    %c4_i32 = arith.constant 4 : i32
    %3 = arith.addi %c0_i32, %c4_i32 : i32
    %c1_i32 = arith.constant 1 : i32
    scf.for %arg6 = %c0_i32 to %3 step %c1_i32  : i32 {
      %4 = arith.index_cast %arg6 : i32 to index
      %c0_6 = arith.constant 0 : index
      %c0_7 = arith.constant 0 : index
      %c0_8 = arith.constant 0 : index
      %5 = vector.load %arg1[%4, %c0_6, %c0_7, %c0_8] : memref<4x16x16x32xbf16, #tpu.memory_space<vmem>>, vector<1x14x14x32xbf16>
      %6 = vector.shape_cast %5 : vector<1x14x14x32xbf16> to vector<14x14x32xbf16>
      %7 = arith.index_cast %arg6 : i32 to index
      %c0_9 = arith.constant 0 : index
      %c1 = arith.constant 1 : index
      %c0_10 = arith.constant 0 : index
      %8 = vector.load %arg1[%7, %c0_9, %c1, %c0_10] : memref<4x16x16x32xbf16, #tpu.memory_space<vmem>>, vector<1x14x14x32xbf16>
      %9 = vector.shape_cast %8 : vector<1x14x14x32xbf16> to vector<14x14x32xbf16>
      %10 = arith.index_cast %arg6 : i32 to index
      %c0_11 = arith.constant 0 : index
      %c2 = arith.constant 2 : index
      %c0_12 = arith.constant 0 : index
      %11 = vector.load %arg1[%10, %c0_11, %c2, %c0_12] : memref<4x16x16x32xbf16, #tpu.memory_space<vmem>>, vector<1x14x14x32xbf16>
      %12 = vector.shape_cast %11 : vector<1x14x14x32xbf16> to vector<14x14x32xbf16>
      %13 = arith.index_cast %arg6 : i32 to index
      %c1_13 = arith.constant 1 : index
      %c0_14 = arith.constant 0 : index
      %c0_15 = arith.constant 0 : index
      %14 = vector.load %arg1[%13, %c1_13, %c0_14, %c0_15] : memref<4x16x16x32xbf16, #tpu.memory_space<vmem>>, vector<1x14x14x32xbf16>
      %15 = vector.shape_cast %14 : vector<1x14x14x32xbf16> to vector<14x14x32xbf16>
      %16 = arith.index_cast %arg6 : i32 to index
      %c1_16 = arith.constant 1 : index
      %c1_17 = arith.constant 1 : index
      %c0_18 = arith.constant 0 : index
      %17 = vector.load %arg1[%16, %c1_16, %c1_17, %c0_18] : memref<4x16x16x32xbf16, #tpu.memory_space<vmem>>, vector<1x14x14x32xbf16>
      %18 = vector.shape_cast %17 : vector<1x14x14x32xbf16> to vector<14x14x32xbf16>
      %19 = arith.index_cast %arg6 : i32 to index
      %c1_19 = arith.constant 1 : index
      %c2_20 = arith.constant 2 : index
      %c0_21 = arith.constant 0 : index
      %20 = vector.load %arg1[%19, %c1_19, %c2_20, %c0_21] : memref<4x16x16x32xbf16, #tpu.memory_space<vmem>>, vector<1x14x14x32xbf16>
      %21 = vector.shape_cast %20 : vector<1x14x14x32xbf16> to vector<14x14x32xbf16>
      %22 = arith.index_cast %arg6 : i32 to index
      %c2_22 = arith.constant 2 : index
      %c0_23 = arith.constant 0 : index
      %c0_24 = arith.constant 0 : index
      %23 = vector.load %arg1[%22, %c2_22, %c0_23, %c0_24] : memref<4x16x16x32xbf16, #tpu.memory_space<vmem>>, vector<1x14x14x32xbf16>
      %24 = vector.shape_cast %23 : vector<1x14x14x32xbf16> to vector<14x14x32xbf16>
      %25 = arith.index_cast %arg6 : i32 to index
      %c2_25 = arith.constant 2 : index
      %c1_26 = arith.constant 1 : index
      %c0_27 = arith.constant 0 : index
      %26 = vector.load %arg1[%25, %c2_25, %c1_26, %c0_27] : memref<4x16x16x32xbf16, #tpu.memory_space<vmem>>, vector<1x14x14x32xbf16>
      %27 = vector.shape_cast %26 : vector<1x14x14x32xbf16> to vector<14x14x32xbf16>
      %28 = arith.index_cast %arg6 : i32 to index
      %c2_28 = arith.constant 2 : index
      %c2_29 = arith.constant 2 : index
      %c0_30 = arith.constant 0 : index
      %29 = vector.load %arg1[%28, %c2_28, %c2_29, %c0_30] : memref<4x16x16x32xbf16, #tpu.memory_space<vmem>>, vector<1x14x14x32xbf16>
      %30 = vector.shape_cast %29 : vector<1x14x14x32xbf16> to vector<14x14x32xbf16>
      %31 = tpu.concatenate %6, %9, %12, %15, %18, %21, %24, %27, %30 in 2 : vector<14x14x32xbf16>, vector<14x14x32xbf16>, vector<14x14x32xbf16>, vector<14x14x32xbf16>, vector<14x14x32xbf16>, vector<14x14x32xbf16>, vector<14x14x32xbf16>, vector<14x14x32xbf16>, vector<14x14x32xbf16> -> vector<14x14x288xbf16>
      %32 = vector.shape_cast %31 : vector<14x14x288xbf16> to vector<196x288xbf16>
      %cst = arith.constant dense<0.000000e+00> : vector<196x64xf32>
      %33 = tpu.matmul %32, %2, %cst {dimension_numbers = #tpu.dot_dimension_numbers<[1], [0], [0], [1], [0, 0, 1, 1], [], []>} : vector<196x288xbf16>, vector<288x64xbf16>, vector<196x64xf32> -> vector<196x64xf32>
      %34 = vector.broadcast %0 : vector<1x64xf32> to vector<196x64xf32>
      %35 = arith.mulf %33, %34 : vector<196x64xf32>
      %36 = vector.broadcast %1 : vector<1x64xf32> to vector<196x64xf32>
      %37 = arith.addf %35, %36 : vector<196x64xf32>
      %cst_31 = arith.constant 0.000000e+00 : f32
      %38 = vector.broadcast %cst_31 : f32 to vector<196x64xf32>
      %39 = arith.maximumf %37, %38 : vector<196x64xf32>
      %40 = vector.shape_cast %39 : vector<196x64xf32> to vector<14x14x64xf32>
      %41 = vector.shape_cast %40 : vector<14x14x64xf32> to vector<14x7x2x64xf32>
      %cst_32 = arith.constant dense<0xFF800000> : vector<14x7x64xf32>
      %42 = vector.multi_reduction <maximumf>, %41, %cst_32 [2] : vector<14x7x2x64xf32> to vector<14x7x64xf32>
      %43 = vector.shape_cast %42 : vector<14x7x64xf32> to vector<7x2x7x64xf32>
      %cst_33 = arith.constant dense<0xFF800000> : vector<7x7x64xf32>
      %44 = vector.multi_reduction <maximumf>, %43, %cst_33 [1] : vector<7x2x7x64xf32> to vector<7x7x64xf32>
      %45 = arith.truncf %44 : vector<7x7x64xf32> to vector<7x7x64xbf16>
      %46 = arith.index_cast %arg6 : i32 to index
      %c0_34 = arith.constant 0 : index
      %c0_35 = arith.constant 0 : index
      %c0_36 = arith.constant 0 : index
      %47 = vector.load %arg5[%46, %c0_34, %c0_35, %c0_36] : memref<4x7x7x64xbf16, #tpu.memory_space<vmem>>, vector<1x7x7x64xbf16>
      %48 = vector.shape_cast %47 : vector<1x7x7x64xbf16> to vector<7x7x64xbf16>
      %49 = vector.shape_cast %45 : vector<7x7x64xbf16> to vector<1x7x7x64xbf16>
      tpu.vector_store %arg5[%46, %c0_34, %c0_35, %c0_36], %49 {strides = array<i32>} : memref<4x7x7x64xbf16, #tpu.memory_space<vmem>>, vector<1x7x7x64xbf16>,
    }
    %c4_i32_5 = arith.constant 4 : i32
    return
  }
  func.func @transform_0(%arg0: i32) -> (i32, i32, i32, i32) {
    %c0_i32 = arith.constant 0 : i32
    %c0_i32_0 = arith.constant 0 : i32
    %c0_i32_1 = arith.constant 0 : i32
    %c0_i32_2 = arith.constant 0 : i32
    return %arg0, %c0_i32, %c0_i32_0, %c0_i32_1 : i32, i32, i32, i32
  }
  func.func @transform_1(%arg0: i32) -> (i32, i32) {
    %c0_i32 = arith.constant 0 : i32
    %c0_i32_0 = arith.constant 0 : i32
    %c0_i32_1 = arith.constant 0 : i32
    return %c0_i32, %c0_i32_0 : i32, i32
  }
  func.func @transform_2(%arg0: i32) -> (i32, i32) {
    %c0_i32 = arith.constant 0 : i32
    %c0_i32_0 = arith.constant 0 : i32
    %c0_i32_1 = arith.constant 0 : i32
    return %c0_i32, %c0_i32_0 : i32, i32
  }
  func.func @transform_3(%arg0: i32) -> (i32, i32) {
    %c0_i32 = arith.constant 0 : i32
    %c0_i32_0 = arith.constant 0 : i32
    %c0_i32_1 = arith.constant 0 : i32
    return %c0_i32, %c0_i32_0 : i32, i32
  }
  func.func @transform_4(%arg0: i32) -> (i32, i32, i32, i32) {
    %c0_i32 = arith.constant 0 : i32
    %c0_i32_0 = arith.constant 0 : i32
    %c0_i32_1 = arith.constant 0 : i32
    %c0_i32_2 = arith.constant 0 : i32
    return %arg0, %c0_i32, %c0_i32_0, %c0_i32_1 : i32, i32, i32, i32
  }
}

module attributes {stable_mosaic.version = 11 : i64} {
  func.func @dense_kernel(%arg0: i32, %arg1: memref<8x3136xbf16, #tpu.memory_space<vmem>>, %arg2: memref<3136x64xbf16, #tpu.memory_space<vmem>>, %arg3: memref<1x64xf32, #tpu.memory_space<vmem>>, %arg4: memref<64x10xbf16, #tpu.memory_space<vmem>>, %arg5: memref<1x10xf32, #tpu.memory_space<vmem>>, %arg6: memref<8x10xf32, #tpu.memory_space<vmem>>) attributes {dimension_semantics = [#tpu.dimension_semantics<parallel>], iteration_bounds = array<i64: 1>, scalar_prefetch = 0 : i64, scratch_operands = 0 : i64, tpu.core_type = #tpu.core_type<tc>, window_params = [{transform_indices = @transform_0, window_bounds = array<i64: 8, 3136>}, {pipeline_mode = #tpu.pipeline_mode<synchronous>, transform_indices = @transform_1, window_bounds = array<i64: 3136, 64>}, {pipeline_mode = #tpu.pipeline_mode<synchronous>, transform_indices = @transform_2, window_bounds = array<i64: 1, 64>}, {pipeline_mode = #tpu.pipeline_mode<synchronous>, transform_indices = @transform_3, window_bounds = array<i64: 64, 10>}, {pipeline_mode = #tpu.pipeline_mode<synchronous>, transform_indices = @transform_4, window_bounds = array<i64: 1, 10>}, {transform_indices = @transform_5, window_bounds = array<i64: 8, 10>}]} {
    %c0 = arith.constant 0 : index
    %c0_0 = arith.constant 0 : index
    %0 = vector.load %arg1[%c0, %c0_0] : memref<8x3136xbf16, #tpu.memory_space<vmem>>, vector<8x3136xbf16>
    %c0_1 = arith.constant 0 : index
    %c0_2 = arith.constant 0 : index
    %1 = vector.load %arg2[%c0_1, %c0_2] : memref<3136x64xbf16, #tpu.memory_space<vmem>>, vector<3136x64xbf16>
    %cst = arith.constant dense<0.000000e+00> : vector<8x64xf32>
    %2 = tpu.matmul %0, %1, %cst {dimension_numbers = #tpu.dot_dimension_numbers<[1], [0], [0], [1], [0, 0, 1, 1], [], []>} : vector<8x3136xbf16>, vector<3136x64xbf16>, vector<8x64xf32> -> vector<8x64xf32>
    %c0_3 = arith.constant 0 : index
    %c0_4 = arith.constant 0 : index
    %3 = vector.load %arg3[%c0_3, %c0_4] : memref<1x64xf32, #tpu.memory_space<vmem>>, vector<1x64xf32>
    %4 = vector.broadcast %3 : vector<1x64xf32> to vector<8x64xf32>
    %5 = arith.addf %2, %4 : vector<8x64xf32>
    %6 = arith.truncf %5 : vector<8x64xf32> to vector<8x64xbf16>
    %c0_5 = arith.constant 0 : index
    %c0_6 = arith.constant 0 : index
    %7 = vector.load %arg4[%c0_5, %c0_6] : memref<64x10xbf16, #tpu.memory_space<vmem>>, vector<64x10xbf16>
    %cst_7 = arith.constant dense<0.000000e+00> : vector<8x10xf32>
    %8 = tpu.matmul %6, %7, %cst_7 {dimension_numbers = #tpu.dot_dimension_numbers<[1], [0], [0], [1], [0, 0, 1, 1], [], []>} : vector<8x64xbf16>, vector<64x10xbf16>, vector<8x10xf32> -> vector<8x10xf32>
    %c0_8 = arith.constant 0 : index
    %c0_9 = arith.constant 0 : index
    %9 = vector.load %arg5[%c0_8, %c0_9] : memref<1x10xf32, #tpu.memory_space<vmem>>, vector<1x10xf32>
    %10 = vector.broadcast %9 : vector<1x10xf32> to vector<8x10xf32>
    %11 = arith.addf %8, %10 : vector<8x10xf32>
    %c0_10 = arith.constant 0 : index
    %c0_11 = arith.constant 0 : index
    %12 = vector.load %arg6[%c0_10, %c0_11] : memref<8x10xf32, #tpu.memory_space<vmem>>, vector<8x10xf32>
    tpu.vector_store %arg6[%c0_10, %c0_11], %11 {strides = array<i32>} : memref<8x10xf32, #tpu.memory_space<vmem>>, vector<8x10xf32>,
    return
  }
  func.func @transform_0(%arg0: i32) -> (i32, i32) {
    %c0_i32 = arith.constant 0 : i32
    %c0_i32_0 = arith.constant 0 : i32
    return %arg0, %c0_i32 : i32, i32
  }
  func.func @transform_1(%arg0: i32) -> (i32, i32) {
    %c0_i32 = arith.constant 0 : i32
    %c0_i32_0 = arith.constant 0 : i32
    %c0_i32_1 = arith.constant 0 : i32
    return %c0_i32, %c0_i32_0 : i32, i32
  }
  func.func @transform_2(%arg0: i32) -> (i32, i32) {
    %c0_i32 = arith.constant 0 : i32
    %c0_i32_0 = arith.constant 0 : i32
    %c0_i32_1 = arith.constant 0 : i32
    return %c0_i32, %c0_i32_0 : i32, i32
  }
  func.func @transform_3(%arg0: i32) -> (i32, i32) {
    %c0_i32 = arith.constant 0 : i32
    %c0_i32_0 = arith.constant 0 : i32
    %c0_i32_1 = arith.constant 0 : i32
    return %c0_i32, %c0_i32_0 : i32, i32
  }
  func.func @transform_4(%arg0: i32) -> (i32, i32) {
    %c0_i32 = arith.constant 0 : i32
    %c0_i32_0 = arith.constant 0 : i32
    %c0_i32_1 = arith.constant 0 : i32
    return %c0_i32, %c0_i32_0 : i32, i32
  }
  func.func @transform_5(%arg0: i32) -> (i32, i32) {
    %c0_i32 = arith.constant 0 : i32
    %c0_i32_0 = arith.constant 0 : i32
    return %arg0, %c0_i32 : i32, i32
  }
}

</mosaic_0001>

<llo_original>
// kernel: moindrot_cnn_forward.5
$region0: #{moindrot_cnn_forward.5}
  #allocation0 [shape = 'u32[]', space=smem, size = 0x4, offset = 0x4, fixed_abs, tag = 'smem constant byte address 0x4 - core index']
  #allocation1 [shape = 'u32[72,128]{1,0:T(1,128)}', space=vmem, size = 0x9000, scoped, tag = 'internal scratch']
  %s0 = inlined_call_operand.vmem [shape: bf16[8,3136], index: 0, kind: input, shape index: {}]
  %s1 = inlined_call_operand.vmem [shape: bf16[3136,64], index: 1, kind: input, shape index: {}]
  %s2 = inlined_call_operand.vmem [shape: f32[1,64], index: 2, kind: input, shape index: {}]
  %s3 = inlined_call_operand.vmem [shape: bf16[64,10], index: 3, kind: input, shape index: {}]
  %s4 = inlined_call_operand.vmem [shape: f32[1,10], index: 4, kind: input, shape index: {}]
  %s5 = inlined_call_operand.vmem [shape: f32[8,10], index: 5, kind: output, shape index: {}]
  %s6 = sld [smem:[#allocation0]]
  $region30: #{moindrot_cnn_forward.5} parent=0
    _
  %s8 = ssub.s32 1, %s6
  %s9 = scalar_select 0, %s8, %s6
  // Predicated region
  $region2: #{moindrot_cnn_forward.5} parent=0 // pred_check
    _
  $region3: #{moindrot_cnn_forward.5} parent=0 // pred_check_branch
    %11 = sbr.rel (0) target = $region5
  $region4: #{moindrot_cnn_forward.5} parent=0 // pred_region
    _
  $region5: #{moindrot_cnn_forward.5} parent=0 // pred_fallthru
    _
  // Predicated region
  $region6: #{moindrot_cnn_forward.5} parent=0 // pred_check
    _
  $region7: #{moindrot_cnn_forward.5} parent=0 // pred_check_branch
    %13 = sbr.rel (0) target = $region9
  $region8: #{moindrot_cnn_forward.5} parent=0 // pred_region
    _
  $region9: #{moindrot_cnn_forward.5} parent=0 // pred_fallthru
    _
  // Predicated region
  $region10: #{moindrot_cnn_forward.5} parent=0 // pred_check
    _
  $region11: #{moindrot_cnn_forward.5} parent=0 // pred_check_branch
    %15 = sbr.rel (0) target = $region13
  $region12: #{moindrot_cnn_forward.5} parent=0 // pred_region
    _
  $region13: #{moindrot_cnn_forward.5} parent=0 // pred_fallthru
    _
  // Predicated region
  $region14: #{moindrot_cnn_forward.5} parent=0 // pred_check
    _
  $region15: #{moindrot_cnn_forward.5} parent=0 // pred_check_branch
    %17 = sbr.rel (0) target = $region17
  $region16: #{moindrot_cnn_forward.5} parent=0 // pred_region
    _
  $region17: #{moindrot_cnn_forward.5} parent=0 // pred_fallthru
    _
  // Predicated region
  $region18: #{moindrot_cnn_forward.5} parent=0 // pred_check
    _
  $region19: #{moindrot_cnn_forward.5} parent=0 // pred_check_branch
    %19 = sbr.rel (0) target = $region21
  $region20: #{moindrot_cnn_forward.5} parent=0 // pred_region
    _
  $region21: #{moindrot_cnn_forward.5} parent=0 // pred_fallthru
    _
  %v21 = vld [vmem:[%s0] sm:$0xff]
  %v22 = vld [vmem:[%s0 + $0x8] sm:$0xff]
  %v23 = vld [vmem:[%s0 + $0x10] sm:$0xff]
  %v24 = vld [vmem:[%s0 + $0x18] sm:$0xff]
  %v25 = vld [vmem:[%s0 + $0x20] sm:$0xff]
  %v26 = vld [vmem:[%s0 + $0x28] sm:$0xff]
  %v27 = vld [vmem:[%s0 + $0x30] sm:$0xff]
  %v28 = vld [vmem:[%s0 + $0x38] sm:$0xff]
  %v29 = vld [vmem:[%s0 + $0x40] sm:$0xff]
  %v30 = vld [vmem:[%s0 + $0x48] sm:$0xff]
  %v31 = vld [vmem:[%s0 + $0x50] sm:$0xff]
  %v32 = vld [vmem:[%s0 + $0x58] sm:$0xff]
  %v33 = vld [vmem:[%s0 + $0x60] sm:$0xf]
  %v34 = vld [vmem:[%s1] sm:$0xf]
  %v35 = vld [vmem:[%s1 + $0x4] sm:$0xf]
  %v36 = vld [vmem:[%s1 + $0x8] sm:$0xf]
  %v37 = vld [vmem:[%s1 + $0xc] sm:$0xf]
  %v38 = vld [vmem:[%s1 + $0x10] sm:$0xf]
  %v39 = vld [vmem:[%s1 + $0x14] sm:$0xf]
  %v40 = vld [vmem:[%s1 + $0x18] sm:$0xf]
  %v41 = vld [vmem:[%s1 + $0x1c] sm:$0xf]
  %v42 = vld [vmem:[%s1 + $0x20] sm:$0xf]
  %v43 = vld [vmem:[%s1 + $0x24] sm:$0xf]
  %v44 = vld [vmem:[%s1 + $0x28] sm:$0xf]
  %v45 = vld [vmem:[%s1 + $0x2c] sm:$0xf]
  %v46 = vld [vmem:[%s1 + $0x30] sm:$0xf]
  %v47 = vld [vmem:[%s1 + $0x34] sm:$0xf]
  %v48 = vld [vmem:[%s1 + $0x38] sm:$0xf]
  %v49 = vld [vmem:[%s1 + $0x3c] sm:$0xf]
  %v50 = vld [vmem:[%s1 + $0x40] sm:$0xf]
  %v51 = vld [vmem:[%s1 + $0x44] sm:$0xf]
  %v52 = vld [vmem:[%s1 + $0x48] sm:$0xf]
  %v53 = vld [vmem:[%s1 + $0x4c] sm:$0xf]
  %v54 = vld [vmem:[%s1 + $0x50] sm:$0xf]
  %v55 = vld [vmem:[%s1 + $0x54] sm:$0xf]
  %v56 = vld [vmem:[%s1 + $0x58] sm:$0xf]
  %v57 = vld [vmem:[%s1 + $0x5c] sm:$0xf]
  %v58 = vld [vmem:[%s1 + $0x60] sm:$0xf]
  %v59 = vld [vmem:[%s1 + $0x64] sm:$0xf]
  %v60 = vld [vmem:[%s1 + $0x68] sm:$0xf]
  %v61 = vld [vmem:[%s1 + $0x6c] sm:$0xf]
  %v62 = vld [vmem:[%s1 + $0x70] sm:$0xf]
  %v63 = vld [vmem:[%s1 + $0x74] sm:$0xf]
  %v64 = vld [vmem:[%s1 + $0x78] sm:$0xf]
  %v65 = vld [vmem:[%s1 + $0x7c] sm:$0xf]
  %v66 = vld [vmem:[%s1 + $0x80] sm:$0xf]
  %v67 = vld [vmem:[%s1 + $0x84] sm:$0xf]
  %v68 = vld [vmem:[%s1 + $0x88] sm:$0xf]
  %v69 = vld [vmem:[%s1 + $0x8c] sm:$0xf]
  %v70 = vld [vmem:[%s1 + $0x90] sm:$0xf]
  %v71 = vld [vmem:[%s1 + $0x94] sm:$0xf]
  %v72 = vld [vmem:[%s1 + $0x98] sm:$0xf]
  %v73 = vld [vmem:[%s1 + $0x9c] sm:$0xf]
  %v74 = vld [vmem:[%s1 + $0xa0] sm:$0xf]
  %v75 = vld [vmem:[%s1 + $0xa4] sm:$0xf]
  %v76 = vld [vmem:[%s1 + $0xa8] sm:$0xf]
  %v77 = vld [vmem:[%s1 + $0xac] sm:$0xf]
  %v78 = vld [vmem:[%s1 + $0xb0] sm:$0xf]
  %v79 = vld [vmem:[%s1 + $0xb4] sm:$0xf]
  %v80 = vld [vmem:[%s1 + $0xb8] sm:$0xf]
  %v81 = vld [vmem:[%s1 + $0xbc] sm:$0xf]
  %v82 = vld [vmem:[%s1 + $0xc0] sm:$0xf]
  %v83 = vld [vmem:[%s1 + $0xc4] sm:$0xf]
  %v84 = vld [vmem:[%s1 + $0xc8] sm:$0xf]
  %v85 = vld [vmem:[%s1 + $0xcc] sm:$0xf]
  %v86 = vld [vmem:[%s1 + $0xd0] sm:$0xf]
  %v87 = vld [vmem:[%s1 + $0xd4] sm:$0xf]
  %v88 = vld [vmem:[%s1 + $0xd8] sm:$0xf]
  %v89 = vld [vmem:[%s1 + $0xdc] sm:$0xf]
  %v90 = vld [vmem:[%s1 + $0xe0] sm:$0xf]
  %v91 = vld [vmem:[%s1 + $0xe4] sm:$0xf]
  %v92 = vld [vmem:[%s1 + $0xe8] sm:$0xf]
  %v93 = vld [vmem:[%s1 + $0xec] sm:$0xf]
  %v94 = vld [vmem:[%s1 + $0xf0] sm:$0xf]
  %v95 = vld [vmem:[%s1 + $0xf4] sm:$0xf]
  %v96 = vld [vmem:[%s1 + $0xf8] sm:$0xf]
  %v97 = vld [vmem:[%s1 + $0xfc] sm:$0xf]
  %v98 = vld [vmem:[%s1 + $0x100] sm:$0xf]
  %v99 = vld [vmem:[%s1 + $0x104] sm:$0xf]
  %v100 = vld [vmem:[%s1 + $0x108] sm:$0xf]
  %v101 = vld [vmem:[%s1 + $0x10c] sm:$0xf]
  %v102 = vld [vmem:[%s1 + $0x110] sm:$0xf]
  %v103 = vld [vmem:[%s1 + $0x114] sm:$0xf]
  %v104 = vld [vmem:[%s1 + $0x118] sm:$0xf]
  %v105 = vld [vmem:[%s1 + $0x11c] sm:$0xf]
  %v106 = vld [vmem:[%s1 + $0x120] sm:$0xf]
  %v107 = vld [vmem:[%s1 + $0x124] sm:$0xf]
  %v108 = vld [vmem:[%s1 + $0x128] sm:$0xf]
  %v109 = vld [vmem:[%s1 + $0x12c] sm:$0xf]
  %v110 = vld [vmem:[%s1 + $0x130] sm:$0xf]
  %v111 = vld [vmem:[%s1 + $0x134] sm:$0xf]
  %v112 = vld [vmem:[%s1 + $0x138] sm:$0xf]
  %v113 = vld [vmem:[%s1 + $0x13c] sm:$0xf]
  %v114 = vld [vmem:[%s1 + $0x140] sm:$0xf]
  %v115 = vld [vmem:[%s1 + $0x144] sm:$0xf]
  %v116 = vld [vmem:[%s1 + $0x148] sm:$0xf]
  %v117 = vld [vmem:[%s1 + $0x14c] sm:$0xf]
  %v118 = vld [vmem:[%s1 + $0x150] sm:$0xf]
  %v119 = vld [vmem:[%s1 + $0x154] sm:$0xf]
  %v120 = vld [vmem:[%s1 + $0x158] sm:$0xf]
  %v121 = vld [vmem:[%s1 + $0x15c] sm:$0xf]
  %v122 = vld [vmem:[%s1 + $0x160] sm:$0xf]
  %v123 = vld [vmem:[%s1 + $0x164] sm:$0xf]
  %v124 = vld [vmem:[%s1 + $0x168] sm:$0xf]
  %v125 = vld [vmem:[%s1 + $0x16c] sm:$0xf]
  %v126 = vld [vmem:[%s1 + $0x170] sm:$0xf]
  %v127 = vld [vmem:[%s1 + $0x174] sm:$0xf]
  %v128 = vld [vmem:[%s1 + $0x178] sm:$0xf]
  %v129 = vld [vmem:[%s1 + $0x17c] sm:$0xf]
  %v130 = vld [vmem:[%s1 + $0x180] sm:$0xf]
  %v131 = vld [vmem:[%s1 + $0x184] sm:$0xf]
  %v132 = vld [vmem:[%s1 + $0x188] sm:$0xf]
  %v133 = vld [vmem:[%s1 + $0x18c] sm:$0xf]
  %v134 = vld [vmem:[%s1 + $0x190] sm:$0xf]
  %v135 = vld [vmem:[%s1 + $0x194] sm:$0xf]
  %v136 = vld [vmem:[%s1 + $0x198] sm:$0xf]
  %v137 = vld [vmem:[%s1 + $0x19c] sm:$0xf]
  %v138 = vld [vmem:[%s1 + $0x1a0] sm:$0xf]
  %v139 = vld [vmem:[%s1 + $0x1a4] sm:$0xf]
  %v140 = vld [vmem:[%s1 + $0x1a8] sm:$0xf]
  %v141 = vld [vmem:[%s1 + $0x1ac] sm:$0xf]
  %v142 = vld [vmem:[%s1 + $0x1b0] sm:$0xf]
  %v143 = vld [vmem:[%s1 + $0x1b4] sm:$0xf]
  %v144 = vld [vmem:[%s1 + $0x1b8] sm:$0xf]
  %v145 = vld [vmem:[%s1 + $0x1bc] sm:$0xf]
  %v146 = vld [vmem:[%s1 + $0x1c0] sm:$0xf]
  %v147 = vld [vmem:[%s1 + $0x1c4] sm:$0xf]
  %v148 = vld [vmem:[%s1 + $0x1c8] sm:$0xf]
  %v149 = vld [vmem:[%s1 + $0x1cc] sm:$0xf]
  %v150 = vld [vmem:[%s1 + $0x1d0] sm:$0xf]
  %v151 = vld [vmem:[%s1 + $0x1d4] sm:$0xf]
  %v152 = vld [vmem:[%s1 + $0x1d8] sm:$0xf]
  %v153 = vld [vmem:[%s1 + $0x1dc] sm:$0xf]
  %v154 = vld [vmem:[%s1 + $0x1e0] sm:$0xf]
  %v155 = vld [vmem:[%s1 + $0x1e4] sm:$0xf]
  %v156 = vld [vmem:[%s1 + $0x1e8] sm:$0xf]
  %v157 = vld [vmem:[%s1 + $0x1ec] sm:$0xf]
  %v158 = vld [vmem:[%s1 + $0x1f0] sm:$0xf]
  %v159 = vld [vmem:[%s1 + $0x1f4] sm:$0xf]
  %v160 = vld [vmem:[%s1 + $0x1f8] sm:$0xf]
  %v161 = vld [vmem:[%s1 + $0x1fc] sm:$0xf]
  %v162 = vld [vmem:[%s1 + $0x200] sm:$0xf]
  %v163 = vld [vmem:[%s1 + $0x204] sm:$0xf]
  %v164 = vld [vmem:[%s1 + $0x208] sm:$0xf]
  %v165 = vld [vmem:[%s1 + $0x20c] sm:$0xf]
  %v166 = vld [vmem:[%s1 + $0x210] sm:$0xf]
  %v167 = vld [vmem:[%s1 + $0x214] sm:$0xf]
  %v168 = vld [vmem:[%s1 + $0x218] sm:$0xf]
  %v169 = vld [vmem:[%s1 + $0x21c] sm:$0xf]
  %v170 = vld [vmem:[%s1 + $0x220] sm:$0xf]
  %v171 = vld [vmem:[%s1 + $0x224] sm:$0xf]
  %v172 = vld [vmem:[%s1 + $0x228] sm:$0xf]
  %v173 = vld [vmem:[%s1 + $0x22c] sm:$0xf]
  %v174 = vld [vmem:[%s1 + $0x230] sm:$0xf]
  %v175 = vld [vmem:[%s1 + $0x234] sm:$0xf]
  %v176 = vld [vmem:[%s1 + $0x238] sm:$0xf]
  %v177 = vld [vmem:[%s1 + $0x23c] sm:$0xf]
  %v178 = vld [vmem:[%s1 + $0x240] sm:$0xf]
  %v179 = vld [vmem:[%s1 + $0x244] sm:$0xf]
  %v180 = vld [vmem:[%s1 + $0x248] sm:$0xf]
  %v181 = vld [vmem:[%s1 + $0x24c] sm:$0xf]
  %v182 = vld [vmem:[%s1 + $0x250] sm:$0xf]
  %v183 = vld [vmem:[%s1 + $0x254] sm:$0xf]
  %v184 = vld [vmem:[%s1 + $0x258] sm:$0xf]
  %v185 = vld [vmem:[%s1 + $0x25c] sm:$0xf]
  %v186 = vld [vmem:[%s1 + $0x260] sm:$0xf]
  %v187 = vld [vmem:[%s1 + $0x264] sm:$0xf]
  %v188 = vld [vmem:[%s1 + $0x268] sm:$0xf]
  %v189 = vld [vmem:[%s1 + $0x26c] sm:$0xf]
  %v190 = vld [vmem:[%s1 + $0x270] sm:$0xf]
  %v191 = vld [vmem:[%s1 + $0x274] sm:$0xf]
  %v192 = vld [vmem:[%s1 + $0x278] sm:$0xf]
  %v193 = vld [vmem:[%s1 + $0x27c] sm:$0xf]
  %v194 = vld [vmem:[%s1 + $0x280] sm:$0xf]
  %v195 = vld [vmem:[%s1 + $0x284] sm:$0xf]
  %v196 = vld [vmem:[%s1 + $0x288] sm:$0xf]
  %v197 = vld [vmem:[%s1 + $0x28c] sm:$0xf]
  %v198 = vld [vmem:[%s1 + $0x290] sm:$0xf]
  %v199 = vld [vmem:[%s1 + $0x294] sm:$0xf]
  %v200 = vld [vmem:[%s1 + $0x298] sm:$0xf]
  %v201 = vld [vmem:[%s1 + $0x29c] sm:$0xf]
  %v202 = vld [vmem:[%s1 + $0x2a0] sm:$0xf]
  %v203 = vld [vmem:[%s1 + $0x2a4] sm:$0xf]
  %v204 = vld [vmem:[%s1 + $0x2a8] sm:$0xf]
  %v205 = vld [vmem:[%s1 + $0x2ac] sm:$0xf]
  %v206 = vld [vmem:[%s1 + $0x2b0] sm:$0xf]
  %v207 = vld [vmem:[%s1 + $0x2b4] sm:$0xf]
  %v208 = vld [vmem:[%s1 + $0x2b8] sm:$0xf]
  %v209 = vld [vmem:[%s1 + $0x2bc] sm:$0xf]
  %v210 = vld [vmem:[%s1 + $0x2c0] sm:$0xf]
  %v211 = vld [vmem:[%s1 + $0x2c4] sm:$0xf]
  %v212 = vld [vmem:[%s1 + $0x2c8] sm:$0xf]
  %v213 = vld [vmem:[%s1 + $0x2cc] sm:$0xf]
  %v214 = vld [vmem:[%s1 + $0x2d0] sm:$0xf]
  %v215 = vld [vmem:[%s1 + $0x2d4] sm:$0xf]
  %v216 = vld [vmem:[%s1 + $0x2d8] sm:$0xf]
  %v217 = vld [vmem:[%s1 + $0x2dc] sm:$0xf]
  %v218 = vld [vmem:[%s1 + $0x2e0] sm:$0xf]
  %v219 = vld [vmem:[%s1 + $0x2e4] sm:$0xf]
  %v220 = vld [vmem:[%s1 + $0x2e8] sm:$0xf]
  %v221 = vld [vmem:[%s1 + $0x2ec] sm:$0xf]
  %v222 = vld [vmem:[%s1 + $0x2f0] sm:$0xf]
  %v223 = vld [vmem:[%s1 + $0x2f4] sm:$0xf]
  %v224 = vld [vmem:[%s1 + $0x2f8] sm:$0xf]
  %v225 = vld [vmem:[%s1 + $0x2fc] sm:$0xf]
  %v226 = vld [vmem:[%s1 + $0x300] sm:$0xf]
  %v227 = vld [vmem:[%s1 + $0x304] sm:$0xf]
  %v228 = vld [vmem:[%s1 + $0x308] sm:$0xf]
  %v229 = vld [vmem:[%s1 + $0x30c] sm:$0xf]
  %v230 = vld [vmem:[%s1 + $0x310] sm:$0xf]
  %v231 = vld [vmem:[%s1 + $0x314] sm:$0xf]
  %v232 = vld [vmem:[%s1 + $0x318] sm:$0xf]
  %v233 = vld [vmem:[%s1 + $0x31c] sm:$0xf]
  %v234 = vld [vmem:[%s1 + $0x320] sm:$0xf]
  %v235 = vld [vmem:[%s1 + $0x324] sm:$0xf]
  %v236 = vld [vmem:[%s1 + $0x328] sm:$0xf]
  %v237 = vld [vmem:[%s1 + $0x32c] sm:$0xf]
  %v238 = vld [vmem:[%s1 + $0x330] sm:$0xf]
  %v239 = vld [vmem:[%s1 + $0x334] sm:$0xf]
  %v240 = vld [vmem:[%s1 + $0x338] sm:$0xf]
  %v241 = vld [vmem:[%s1 + $0x33c] sm:$0xf]
  %v242 = vld [vmem:[%s1 + $0x340] sm:$0xf]
  %v243 = vld [vmem:[%s1 + $0x344] sm:$0xf]
  %v244 = vld [vmem:[%s1 + $0x348] sm:$0xf]
  %v245 = vld [vmem:[%s1 + $0x34c] sm:$0xf]
  %v246 = vld [vmem:[%s1 + $0x350] sm:$0xf]
  %v247 = vld [vmem:[%s1 + $0x354] sm:$0xf]
  %v248 = vld [vmem:[%s1 + $0x358] sm:$0xf]
  %v249 = vld [vmem:[%s1 + $0x35c] sm:$0xf]
  %v250 = vld [vmem:[%s1 + $0x360] sm:$0xf]
  %v251 = vld [vmem:[%s1 + $0x364] sm:$0xf]
  %v252 = vld [vmem:[%s1 + $0x368] sm:$0xf]
  %v253 = vld [vmem:[%s1 + $0x36c] sm:$0xf]
  %v254 = vld [vmem:[%s1 + $0x370] sm:$0xf]
  %v255 = vld [vmem:[%s1 + $0x374] sm:$0xf]
  %v256 = vld [vmem:[%s1 + $0x378] sm:$0xf]
  %v257 = vld [vmem:[%s1 + $0x37c] sm:$0xf]
  %v258 = vld [vmem:[%s1 + $0x380] sm:$0xf]
  %v259 = vld [vmem:[%s1 + $0x384] sm:$0xf]
  %v260 = vld [vmem:[%s1 + $0x388] sm:$0xf]
  %v261 = vld [vmem:[%s1 + $0x38c] sm:$0xf]
  %v262 = vld [vmem:[%s1 + $0x390] sm:$0xf]
  %v263 = vld [vmem:[%s1 + $0x394] sm:$0xf]
  %v264 = vld [vmem:[%s1 + $0x398] sm:$0xf]
  %v265 = vld [vmem:[%s1 + $0x39c] sm:$0xf]
  %v266 = vld [vmem:[%s1 + $0x3a0] sm:$0xf]
  %v267 = vld [vmem:[%s1 + $0x3a4] sm:$0xf]
  %v268 = vld [vmem:[%s1 + $0x3a8] sm:$0xf]
  %v269 = vld [vmem:[%s1 + $0x3ac] sm:$0xf]
  %v270 = vld [vmem:[%s1 + $0x3b0] sm:$0xf]
  %v271 = vld [vmem:[%s1 + $0x3b4] sm:$0xf]
  %v272 = vld [vmem:[%s1 + $0x3b8] sm:$0xf]
  %v273 = vld [vmem:[%s1 + $0x3bc] sm:$0xf]
  %v274 = vld [vmem:[%s1 + $0x3c0] sm:$0xf]
  %v275 = vld [vmem:[%s1 + $0x3c4] sm:$0xf]
  %v276 = vld [vmem:[%s1 + $0x3c8] sm:$0xf]
  %v277 = vld [vmem:[%s1 + $0x3cc] sm:$0xf]
  %v278 = vld [vmem:[%s1 + $0x3d0] sm:$0xf]
  %v279 = vld [vmem:[%s1 + $0x3d4] sm:$0xf]
  %v280 = vld [vmem:[%s1 + $0x3d8] sm:$0xf]
  %v281 = vld [vmem:[%s1 + $0x3dc] sm:$0xf]
  %v282 = vld [vmem:[%s1 + $0x3e0] sm:$0xf]
  %v283 = vld [vmem:[%s1 + $0x3e4] sm:$0xf]
  %v284 = vld [vmem:[%s1 + $0x3e8] sm:$0xf]
  %v285 = vld [vmem:[%s1 + $0x3ec] sm:$0xf]
  %v286 = vld [vmem:[%s1 + $0x3f0] sm:$0xf]
  %v287 = vld [vmem:[%s1 + $0x3f4] sm:$0xf]
  %v288 = vld [vmem:[%s1 + $0x3f8] sm:$0xf]
  %v289 = vld [vmem:[%s1 + $0x3fc] sm:$0xf]
  %v290 = vld [vmem:[%s1 + $0x400] sm:$0xf]
  %v291 = vld [vmem:[%s1 + $0x404] sm:$0xf]
  %v292 = vld [vmem:[%s1 + $0x408] sm:$0xf]
  %v293 = vld [vmem:[%s1 + $0x40c] sm:$0xf]
  %v294 = vld [vmem:[%s1 + $0x410] sm:$0xf]
  %v295 = vld [vmem:[%s1 + $0x414] sm:$0xf]
  %v296 = vld [vmem:[%s1 + $0x418] sm:$0xf]
  %v297 = vld [vmem:[%s1 + $0x41c] sm:$0xf]
  %v298 = vld [vmem:[%s1 + $0x420] sm:$0xf]
  %v299 = vld [vmem:[%s1 + $0x424] sm:$0xf]
  %v300 = vld [vmem:[%s1 + $0x428] sm:$0xf]
  %v301 = vld [vmem:[%s1 + $0x42c] sm:$0xf]
  %v302 = vld [vmem:[%s1 + $0x430] sm:$0xf]
  %v303 = vld [vmem:[%s1 + $0x434] sm:$0xf]
  %v304 = vld [vmem:[%s1 + $0x438] sm:$0xf]
  %v305 = vld [vmem:[%s1 + $0x43c] sm:$0xf]
  %v306 = vld [vmem:[%s1 + $0x440] sm:$0xf]
  %v307 = vld [vmem:[%s1 + $0x444] sm:$0xf]
  %v308 = vld [vmem:[%s1 + $0x448] sm:$0xf]
  %v309 = vld [vmem:[%s1 + $0x44c] sm:$0xf]
  %v310 = vld [vmem:[%s1 + $0x450] sm:$0xf]
  %v311 = vld [vmem:[%s1 + $0x454] sm:$0xf]
  %v312 = vld [vmem:[%s1 + $0x458] sm:$0xf]
  %v313 = vld [vmem:[%s1 + $0x45c] sm:$0xf]
  %v314 = vld [vmem:[%s1 + $0x460] sm:$0xf]
  %v315 = vld [vmem:[%s1 + $0x464] sm:$0xf]
  %v316 = vld [vmem:[%s1 + $0x468] sm:$0xf]
  %v317 = vld [vmem:[%s1 + $0x46c] sm:$0xf]
  %v318 = vld [vmem:[%s1 + $0x470] sm:$0xf]
  %v319 = vld [vmem:[%s1 + $0x474] sm:$0xf]
  %v320 = vld [vmem:[%s1 + $0x478] sm:$0xf]
  %v321 = vld [vmem:[%s1 + $0x47c] sm:$0xf]
  %v322 = vld [vmem:[%s1 + $0x480] sm:$0xf]
  %v323 = vld [vmem:[%s1 + $0x484] sm:$0xf]
  %v324 = vld [vmem:[%s1 + $0x488] sm:$0xf]
  %v325 = vld [vmem:[%s1 + $0x48c] sm:$0xf]
  %v326 = vld [vmem:[%s1 + $0x490] sm:$0xf]
  %v327 = vld [vmem:[%s1 + $0x494] sm:$0xf]
  %v328 = vld [vmem:[%s1 + $0x498] sm:$0xf]
  %v329 = vld [vmem:[%s1 + $0x49c] sm:$0xf]
  %v330 = vld [vmem:[%s1 + $0x4a0] sm:$0xf]
  %v331 = vld [vmem:[%s1 + $0x4a4] sm:$0xf]
  %v332 = vld [vmem:[%s1 + $0x4a8] sm:$0xf]
  %v333 = vld [vmem:[%s1 + $0x4ac] sm:$0xf]
  %v334 = vld [vmem:[%s1 + $0x4b0] sm:$0xf]
  %v335 = vld [vmem:[%s1 + $0x4b4] sm:$0xf]
  %v336 = vld [vmem:[%s1 + $0x4b8] sm:$0xf]
  %v337 = vld [vmem:[%s1 + $0x4bc] sm:$0xf]
  %v338 = vld [vmem:[%s1 + $0x4c0] sm:$0xf]
  %v339 = vld [vmem:[%s1 + $0x4c4] sm:$0xf]
  %v340 = vld [vmem:[%s1 + $0x4c8] sm:$0xf]
  %v341 = vld [vmem:[%s1 + $0x4cc] sm:$0xf]
  %v342 = vld [vmem:[%s1 + $0x4d0] sm:$0xf]
  %v343 = vld [vmem:[%s1 + $0x4d4] sm:$0xf]
  %v344 = vld [vmem:[%s1 + $0x4d8] sm:$0xf]
  %v345 = vld [vmem:[%s1 + $0x4dc] sm:$0xf]
  %v346 = vld [vmem:[%s1 + $0x4e0] sm:$0xf]
  %v347 = vld [vmem:[%s1 + $0x4e4] sm:$0xf]
  %v348 = vld [vmem:[%s1 + $0x4e8] sm:$0xf]
  %v349 = vld [vmem:[%s1 + $0x4ec] sm:$0xf]
  %v350 = vld [vmem:[%s1 + $0x4f0] sm:$0xf]
  %v351 = vld [vmem:[%s1 + $0x4f4] sm:$0xf]
  %v352 = vld [vmem:[%s1 + $0x4f8] sm:$0xf]
  %v353 = vld [vmem:[%s1 + $0x4fc] sm:$0xf]
  %v354 = vld [vmem:[%s1 + $0x500] sm:$0xf]
  %v355 = vld [vmem:[%s1 + $0x504] sm:$0xf]
  %v356 = vld [vmem:[%s1 + $0x508] sm:$0xf]
  %v357 = vld [vmem:[%s1 + $0x50c] sm:$0xf]
  %v358 = vld [vmem:[%s1 + $0x510] sm:$0xf]
  %v359 = vld [vmem:[%s1 + $0x514] sm:$0xf]
  %v360 = vld [vmem:[%s1 + $0x518] sm:$0xf]
  %v361 = vld [vmem:[%s1 + $0x51c] sm:$0xf]
  %v362 = vld [vmem:[%s1 + $0x520] sm:$0xf]
  %v363 = vld [vmem:[%s1 + $0x524] sm:$0xf]
  %v364 = vld [vmem:[%s1 + $0x528] sm:$0xf]
  %v365 = vld [vmem:[%s1 + $0x52c] sm:$0xf]
  %v366 = vld [vmem:[%s1 + $0x530] sm:$0xf]
  %v367 = vld [vmem:[%s1 + $0x534] sm:$0xf]
  %v368 = vld [vmem:[%s1 + $0x538] sm:$0xf]
  %v369 = vld [vmem:[%s1 + $0x53c] sm:$0xf]
  %v370 = vld [vmem:[%s1 + $0x540] sm:$0xf]
  %v371 = vld [vmem:[%s1 + $0x544] sm:$0xf]
  %v372 = vld [vmem:[%s1 + $0x548] sm:$0xf]
  %v373 = vld [vmem:[%s1 + $0x54c] sm:$0xf]
  %v374 = vld [vmem:[%s1 + $0x550] sm:$0xf]
  %v375 = vld [vmem:[%s1 + $0x554] sm:$0xf]
  %v376 = vld [vmem:[%s1 + $0x558] sm:$0xf]
  %v377 = vld [vmem:[%s1 + $0x55c] sm:$0xf]
  %v378 = vld [vmem:[%s1 + $0x560] sm:$0xf]
  %v379 = vld [vmem:[%s1 + $0x564] sm:$0xf]
  %v380 = vld [vmem:[%s1 + $0x568] sm:$0xf]
  %v381 = vld [vmem:[%s1 + $0x56c] sm:$0xf]
  %v382 = vld [vmem:[%s1 + $0x570] sm:$0xf]
  %v383 = vld [vmem:[%s1 + $0x574] sm:$0xf]
  %v384 = vld [vmem:[%s1 + $0x578] sm:$0xf]
  %v385 = vld [vmem:[%s1 + $0x57c] sm:$0xf]
  %v386 = vld [vmem:[%s1 + $0x580] sm:$0xf]
  %v387 = vld [vmem:[%s1 + $0x584] sm:$0xf]
  %v388 = vld [vmem:[%s1 + $0x588] sm:$0xf]
  %v389 = vld [vmem:[%s1 + $0x58c] sm:$0xf]
  %v390 = vld [vmem:[%s1 + $0x590] sm:$0xf]
  %v391 = vld [vmem:[%s1 + $0x594] sm:$0xf]
  %v392 = vld [vmem:[%s1 + $0x598] sm:$0xf]
  %v393 = vld [vmem:[%s1 + $0x59c] sm:$0xf]
  %v394 = vld [vmem:[%s1 + $0x5a0] sm:$0xf]
  %v395 = vld [vmem:[%s1 + $0x5a4] sm:$0xf]
  %v396 = vld [vmem:[%s1 + $0x5a8] sm:$0xf]
  %v397 = vld [vmem:[%s1 + $0x5ac] sm:$0xf]
  %v398 = vld [vmem:[%s1 + $0x5b0] sm:$0xf]
  %v399 = vld [vmem:[%s1 + $0x5b4] sm:$0xf]
  %v400 = vld [vmem:[%s1 + $0x5b8] sm:$0xf]
  %v401 = vld [vmem:[%s1 + $0x5bc] sm:$0xf]
  %v402 = vld [vmem:[%s1 + $0x5c0] sm:$0xf]
  %v403 = vld [vmem:[%s1 + $0x5c4] sm:$0xf]
  %v404 = vld [vmem:[%s1 + $0x5c8] sm:$0xf]
  %v405 = vld [vmem:[%s1 + $0x5cc] sm:$0xf]
  %v406 = vld [vmem:[%s1 + $0x5d0] sm:$0xf]
  %v407 = vld [vmem:[%s1 + $0x5d4] sm:$0xf]
  %v408 = vld [vmem:[%s1 + $0x5d8] sm:$0xf]
  %v409 = vld [vmem:[%s1 + $0x5dc] sm:$0xf]
  %v410 = vld [vmem:[%s1 + $0x5e0] sm:$0xf]
  %v411 = vld [vmem:[%s1 + $0x5e4] sm:$0xf]
  %v412 = vld [vmem:[%s1 + $0x5e8] sm:$0xf]
  %v413 = vld [vmem:[%s1 + $0x5ec] sm:$0xf]
  %v414 = vld [vmem:[%s1 + $0x5f0] sm:$0xf]
  %v415 = vld [vmem:[%s1 + $0x5f4] sm:$0xf]
  %v416 = vld [vmem:[%s1 + $0x5f8] sm:$0xf]
  %v417 = vld [vmem:[%s1 + $0x5fc] sm:$0xf]
  %v418 = vld [vmem:[%s1 + $0x600] sm:$0xf]
  %v419 = vld [vmem:[%s1 + $0x604] sm:$0xf]
  %v420 = vld [vmem:[%s1 + $0x608] sm:$0xf]
  %v421 = vld [vmem:[%s1 + $0x60c] sm:$0xf]
  %v422 = vld [vmem:[%s1 + $0x610] sm:$0xf]
  %v423 = vld [vmem:[%s1 + $0x614] sm:$0xf]
  %v424 = vld [vmem:[%s1 + $0x618] sm:$0xf]
  %v425 = vld [vmem:[%s1 + $0x61c] sm:$0xf]
  %v426 = vld [vmem:[%s2] sm:$0x1]
  %v428 = vperm.slane %v426, 0
  %v443 = vunpack.c.l.b16 %v21
  %v444 = vunpack.c.h.b16 %v21
  %v445 = vunpack.c.l.b16 %v22
  %v446 = vunpack.c.h.b16 %v22
  %v447 = vunpack.c.l.b16 %v23
  %v448 = vunpack.c.h.b16 %v23
  %v449 = vunpack.c.l.b16 %v24
  %v450 = vunpack.c.h.b16 %v24
  %v451 = vunpack.c.l.b16 %v25
  %v452 = vunpack.c.h.b16 %v25
  %v453 = vunpack.c.l.b16 %v26
  %v454 = vunpack.c.h.b16 %v26
  %v455 = vunpack.c.l.b16 %v27
  %v456 = vunpack.c.h.b16 %v27
  %v457 = vunpack.c.l.b16 %v28
  %v458 = vunpack.c.h.b16 %v28
  %v459 = vunpack.c.l.b16 %v29
  %v460 = vunpack.c.h.b16 %v29
  %v461 = vunpack.c.l.b16 %v30
  %v462 = vunpack.c.h.b16 %v30
  %v463 = vunpack.c.l.b16 %v31
  %v464 = vunpack.c.h.b16 %v31
  %v465 = vunpack.c.l.b16 %v32
  %v466 = vunpack.c.h.b16 %v32
  %v467 = vunpack.c.l.b16 %v33
  %v468 = vpack.c.b16 %v443, %v443
  %v469 = vpack.c.b16 %v444, %v444
  %v470 = vpack.c.b16 %v445, %v445
  %v471 = vpack.c.b16 %v446, %v446
  %v472 = vpack.c.b16 %v447, %v447
  %v473 = vpack.c.b16 %v448, %v448
  %v474 = vpack.c.b16 %v449, %v449
  %v475 = vpack.c.b16 %v450, %v450
  %v476 = vpack.c.b16 %v451, %v451
  %v477 = vpack.c.b16 %v452, %v452
  %v478 = vpack.c.b16 %v453, %v453
  %v479 = vpack.c.b16 %v454, %v454
  %v480 = vpack.c.b16 %v455, %v455
  %v481 = vpack.c.b16 %v456, %v456
  %v482 = vpack.c.b16 %v457, %v457
  %v483 = vpack.c.b16 %v458, %v458
  %v484 = vpack.c.b16 %v459, %v459
  %v485 = vpack.c.b16 %v460, %v460
  %v486 = vpack.c.b16 %v461, %v461
  %v487 = vpack.c.b16 %v462, %v462
  %v488 = vpack.c.b16 %v463, %v463
  %v489 = vpack.c.b16 %v464, %v464
  %v490 = vpack.c.b16 %v465, %v465
  %v491 = vpack.c.b16 %v466, %v466
  %v492 = vpack.c.b16 %v467, %v467
  %v909 = vunpack.c.l.b16 %v34
  %v910 = vunpack.c.l.b16 %v35
  %v911 = vunpack.c.l.b16 %v36
  %v912 = vunpack.c.l.b16 %v37
  %v913 = vunpack.c.l.b16 %v38
  %v914 = vunpack.c.l.b16 %v39
  %v915 = vunpack.c.l.b16 %v40
  %v916 = vunpack.c.l.b16 %v41
  %v917 = vunpack.c.l.b16 %v42
  %v918 = vunpack.c.l.b16 %v43
  %v919 = vunpack.c.l.b16 %v44
  %v920 = vunpack.c.l.b16 %v45
  %v921 = vunpack.c.l.b16 %v46
  %v922 = vunpack.c.l.b16 %v47
  %v923 = vunpack.c.l.b16 %v48
  %v924 = vunpack.c.l.b16 %v49
  %v925 = vunpack.c.l.b16 %v50
  %v926 = vunpack.c.l.b16 %v51
  %v927 = vunpack.c.l.b16 %v52
  %v928 = vunpack.c.l.b16 %v53
  %v929 = vunpack.c.l.b16 %v54
  %v930 = vunpack.c.l.b16 %v55
  %v931 = vunpack.c.l.b16 %v56
  %v932 = vunpack.c.l.b16 %v57
  %v933 = vunpack.c.l.b16 %v58
  %v934 = vunpack.c.l.b16 %v59
  %v935 = vunpack.c.l.b16 %v60
  %v936 = vunpack.c.l.b16 %v61
  %v937 = vunpack.c.l.b16 %v62
  %v938 = vunpack.c.l.b16 %v63
  %v939 = vunpack.c.l.b16 %v64
  %v940 = vunpack.c.l.b16 %v65
  %v941 = vunpack.c.l.b16 %v66
  %v942 = vunpack.c.l.b16 %v67
  %v943 = vunpack.c.l.b16 %v68
  %v944 = vunpack.c.l.b16 %v69
  %v945 = vunpack.c.l.b16 %v70
  %v946 = vunpack.c.l.b16 %v71
  %v947 = vunpack.c.l.b16 %v72
  %v948 = vunpack.c.l.b16 %v73
  %v949 = vunpack.c.l.b16 %v74
  %v950 = vunpack.c.l.b16 %v75
  %v951 = vunpack.c.l.b16 %v76
  %v952 = vunpack.c.l.b16 %v77
  %v953 = vunpack.c.l.b16 %v78
  %v954 = vunpack.c.l.b16 %v79
  %v955 = vunpack.c.l.b16 %v80
  %v956 = vunpack.c.l.b16 %v81
  %v957 = vunpack.c.l.b16 %v82
  %v958 = vunpack.c.l.b16 %v83
  %v959 = vunpack.c.l.b16 %v84
  %v960 = vunpack.c.l.b16 %v85
  %v961 = vunpack.c.l.b16 %v86
  %v962 = vunpack.c.l.b16 %v87
  %v963 = vunpack.c.l.b16 %v88
  %v964 = vunpack.c.l.b16 %v89
  %v965 = vunpack.c.l.b16 %v90
  %v966 = vunpack.c.l.b16 %v91
  %v967 = vunpack.c.l.b16 %v92
  %v968 = vunpack.c.l.b16 %v93
  %v969 = vunpack.c.l.b16 %v94
  %v970 = vunpack.c.l.b16 %v95
  %v971 = vunpack.c.l.b16 %v96
  %v972 = vunpack.c.l.b16 %v97
  %v973 = vunpack.c.l.b16 %v98
  %v974 = vunpack.c.l.b16 %v99
  %v975 = vunpack.c.l.b16 %v100
  %v976 = vunpack.c.l.b16 %v101
  %v977 = vunpack.c.l.b16 %v102
  %v978 = vunpack.c.l.b16 %v103
  %v979 = vunpack.c.l.b16 %v104
  %v980 = vunpack.c.l.b16 %v105
  %v981 = vunpack.c.l.b16 %v106
  %v982 = vunpack.c.l.b16 %v107
  %v983 = vunpack.c.l.b16 %v108
  %v984 = vunpack.c.l.b16 %v109
  %v985 = vunpack.c.l.b16 %v110
  %v986 = vunpack.c.l.b16 %v111
  %v987 = vunpack.c.l.b16 %v112
  %v988 = vunpack.c.l.b16 %v113
  %v989 = vunpack.c.l.b16 %v114
  %v990 = vunpack.c.l.b16 %v115
  %v991 = vunpack.c.l.b16 %v116
  %v992 = vunpack.c.l.b16 %v117
  %v993 = vunpack.c.l.b16 %v118
  %v994 = vunpack.c.l.b16 %v119
  %v995 = vunpack.c.l.b16 %v120
  %v996 = vunpack.c.l.b16 %v121
  %v997 = vunpack.c.l.b16 %v122
  %v998 = vunpack.c.l.b16 %v123
  %v999 = vunpack.c.l.b16 %v124
  %v1000 = vunpack.c.l.b16 %v125
  %v1001 = vunpack.c.l.b16 %v126
  %v1002 = vunpack.c.l.b16 %v127
  %v1003 = vunpack.c.l.b16 %v128
  %v1004 = vunpack.c.l.b16 %v129
  %v1005 = vunpack.c.l.b16 %v130
  %v1006 = vunpack.c.l.b16 %v131
  %v1007 = vunpack.c.l.b16 %v132
  %v1008 = vunpack.c.l.b16 %v133
  %v1009 = vunpack.c.l.b16 %v134
  %v1010 = vunpack.c.l.b16 %v135
  %v1011 = vunpack.c.l.b16 %v136
  %v1012 = vunpack.c.l.b16 %v137
  %v1013 = vunpack.c.l.b16 %v138
  %v1014 = vunpack.c.l.b16 %v139
  %v1015 = vunpack.c.l.b16 %v140
  %v1016 = vunpack.c.l.b16 %v141
  %v1017 = vunpack.c.l.b16 %v142
  %v1018 = vunpack.c.l.b16 %v143
  %v1019 = vunpack.c.l.b16 %v144
  %v1020 = vunpack.c.l.b16 %v145
  %v1021 = vunpack.c.l.b16 %v146
  %v1022 = vunpack.c.l.b16 %v147
  %v1023 = vunpack.c.l.b16 %v148
  %v1024 = vunpack.c.l.b16 %v149
  %v1025 = vunpack.c.l.b16 %v150
  %v1026 = vunpack.c.l.b16 %v151
  %v1027 = vunpack.c.l.b16 %v152
  %v1028 = vunpack.c.l.b16 %v153
  %v1029 = vunpack.c.l.b16 %v154
  %v1030 = vunpack.c.l.b16 %v155
  %v1031 = vunpack.c.l.b16 %v156
  %v1032 = vunpack.c.l.b16 %v157
  %v1033 = vunpack.c.l.b16 %v158
  %v1034 = vunpack.c.l.b16 %v159
  %v1035 = vunpack.c.l.b16 %v160
  %v1036 = vunpack.c.l.b16 %v161
  %v1037 = vunpack.c.l.b16 %v162
  %v1038 = vunpack.c.l.b16 %v163
  %v1039 = vunpack.c.l.b16 %v164
  %v1040 = vunpack.c.l.b16 %v165
  %v1041 = vunpack.c.l.b16 %v166
  %v1042 = vunpack.c.l.b16 %v167
  %v1043 = vunpack.c.l.b16 %v168
  %v1044 = vunpack.c.l.b16 %v169
  %v1045 = vunpack.c.l.b16 %v170
  %v1046 = vunpack.c.l.b16 %v171
  %v1047 = vunpack.c.l.b16 %v172
  %v1048 = vunpack.c.l.b16 %v173
  %v1049 = vunpack.c.l.b16 %v174
  %v1050 = vunpack.c.l.b16 %v175
  %v1051 = vunpack.c.l.b16 %v176
  %v1052 = vunpack.c.l.b16 %v177
  %v1053 = vunpack.c.l.b16 %v178
  %v1054 = vunpack.c.l.b16 %v179
  %v1055 = vunpack.c.l.b16 %v180
  %v1056 = vunpack.c.l.b16 %v181
  %v1057 = vunpack.c.l.b16 %v182
  %v1058 = vunpack.c.l.b16 %v183
  %v1059 = vunpack.c.l.b16 %v184
  %v1060 = vunpack.c.l.b16 %v185
  %v1061 = vunpack.c.l.b16 %v186
  %v1062 = vunpack.c.l.b16 %v187
  %v1063 = vunpack.c.l.b16 %v188
  %v1064 = vunpack.c.l.b16 %v189
  %v1065 = vunpack.c.l.b16 %v190
  %v1066 = vunpack.c.l.b16 %v191
  %v1067 = vunpack.c.l.b16 %v192
  %v1068 = vunpack.c.l.b16 %v193
  %v1069 = vunpack.c.l.b16 %v194
  %v1070 = vunpack.c.l.b16 %v195
  %v1071 = vunpack.c.l.b16 %v196
  %v1072 = vunpack.c.l.b16 %v197
  %v1073 = vunpack.c.l.b16 %v198
  %v1074 = vunpack.c.l.b16 %v199
  %v1075 = vunpack.c.l.b16 %v200
  %v1076 = vunpack.c.l.b16 %v201
  %v1077 = vunpack.c.l.b16 %v202
  %v1078 = vunpack.c.l.b16 %v203
  %v1079 = vunpack.c.l.b16 %v204
  %v1080 = vunpack.c.l.b16 %v205
  %v1081 = vunpack.c.l.b16 %v206
  %v1082 = vunpack.c.l.b16 %v207
  %v1083 = vunpack.c.l.b16 %v208
  %v1084 = vunpack.c.l.b16 %v209
  %v1085 = vunpack.c.l.b16 %v210
  %v1086 = vunpack.c.l.b16 %v211
  %v1087 = vunpack.c.l.b16 %v212
  %v1088 = vunpack.c.l.b16 %v213
  %v1089 = vunpack.c.l.b16 %v214
  %v1090 = vunpack.c.l.b16 %v215
  %v1091 = vunpack.c.l.b16 %v216
  %v1092 = vunpack.c.l.b16 %v217
  %v1093 = vunpack.c.l.b16 %v218
  %v1094 = vunpack.c.l.b16 %v219
  %v1095 = vunpack.c.l.b16 %v220
  %v1096 = vunpack.c.l.b16 %v221
  %v1097 = vunpack.c.l.b16 %v222
  %v1098 = vunpack.c.l.b16 %v223
  %v1099 = vunpack.c.l.b16 %v224
  %v1100 = vunpack.c.l.b16 %v225
  %v1101 = vunpack.c.l.b16 %v226
  %v1102 = vunpack.c.l.b16 %v227
  %v1103 = vunpack.c.l.b16 %v228
  %v1104 = vunpack.c.l.b16 %v229
  %v1105 = vunpack.c.l.b16 %v230
  %v1106 = vunpack.c.l.b16 %v231
  %v1107 = vunpack.c.l.b16 %v232
  %v1108 = vunpack.c.l.b16 %v233
  %v1109 = vunpack.c.l.b16 %v234
  %v1110 = vunpack.c.l.b16 %v235
  %v1111 = vunpack.c.l.b16 %v236
  %v1112 = vunpack.c.l.b16 %v237
  %v1113 = vunpack.c.l.b16 %v238
  %v1114 = vunpack.c.l.b16 %v239
  %v1115 = vunpack.c.l.b16 %v240
  %v1116 = vunpack.c.l.b16 %v241
  %v1117 = vunpack.c.l.b16 %v242
  %v1118 = vunpack.c.l.b16 %v243
  %v1119 = vunpack.c.l.b16 %v244
  %v1120 = vunpack.c.l.b16 %v245
  %v1121 = vunpack.c.l.b16 %v246
  %v1122 = vunpack.c.l.b16 %v247
  %v1123 = vunpack.c.l.b16 %v248
  %v1124 = vunpack.c.l.b16 %v249
  %v1125 = vunpack.c.l.b16 %v250
  %v1126 = vunpack.c.l.b16 %v251
  %v1127 = vunpack.c.l.b16 %v252
  %v1128 = vunpack.c.l.b16 %v253
  %v1129 = vunpack.c.l.b16 %v254
  %v1130 = vunpack.c.l.b16 %v255
  %v1131 = vunpack.c.l.b16 %v256
  %v1132 = vunpack.c.l.b16 %v257
  %v1133 = vunpack.c.l.b16 %v258
  %v1134 = vunpack.c.l.b16 %v259
  %v1135 = vunpack.c.l.b16 %v260
  %v1136 = vunpack.c.l.b16 %v261
  %v1137 = vunpack.c.l.b16 %v262
  %v1138 = vunpack.c.l.b16 %v263
  %v1139 = vunpack.c.l.b16 %v264
  %v1140 = vunpack.c.l.b16 %v265
  %v1141 = vunpack.c.l.b16 %v266
  %v1142 = vunpack.c.l.b16 %v267
  %v1143 = vunpack.c.l.b16 %v268
  %v1144 = vunpack.c.l.b16 %v269
  %v1145 = vunpack.c.l.b16 %v270
  %v1146 = vunpack.c.l.b16 %v271
  %v1147 = vunpack.c.l.b16 %v272
  %v1148 = vunpack.c.l.b16 %v273
  %v1149 = vunpack.c.l.b16 %v274
  %v1150 = vunpack.c.l.b16 %v275
  %v1151 = vunpack.c.l.b16 %v276
  %v1152 = vunpack.c.l.b16 %v277
  %v1153 = vunpack.c.l.b16 %v278
  %v1154 = vunpack.c.l.b16 %v279
  %v1155 = vunpack.c.l.b16 %v280
  %v1156 = vunpack.c.l.b16 %v281
  %v1157 = vunpack.c.l.b16 %v282
  %v1158 = vunpack.c.l.b16 %v283
  %v1159 = vunpack.c.l.b16 %v284
  %v1160 = vunpack.c.l.b16 %v285
  %v1161 = vunpack.c.l.b16 %v286
  %v1162 = vunpack.c.l.b16 %v287
  %v1163 = vunpack.c.l.b16 %v288
  %v1164 = vunpack.c.l.b16 %v289
  %v1165 = vunpack.c.l.b16 %v290
  %v1166 = vunpack.c.l.b16 %v291
  %v1167 = vunpack.c.l.b16 %v292
  %v1168 = vunpack.c.l.b16 %v293
  %v1169 = vunpack.c.l.b16 %v294
  %v1170 = vunpack.c.l.b16 %v295
  %v1171 = vunpack.c.l.b16 %v296
  %v1172 = vunpack.c.l.b16 %v297
  %v1173 = vunpack.c.l.b16 %v298
  %v1174 = vunpack.c.l.b16 %v299
  %v1175 = vunpack.c.l.b16 %v300
  %v1176 = vunpack.c.l.b16 %v301
  %v1177 = vunpack.c.l.b16 %v302
  %v1178 = vunpack.c.l.b16 %v303
  %v1179 = vunpack.c.l.b16 %v304
  %v1180 = vunpack.c.l.b16 %v305
  %v1181 = vunpack.c.l.b16 %v306
  %v1182 = vunpack.c.l.b16 %v307
  %v1183 = vunpack.c.l.b16 %v308
  %v1184 = vunpack.c.l.b16 %v309
  %v1185 = vunpack.c.l.b16 %v310
  %v1186 = vunpack.c.l.b16 %v311
  %v1187 = vunpack.c.l.b16 %v312
  %v1188 = vunpack.c.l.b16 %v313
  %v1189 = vunpack.c.l.b16 %v314
  %v1190 = vunpack.c.l.b16 %v315
  %v1191 = vunpack.c.l.b16 %v316
  %v1192 = vunpack.c.l.b16 %v317
  %v1193 = vunpack.c.l.b16 %v318
  %v1194 = vunpack.c.l.b16 %v319
  %v1195 = vunpack.c.l.b16 %v320
  %v1196 = vunpack.c.l.b16 %v321
  %v1197 = vunpack.c.l.b16 %v322
  %v1198 = vunpack.c.l.b16 %v323
  %v1199 = vunpack.c.l.b16 %v324
  %v1200 = vunpack.c.l.b16 %v325
  %v1201 = vunpack.c.l.b16 %v326
  %v1202 = vunpack.c.l.b16 %v327
  %v1203 = vunpack.c.l.b16 %v328
  %v1204 = vunpack.c.l.b16 %v329
  %v1205 = vunpack.c.l.b16 %v330
  %v1206 = vunpack.c.l.b16 %v331
  %v1207 = vunpack.c.l.b16 %v332
  %v1208 = vunpack.c.l.b16 %v333
  %v1209 = vunpack.c.l.b16 %v334
  %v1210 = vunpack.c.l.b16 %v335
  %v1211 = vunpack.c.l.b16 %v336
  %v1212 = vunpack.c.l.b16 %v337
  %v1213 = vunpack.c.l.b16 %v338
  %v1214 = vunpack.c.l.b16 %v339
  %v1215 = vunpack.c.l.b16 %v340
  %v1216 = vunpack.c.l.b16 %v341
  %v1217 = vunpack.c.l.b16 %v342
  %v1218 = vunpack.c.l.b16 %v343
  %v1219 = vunpack.c.l.b16 %v344
  %v1220 = vunpack.c.l.b16 %v345
  %v1221 = vunpack.c.l.b16 %v346
  %v1222 = vunpack.c.l.b16 %v347
  %v1223 = vunpack.c.l.b16 %v348
  %v1224 = vunpack.c.l.b16 %v349
  %v1225 = vunpack.c.l.b16 %v350
  %v1226 = vunpack.c.l.b16 %v351
  %v1227 = vunpack.c.l.b16 %v352
  %v1228 = vunpack.c.l.b16 %v353
  %v1229 = vunpack.c.l.b16 %v354
  %v1230 = vunpack.c.l.b16 %v355
  %v1231 = vunpack.c.l.b16 %v356
  %v1232 = vunpack.c.l.b16 %v357
  %v1233 = vunpack.c.l.b16 %v358
  %v1234 = vunpack.c.l.b16 %v359
  %v1235 = vunpack.c.l.b16 %v360
  %v1236 = vunpack.c.l.b16 %v361
  %v1237 = vunpack.c.l.b16 %v362
  %v1238 = vunpack.c.l.b16 %v363
  %v1239 = vunpack.c.l.b16 %v364
  %v1240 = vunpack.c.l.b16 %v365
  %v1241 = vunpack.c.l.b16 %v366
  %v1242 = vunpack.c.l.b16 %v367
  %v1243 = vunpack.c.l.b16 %v368
  %v1244 = vunpack.c.l.b16 %v369
  %v1245 = vunpack.c.l.b16 %v370
  %v1246 = vunpack.c.l.b16 %v371
  %v1247 = vunpack.c.l.b16 %v372
  %v1248 = vunpack.c.l.b16 %v373
  %v1249 = vunpack.c.l.b16 %v374
  %v1250 = vunpack.c.l.b16 %v375
  %v1251 = vunpack.c.l.b16 %v376
  %v1252 = vunpack.c.l.b16 %v377
  %v1253 = vunpack.c.l.b16 %v378
  %v1254 = vunpack.c.l.b16 %v379
  %v1255 = vunpack.c.l.b16 %v380
  %v1256 = vunpack.c.l.b16 %v381
  %v1257 = vunpack.c.l.b16 %v382
  %v1258 = vunpack.c.l.b16 %v383
  %v1259 = vunpack.c.l.b16 %v384
  %v1260 = vunpack.c.l.b16 %v385
  %v1261 = vunpack.c.l.b16 %v386
  %v1262 = vunpack.c.l.b16 %v387
  %v1263 = vunpack.c.l.b16 %v388
  %v1264 = vunpack.c.l.b16 %v389
  %v1265 = vunpack.c.l.b16 %v390
  %v1266 = vunpack.c.l.b16 %v391
  %v1267 = vunpack.c.l.b16 %v392
  %v1268 = vunpack.c.l.b16 %v393
  %v1269 = vunpack.c.l.b16 %v394
  %v1270 = vunpack.c.l.b16 %v395
  %v1271 = vunpack.c.l.b16 %v396
  %v1272 = vunpack.c.l.b16 %v397
  %v1273 = vunpack.c.l.b16 %v398
  %v1274 = vunpack.c.l.b16 %v399
  %v1275 = vunpack.c.l.b16 %v400
  %v1276 = vunpack.c.l.b16 %v401
  %v1277 = vunpack.c.l.b16 %v402
  %v1278 = vunpack.c.l.b16 %v403
  %v1279 = vunpack.c.l.b16 %v404
  %v1280 = vunpack.c.l.b16 %v405
  %v1281 = vunpack.c.l.b16 %v406
  %v1282 = vunpack.c.l.b16 %v407
  %v1283 = vunpack.c.l.b16 %v408
  %v1284 = vunpack.c.l.b16 %v409
  %v1285 = vunpack.c.l.b16 %v410
  %v1286 = vunpack.c.l.b16 %v411
  %v1287 = vunpack.c.l.b16 %v412
  %v1288 = vunpack.c.l.b16 %v413
  %v1289 = vunpack.c.l.b16 %v414
  %v1290 = vunpack.c.l.b16 %v415
  %v1291 = vunpack.c.l.b16 %v416
  %v1292 = vunpack.c.l.b16 %v417
  %v1293 = vunpack.c.l.b16 %v418
  %v1294 = vunpack.c.l.b16 %v419
  %v1295 = vunpack.c.l.b16 %v420
  %v1296 = vunpack.c.l.b16 %v421
  %v1297 = vunpack.c.l.b16 %v422
  %v1298 = vunpack.c.l.b16 %v423
  %v1299 = vunpack.c.l.b16 %v424
  %v1300 = vunpack.c.l.b16 %v425
  %v1301 = vpack.c.b16 %v910, %v909
  %v1302 = vpack.c.b16 %v912, %v911
  %v1303 = vpack.c.b16 %v914, %v913
  %v1304 = vpack.c.b16 %v916, %v915
  %v1305 = vpack.c.b16 %v918, %v917
  %v1306 = vpack.c.b16 %v920, %v919
  %v1307 = vpack.c.b16 %v922, %v921
  %v1308 = vpack.c.b16 %v924, %v923
  %v1309 = vpack.c.b16 %v926, %v925
  %v1310 = vpack.c.b16 %v928, %v927
  %v1311 = vpack.c.b16 %v930, %v929
  %v1312 = vpack.c.b16 %v932, %v931
  %v1313 = vpack.c.b16 %v934, %v933
  %v1314 = vpack.c.b16 %v936, %v935
  %v1315 = vpack.c.b16 %v938, %v937
  %v1316 = vpack.c.b16 %v940, %v939
  %v1317 = vpack.c.b16 %v942, %v941
  %v1318 = vpack.c.b16 %v944, %v943
  %v1319 = vpack.c.b16 %v946, %v945
  %v1320 = vpack.c.b16 %v948, %v947
  %v1321 = vpack.c.b16 %v950, %v949
  %v1322 = vpack.c.b16 %v952, %v951
  %v1323 = vpack.c.b16 %v954, %v953
  %v1324 = vpack.c.b16 %v956, %v955
  %v1325 = vpack.c.b16 %v958, %v957
  %v1326 = vpack.c.b16 %v960, %v959
  %v1327 = vpack.c.b16 %v962, %v961
  %v1328 = vpack.c.b16 %v964, %v963
  %v1329 = vpack.c.b16 %v966, %v965
  %v1330 = vpack.c.b16 %v968, %v967
  %v1331 = vpack.c.b16 %v970, %v969
  %v1332 = vpack.c.b16 %v972, %v971
  %v1333 = vpack.c.b16 %v974, %v973
  %v1334 = vpack.c.b16 %v976, %v975
  %v1335 = vpack.c.b16 %v978, %v977
  %v1336 = vpack.c.b16 %v980, %v979
  %v1337 = vpack.c.b16 %v982, %v981
  %v1338 = vpack.c.b16 %v984, %v983
  %v1339 = vpack.c.b16 %v986, %v985
  %v1340 = vpack.c.b16 %v988, %v987
  %v1341 = vpack.c.b16 %v990, %v989
  %v1342 = vpack.c.b16 %v992, %v991
  %v1343 = vpack.c.b16 %v994, %v993
  %v1344 = vpack.c.b16 %v996, %v995
  %v1345 = vpack.c.b16 %v998, %v997
  %v1346 = vpack.c.b16 %v1000, %v999
  %v1347 = vpack.c.b16 %v1002, %v1001
  %v1348 = vpack.c.b16 %v1004, %v1003
  %v1349 = vpack.c.b16 %v1006, %v1005
  %v1350 = vpack.c.b16 %v1008, %v1007
  %v1351 = vpack.c.b16 %v1010, %v1009
  %v1352 = vpack.c.b16 %v1012, %v1011
  %v1353 = vpack.c.b16 %v1014, %v1013
  %v1354 = vpack.c.b16 %v1016, %v1015
  %v1355 = vpack.c.b16 %v1018, %v1017
  %v1356 = vpack.c.b16 %v1020, %v1019
  %v1357 = vpack.c.b16 %v1022, %v1021
  %v1358 = vpack.c.b16 %v1024, %v1023
  %v1359 = vpack.c.b16 %v1026, %v1025
  %v1360 = vpack.c.b16 %v1028, %v1027
  %v1361 = vpack.c.b16 %v1030, %v1029
  %v1362 = vpack.c.b16 %v1032, %v1031
  %v1363 = vpack.c.b16 %v1034, %v1033
  %v1364 = vpack.c.b16 %v1036, %v1035
  %v1365 = vpack.c.b16 %v1038, %v1037
  %v1366 = vpack.c.b16 %v1040, %v1039
  %v1367 = vpack.c.b16 %v1042, %v1041
  %v1368 = vpack.c.b16 %v1044, %v1043
  %v1369 = vpack.c.b16 %v1046, %v1045
  %v1370 = vpack.c.b16 %v1048, %v1047
  %v1371 = vpack.c.b16 %v1050, %v1049
  %v1372 = vpack.c.b16 %v1052, %v1051
  %v1373 = vpack.c.b16 %v1054, %v1053
  %v1374 = vpack.c.b16 %v1056, %v1055
  %v1375 = vpack.c.b16 %v1058, %v1057
  %v1376 = vpack.c.b16 %v1060, %v1059
  %v1377 = vpack.c.b16 %v1062, %v1061
  %v1378 = vpack.c.b16 %v1064, %v1063
  %v1379 = vpack.c.b16 %v1066, %v1065
  %v1380 = vpack.c.b16 %v1068, %v1067
  %v1381 = vpack.c.b16 %v1070, %v1069
  %v1382 = vpack.c.b16 %v1072, %v1071
  %v1383 = vpack.c.b16 %v1074, %v1073
  %v1384 = vpack.c.b16 %v1076, %v1075
  %v1385 = vpack.c.b16 %v1078, %v1077
  %v1386 = vpack.c.b16 %v1080, %v1079
  %v1387 = vpack.c.b16 %v1082, %v1081
  %v1388 = vpack.c.b16 %v1084, %v1083
  %v1389 = vpack.c.b16 %v1086, %v1085
  %v1390 = vpack.c.b16 %v1088, %v1087
  %v1391 = vpack.c.b16 %v1090, %v1089
  %v1392 = vpack.c.b16 %v1092, %v1091
  %v1393 = vpack.c.b16 %v1094, %v1093
  %v1394 = vpack.c.b16 %v1096, %v1095
  %v1395 = vpack.c.b16 %v1098, %v1097
  %v1396 = vpack.c.b16 %v1100, %v1099
  %v1397 = vpack.c.b16 %v1102, %v1101
  %v1398 = vpack.c.b16 %v1104, %v1103
  %v1399 = vpack.c.b16 %v1106, %v1105
  %v1400 = vpack.c.b16 %v1108, %v1107
  %v1401 = vpack.c.b16 %v1110, %v1109
  %v1402 = vpack.c.b16 %v1112, %v1111
  %v1403 = vpack.c.b16 %v1114, %v1113
  %v1404 = vpack.c.b16 %v1116, %v1115
  %v1405 = vpack.c.b16 %v1118, %v1117
  %v1406 = vpack.c.b16 %v1120, %v1119
  %v1407 = vpack.c.b16 %v1122, %v1121
  %v1408 = vpack.c.b16 %v1124, %v1123
  %v1409 = vpack.c.b16 %v1126, %v1125
  %v1410 = vpack.c.b16 %v1128, %v1127
  %v1411 = vpack.c.b16 %v1130, %v1129
  %v1412 = vpack.c.b16 %v1132, %v1131
  %v1413 = vpack.c.b16 %v1134, %v1133
  %v1414 = vpack.c.b16 %v1136, %v1135
  %v1415 = vpack.c.b16 %v1138, %v1137
  %v1416 = vpack.c.b16 %v1140, %v1139
  %v1417 = vpack.c.b16 %v1142, %v1141
  %v1418 = vpack.c.b16 %v1144, %v1143
  %v1419 = vpack.c.b16 %v1146, %v1145
  %v1420 = vpack.c.b16 %v1148, %v1147
  %v1421 = vpack.c.b16 %v1150, %v1149
  %v1422 = vpack.c.b16 %v1152, %v1151
  %v1423 = vpack.c.b16 %v1154, %v1153
  %v1424 = vpack.c.b16 %v1156, %v1155
  %v1425 = vpack.c.b16 %v1158, %v1157
  %v1426 = vpack.c.b16 %v1160, %v1159
  %v1427 = vpack.c.b16 %v1162, %v1161
  %v1428 = vpack.c.b16 %v1164, %v1163
  %v1429 = vpack.c.b16 %v1166, %v1165
  %v1430 = vpack.c.b16 %v1168, %v1167
  %v1431 = vpack.c.b16 %v1170, %v1169
  %v1432 = vpack.c.b16 %v1172, %v1171
  %v1433 = vpack.c.b16 %v1174, %v1173
  %v1434 = vpack.c.b16 %v1176, %v1175
  %v1435 = vpack.c.b16 %v1178, %v1177
  %v1436 = vpack.c.b16 %v1180, %v1179
  %v1437 = vpack.c.b16 %v1182, %v1181
  %v1438 = vpack.c.b16 %v1184, %v1183
  %v1439 = vpack.c.b16 %v1186, %v1185
  %v1440 = vpack.c.b16 %v1188, %v1187
  %v1441 = vpack.c.b16 %v1190, %v1189
  %v1442 = vpack.c.b16 %v1192, %v1191
  %v1443 = vpack.c.b16 %v1194, %v1193
  %v1444 = vpack.c.b16 %v1196, %v1195
  %v1445 = vpack.c.b16 %v1198, %v1197
  %v1446 = vpack.c.b16 %v1200, %v1199
  %v1447 = vpack.c.b16 %v1202, %v1201
  %v1448 = vpack.c.b16 %v1204, %v1203
  %v1449 = vpack.c.b16 %v1206, %v1205
  %v1450 = vpack.c.b16 %v1208, %v1207
  %v1451 = vpack.c.b16 %v1210, %v1209
  %v1452 = vpack.c.b16 %v1212, %v1211
  %v1453 = vpack.c.b16 %v1214, %v1213
  %v1454 = vpack.c.b16 %v1216, %v1215
  %v1455 = vpack.c.b16 %v1218, %v1217
  %v1456 = vpack.c.b16 %v1220, %v1219
  %v1457 = vpack.c.b16 %v1222, %v1221
  %v1458 = vpack.c.b16 %v1224, %v1223
  %v1459 = vpack.c.b16 %v1226, %v1225
  %v1460 = vpack.c.b16 %v1228, %v1227
  %v1461 = vpack.c.b16 %v1230, %v1229
  %v1462 = vpack.c.b16 %v1232, %v1231
  %v1463 = vpack.c.b16 %v1234, %v1233
  %v1464 = vpack.c.b16 %v1236, %v1235
  %v1465 = vpack.c.b16 %v1238, %v1237
  %v1466 = vpack.c.b16 %v1240, %v1239
  %v1467 = vpack.c.b16 %v1242, %v1241
  %v1468 = vpack.c.b16 %v1244, %v1243
  %v1469 = vpack.c.b16 %v1246, %v1245
  %v1470 = vpack.c.b16 %v1248, %v1247
  %v1471 = vpack.c.b16 %v1250, %v1249
  %v1472 = vpack.c.b16 %v1252, %v1251
  %v1473 = vpack.c.b16 %v1254, %v1253
  %v1474 = vpack.c.b16 %v1256, %v1255
  %v1475 = vpack.c.b16 %v1258, %v1257
  %v1476 = vpack.c.b16 %v1260, %v1259
  %v1477 = vpack.c.b16 %v1262, %v1261
  %v1478 = vpack.c.b16 %v1264, %v1263
  %v1479 = vpack.c.b16 %v1266, %v1265
  %v1480 = vpack.c.b16 %v1268, %v1267
  %v1481 = vpack.c.b16 %v1270, %v1269
  %v1482 = vpack.c.b16 %v1272, %v1271
  %v1483 = vpack.c.b16 %v1274, %v1273
  %v1484 = vpack.c.b16 %v1276, %v1275
  %v1485 = vpack.c.b16 %v1278, %v1277
  %v1486 = vpack.c.b16 %v1280, %v1279
  %v1487 = vpack.c.b16 %v1282, %v1281
  %v1488 = vpack.c.b16 %v1284, %v1283
  %v1489 = vpack.c.b16 %v1286, %v1285
  %v1490 = vpack.c.b16 %v1288, %v1287
  %v1491 = vpack.c.b16 %v1290, %v1289
  %v1492 = vpack.c.b16 %v1292, %v1291
  %v1493 = vpack.c.b16 %v1294, %v1293
  %v1494 = vpack.c.b16 %v1296, %v1295
  %v1495 = vpack.c.b16 %v1298, %v1297
  %v1496 = vpack.c.b16 %v1300, %v1299
  %vm1693 = vcmask 523264
  %v1695 = vsel %vm1693, %v492, 0
  %1697 = vmatpush.bf16.msra.mxu0 %v1308
  %1698 = vmatpush.bf16.msra.mxu0 %v1307
  %1699 = vmatpush.bf16.msra.mxu0 %v1306
  %1700 = vmatpush.bf16.msra.mxu0 %v1305
  %1701 = vmatpush.bf16.msra.mxu0 %v1304
  %1702 = vmatpush.bf16.msra.mxu0 %v1303
  %1703 = vmatpush.bf16.msra.mxu0 %v1302
  %1704 = vmatpush.bf16.msra.mxu0 %v1301
  %1705 = vmatmul.bf16.gmra.mxu0 %v468
  %v1706 = vpop.f32.mrf.mxu0
  %v1707 = vadd.f32 %v428, %v1706
  %v1708 = vpop.f32.mrf.mxu0
  %1709 = vdwg.mxu0
  %1710 = vmatpush.bf16.msra.mxu0 %v1316
  %1711 = vmatpush.bf16.msra.mxu0 %v1315
  %1712 = vmatpush.bf16.msra.mxu0 %v1314
  %1713 = vmatpush.bf16.msra.mxu0 %v1313
  %1714 = vmatpush.bf16.msra.mxu0 %v1312
  %1715 = vmatpush.bf16.msra.mxu0 %v1311
  %1716 = vmatpush.bf16.msra.mxu0 %v1310
  %1717 = vmatpush.bf16.msra.mxu0 %v1309
  %1718 = vmatmul.bf16.gmra.mxu0 %v469
  %v1719 = vpop.f32.mrf.mxu0
  %v1720 = vadd.f32 %v1707, %v1719
  %v1721 = vpop.f32.mrf.mxu0
  %1722 = vdwg.mxu0
  %1723 = vmatpush.bf16.msra.mxu0 %v1324
  %1724 = vmatpush.bf16.msra.mxu0 %v1323
  %1725 = vmatpush.bf16.msra.mxu0 %v1322
  %1726 = vmatpush.bf16.msra.mxu0 %v1321
  %1727 = vmatpush.bf16.msra.mxu0 %v1320
  %1728 = vmatpush.bf16.msra.mxu0 %v1319
  %1729 = vmatpush.bf16.msra.mxu0 %v1318
  %1730 = vmatpush.bf16.msra.mxu0 %v1317
  %1731 = vmatmul.bf16.gmra.mxu0 %v470
  %v1732 = vpop.f32.mrf.mxu0
  %v1733 = vadd.f32 %v1720, %v1732
  %v1734 = vpop.f32.mrf.mxu0
  %1735 = vdwg.mxu0
  %1736 = vmatpush.bf16.msra.mxu0 %v1332
  %1737 = vmatpush.bf16.msra.mxu0 %v1331
  %1738 = vmatpush.bf16.msra.mxu0 %v1330
  %1739 = vmatpush.bf16.msra.mxu0 %v1329
  %1740 = vmatpush.bf16.msra.mxu0 %v1328
  %1741 = vmatpush.bf16.msra.mxu0 %v1327
  %1742 = vmatpush.bf16.msra.mxu0 %v1326
  %1743 = vmatpush.bf16.msra.mxu0 %v1325
  %1744 = vmatmul.bf16.gmra.mxu0 %v471
  %v1745 = vpop.f32.mrf.mxu0
  %v1746 = vadd.f32 %v1733, %v1745
  %v1747 = vpop.f32.mrf.mxu0
  %1748 = vdwg.mxu0
  %1749 = vmatpush.bf16.msra.mxu0 %v1340
  %1750 = vmatpush.bf16.msra.mxu0 %v1339
  %1751 = vmatpush.bf16.msra.mxu0 %v1338
  %1752 = vmatpush.bf16.msra.mxu0 %v1337
  %1753 = vmatpush.bf16.msra.mxu0 %v1336
  %1754 = vmatpush.bf16.msra.mxu0 %v1335
  %1755 = vmatpush.bf16.msra.mxu0 %v1334
  %1756 = vmatpush.bf16.msra.mxu0 %v1333
  %1757 = vmatmul.bf16.gmra.mxu0 %v472
  %v1758 = vpop.f32.mrf.mxu0
  %v1759 = vadd.f32 %v1746, %v1758
  %v1760 = vpop.f32.mrf.mxu0
  %1761 = vdwg.mxu0
  %1762 = vmatpush.bf16.msra.mxu0 %v1348
  %1763 = vmatpush.bf16.msra.mxu0 %v1347
  %1764 = vmatpush.bf16.msra.mxu0 %v1346
  %1765 = vmatpush.bf16.msra.mxu0 %v1345
  %1766 = vmatpush.bf16.msra.mxu0 %v1344
  %1767 = vmatpush.bf16.msra.mxu0 %v1343
  %1768 = vmatpush.bf16.msra.mxu0 %v1342
  %1769 = vmatpush.bf16.msra.mxu0 %v1341
  %1770 = vmatmul.bf16.gmra.mxu0 %v473
  %v1771 = vpop.f32.mrf.mxu0
  %v1772 = vadd.f32 %v1759, %v1771
  %v1773 = vpop.f32.mrf.mxu0
  %1774 = vdwg.mxu0
  %1775 = vmatpush.bf16.msra.mxu0 %v1356
  %1776 = vmatpush.bf16.msra.mxu0 %v1355
  %1777 = vmatpush.bf16.msra.mxu0 %v1354
  %1778 = vmatpush.bf16.msra.mxu0 %v1353
  %1779 = vmatpush.bf16.msra.mxu0 %v1352
  %1780 = vmatpush.bf16.msra.mxu0 %v1351
  %1781 = vmatpush.bf16.msra.mxu0 %v1350
  %1782 = vmatpush.bf16.msra.mxu0 %v1349
  %1783 = vmatmul.bf16.gmra.mxu0 %v474
  %v1784 = vpop.f32.mrf.mxu0
  %v1785 = vadd.f32 %v1772, %v1784
  %v1786 = vpop.f32.mrf.mxu0
  %1787 = vdwg.mxu0
  %1788 = vmatpush.bf16.msra.mxu0 %v1364
  %1789 = vmatpush.bf16.msra.mxu0 %v1363
  %1790 = vmatpush.bf16.msra.mxu0 %v1362
  %1791 = vmatpush.bf16.msra.mxu0 %v1361
  %1792 = vmatpush.bf16.msra.mxu0 %v1360
  %1793 = vmatpush.bf16.msra.mxu0 %v1359
  %1794 = vmatpush.bf16.msra.mxu0 %v1358
  %1795 = vmatpush.bf16.msra.mxu0 %v1357
  %1796 = vmatmul.bf16.gmra.mxu0 %v475
  %v1797 = vpop.f32.mrf.mxu0
  %v1798 = vadd.f32 %v1785, %v1797
  %v1799 = vpop.f32.mrf.mxu0
  %1800 = vdwg.mxu0
  %1801 = vmatpush.bf16.msra.mxu0 %v1372
  %1802 = vmatpush.bf16.msra.mxu0 %v1371
  %1803 = vmatpush.bf16.msra.mxu0 %v1370
  %1804 = vmatpush.bf16.msra.mxu0 %v1369
  %1805 = vmatpush.bf16.msra.mxu0 %v1368
  %1806 = vmatpush.bf16.msra.mxu0 %v1367
  %1807 = vmatpush.bf16.msra.mxu0 %v1366
  %1808 = vmatpush.bf16.msra.mxu0 %v1365
  %1809 = vmatmul.bf16.gmra.mxu0 %v476
  %v1810 = vpop.f32.mrf.mxu0
  %v1811 = vadd.f32 %v1798, %v1810
  %v1812 = vpop.f32.mrf.mxu0
  %1813 = vdwg.mxu0
  %1814 = vmatpush.bf16.msra.mxu0 %v1380
  %1815 = vmatpush.bf16.msra.mxu0 %v1379
  %1816 = vmatpush.bf16.msra.mxu0 %v1378
  %1817 = vmatpush.bf16.msra.mxu0 %v1377
  %1818 = vmatpush.bf16.msra.mxu0 %v1376
  %1819 = vmatpush.bf16.msra.mxu0 %v1375
  %1820 = vmatpush.bf16.msra.mxu0 %v1374
  %1821 = vmatpush.bf16.msra.mxu0 %v1373
  %1822 = vmatmul.bf16.gmra.mxu0 %v477
  %v1823 = vpop.f32.mrf.mxu0
  %v1824 = vadd.f32 %v1811, %v1823
  %v1825 = vpop.f32.mrf.mxu0
  %1826 = vdwg.mxu0
  %1827 = vmatpush.bf16.msra.mxu0 %v1388
  %1828 = vmatpush.bf16.msra.mxu0 %v1387
  %1829 = vmatpush.bf16.msra.mxu0 %v1386
  %1830 = vmatpush.bf16.msra.mxu0 %v1385
  %1831 = vmatpush.bf16.msra.mxu0 %v1384
  %1832 = vmatpush.bf16.msra.mxu0 %v1383
  %1833 = vmatpush.bf16.msra.mxu0 %v1382
  %1834 = vmatpush.bf16.msra.mxu0 %v1381
  %1835 = vmatmul.bf16.gmra.mxu0 %v478
  %v1836 = vpop.f32.mrf.mxu0
  %v1837 = vadd.f32 %v1824, %v1836
  %v1838 = vpop.f32.mrf.mxu0
  %1839 = vdwg.mxu0
  %1840 = vmatpush.bf16.msra.mxu0 %v1396
  %1841 = vmatpush.bf16.msra.mxu0 %v1395
  %1842 = vmatpush.bf16.msra.mxu0 %v1394
  %1843 = vmatpush.bf16.msra.mxu0 %v1393
  %1844 = vmatpush.bf16.msra.mxu0 %v1392
  %1845 = vmatpush.bf16.msra.mxu0 %v1391
  %1846 = vmatpush.bf16.msra.mxu0 %v1390
  %1847 = vmatpush.bf16.msra.mxu0 %v1389
  %1848 = vmatmul.bf16.gmra.mxu0 %v479
  %v1849 = vpop.f32.mrf.mxu0
  %v1850 = vadd.f32 %v1837, %v1849
  %v1851 = vpop.f32.mrf.mxu0
  %1852 = vdwg.mxu0
  %1853 = vmatpush.bf16.msra.mxu0 %v1404
  %1854 = vmatpush.bf16.msra.mxu0 %v1403
  %1855 = vmatpush.bf16.msra.mxu0 %v1402
  %1856 = vmatpush.bf16.msra.mxu0 %v1401
  %1857 = vmatpush.bf16.msra.mxu0 %v1400
  %1858 = vmatpush.bf16.msra.mxu0 %v1399
  %1859 = vmatpush.bf16.msra.mxu0 %v1398
  %1860 = vmatpush.bf16.msra.mxu0 %v1397
  %1861 = vmatmul.bf16.gmra.mxu0 %v480
  %v1862 = vpop.f32.mrf.mxu0
  %v1863 = vadd.f32 %v1850, %v1862
  %v1864 = vpop.f32.mrf.mxu0
  %1865 = vdwg.mxu0
  %1866 = vmatpush.bf16.msra.mxu0 %v1412
  %1867 = vmatpush.bf16.msra.mxu0 %v1411
  %1868 = vmatpush.bf16.msra.mxu0 %v1410
  %1869 = vmatpush.bf16.msra.mxu0 %v1409
  %1870 = vmatpush.bf16.msra.mxu0 %v1408
  %1871 = vmatpush.bf16.msra.mxu0 %v1407
  %1872 = vmatpush.bf16.msra.mxu0 %v1406
  %1873 = vmatpush.bf16.msra.mxu0 %v1405
  %1874 = vmatmul.bf16.gmra.mxu0 %v481
  %v1875 = vpop.f32.mrf.mxu0
  %v1876 = vadd.f32 %v1863, %v1875
  %v1877 = vpop.f32.mrf.mxu0
  %1878 = vdwg.mxu0
  %1879 = vmatpush.bf16.msra.mxu0 %v1420
  %1880 = vmatpush.bf16.msra.mxu0 %v1419
  %1881 = vmatpush.bf16.msra.mxu0 %v1418
  %1882 = vmatpush.bf16.msra.mxu0 %v1417
  %1883 = vmatpush.bf16.msra.mxu0 %v1416
  %1884 = vmatpush.bf16.msra.mxu0 %v1415
  %1885 = vmatpush.bf16.msra.mxu0 %v1414
  %1886 = vmatpush.bf16.msra.mxu0 %v1413
  %1887 = vmatmul.bf16.gmra.mxu0 %v482
  %v1888 = vpop.f32.mrf.mxu0
  %v1889 = vadd.f32 %v1876, %v1888
  %v1890 = vpop.f32.mrf.mxu0
  %1891 = vdwg.mxu0
  %1892 = vmatpush.bf16.msra.mxu0 %v1428
  %1893 = vmatpush.bf16.msra.mxu0 %v1427
  %1894 = vmatpush.bf16.msra.mxu0 %v1426
  %1895 = vmatpush.bf16.msra.mxu0 %v1425
  %1896 = vmatpush.bf16.msra.mxu0 %v1424
  %1897 = vmatpush.bf16.msra.mxu0 %v1423
  %1898 = vmatpush.bf16.msra.mxu0 %v1422
  %1899 = vmatpush.bf16.msra.mxu0 %v1421
  %1900 = vmatmul.bf16.gmra.mxu0 %v483
  %v1901 = vpop.f32.mrf.mxu0
  %v1902 = vadd.f32 %v1889, %v1901
  %v1903 = vpop.f32.mrf.mxu0
  %1904 = vdwg.mxu0
  %1905 = vmatpush.bf16.msra.mxu0 %v1436
  %1906 = vmatpush.bf16.msra.mxu0 %v1435
  %1907 = vmatpush.bf16.msra.mxu0 %v1434
  %1908 = vmatpush.bf16.msra.mxu0 %v1433
  %1909 = vmatpush.bf16.msra.mxu0 %v1432
  %1910 = vmatpush.bf16.msra.mxu0 %v1431
  %1911 = vmatpush.bf16.msra.mxu0 %v1430
  %1912 = vmatpush.bf16.msra.mxu0 %v1429
  %1913 = vmatmul.bf16.gmra.mxu0 %v484
  %v1914 = vpop.f32.mrf.mxu0
  %v1915 = vadd.f32 %v1902, %v1914
  %v1916 = vpop.f32.mrf.mxu0
  %1917 = vdwg.mxu0
  %1918 = vmatpush.bf16.msra.mxu0 %v1444
  %1919 = vmatpush.bf16.msra.mxu0 %v1443
  %1920 = vmatpush.bf16.msra.mxu0 %v1442
  %1921 = vmatpush.bf16.msra.mxu0 %v1441
  %1922 = vmatpush.bf16.msra.mxu0 %v1440
  %1923 = vmatpush.bf16.msra.mxu0 %v1439
  %1924 = vmatpush.bf16.msra.mxu0 %v1438
  %1925 = vmatpush.bf16.msra.mxu0 %v1437
  %1926 = vmatmul.bf16.gmra.mxu0 %v485
  %v1927 = vpop.f32.mrf.mxu0
  %v1928 = vadd.f32 %v1915, %v1927
  %v1929 = vpop.f32.mrf.mxu0
  %1930 = vdwg.mxu0
  %1931 = vmatpush.bf16.msra.mxu0 %v1452
  %1932 = vmatpush.bf16.msra.mxu0 %v1451
  %1933 = vmatpush.bf16.msra.mxu0 %v1450
  %1934 = vmatpush.bf16.msra.mxu0 %v1449
  %1935 = vmatpush.bf16.msra.mxu0 %v1448
  %1936 = vmatpush.bf16.msra.mxu0 %v1447
  %1937 = vmatpush.bf16.msra.mxu0 %v1446
  %1938 = vmatpush.bf16.msra.mxu0 %v1445
  %1939 = vmatmul.bf16.gmra.mxu0 %v486
  %v1940 = vpop.f32.mrf.mxu0
  %v1941 = vadd.f32 %v1928, %v1940
  %v1942 = vpop.f32.mrf.mxu0
  %1943 = vdwg.mxu0
  %1944 = vmatpush.bf16.msra.mxu0 %v1460
  %1945 = vmatpush.bf16.msra.mxu0 %v1459
  %1946 = vmatpush.bf16.msra.mxu0 %v1458
  %1947 = vmatpush.bf16.msra.mxu0 %v1457
  %1948 = vmatpush.bf16.msra.mxu0 %v1456
  %1949 = vmatpush.bf16.msra.mxu0 %v1455
  %1950 = vmatpush.bf16.msra.mxu0 %v1454
  %1951 = vmatpush.bf16.msra.mxu0 %v1453
  %1952 = vmatmul.bf16.gmra.mxu0 %v487
  %v1953 = vpop.f32.mrf.mxu0
  %v1954 = vadd.f32 %v1941, %v1953
  %v1955 = vpop.f32.mrf.mxu0
  %1956 = vdwg.mxu0
  %1957 = vmatpush.bf16.msra.mxu0 %v1468
  %1958 = vmatpush.bf16.msra.mxu0 %v1467
  %1959 = vmatpush.bf16.msra.mxu0 %v1466
  %1960 = vmatpush.bf16.msra.mxu0 %v1465
  %1961 = vmatpush.bf16.msra.mxu0 %v1464
  %1962 = vmatpush.bf16.msra.mxu0 %v1463
  %1963 = vmatpush.bf16.msra.mxu0 %v1462
  %1964 = vmatpush.bf16.msra.mxu0 %v1461
  %1965 = vmatmul.bf16.gmra.mxu0 %v488
  %v1966 = vpop.f32.mrf.mxu0
  %v1967 = vadd.f32 %v1954, %v1966
  %v1968 = vpop.f32.mrf.mxu0
  %1969 = vdwg.mxu0
  %1970 = vmatpush.bf16.msra.mxu0 %v1476
  %1971 = vmatpush.bf16.msra.mxu0 %v1475
  %1972 = vmatpush.bf16.msra.mxu0 %v1474
  %1973 = vmatpush.bf16.msra.mxu0 %v1473
  %1974 = vmatpush.bf16.msra.mxu0 %v1472
  %1975 = vmatpush.bf16.msra.mxu0 %v1471
  %1976 = vmatpush.bf16.msra.mxu0 %v1470
  %1977 = vmatpush.bf16.msra.mxu0 %v1469
  %1978 = vmatmul.bf16.gmra.mxu0 %v489
  %v1979 = vpop.f32.mrf.mxu0
  %v1980 = vadd.f32 %v1967, %v1979
  %v1981 = vpop.f32.mrf.mxu0
  %1982 = vdwg.mxu0
  %1983 = vmatpush.bf16.msra.mxu0 %v1484
  %1984 = vmatpush.bf16.msra.mxu0 %v1483
  %1985 = vmatpush.bf16.msra.mxu0 %v1482
  %1986 = vmatpush.bf16.msra.mxu0 %v1481
  %1987 = vmatpush.bf16.msra.mxu0 %v1480
  %1988 = vmatpush.bf16.msra.mxu0 %v1479
  %1989 = vmatpush.bf16.msra.mxu0 %v1478
  %1990 = vmatpush.bf16.msra.mxu0 %v1477
  %1991 = vmatmul.bf16.gmra.mxu0 %v490
  %v1992 = vpop.f32.mrf.mxu0
  %v1993 = vadd.f32 %v1980, %v1992
  %v1994 = vpop.f32.mrf.mxu0
  %1995 = vdwg.mxu0
  %1996 = vmatpush.bf16.msra.mxu0 %v1492
  %1997 = vmatpush.bf16.msra.mxu0 %v1491
  %1998 = vmatpush.bf16.msra.mxu0 %v1490
  %1999 = vmatpush.bf16.msra.mxu0 %v1489
  %2000 = vmatpush.bf16.msra.mxu0 %v1488
  %2001 = vmatpush.bf16.msra.mxu0 %v1487
  %2002 = vmatpush.bf16.msra.mxu0 %v1486
  %2003 = vmatpush.bf16.msra.mxu0 %v1485
  %2004 = vmatmul.bf16.gmra.mxu0 %v491
  %v2005 = vpop.f32.mrf.mxu0
  %v2006 = vadd.f32 %v1993, %v2005
  %v2007 = vpop.f32.mrf.mxu0
  %2008 = vdwg.mxu0
  %2009 = vmatpush.bf16.msra.mxu0 0
  %2010 = vmatpush.bf16.msra.mxu0 0
  %2011 = vmatpush.bf16.msra.mxu0 0
  %2012 = vmatpush.bf16.msra.mxu0 0
  %2013 = vmatpush.bf16.msra.mxu0 %v1496
  %2014 = vmatpush.bf16.msra.mxu0 %v1495
  %2015 = vmatpush.bf16.msra.mxu0 %v1494
  %2016 = vmatpush.bf16.msra.mxu0 %v1493
  %2017 = vmatmul.bf16.gmra.mxu0 %v1695
  %v2018 = vpop.f32.mrf.mxu0
  %v2019 = vadd.f32 %v2006, %v2018
  %v2020 = vpop.f32.mrf.mxu0
  %2021 = vdwg.mxu0
  %v2022 = vpack.c.bf16 %v2019, %v2019
  %v2023 = vld [vmem:[%s3] sm:$0xf]
  %v2024 = vld [vmem:[%s3 + $0x4] sm:$0xf]
  %v2025 = vld [vmem:[%s3 + $0x8] sm:$0xf]
  %v2026 = vld [vmem:[%s3 + $0xc] sm:$0xf]
  %v2027 = vld [vmem:[%s3 + $0x10] sm:$0xf]
  %v2028 = vld [vmem:[%s3 + $0x14] sm:$0xf]
  %v2029 = vld [vmem:[%s3 + $0x18] sm:$0xf]
  %v2030 = vld [vmem:[%s3 + $0x1c] sm:$0xf]
  %v2031 = vld [vmem:[%s4] sm:$0x1]
  %v2033 = vperm.slane %v2031, 0
  %v2043 = vunpack.c.l.b16 %v2023
  %v2044 = vunpack.c.l.b16 %v2024
  %v2045 = vunpack.c.l.b16 %v2025
  %v2046 = vunpack.c.l.b16 %v2026
  %v2047 = vunpack.c.l.b16 %v2027
  %v2048 = vunpack.c.l.b16 %v2028
  %v2049 = vunpack.c.l.b16 %v2029
  %v2050 = vunpack.c.l.b16 %v2030
  %v2051 = vpack.c.b16 %v2044, %v2043
  %v2052 = vpack.c.b16 %v2046, %v2045
  %v2053 = vpack.c.b16 %v2048, %v2047
  %v2054 = vpack.c.b16 %v2050, %v2049
  %v2060 = vsel %vm1693, %v2022, 0
  %2062 = vmatpush.bf16.msra.mxu0 0
  %2063 = vmatpush.bf16.msra.mxu0 0
  %2064 = vmatpush.bf16.msra.mxu0 0
  %2065 = vmatpush.bf16.msra.mxu0 0
  %2066 = vmatpush.bf16.msra.mxu0 %v2054
  %2067 = vmatpush.bf16.msra.mxu0 %v2053
  %2068 = vmatpush.bf16.msra.mxu0 %v2052
  %2069 = vmatpush.bf16.msra.mxu0 %v2051
  %2070 = vmatmul.bf16.gmra.mxu0 %v2060
  %v2071 = vpop.f32.mrf.mxu0
  %v2072 = vadd.f32 %v2033, %v2071
  %v2073 = vpop.f32.mrf.mxu0
  %2074 = vdwg.mxu0
  %vm2075 = vcmask 80896
  %2076 = vst.msk [vmem:[%s5] sm:$0xff] %vm2075, %v2072
  // Predicated region
  $region22: #{moindrot_cnn_forward.5} parent=0 // pred_check
    _
  $region23: #{moindrot_cnn_forward.5} parent=0 // pred_check_branch
    %2078 = sbr.rel (0) target = $region25
  $region24: #{moindrot_cnn_forward.5} parent=0 // pred_region
    _
  $region25: #{moindrot_cnn_forward.5} parent=0 // pred_fallthru
    _
  // Predicated region
  $region26: #{moindrot_cnn_forward.5} parent=0 // pred_check
    _
  $region27: #{moindrot_cnn_forward.5} parent=0 // pred_check_branch
    %2080 = sbr.rel (0) target = $region29
  $region28: #{moindrot_cnn_forward.5} parent=0 // pred_region
    _
  $region29: #{moindrot_cnn_forward.5} parent=0 // pred_fallthru
    _

// kernel: moindrot_cnn_forward.3
$region0: #{moindrot_cnn_forward.3}
  #allocation0 [shape = 'u32[]', space=smem, size = 0x4, offset = 0x4, fixed_abs, tag = 'smem constant byte address 0x4 - core index']
  #allocation1 [shape = 'u32[72,128]{1,0:T(1,128)}', space=vmem, size = 0x9000, scoped, tag = 'internal scratch']
  %s0 = inlined_call_operand.vmem [shape: f32[8,30,30], index: 0, kind: input, shape index: {}]
  %s1 = inlined_call_operand.hbm [shape: f32[6,30,448], index: 1, kind: input, shape index: {}]
  %s2 = inlined_call_operand.hbm [shape: f32[1,448], index: 2, kind: input, shape index: {}]
  %s3 = inlined_call_operand.hbm [shape: f32[1,448], index: 3, kind: input, shape index: {}]
  %s4 = inlined_call_operand.vmem [shape: bf16[8,16,16,32], index: 4, kind: output, shape index: {}]
  %s5 = sld [smem:[#allocation0]]
  $region68: #{moindrot_cnn_forward.3} parent=0
    _
  %s7 = ssub.s32 1, %s5
  %s8 = scalar_select 0, %s7, %s5
  $region1: #{moindrot_cnn_forward.3} parent=0
    #allocation2 [shape = 'u8[393216]{0}', space=vmem, size = 0x60000, scoped, tag = 'input window, operand 1, single buffered']
    #allocation3 [shape = 's32[2]{0}', space=sflag, size = 0x8, scoped, tag = 'scoped memory for moindrot_cnn_forward.3']
    #allocation4 [shape = 'u8[2048]{0}', space=vmem, size = 0x800, scoped, tag = 'input window, operand 2, single buffered']
    #allocation5 [shape = 's32[1]{0}', space=sflag, size = 0x4, scoped, tag = 'scoped memory for moindrot_cnn_forward.3']
    #allocation6 [shape = 'u8[2048]{0}', space=vmem, size = 0x800, scoped, tag = 'input window, operand 3, single buffered']
    %9 = vsyncpa [#allocation3], 0
    %10 = vsyncpa [#allocation5], 0
    loop: start=0, step=1, limit=4
    $region2: #{moindrot_cnn_forward.3} parent=1 // loop_pre_header
      _
    $region3: #{moindrot_cnn_forward.3} parent=1 // loop_header
      %s12 = sphi 0, %s16
      %p13 = scmp.ge.s32.totalorder %s12, 4
      %s22 = sphi 0, %s24
      %s25 = sphi 0, %s22
      %s26 = sphi 0, %s25
      %s42 = sphi 0, %s26
      %s46 = sphi 0, %s46
      %s48 = sphi 0, %s46
      %s49 = sphi 0, %s48
      %s63 = sphi 0, %s49
      %s67 = sphi 0, %s67
      %s69 = sphi 0, %s67
      %s70 = sphi 0, %s69
      %s84 = sphi 0, %s70
      %s88 = sphi 0, %s88
      %s90 = sphi 0, %s88
      %s91 = sphi 0, %s90
      %s105 = sphi 0, %s91
      %s111 = sphi 0, %s113
      %s114 = sphi 0, %s111
      %s115 = sphi 0, %s114
      %s131 = sphi 0, %s115
    $region4: #{moindrot_cnn_forward.3} parent=1 // loop_header_branch
      %15 = sbr.rel (%p13) target = $region8
    $region5: #{moindrot_cnn_forward.3} parent=1 // loop_body
      %s17 = ssub.s32 %s12, 1
      %s18 = ssub.s32 %s12, 2
      %s19 = sadd.s32 %s12, 1
      %s20 = ssub.s32 %s12, %s19
      %p21 = scmp.eq.s32.totalorder %s20, 0
      %s23 = sadd.s32 %s22, 1
      %s24 = scalar_select %p21, %s22, %s23
      %p27 = pneg %p21
      %p28 = scmp.eq.s32.totalorder %s12, 1
      %p29 = por %p27, %p28
      %p30 = scmp.ne.s32.totalorder %s22, %s25
      %p31 = scmp.eq.s32.totalorder %s12, 0
      %p32 = por %p30, %p31
      %p33 = scmp.ne.s32.totalorder %s22, %s25
      %p34 = scmp.eq.s32.totalorder %s17, 1
      %p35 = por %p33, %p34
      %p36 = scmp.ne.s32.totalorder %s25, %s26
      %p37 = scmp.eq.s32.totalorder %s17, 0
      %p38 = por %p36, %p37
      %p39 = scmp.ne.s32.totalorder %s25, %s26
      %p40 = scmp.eq.s32.totalorder %s18, 1
      %p41 = por %p39, %p40
      %p43 = scmp.ne.s32.totalorder %s26, %s42
      %p44 = scmp.eq.s32.totalorder %s18, 0
      %p45 = por %p43, %p44
      %s47 = sadd.s32 %s46, 1
      %p50 = scmp.eq.s32.totalorder %s12, 1
      %p51 = scmp.ne.s32.totalorder %s46, %s48
      %p52 = scmp.eq.s32.totalorder %s12, 0
      %p53 = por %p51, %p52
      %p54 = scmp.ne.s32.totalorder %s46, %s48
      %p55 = scmp.eq.s32.totalorder %s17, 1
      %p56 = por %p54, %p55
      %p57 = scmp.ne.s32.totalorder %s48, %s49
      %p58 = scmp.eq.s32.totalorder %s17, 0
      %p59 = por %p57, %p58
      %p60 = scmp.ne.s32.totalorder %s48, %s49
      %p61 = scmp.eq.s32.totalorder %s18, 1
      %p62 = por %p60, %p61
      %p64 = scmp.ne.s32.totalorder %s49, %s63
      %p65 = scmp.eq.s32.totalorder %s18, 0
      %p66 = por %p64, %p65
      %s68 = sadd.s32 %s67, 1
      %p71 = scmp.eq.s32.totalorder %s12, 1
      %p72 = scmp.ne.s32.totalorder %s67, %s69
      %p73 = scmp.eq.s32.totalorder %s12, 0
      %p74 = por %p72, %p73
      %p75 = scmp.ne.s32.totalorder %s67, %s69
      %p76 = scmp.eq.s32.totalorder %s17, 1
      %p77 = por %p75, %p76
      %p78 = scmp.ne.s32.totalorder %s69, %s70
      %p79 = scmp.eq.s32.totalorder %s17, 0
      %p80 = por %p78, %p79
      %p81 = scmp.ne.s32.totalorder %s69, %s70
      %p82 = scmp.eq.s32.totalorder %s18, 1
      %p83 = por %p81, %p82
      %p85 = scmp.ne.s32.totalorder %s70, %s84
      %p86 = scmp.eq.s32.totalorder %s18, 0
      %p87 = por %p85, %p86
      %s89 = sadd.s32 %s88, 1
      %p92 = scmp.eq.s32.totalorder %s12, 1
      %p93 = scmp.ne.s32.totalorder %s88, %s90
      %p94 = scmp.eq.s32.totalorder %s12, 0
      %p95 = por %p93, %p94
      %p96 = scmp.ne.s32.totalorder %s88, %s90
      %p97 = scmp.eq.s32.totalorder %s17, 1
      %p98 = por %p96, %p97
      %p99 = scmp.ne.s32.totalorder %s90, %s91
      %p100 = scmp.eq.s32.totalorder %s17, 0
      %p101 = por %p99, %p100
      %p102 = scmp.ne.s32.totalorder %s90, %s91
      %p103 = scmp.eq.s32.totalorder %s18, 1
      %p104 = por %p102, %p103
      %p106 = scmp.ne.s32.totalorder %s91, %s105
      %p107 = scmp.eq.s32.totalorder %s18, 0
      %p108 = por %p106, %p107
      %s109 = ssub.s32 %s12, %s19
      %p110 = scmp.eq.s32.totalorder %s109, 0
      %s112 = sadd.s32 %s111, 1
      %s113 = scalar_select %p110, %s111, %s112
      %p116 = pneg %p110
      %p117 = scmp.eq.s32.totalorder %s12, 1
      %p118 = por %p116, %p117
      %p119 = scmp.ne.s32.totalorder %s111, %s114
      %p120 = scmp.eq.s32.totalorder %s12, 0
      %p121 = por %p119, %p120
      %p122 = scmp.ne.s32.totalorder %s111, %s114
      %p123 = scmp.eq.s32.totalorder %s17, 1
      %p124 = por %p122, %p123
      %p125 = scmp.ne.s32.totalorder %s114, %s115
      %p126 = scmp.eq.s32.totalorder %s17, 0
      %p127 = por %p125, %p126
      %p128 = scmp.ne.s32.totalorder %s114, %s115
      %p129 = scmp.eq.s32.totalorder %s18, 1
      %p130 = por %p128, %p129
      %p132 = scmp.ne.s32.totalorder %s115, %s131
      %p133 = scmp.eq.s32.totalorder %s18, 0
      %p134 = por %p132, %p133
      %p135 = scmp.le.s32.totalorder 1, %s12
      %p136 = scmp.lt.s32.totalorder %s12, 3
      %p137 = pnand %p135, %p136
      %p138 = pneg %p137
      // Predicated region
      $region9: #{moindrot_cnn_forward.3} parent=5 // pred_check
        _
      $region10: #{moindrot_cnn_forward.3} parent=5 // pred_check_branch
        %140 = sbr.rel (%p137) target = $region12
      $region11: #{moindrot_cnn_forward.3} parent=5 // pred_region
        %s141 = ssub.s32 %s12, 1
        // Predicated region
        $region13: #{moindrot_cnn_forward.3} parent=11 // pred_check
          %p142 = pneg %p59
        $region14: #{moindrot_cnn_forward.3} parent=11 // pred_check_branch
          %144 = sbr.rel (%p142) target = $region16
        $region15: #{moindrot_cnn_forward.3} parent=11 // pred_region
          %146 = vsyncadd [#allocation3], 0
          %s147 = sshll.u32 %s1, 4
          %s148 = int_to_ptr.hbm [resolvable:$true] %s147
          %s149 = sshll.u32 [#allocation2], 4
          %s150 = int_to_ptr.vmem [resolvable:$true] %s149
          %155 = dma.hbm_to_vmem [thread:$0]  %s148, 12288, %s150, [#allocation3], 512, 512, 32
        $region16: #{moindrot_cnn_forward.3} parent=11 // pred_fallthru
          _
        // Predicated region
        $region17: #{moindrot_cnn_forward.3} parent=11 // pred_check
          %p156 = pneg %p80
        $region18: #{moindrot_cnn_forward.3} parent=11 // pred_check_branch
          %158 = sbr.rel (%p156) target = $region20
        $region19: #{moindrot_cnn_forward.3} parent=11 // pred_region
          %160 = vsyncadd [#allocation5], 0
          %s162 = sshll.u32 %s2, 4
          %s163 = int_to_ptr.hbm [resolvable:$true] %s162
          %s164 = sshll.u32 [#allocation4], 4
          %s165 = int_to_ptr.vmem [resolvable:$true] %s164
          %167 = dma.hbm_to_vmem [thread:$0]  %s163, 64, %s165, [#allocation5]
        $region20: #{moindrot_cnn_forward.3} parent=11 // pred_fallthru
          _
        // Predicated region
        $region21: #{moindrot_cnn_forward.3} parent=11 // pred_check
          %p168 = pneg %p101
        $region22: #{moindrot_cnn_forward.3} parent=11 // pred_check_branch
          %170 = sbr.rel (%p168) target = $region24
        $region23: #{moindrot_cnn_forward.3} parent=11 // pred_region
          %172 = vsyncadd [#allocation5], 0
          %s174 = sshll.u32 %s3, 4
          %s175 = int_to_ptr.hbm [resolvable:$true] %s174
          %s176 = sshll.u32 [#allocation6], 4
          %s177 = int_to_ptr.vmem [resolvable:$true] %s176
          %179 = dma.hbm_to_vmem [thread:$0]  %s175, 64, %s177, [#allocation5]
        $region24: #{moindrot_cnn_forward.3} parent=11 // pred_fallthru
          _
      $region12: #{moindrot_cnn_forward.3} parent=5 // pred_fallthru
        _
      %p180 = scmp.lt.s32.totalorder %s12, 2
      // Predicated region
      $region25: #{moindrot_cnn_forward.3} parent=5 // pred_check
        %p181 = pneg %p180
      $region26: #{moindrot_cnn_forward.3} parent=5 // pred_check_branch
        %183 = sbr.rel (%p181) target = $region28
      $region27: #{moindrot_cnn_forward.3} parent=5 // pred_region
        // Predicated region
        $region29: #{moindrot_cnn_forward.3} parent=27 // pred_check
          %p184 = pneg %p32
        $region30: #{moindrot_cnn_forward.3} parent=27 // pred_check_branch
          %186 = sbr.rel (%p184) target = $region32
        $region31: #{moindrot_cnn_forward.3} parent=27 // pred_region
          %s187 = smul.u32 4, %s12
          %p188 = scmp.lt.s32.totalorder %s187, 7
          %s189 = scalar_select %p188, %s187, 7
          %s190 = smul.addr %s189, 4
          %s191 = smul.addr %s190, 8
          %s192 = scalar_lea.vmem %s0, %s191
          %s193 = smul.u32 4, %s12
        $region32: #{moindrot_cnn_forward.3} parent=27 // pred_fallthru
          _
      $region28: #{moindrot_cnn_forward.3} parent=5 // pred_fallthru
        _
      %p194 = scmp.le.s32.totalorder 1, %s12
      %p195 = scmp.lt.s32.totalorder %s12, 3
      %p196 = pnand %p194, %p195
      %p197 = pneg %p196
      // Predicated region
      $region33: #{moindrot_cnn_forward.3} parent=5 // pred_check
        _
      $region34: #{moindrot_cnn_forward.3} parent=5 // pred_check_branch
        %199 = sbr.rel (%p196) target = $region36
      $region35: #{moindrot_cnn_forward.3} parent=5 // pred_region
        %s200 = ssub.s32 %s12, 1
        // Predicated region
        $region37: #{moindrot_cnn_forward.3} parent=35 // pred_check
          %p201 = pneg %p59
        $region38: #{moindrot_cnn_forward.3} parent=35 // pred_check_branch
          %203 = sbr.rel (%p201) target = $region40
        $region39: #{moindrot_cnn_forward.3} parent=35 // pred_region
          %205 = dma.done [#allocation3], 12288
        $region40: #{moindrot_cnn_forward.3} parent=35 // pred_fallthru
          _
        // Predicated region
        $region41: #{moindrot_cnn_forward.3} parent=35 // pred_check
          %p206 = pneg %p80
        $region42: #{moindrot_cnn_forward.3} parent=35 // pred_check_branch
          %208 = sbr.rel (%p206) target = $region44
        $region43: #{moindrot_cnn_forward.3} parent=35 // pred_region
          %210 = dma.done [#allocation5], 64
        $region44: #{moindrot_cnn_forward.3} parent=35 // pred_fallthru
          _
        // Predicated region
        $region45: #{moindrot_cnn_forward.3} parent=35 // pred_check
          %p211 = pneg %p101
        $region46: #{moindrot_cnn_forward.3} parent=35 // pred_check_branch
          %213 = sbr.rel (%p211) target = $region48
        $region47: #{moindrot_cnn_forward.3} parent=35 // pred_region
          %215 = dma.done [#allocation5], 64
        $region48: #{moindrot_cnn_forward.3} parent=35 // pred_fallthru
          _
        %s216 = smul.u32 4, %s17
        %p217 = scmp.lt.s32.totalorder %s216, 7
        %s218 = scalar_select %p217, %s216, 7
        %s219 = smul.addr %s218, 4
        %s220 = smul.addr %s219, 8
        %s221 = scalar_lea.vmem %s0, %s220
        %p222 = pneg %p38
        %p223 = pneg %p35
        %p224 = pneg %p59
        %p225 = pneg %p56
        %p226 = pneg %p80
        %p227 = pneg %p77
        %p228 = pneg %p101
        %p229 = pneg %p98
        %p230 = pneg %p127
        %p231 = pneg %p124
        %s232 = smul.u32 4, %s17
        %p233 = scmp.lt.s32.totalorder %s232, 7
        %s234 = scalar_select %p233, %s232, 7
        %s235 = smul.addr %s234, 32
        %s236 = smul.addr %s235, 4
        %s237 = scalar_lea.vmem %s4, %s236
        %s238 = smul.u32 4, %s17
        %p239 = scmp.lt.s32.totalorder %s238, 7
        %s240 = scalar_select %p239, %s238, 7
        %s241 = smul.addr %s240, 4
        %s242 = smul.addr %s241, 8
        %s243 = scalar_lea.vmem %s0, %s242
        %s244 = smul.u32 4, %s17
        %s245 = smul.u32 4, %s17
        %p246 = scmp.lt.s32.totalorder %s245, 7
        %s247 = scalar_select %p246, %s245, 7
        %s248 = smul.addr %s247, 32
        %s249 = smul.addr %s248, 4
        %s250 = scalar_lea.vmem %s4, %s249
        %s251 = smul.u32 4, %s17
        %vm253 = vcmask 257024
        %254 = vst.msk [vmem:[%s250] sm:$0xf] %vm253, 0
        %255 = vst.msk [vmem:[%s250 + $0x4] sm:$0xf] %vm253, 0
        %256 = vst.msk [vmem:[%s250 + $0x8] sm:$0xf] %vm253, 0
        %257 = vst.msk [vmem:[%s250 + $0xc] sm:$0xf] %vm253, 0
        %258 = vst.msk [vmem:[%s250 + $0x10] sm:$0xf] %vm253, 0
        %259 = vst.msk [vmem:[%s250 + $0x14] sm:$0xf] %vm253, 0
        %260 = vst.msk [vmem:[%s250 + $0x18] sm:$0xf] %vm253, 0
        %261 = vst.msk [vmem:[%s250 + $0x1c] sm:$0xf] %vm253, 0
        %262 = vst.msk [vmem:[%s250 + $0x20] sm:$0xf] %vm253, 0
        %263 = vst.msk [vmem:[%s250 + $0x24] sm:$0xf] %vm253, 0
        %264 = vst.msk [vmem:[%s250 + $0x28] sm:$0xf] %vm253, 0
        %265 = vst.msk [vmem:[%s250 + $0x2c] sm:$0xf] %vm253, 0
        %266 = vst.msk [vmem:[%s250 + $0x30] sm:$0xf] %vm253, 0
        %267 = vst.msk [vmem:[%s250 + $0x34] sm:$0xf] %vm253, 0
        %268 = vst.msk [vmem:[%s250 + $0x38] sm:$0xf] %vm253, 0
        %269 = vst.msk [vmem:[%s250 + $0x3c] sm:$0xf] %vm253, 0
        %270 = vst.msk [vmem:[%s250 + $0x40] sm:$0xf] %vm253, 0
        %271 = vst.msk [vmem:[%s250 + $0x44] sm:$0xf] %vm253, 0
        %272 = vst.msk [vmem:[%s250 + $0x48] sm:$0xf] %vm253, 0
        %273 = vst.msk [vmem:[%s250 + $0x4c] sm:$0xf] %vm253, 0
        %274 = vst.msk [vmem:[%s250 + $0x50] sm:$0xf] %vm253, 0
        %275 = vst.msk [vmem:[%s250 + $0x54] sm:$0xf] %vm253, 0
        %276 = vst.msk [vmem:[%s250 + $0x58] sm:$0xf] %vm253, 0
        %277 = vst.msk [vmem:[%s250 + $0x5c] sm:$0xf] %vm253, 0
        %278 = vst.msk [vmem:[%s250 + $0x60] sm:$0xf] %vm253, 0
        %279 = vst.msk [vmem:[%s250 + $0x64] sm:$0xf] %vm253, 0
        %280 = vst.msk [vmem:[%s250 + $0x68] sm:$0xf] %vm253, 0
        %281 = vst.msk [vmem:[%s250 + $0x6c] sm:$0xf] %vm253, 0
        %282 = vst.msk [vmem:[%s250 + $0x70] sm:$0xf] %vm253, 0
        %283 = vst.msk [vmem:[%s250 + $0x74] sm:$0xf] %vm253, 0
        %284 = vst.msk [vmem:[%s250 + $0x78] sm:$0xf] %vm253, 0
        %285 = vst.msk [vmem:[%s250 + $0x7c] sm:$0xf] %vm253, 0
        %286 = vst.msk [vmem:[%s250 + $0x80] sm:$0xf] %vm253, 0
        %287 = vst.msk [vmem:[%s250 + $0x84] sm:$0xf] %vm253, 0
        %288 = vst.msk [vmem:[%s250 + $0x88] sm:$0xf] %vm253, 0
        %289 = vst.msk [vmem:[%s250 + $0x8c] sm:$0xf] %vm253, 0
        %290 = vst.msk [vmem:[%s250 + $0x90] sm:$0xf] %vm253, 0
        %291 = vst.msk [vmem:[%s250 + $0x94] sm:$0xf] %vm253, 0
        %292 = vst.msk [vmem:[%s250 + $0x98] sm:$0xf] %vm253, 0
        %293 = vst.msk [vmem:[%s250 + $0x9c] sm:$0xf] %vm253, 0
        %294 = vst.msk [vmem:[%s250 + $0xa0] sm:$0xf] %vm253, 0
        %295 = vst.msk [vmem:[%s250 + $0xa4] sm:$0xf] %vm253, 0
        %296 = vst.msk [vmem:[%s250 + $0xa8] sm:$0xf] %vm253, 0
        %297 = vst.msk [vmem:[%s250 + $0xac] sm:$0xf] %vm253, 0
        %298 = vst.msk [vmem:[%s250 + $0xb0] sm:$0xf] %vm253, 0
        %299 = vst.msk [vmem:[%s250 + $0xb4] sm:$0xf] %vm253, 0
        %300 = vst.msk [vmem:[%s250 + $0xb8] sm:$0xf] %vm253, 0
        %301 = vst.msk [vmem:[%s250 + $0xbc] sm:$0xf] %vm253, 0
        %302 = vst.msk [vmem:[%s250 + $0xc0] sm:$0xf] %vm253, 0
        %303 = vst.msk [vmem:[%s250 + $0xc4] sm:$0xf] %vm253, 0
        %304 = vst.msk [vmem:[%s250 + $0xc8] sm:$0xf] %vm253, 0
        %305 = vst.msk [vmem:[%s250 + $0xcc] sm:$0xf] %vm253, 0
        %306 = vst.msk [vmem:[%s250 + $0xd0] sm:$0xf] %vm253, 0
        %307 = vst.msk [vmem:[%s250 + $0xd4] sm:$0xf] %vm253, 0
        %308 = vst.msk [vmem:[%s250 + $0xd8] sm:$0xf] %vm253, 0
        %309 = vst.msk [vmem:[%s250 + $0xdc] sm:$0xf] %vm253, 0
        %310 = vst.msk [vmem:[%s250 + $0xe0] sm:$0xf] %vm253, 0
        %311 = vst.msk [vmem:[%s250 + $0xe4] sm:$0xf] %vm253, 0
        %312 = vst.msk [vmem:[%s250 + $0xe8] sm:$0xf] %vm253, 0
        %313 = vst.msk [vmem:[%s250 + $0xec] sm:$0xf] %vm253, 0
        %314 = vst.msk [vmem:[%s250 + $0xf0] sm:$0xf] %vm253, 0
        %315 = vst.msk [vmem:[%s250 + $0xf4] sm:$0xf] %vm253, 0
        %316 = vst.msk [vmem:[%s250 + $0xf8] sm:$0xf] %vm253, 0
        %317 = vst.msk [vmem:[%s250 + $0xfc] sm:$0xf] %vm253, 0
        %318 = vst.msk [vmem:[%s250 + $0x100] sm:$0xf] %vm253, 0
        %319 = vst.msk [vmem:[%s250 + $0x104] sm:$0xf] %vm253, 0
        %320 = vst.msk [vmem:[%s250 + $0x108] sm:$0xf] %vm253, 0
        %321 = vst.msk [vmem:[%s250 + $0x10c] sm:$0xf] %vm253, 0
        %322 = vst.msk [vmem:[%s250 + $0x110] sm:$0xf] %vm253, 0
        %323 = vst.msk [vmem:[%s250 + $0x114] sm:$0xf] %vm253, 0
        %324 = vst.msk [vmem:[%s250 + $0x118] sm:$0xf] %vm253, 0
        %325 = vst.msk [vmem:[%s250 + $0x11c] sm:$0xf] %vm253, 0
        %326 = vst.msk [vmem:[%s250 + $0x120] sm:$0xf] %vm253, 0
        %327 = vst.msk [vmem:[%s250 + $0x124] sm:$0xf] %vm253, 0
        %328 = vst.msk [vmem:[%s250 + $0x128] sm:$0xf] %vm253, 0
        %329 = vst.msk [vmem:[%s250 + $0x12c] sm:$0xf] %vm253, 0
        %330 = vst.msk [vmem:[%s250 + $0x130] sm:$0xf] %vm253, 0
        %331 = vst.msk [vmem:[%s250 + $0x134] sm:$0xf] %vm253, 0
        %332 = vst.msk [vmem:[%s250 + $0x138] sm:$0xf] %vm253, 0
        %333 = vst.msk [vmem:[%s250 + $0x13c] sm:$0xf] %vm253, 0
        %334 = vst.msk [vmem:[%s250 + $0x140] sm:$0xf] %vm253, 0
        %335 = vst.msk [vmem:[%s250 + $0x144] sm:$0xf] %vm253, 0
        %336 = vst.msk [vmem:[%s250 + $0x148] sm:$0xf] %vm253, 0
        %337 = vst.msk [vmem:[%s250 + $0x14c] sm:$0xf] %vm253, 0
        %338 = vst.msk [vmem:[%s250 + $0x150] sm:$0xf] %vm253, 0
        %339 = vst.msk [vmem:[%s250 + $0x154] sm:$0xf] %vm253, 0
        %340 = vst.msk [vmem:[%s250 + $0x158] sm:$0xf] %vm253, 0
        %341 = vst.msk [vmem:[%s250 + $0x15c] sm:$0xf] %vm253, 0
        %342 = vst.msk [vmem:[%s250 + $0x160] sm:$0xf] %vm253, 0
        %343 = vst.msk [vmem:[%s250 + $0x164] sm:$0xf] %vm253, 0
        %344 = vst.msk [vmem:[%s250 + $0x168] sm:$0xf] %vm253, 0
        %345 = vst.msk [vmem:[%s250 + $0x16c] sm:$0xf] %vm253, 0
        %346 = vst.msk [vmem:[%s250 + $0x170] sm:$0xf] %vm253, 0
        %347 = vst.msk [vmem:[%s250 + $0x174] sm:$0xf] %vm253, 0
        %348 = vst.msk [vmem:[%s250 + $0x178] sm:$0xf] %vm253, 0
        %349 = vst.msk [vmem:[%s250 + $0x17c] sm:$0xf] %vm253, 0
        %350 = vst.msk [vmem:[%s250 + $0x180] sm:$0xf] %vm253, 0
        %351 = vst.msk [vmem:[%s250 + $0x184] sm:$0xf] %vm253, 0
        %352 = vst.msk [vmem:[%s250 + $0x188] sm:$0xf] %vm253, 0
        %353 = vst.msk [vmem:[%s250 + $0x18c] sm:$0xf] %vm253, 0
        %354 = vst.msk [vmem:[%s250 + $0x190] sm:$0xf] %vm253, 0
        %355 = vst.msk [vmem:[%s250 + $0x194] sm:$0xf] %vm253, 0
        %356 = vst.msk [vmem:[%s250 + $0x198] sm:$0xf] %vm253, 0
        %357 = vst.msk [vmem:[%s250 + $0x19c] sm:$0xf] %vm253, 0
        %358 = vst.msk [vmem:[%s250 + $0x1a0] sm:$0xf] %vm253, 0
        %359 = vst.msk [vmem:[%s250 + $0x1a4] sm:$0xf] %vm253, 0
        %360 = vst.msk [vmem:[%s250 + $0x1a8] sm:$0xf] %vm253, 0
        %361 = vst.msk [vmem:[%s250 + $0x1ac] sm:$0xf] %vm253, 0
        %362 = vst.msk [vmem:[%s250 + $0x1b0] sm:$0xf] %vm253, 0
        %363 = vst.msk [vmem:[%s250 + $0x1b4] sm:$0xf] %vm253, 0
        %364 = vst.msk [vmem:[%s250 + $0x1b8] sm:$0xf] %vm253, 0
        %365 = vst.msk [vmem:[%s250 + $0x1bc] sm:$0xf] %vm253, 0
        %366 = vst.msk [vmem:[%s250 + $0x1c0] sm:$0xf] %vm253, 0
        %367 = vst.msk [vmem:[%s250 + $0x1c4] sm:$0xf] %vm253, 0
        %368 = vst.msk [vmem:[%s250 + $0x1c8] sm:$0xf] %vm253, 0
        %369 = vst.msk [vmem:[%s250 + $0x1cc] sm:$0xf] %vm253, 0
        %370 = vst.msk [vmem:[%s250 + $0x1d0] sm:$0xf] %vm253, 0
        %371 = vst.msk [vmem:[%s250 + $0x1d4] sm:$0xf] %vm253, 0
        %372 = vst.msk [vmem:[%s250 + $0x1d8] sm:$0xf] %vm253, 0
        %373 = vst.msk [vmem:[%s250 + $0x1dc] sm:$0xf] %vm253, 0
        %374 = vst.msk [vmem:[%s250 + $0x1e0] sm:$0xf] %vm253, 0
        %375 = vst.msk [vmem:[%s250 + $0x1e4] sm:$0xf] %vm253, 0
        %376 = vst.msk [vmem:[%s250 + $0x1e8] sm:$0xf] %vm253, 0
        %377 = vst.msk [vmem:[%s250 + $0x1ec] sm:$0xf] %vm253, 0
        %378 = vst.msk [vmem:[%s250 + $0x1f0] sm:$0xf] %vm253, 0
        %379 = vst.msk [vmem:[%s250 + $0x1f4] sm:$0xf] %vm253, 0
        %380 = vst.msk [vmem:[%s250 + $0x1f8] sm:$0xf] %vm253, 0
        %381 = vst.msk [vmem:[%s250 + $0x1fc] sm:$0xf] %vm253, 0
        %v382 = vld [vmem:[#allocation4] sm:$0xf]
        %v383 = vld [vmem:[#allocation6] sm:$0xf]
        loop: start=0, step=1, limit=4
        $region49: #{moindrot_cnn_forward.3} parent=35 // loop_pre_header
          _
        $region50: #{moindrot_cnn_forward.3} parent=35 // loop_header
          %s385 = sphi 0, %s389
          %p386 = scmp.ge.s32.totalorder %s385, 4
        $region51: #{moindrot_cnn_forward.3} parent=35 // loop_header_branch
          %388 = sbr.rel (%p386) target = $region55
        $region52: #{moindrot_cnn_forward.3} parent=35 // loop_body
          %s390 = smul.u32 %s385, 32
          %s391 = scalar_lea.vmem %s243, %s390
          %v392 = vld [vmem:[%s391] sm:$0xff]
          %v393 = vld [vmem:[%s391 + $0x8] sm:$0xff]
          %v394 = vld [vmem:[%s391 + $0x10] sm:$0xff]
          %v395 = vld [vmem:[%s391 + $0x18] sm:$0xf]
          %v396 = vld [vmem:[#allocation2] sm:$0xff]
          %v397 = vld [vmem:[#allocation2 + $0x8] sm:$0xff]
          %v398 = vld [vmem:[#allocation2 + $0x10] sm:$0xff]
          %v399 = vld [vmem:[#allocation2 + $0x18] sm:$0xff]
          %v400 = vld [vmem:[#allocation2 + $0x20] sm:$0xff]
          %v401 = vld [vmem:[#allocation2 + $0x28] sm:$0xff]
          %v402 = vld [vmem:[#allocation2 + $0x30] sm:$0xff]
          %v403 = vld [vmem:[#allocation2 + $0x38] sm:$0xff]
          %v404 = vld [vmem:[#allocation2 + $0x40] sm:$0xff]
          %v405 = vld [vmem:[#allocation2 + $0x48] sm:$0xff]
          %v406 = vld [vmem:[#allocation2 + $0x50] sm:$0xff]
          %v407 = vld [vmem:[#allocation2 + $0x58] sm:$0xff]
          %v408 = vld [vmem:[#allocation2 + $0x60] sm:$0x3f]
          %v409 = vld [vmem:[#allocation2 + $0x68] sm:$0x3f]
          %v410 = vld [vmem:[#allocation2 + $0x70] sm:$0x3f]
          %v411 = vld [vmem:[#allocation2 + $0x78] sm:$0x3f]
          %s412 = scalar_lea.vmem [#allocation2], 384
          %v413 = vld [vmem:[%s412] sm:$0xff]
          %v414 = vld [vmem:[%s412 + $0x8] sm:$0xff]
          %v415 = vld [vmem:[%s412 + $0x10] sm:$0xff]
          %v416 = vld [vmem:[%s412 + $0x18] sm:$0xff]
          %v417 = vld [vmem:[%s412 + $0x20] sm:$0xff]
          %v418 = vld [vmem:[%s412 + $0x28] sm:$0xff]
          %v419 = vld [vmem:[%s412 + $0x30] sm:$0xff]
          %v420 = vld [vmem:[%s412 + $0x38] sm:$0xff]
          %v421 = vld [vmem:[%s412 + $0x40] sm:$0xff]
          %v422 = vld [vmem:[%s412 + $0x48] sm:$0xff]
          %v423 = vld [vmem:[%s412 + $0x50] sm:$0xff]
          %v424 = vld [vmem:[%s412 + $0x58] sm:$0xff]
          %v425 = vld [vmem:[%s412 + $0x60] sm:$0x3f]
          %v426 = vld [vmem:[%s412 + $0x68] sm:$0x3f]
          %v427 = vld [vmem:[%s412 + $0x70] sm:$0x3f]
          %v428 = vld [vmem:[%s412 + $0x78] sm:$0x3f]
          %v429 = vld [vmem:[%s391 + $0x1] sm:$0xff]
          %v430 = vld [vmem:[%s391 + $0x9] sm:$0xff]
          %v431 = vld [vmem:[%s391 + $0x11] sm:$0xff]
          %v432 = vld [vmem:[%s391 + $0x19] sm:$0xf]
          %s433 = scalar_lea.vmem [#allocation2], 128
          %v434 = vld [vmem:[%s433] sm:$0xff]
          %v435 = vld [vmem:[%s433 + $0x8] sm:$0xff]
          %v436 = vld [vmem:[%s433 + $0x10] sm:$0xff]
          %v437 = vld [vmem:[%s433 + $0x18] sm:$0xff]
          %v438 = vld [vmem:[%s433 + $0x20] sm:$0xff]
          %v439 = vld [vmem:[%s433 + $0x28] sm:$0xff]
          %v440 = vld [vmem:[%s433 + $0x30] sm:$0xff]
          %v441 = vld [vmem:[%s433 + $0x38] sm:$0xff]
          %v442 = vld [vmem:[%s433 + $0x40] sm:$0xff]
          %v443 = vld [vmem:[%s433 + $0x48] sm:$0xff]
          %v444 = vld [vmem:[%s433 + $0x50] sm:$0xff]
          %v445 = vld [vmem:[%s433 + $0x58] sm:$0xff]
          %v446 = vld [vmem:[%s433 + $0x60] sm:$0x3f]
          %v447 = vld [vmem:[%s433 + $0x68] sm:$0x3f]
          %v448 = vld [vmem:[%s433 + $0x70] sm:$0x3f]
          %v449 = vld [vmem:[%s433 + $0x78] sm:$0x3f]
          %vm450 = vcmask 244736
          %v452 = vsel %vm450, %v429, 0
          %v455 = vsel %vm450, %v430, 0
          %v458 = vsel %vm450, %v431, 0
          %v461 = vsel %vm450, %v432, 0
          %vm463 = vcmask 1045504
          %v465 = vsel %vm463, %v446, 0
          %v468 = vsel %vm463, %v447, 0
          %v471 = vsel %vm463, %v448, 0
          %v474 = vsel %vm463, %v449, 0
          %476 = vmatpush.msra.mxu0 0.0
          %477 = vmatpush.msra.mxu0 0.0
          %478 = vmatpush.msra.mxu0 0.0
          %479 = vmatpush.msra.mxu0 0.0
          %480 = vmatpush.msra.mxu0 0.0
          %481 = vmatpush.msra.mxu0 0.0
          %482 = vmatpush.msra.mxu0 0.0
          %483 = vmatpush.msra.mxu0 0.0
          %484 = vmatpush.msra.mxu0 0.0
          %485 = vmatpush.msra.mxu0 0.0
          %486 = vmatpush.msra.mxu0 0.0
          %487 = vmatpush.msra.mxu0 0.0
          %488 = vmatpush.msra.mxu0 %v465
          %489 = vmatpush.msra.mxu0 %v442
          %490 = vmatpush.msra.mxu0 %v438
          %491 = vmatpush.msra.mxu0 %v434
          %492 = vmatmul.f32.gmra.mxu0 %v452
          %v493 = vpop.f32.mrf.mxu0
          %v494 = vadd.f32 0.0, %v493
          %495 = vmatmul.f32.gmra.mxu0 %v455
          %v496 = vpop.f32.mrf.mxu0
          %v497 = vadd.f32 0.0, %v496
          %498 = vmatmul.f32.gmra.mxu0 %v458
          %v499 = vpop.f32.mrf.mxu0
          %v500 = vadd.f32 0.0, %v499
          %501 = vmatmul.f32.gmra.mxu0 %v461
          %v502 = vpop.f32.mrf.mxu0
          %v503 = vadd.f32 0.0, %v502
          %504 = vdwg.mxu0
          %505 = vmatpush.msra.mxu0 0.0
          %506 = vmatpush.msra.mxu0 0.0
          %507 = vmatpush.msra.mxu0 0.0
          %508 = vmatpush.msra.mxu0 0.0
          %509 = vmatpush.msra.mxu0 0.0
          %510 = vmatpush.msra.mxu0 0.0
          %511 = vmatpush.msra.mxu0 0.0
          %512 = vmatpush.msra.mxu0 0.0
          %513 = vmatpush.msra.mxu0 0.0
          %514 = vmatpush.msra.mxu0 0.0
          %515 = vmatpush.msra.mxu0 0.0
          %516 = vmatpush.msra.mxu0 0.0
          %517 = vmatpush.msra.mxu0 %v468
          %518 = vmatpush.msra.mxu0 %v443
          %519 = vmatpush.msra.mxu0 %v439
          %520 = vmatpush.msra.mxu0 %v435
          %521 = vmatmul.f32.gmra.mxu0 %v452
          %v522 = vpop.f32.mrf.mxu0
          %v523 = vadd.f32 0.0, %v522
          %524 = vmatmul.f32.gmra.mxu0 %v455
          %v525 = vpop.f32.mrf.mxu0
          %v526 = vadd.f32 0.0, %v525
          %527 = vmatmul.f32.gmra.mxu0 %v458
          %v528 = vpop.f32.mrf.mxu0
          %v529 = vadd.f32 0.0, %v528
          %530 = vmatmul.f32.gmra.mxu0 %v461
          %v531 = vpop.f32.mrf.mxu0
          %v532 = vadd.f32 0.0, %v531
          %533 = vdwg.mxu0
          %534 = vmatpush.msra.mxu0 0.0
          %535 = vmatpush.msra.mxu0 0.0
          %536 = vmatpush.msra.mxu0 0.0
          %537 = vmatpush.msra.mxu0 0.0
          %538 = vmatpush.msra.mxu0 0.0
          %539 = vmatpush.msra.mxu0 0.0
          %540 = vmatpush.msra.mxu0 0.0
          %541 = vmatpush.msra.mxu0 0.0
          %542 = vmatpush.msra.mxu0 0.0
          %543 = vmatpush.msra.mxu0 0.0
          %544 = vmatpush.msra.mxu0 0.0
          %545 = vmatpush.msra.mxu0 0.0
          %546 = vmatpush.msra.mxu0 %v471
          %547 = vmatpush.msra.mxu0 %v444
          %548 = vmatpush.msra.mxu0 %v440
          %549 = vmatpush.msra.mxu0 %v436
          %550 = vmatmul.f32.gmra.mxu0 %v452
          %v551 = vpop.f32.mrf.mxu0
          %v552 = vadd.f32 0.0, %v551
          %553 = vmatmul.f32.gmra.mxu0 %v455
          %v554 = vpop.f32.mrf.mxu0
          %v555 = vadd.f32 0.0, %v554
          %556 = vmatmul.f32.gmra.mxu0 %v458
          %v557 = vpop.f32.mrf.mxu0
          %v558 = vadd.f32 0.0, %v557
          %559 = vmatmul.f32.gmra.mxu0 %v461
          %v560 = vpop.f32.mrf.mxu0
          %v561 = vadd.f32 0.0, %v560
          %562 = vdwg.mxu0
          %563 = vmatpush.msra.mxu0 0.0
          %564 = vmatpush.msra.mxu0 0.0
          %565 = vmatpush.msra.mxu0 0.0
          %566 = vmatpush.msra.mxu0 0.0
          %567 = vmatpush.msra.mxu0 0.0
          %568 = vmatpush.msra.mxu0 0.0
          %569 = vmatpush.msra.mxu0 0.0
          %570 = vmatpush.msra.mxu0 0.0
          %571 = vmatpush.msra.mxu0 0.0
          %572 = vmatpush.msra.mxu0 0.0
          %573 = vmatpush.msra.mxu0 0.0
          %574 = vmatpush.msra.mxu0 0.0
          %575 = vmatpush.msra.mxu0 %v474
          %576 = vmatpush.msra.mxu0 %v445
          %577 = vmatpush.msra.mxu0 %v441
          %578 = vmatpush.msra.mxu0 %v437
          %579 = vmatmul.f32.gmra.mxu0 %v452
          %v580 = vpop.f32.mrf.mxu0
          %v581 = vadd.f32 0.0, %v580
          %582 = vmatmul.f32.gmra.mxu0 %v455
          %v583 = vpop.f32.mrf.mxu0
          %v584 = vadd.f32 0.0, %v583
          %585 = vmatmul.f32.gmra.mxu0 %v458
          %v586 = vpop.f32.mrf.mxu0
          %v587 = vadd.f32 0.0, %v586
          %588 = vmatmul.f32.gmra.mxu0 %v461
          %v589 = vpop.f32.mrf.mxu0
          %v590 = vadd.f32 0.0, %v589
          %591 = vdwg.mxu0
          %v593 = vsel %vm450, %v392, 0
          %v596 = vsel %vm450, %v393, 0
          %v599 = vsel %vm450, %v394, 0
          %v602 = vsel %vm450, %v395, 0
          %v605 = vsel %vm463, %v408, 0
          %v608 = vsel %vm463, %v409, 0
          %v611 = vsel %vm463, %v410, 0
          %v614 = vsel %vm463, %v411, 0
          %616 = vmatpush.msra.mxu0 0.0
          %617 = vmatpush.msra.mxu0 0.0
          %618 = vmatpush.msra.mxu0 0.0
          %619 = vmatpush.msra.mxu0 0.0
          %620 = vmatpush.msra.mxu0 0.0
          %621 = vmatpush.msra.mxu0 0.0
          %622 = vmatpush.msra.mxu0 0.0
          %623 = vmatpush.msra.mxu0 0.0
          %624 = vmatpush.msra.mxu0 0.0
          %625 = vmatpush.msra.mxu0 0.0
          %626 = vmatpush.msra.mxu0 0.0
          %627 = vmatpush.msra.mxu0 0.0
          %628 = vmatpush.msra.mxu0 %v605
          %629 = vmatpush.msra.mxu0 %v404
          %630 = vmatpush.msra.mxu0 %v400
          %631 = vmatpush.msra.mxu0 %v396
          %632 = vmatmul.f32.gmra.mxu0 %v593
          %v633 = vpop.f32.mrf.mxu0
          %v634 = vadd.f32 %v494, %v633
          %635 = vmatmul.f32.gmra.mxu0 %v596
          %v636 = vpop.f32.mrf.mxu0
          %v637 = vadd.f32 %v497, %v636
          %638 = vmatmul.f32.gmra.mxu0 %v599
          %v639 = vpop.f32.mrf.mxu0
          %v640 = vadd.f32 %v500, %v639
          %641 = vmatmul.f32.gmra.mxu0 %v602
          %v642 = vpop.f32.mrf.mxu0
          %v643 = vadd.f32 %v503, %v642
          %644 = vdwg.mxu0
          %645 = vmatpush.msra.mxu0 0.0
          %646 = vmatpush.msra.mxu0 0.0
          %647 = vmatpush.msra.mxu0 0.0
          %648 = vmatpush.msra.mxu0 0.0
          %649 = vmatpush.msra.mxu0 0.0
          %650 = vmatpush.msra.mxu0 0.0
          %651 = vmatpush.msra.mxu0 0.0
          %652 = vmatpush.msra.mxu0 0.0
          %653 = vmatpush.msra.mxu0 0.0
          %654 = vmatpush.msra.mxu0 0.0
          %655 = vmatpush.msra.mxu0 0.0
          %656 = vmatpush.msra.mxu0 0.0
          %657 = vmatpush.msra.mxu0 %v608
          %658 = vmatpush.msra.mxu0 %v405
          %659 = vmatpush.msra.mxu0 %v401
          %660 = vmatpush.msra.mxu0 %v397
          %661 = vmatmul.f32.gmra.mxu0 %v593
          %v662 = vpop.f32.mrf.mxu0
          %v663 = vadd.f32 %v523, %v662
          %664 = vmatmul.f32.gmra.mxu0 %v596
          %v665 = vpop.f32.mrf.mxu0
          %v666 = vadd.f32 %v526, %v665
          %667 = vmatmul.f32.gmra.mxu0 %v599
          %v668 = vpop.f32.mrf.mxu0
          %v669 = vadd.f32 %v529, %v668
          %670 = vmatmul.f32.gmra.mxu0 %v602
          %v671 = vpop.f32.mrf.mxu0
          %v672 = vadd.f32 %v532, %v671
          %673 = vdwg.mxu0
          %674 = vmatpush.msra.mxu0 0.0
          %675 = vmatpush.msra.mxu0 0.0
          %676 = vmatpush.msra.mxu0 0.0
          %677 = vmatpush.msra.mxu0 0.0
          %678 = vmatpush.msra.mxu0 0.0
          %679 = vmatpush.msra.mxu0 0.0
          %680 = vmatpush.msra.mxu0 0.0
          %681 = vmatpush.msra.mxu0 0.0
          %682 = vmatpush.msra.mxu0 0.0
          %683 = vmatpush.msra.mxu0 0.0
          %684 = vmatpush.msra.mxu0 0.0
          %685 = vmatpush.msra.mxu0 0.0
          %686 = vmatpush.msra.mxu0 %v611
          %687 = vmatpush.msra.mxu0 %v406
          %688 = vmatpush.msra.mxu0 %v402
          %689 = vmatpush.msra.mxu0 %v398
          %690 = vmatmul.f32.gmra.mxu0 %v593
          %v691 = vpop.f32.mrf.mxu0
          %v692 = vadd.f32 %v552, %v691
          %693 = vmatmul.f32.gmra.mxu0 %v596
          %v694 = vpop.f32.mrf.mxu0
          %v695 = vadd.f32 %v555, %v694
          %696 = vmatmul.f32.gmra.mxu0 %v599
          %v697 = vpop.f32.mrf.mxu0
          %v698 = vadd.f32 %v558, %v697
          %699 = vmatmul.f32.gmra.mxu0 %v602
          %v700 = vpop.f32.mrf.mxu0
          %v701 = vadd.f32 %v561, %v700
          %702 = vdwg.mxu0
          %703 = vmatpush.msra.mxu0 0.0
          %704 = vmatpush.msra.mxu0 0.0
          %705 = vmatpush.msra.mxu0 0.0
          %706 = vmatpush.msra.mxu0 0.0
          %707 = vmatpush.msra.mxu0 0.0
          %708 = vmatpush.msra.mxu0 0.0
          %709 = vmatpush.msra.mxu0 0.0
          %710 = vmatpush.msra.mxu0 0.0
          %711 = vmatpush.msra.mxu0 0.0
          %712 = vmatpush.msra.mxu0 0.0
          %713 = vmatpush.msra.mxu0 0.0
          %714 = vmatpush.msra.mxu0 0.0
          %715 = vmatpush.msra.mxu0 %v614
          %716 = vmatpush.msra.mxu0 %v407
          %717 = vmatpush.msra.mxu0 %v403
          %718 = vmatpush.msra.mxu0 %v399
          %719 = vmatmul.f32.gmra.mxu0 %v593
          %v720 = vpop.f32.mrf.mxu0
          %v721 = vadd.f32 %v581, %v720
          %722 = vmatmul.f32.gmra.mxu0 %v596
          %v723 = vpop.f32.mrf.mxu0
          %v724 = vadd.f32 %v584, %v723
          %725 = vmatmul.f32.gmra.mxu0 %v599
          %v726 = vpop.f32.mrf.mxu0
          %v727 = vadd.f32 %v587, %v726
          %728 = vmatmul.f32.gmra.mxu0 %v602
          %v729 = vpop.f32.mrf.mxu0
          %v730 = vadd.f32 %v590, %v729
          %731 = vdwg.mxu0
          %s732 = scalar_lea.vmem [#allocation2], 512
          %v733 = vld [vmem:[%s732] sm:$0xff]
          %v734 = vld [vmem:[%s732 + $0x8] sm:$0xff]
          %v735 = vld [vmem:[%s732 + $0x10] sm:$0xff]
          %v736 = vld [vmem:[%s732 + $0x18] sm:$0xff]
          %v737 = vld [vmem:[%s732 + $0x20] sm:$0xff]
          %v738 = vld [vmem:[%s732 + $0x28] sm:$0xff]
          %v739 = vld [vmem:[%s732 + $0x30] sm:$0xff]
          %v740 = vld [vmem:[%s732 + $0x38] sm:$0xff]
          %v741 = vld [vmem:[%s732 + $0x40] sm:$0xff]
          %v742 = vld [vmem:[%s732 + $0x48] sm:$0xff]
          %v743 = vld [vmem:[%s732 + $0x50] sm:$0xff]
          %v744 = vld [vmem:[%s732 + $0x58] sm:$0xff]
          %v745 = vld [vmem:[%s732 + $0x60] sm:$0x3f]
          %v746 = vld [vmem:[%s732 + $0x68] sm:$0x3f]
          %v747 = vld [vmem:[%s732 + $0x70] sm:$0x3f]
          %v748 = vld [vmem:[%s732 + $0x78] sm:$0x3f]
          %v750 = vsel %vm463, %v745, 0
          %v753 = vsel %vm463, %v746, 0
          %v756 = vsel %vm463, %v747, 0
          %v759 = vsel %vm463, %v748, 0
          %761 = vmatpush.msra.mxu0 0.0
          %762 = vmatpush.msra.mxu0 0.0
          %763 = vmatpush.msra.mxu0 0.0
          %764 = vmatpush.msra.mxu0 0.0
          %765 = vmatpush.msra.mxu0 0.0
          %766 = vmatpush.msra.mxu0 0.0
          %767 = vmatpush.msra.mxu0 0.0
          %768 = vmatpush.msra.mxu0 0.0
          %769 = vmatpush.msra.mxu0 0.0
          %770 = vmatpush.msra.mxu0 0.0
          %771 = vmatpush.msra.mxu0 0.0
          %772 = vmatpush.msra.mxu0 0.0
          %773 = vmatpush.msra.mxu0 %v750
          %774 = vmatpush.msra.mxu0 %v741
          %775 = vmatpush.msra.mxu0 %v737
          %776 = vmatpush.msra.mxu0 %v733
          %777 = vmatmul.f32.gmra.mxu0 %v452
          %v778 = vpop.f32.mrf.mxu0
          %v779 = vadd.f32 0.0, %v778
          %780 = vmatmul.f32.gmra.mxu0 %v455
          %v781 = vpop.f32.mrf.mxu0
          %v782 = vadd.f32 0.0, %v781
          %783 = vmatmul.f32.gmra.mxu0 %v458
          %v784 = vpop.f32.mrf.mxu0
          %v785 = vadd.f32 0.0, %v784
          %786 = vmatmul.f32.gmra.mxu0 %v461
          %v787 = vpop.f32.mrf.mxu0
          %v788 = vadd.f32 0.0, %v787
          %789 = vdwg.mxu0
          %790 = vmatpush.msra.mxu0 0.0
          %791 = vmatpush.msra.mxu0 0.0
          %792 = vmatpush.msra.mxu0 0.0
          %793 = vmatpush.msra.mxu0 0.0
          %794 = vmatpush.msra.mxu0 0.0
          %795 = vmatpush.msra.mxu0 0.0
          %796 = vmatpush.msra.mxu0 0.0
          %797 = vmatpush.msra.mxu0 0.0
          %798 = vmatpush.msra.mxu0 0.0
          %799 = vmatpush.msra.mxu0 0.0
          %800 = vmatpush.msra.mxu0 0.0
          %801 = vmatpush.msra.mxu0 0.0
          %802 = vmatpush.msra.mxu0 %v753
          %803 = vmatpush.msra.mxu0 %v742
          %804 = vmatpush.msra.mxu0 %v738
          %805 = vmatpush.msra.mxu0 %v734
          %806 = vmatmul.f32.gmra.mxu0 %v452
          %v807 = vpop.f32.mrf.mxu0
          %v808 = vadd.f32 0.0, %v807
          %809 = vmatmul.f32.gmra.mxu0 %v455
          %v810 = vpop.f32.mrf.mxu0
          %v811 = vadd.f32 0.0, %v810
          %812 = vmatmul.f32.gmra.mxu0 %v458
          %v813 = vpop.f32.mrf.mxu0
          %v814 = vadd.f32 0.0, %v813
          %815 = vmatmul.f32.gmra.mxu0 %v461
          %v816 = vpop.f32.mrf.mxu0
          %v817 = vadd.f32 0.0, %v816
          %818 = vdwg.mxu0
          %819 = vmatpush.msra.mxu0 0.0
          %820 = vmatpush.msra.mxu0 0.0
          %821 = vmatpush.msra.mxu0 0.0
          %822 = vmatpush.msra.mxu0 0.0
          %823 = vmatpush.msra.mxu0 0.0
          %824 = vmatpush.msra.mxu0 0.0
          %825 = vmatpush.msra.mxu0 0.0
          %826 = vmatpush.msra.mxu0 0.0
          %827 = vmatpush.msra.mxu0 0.0
          %828 = vmatpush.msra.mxu0 0.0
          %829 = vmatpush.msra.mxu0 0.0
          %830 = vmatpush.msra.mxu0 0.0
          %831 = vmatpush.msra.mxu0 %v756
          %832 = vmatpush.msra.mxu0 %v743
          %833 = vmatpush.msra.mxu0 %v739
          %834 = vmatpush.msra.mxu0 %v735
          %835 = vmatmul.f32.gmra.mxu0 %v452
          %v836 = vpop.f32.mrf.mxu0
          %v837 = vadd.f32 0.0, %v836
          %838 = vmatmul.f32.gmra.mxu0 %v455
          %v839 = vpop.f32.mrf.mxu0
          %v840 = vadd.f32 0.0, %v839
          %841 = vmatmul.f32.gmra.mxu0 %v458
          %v842 = vpop.f32.mrf.mxu0
          %v843 = vadd.f32 0.0, %v842
          %844 = vmatmul.f32.gmra.mxu0 %v461
          %v845 = vpop.f32.mrf.mxu0
          %v846 = vadd.f32 0.0, %v845
          %847 = vdwg.mxu0
          %848 = vmatpush.msra.mxu0 0.0
          %849 = vmatpush.msra.mxu0 0.0
          %850 = vmatpush.msra.mxu0 0.0
          %851 = vmatpush.msra.mxu0 0.0
          %852 = vmatpush.msra.mxu0 0.0
          %853 = vmatpush.msra.mxu0 0.0
          %854 = vmatpush.msra.mxu0 0.0
          %855 = vmatpush.msra.mxu0 0.0
          %856 = vmatpush.msra.mxu0 0.0
          %857 = vmatpush.msra.mxu0 0.0
          %858 = vmatpush.msra.mxu0 0.0
          %859 = vmatpush.msra.mxu0 0.0
          %860 = vmatpush.msra.mxu0 %v759
          %861 = vmatpush.msra.mxu0 %v744
          %862 = vmatpush.msra.mxu0 %v740
          %863 = vmatpush.msra.mxu0 %v736
          %864 = vmatmul.f32.gmra.mxu0 %v452
          %v865 = vpop.f32.mrf.mxu0
          %v866 = vadd.f32 0.0, %v865
          %867 = vmatmul.f32.gmra.mxu0 %v455
          %v868 = vpop.f32.mrf.mxu0
          %v869 = vadd.f32 0.0, %v868
          %870 = vmatmul.f32.gmra.mxu0 %v458
          %v871 = vpop.f32.mrf.mxu0
          %v872 = vadd.f32 0.0, %v871
          %873 = vmatmul.f32.gmra.mxu0 %v461
          %v874 = vpop.f32.mrf.mxu0
          %v875 = vadd.f32 0.0, %v874
          %876 = vdwg.mxu0
          %v878 = vsel %vm463, %v425, 0
          %v881 = vsel %vm463, %v426, 0
          %v884 = vsel %vm463, %v427, 0
          %v887 = vsel %vm463, %v428, 0
          %889 = vmatpush.msra.mxu0 0.0
          %890 = vmatpush.msra.mxu0 0.0
          %891 = vmatpush.msra.mxu0 0.0
          %892 = vmatpush.msra.mxu0 0.0
          %893 = vmatpush.msra.mxu0 0.0
          %894 = vmatpush.msra.mxu0 0.0
          %895 = vmatpush.msra.mxu0 0.0
          %896 = vmatpush.msra.mxu0 0.0
          %897 = vmatpush.msra.mxu0 0.0
          %898 = vmatpush.msra.mxu0 0.0
          %899 = vmatpush.msra.mxu0 0.0
          %900 = vmatpush.msra.mxu0 0.0
          %901 = vmatpush.msra.mxu0 %v878
          %902 = vmatpush.msra.mxu0 %v421
          %903 = vmatpush.msra.mxu0 %v417
          %904 = vmatpush.msra.mxu0 %v413
          %905 = vmatmul.f32.gmra.mxu0 %v593
          %v906 = vpop.f32.mrf.mxu0
          %v907 = vadd.f32 %v779, %v906
          %908 = vmatmul.f32.gmra.mxu0 %v596
          %v909 = vpop.f32.mrf.mxu0
          %v910 = vadd.f32 %v782, %v909
          %911 = vmatmul.f32.gmra.mxu0 %v599
          %v912 = vpop.f32.mrf.mxu0
          %v913 = vadd.f32 %v785, %v912
          %914 = vmatmul.f32.gmra.mxu0 %v602
          %v915 = vpop.f32.mrf.mxu0
          %v916 = vadd.f32 %v788, %v915
          %917 = vdwg.mxu0
          %918 = vmatpush.msra.mxu0 0.0
          %919 = vmatpush.msra.mxu0 0.0
          %920 = vmatpush.msra.mxu0 0.0
          %921 = vmatpush.msra.mxu0 0.0
          %922 = vmatpush.msra.mxu0 0.0
          %923 = vmatpush.msra.mxu0 0.0
          %924 = vmatpush.msra.mxu0 0.0
          %925 = vmatpush.msra.mxu0 0.0
          %926 = vmatpush.msra.mxu0 0.0
          %927 = vmatpush.msra.mxu0 0.0
          %928 = vmatpush.msra.mxu0 0.0
          %929 = vmatpush.msra.mxu0 0.0
          %930 = vmatpush.msra.mxu0 %v881
          %931 = vmatpush.msra.mxu0 %v422
          %932 = vmatpush.msra.mxu0 %v418
          %933 = vmatpush.msra.mxu0 %v414
          %934 = vmatmul.f32.gmra.mxu0 %v593
          %v935 = vpop.f32.mrf.mxu0
          %v936 = vadd.f32 %v808, %v935
          %937 = vmatmul.f32.gmra.mxu0 %v596
          %v938 = vpop.f32.mrf.mxu0
          %v939 = vadd.f32 %v811, %v938
          %940 = vmatmul.f32.gmra.mxu0 %v599
          %v941 = vpop.f32.mrf.mxu0
          %v942 = vadd.f32 %v814, %v941
          %943 = vmatmul.f32.gmra.mxu0 %v602
          %v944 = vpop.f32.mrf.mxu0
          %v945 = vadd.f32 %v817, %v944
          %946 = vdwg.mxu0
          %947 = vmatpush.msra.mxu0 0.0
          %948 = vmatpush.msra.mxu0 0.0
          %949 = vmatpush.msra.mxu0 0.0
          %950 = vmatpush.msra.mxu0 0.0
          %951 = vmatpush.msra.mxu0 0.0
          %952 = vmatpush.msra.mxu0 0.0
          %953 = vmatpush.msra.mxu0 0.0
          %954 = vmatpush.msra.mxu0 0.0
          %955 = vmatpush.msra.mxu0 0.0
          %956 = vmatpush.msra.mxu0 0.0
          %957 = vmatpush.msra.mxu0 0.0
          %958 = vmatpush.msra.mxu0 0.0
          %959 = vmatpush.msra.mxu0 %v884
          %960 = vmatpush.msra.mxu0 %v423
          %961 = vmatpush.msra.mxu0 %v419
          %962 = vmatpush.msra.mxu0 %v415
          %963 = vmatmul.f32.gmra.mxu0 %v593
          %v964 = vpop.f32.mrf.mxu0
          %v965 = vadd.f32 %v837, %v964
          %966 = vmatmul.f32.gmra.mxu0 %v596
          %v967 = vpop.f32.mrf.mxu0
          %v968 = vadd.f32 %v840, %v967
          %969 = vmatmul.f32.gmra.mxu0 %v599
          %v970 = vpop.f32.mrf.mxu0
          %v971 = vadd.f32 %v843, %v970
          %972 = vmatmul.f32.gmra.mxu0 %v602
          %v973 = vpop.f32.mrf.mxu0
          %v974 = vadd.f32 %v846, %v973
          %975 = vdwg.mxu0
          %976 = vmatpush.msra.mxu0 0.0
          %977 = vmatpush.msra.mxu0 0.0
          %978 = vmatpush.msra.mxu0 0.0
          %979 = vmatpush.msra.mxu0 0.0
          %980 = vmatpush.msra.mxu0 0.0
          %981 = vmatpush.msra.mxu0 0.0
          %982 = vmatpush.msra.mxu0 0.0
          %983 = vmatpush.msra.mxu0 0.0
          %984 = vmatpush.msra.mxu0 0.0
          %985 = vmatpush.msra.mxu0 0.0
          %986 = vmatpush.msra.mxu0 0.0
          %987 = vmatpush.msra.mxu0 0.0
          %988 = vmatpush.msra.mxu0 %v887
          %989 = vmatpush.msra.mxu0 %v424
          %990 = vmatpush.msra.mxu0 %v420
          %991 = vmatpush.msra.mxu0 %v416
          %992 = vmatmul.f32.gmra.mxu0 %v593
          %v993 = vpop.f32.mrf.mxu0
          %v994 = vadd.f32 %v866, %v993
          %995 = vmatmul.f32.gmra.mxu0 %v596
          %v996 = vpop.f32.mrf.mxu0
          %v997 = vadd.f32 %v869, %v996
          %998 = vmatmul.f32.gmra.mxu0 %v599
          %v999 = vpop.f32.mrf.mxu0
          %v1000 = vadd.f32 %v872, %v999
          %1001 = vmatmul.f32.gmra.mxu0 %v602
          %v1002 = vpop.f32.mrf.mxu0
          %v1003 = vadd.f32 %v875, %v1002
          %1004 = vdwg.mxu0
          %v1005 = vld [vmem:[%s391 + $0x2] sm:$0xff]
          %v1006 = vld [vmem:[%s391 + $0xa] sm:$0xff]
          %v1007 = vld [vmem:[%s391 + $0x12] sm:$0xff]
          %v1008 = vld [vmem:[%s391 + $0x1a] sm:$0xf]
          %s1009 = scalar_lea.vmem [#allocation2], 256
          %v1010 = vld [vmem:[%s1009] sm:$0xff]
          %v1011 = vld [vmem:[%s1009 + $0x8] sm:$0xff]
          %v1012 = vld [vmem:[%s1009 + $0x10] sm:$0xff]
          %v1013 = vld [vmem:[%s1009 + $0x18] sm:$0xff]
          %v1014 = vld [vmem:[%s1009 + $0x20] sm:$0xff]
          %v1015 = vld [vmem:[%s1009 + $0x28] sm:$0xff]
          %v1016 = vld [vmem:[%s1009 + $0x30] sm:$0xff]
          %v1017 = vld [vmem:[%s1009 + $0x38] sm:$0xff]
          %v1018 = vld [vmem:[%s1009 + $0x40] sm:$0xff]
          %v1019 = vld [vmem:[%s1009 + $0x48] sm:$0xff]
          %v1020 = vld [vmem:[%s1009 + $0x50] sm:$0xff]
          %v1021 = vld [vmem:[%s1009 + $0x58] sm:$0xff]
          %v1022 = vld [vmem:[%s1009 + $0x60] sm:$0x3f]
          %v1023 = vld [vmem:[%s1009 + $0x68] sm:$0x3f]
          %v1024 = vld [vmem:[%s1009 + $0x70] sm:$0x3f]
          %v1025 = vld [vmem:[%s1009 + $0x78] sm:$0x3f]
          %v1027 = vsel %vm450, %v1005, 0
          %v1030 = vsel %vm450, %v1006, 0
          %v1033 = vsel %vm450, %v1007, 0
          %v1036 = vsel %vm450, %v1008, 0
          %v1039 = vsel %vm463, %v1022, 0
          %v1042 = vsel %vm463, %v1023, 0
          %v1045 = vsel %vm463, %v1024, 0
          %v1048 = vsel %vm463, %v1025, 0
          %1050 = vmatpush.msra.mxu0 0.0
          %1051 = vmatpush.msra.mxu0 0.0
          %1052 = vmatpush.msra.mxu0 0.0
          %1053 = vmatpush.msra.mxu0 0.0
          %1054 = vmatpush.msra.mxu0 0.0
          %1055 = vmatpush.msra.mxu0 0.0
          %1056 = vmatpush.msra.mxu0 0.0
          %1057 = vmatpush.msra.mxu0 0.0
          %1058 = vmatpush.msra.mxu0 0.0
          %1059 = vmatpush.msra.mxu0 0.0
          %1060 = vmatpush.msra.mxu0 0.0
          %1061 = vmatpush.msra.mxu0 0.0
          %1062 = vmatpush.msra.mxu0 %v1039
          %1063 = vmatpush.msra.mxu0 %v1018
          %1064 = vmatpush.msra.mxu0 %v1014
          %1065 = vmatpush.msra.mxu0 %v1010
          %1066 = vmatmul.f32.gmra.mxu0 %v1027
          %v1067 = vpop.f32.mrf.mxu0
          %v1068 = vadd.f32 0.0, %v1067
          %1069 = vmatmul.f32.gmra.mxu0 %v1030
          %v1070 = vpop.f32.mrf.mxu0
          %v1071 = vadd.f32 0.0, %v1070
          %1072 = vmatmul.f32.gmra.mxu0 %v1033
          %v1073 = vpop.f32.mrf.mxu0
          %v1074 = vadd.f32 0.0, %v1073
          %1075 = vmatmul.f32.gmra.mxu0 %v1036
          %v1076 = vpop.f32.mrf.mxu0
          %v1077 = vadd.f32 0.0, %v1076
          %1078 = vdwg.mxu0
          %1079 = vmatpush.msra.mxu0 0.0
          %1080 = vmatpush.msra.mxu0 0.0
          %1081 = vmatpush.msra.mxu0 0.0
          %1082 = vmatpush.msra.mxu0 0.0
          %1083 = vmatpush.msra.mxu0 0.0
          %1084 = vmatpush.msra.mxu0 0.0
          %1085 = vmatpush.msra.mxu0 0.0
          %1086 = vmatpush.msra.mxu0 0.0
          %1087 = vmatpush.msra.mxu0 0.0
          %1088 = vmatpush.msra.mxu0 0.0
          %1089 = vmatpush.msra.mxu0 0.0
          %1090 = vmatpush.msra.mxu0 0.0
          %1091 = vmatpush.msra.mxu0 %v1042
          %1092 = vmatpush.msra.mxu0 %v1019
          %1093 = vmatpush.msra.mxu0 %v1015
          %1094 = vmatpush.msra.mxu0 %v1011
          %1095 = vmatmul.f32.gmra.mxu0 %v1027
          %v1096 = vpop.f32.mrf.mxu0
          %v1097 = vadd.f32 0.0, %v1096
          %1098 = vmatmul.f32.gmra.mxu0 %v1030
          %v1099 = vpop.f32.mrf.mxu0
          %v1100 = vadd.f32 0.0, %v1099
          %1101 = vmatmul.f32.gmra.mxu0 %v1033
          %v1102 = vpop.f32.mrf.mxu0
          %v1103 = vadd.f32 0.0, %v1102
          %1104 = vmatmul.f32.gmra.mxu0 %v1036
          %v1105 = vpop.f32.mrf.mxu0
          %v1106 = vadd.f32 0.0, %v1105
          %1107 = vdwg.mxu0
          %1108 = vmatpush.msra.mxu0 0.0
          %1109 = vmatpush.msra.mxu0 0.0
          %1110 = vmatpush.msra.mxu0 0.0
          %1111 = vmatpush.msra.mxu0 0.0
          %1112 = vmatpush.msra.mxu0 0.0
          %1113 = vmatpush.msra.mxu0 0.0
          %1114 = vmatpush.msra.mxu0 0.0
          %1115 = vmatpush.msra.mxu0 0.0
          %1116 = vmatpush.msra.mxu0 0.0
          %1117 = vmatpush.msra.mxu0 0.0
          %1118 = vmatpush.msra.mxu0 0.0
          %1119 = vmatpush.msra.mxu0 0.0
          %1120 = vmatpush.msra.mxu0 %v1045
          %1121 = vmatpush.msra.mxu0 %v1020
          %1122 = vmatpush.msra.mxu0 %v1016
          %1123 = vmatpush.msra.mxu0 %v1012
          %1124 = vmatmul.f32.gmra.mxu0 %v1027
          %v1125 = vpop.f32.mrf.mxu0
          %v1126 = vadd.f32 0.0, %v1125
          %1127 = vmatmul.f32.gmra.mxu0 %v1030
          %v1128 = vpop.f32.mrf.mxu0
          %v1129 = vadd.f32 0.0, %v1128
          %1130 = vmatmul.f32.gmra.mxu0 %v1033
          %v1131 = vpop.f32.mrf.mxu0
          %v1132 = vadd.f32 0.0, %v1131
          %1133 = vmatmul.f32.gmra.mxu0 %v1036
          %v1134 = vpop.f32.mrf.mxu0
          %v1135 = vadd.f32 0.0, %v1134
          %1136 = vdwg.mxu0
          %1137 = vmatpush.msra.mxu0 0.0
          %1138 = vmatpush.msra.mxu0 0.0
          %1139 = vmatpush.msra.mxu0 0.0
          %1140 = vmatpush.msra.mxu0 0.0
          %1141 = vmatpush.msra.mxu0 0.0
          %1142 = vmatpush.msra.mxu0 0.0
          %1143 = vmatpush.msra.mxu0 0.0
          %1144 = vmatpush.msra.mxu0 0.0
          %1145 = vmatpush.msra.mxu0 0.0
          %1146 = vmatpush.msra.mxu0 0.0
          %1147 = vmatpush.msra.mxu0 0.0
          %1148 = vmatpush.msra.mxu0 0.0
          %1149 = vmatpush.msra.mxu0 %v1048
          %1150 = vmatpush.msra.mxu0 %v1021
          %1151 = vmatpush.msra.mxu0 %v1017
          %1152 = vmatpush.msra.mxu0 %v1013
          %1153 = vmatmul.f32.gmra.mxu0 %v1027
          %v1154 = vpop.f32.mrf.mxu0
          %v1155 = vadd.f32 0.0, %v1154
          %1156 = vmatmul.f32.gmra.mxu0 %v1030
          %v1157 = vpop.f32.mrf.mxu0
          %v1158 = vadd.f32 0.0, %v1157
          %1159 = vmatmul.f32.gmra.mxu0 %v1033
          %v1160 = vpop.f32.mrf.mxu0
          %v1161 = vadd.f32 0.0, %v1160
          %1162 = vmatmul.f32.gmra.mxu0 %v1036
          %v1163 = vpop.f32.mrf.mxu0
          %v1164 = vadd.f32 0.0, %v1163
          %1165 = vdwg.mxu0
          %v1166 = vadd.f32 %v634, %v1068
          %v1167 = vadd.f32 %v663, %v1097
          %v1168 = vadd.f32 %v692, %v1126
          %v1169 = vadd.f32 %v721, %v1155
          %v1170 = vadd.f32 %v637, %v1071
          %v1171 = vadd.f32 %v666, %v1100
          %v1172 = vadd.f32 %v695, %v1129
          %v1173 = vadd.f32 %v724, %v1158
          %v1174 = vadd.f32 %v640, %v1074
          %v1175 = vadd.f32 %v669, %v1103
          %v1176 = vadd.f32 %v698, %v1132
          %v1177 = vadd.f32 %v727, %v1161
          %v1178 = vadd.f32 %v643, %v1077
          %v1179 = vadd.f32 %v672, %v1106
          %v1180 = vadd.f32 %v701, %v1135
          %v1181 = vadd.f32 %v730, %v1164
          %s1182 = scalar_lea.vmem [#allocation2], 640
          %v1183 = vld [vmem:[%s1182] sm:$0xff]
          %v1184 = vld [vmem:[%s1182 + $0x8] sm:$0xff]
          %v1185 = vld [vmem:[%s1182 + $0x10] sm:$0xff]
          %v1186 = vld [vmem:[%s1182 + $0x18] sm:$0xff]
          %v1187 = vld [vmem:[%s1182 + $0x20] sm:$0xff]
          %v1188 = vld [vmem:[%s1182 + $0x28] sm:$0xff]
          %v1189 = vld [vmem:[%s1182 + $0x30] sm:$0xff]
          %v1190 = vld [vmem:[%s1182 + $0x38] sm:$0xff]
          %v1191 = vld [vmem:[%s1182 + $0x40] sm:$0xff]
          %v1192 = vld [vmem:[%s1182 + $0x48] sm:$0xff]
          %v1193 = vld [vmem:[%s1182 + $0x50] sm:$0xff]
          %v1194 = vld [vmem:[%s1182 + $0x58] sm:$0xff]
          %v1195 = vld [vmem:[%s1182 + $0x60] sm:$0x3f]
          %v1196 = vld [vmem:[%s1182 + $0x68] sm:$0x3f]
          %v1197 = vld [vmem:[%s1182 + $0x70] sm:$0x3f]
          %v1198 = vld [vmem:[%s1182 + $0x78] sm:$0x3f]
          %v1200 = vsel %vm463, %v1195, 0
          %v1203 = vsel %vm463, %v1196, 0
          %v1206 = vsel %vm463, %v1197, 0
          %v1209 = vsel %vm463, %v1198, 0
          %1211 = vmatpush.msra.mxu0 0.0
          %1212 = vmatpush.msra.mxu0 0.0
          %1213 = vmatpush.msra.mxu0 0.0
          %1214 = vmatpush.msra.mxu0 0.0
          %1215 = vmatpush.msra.mxu0 0.0
          %1216 = vmatpush.msra.mxu0 0.0
          %1217 = vmatpush.msra.mxu0 0.0
          %1218 = vmatpush.msra.mxu0 0.0
          %1219 = vmatpush.msra.mxu0 0.0
          %1220 = vmatpush.msra.mxu0 0.0
          %1221 = vmatpush.msra.mxu0 0.0
          %1222 = vmatpush.msra.mxu0 0.0
          %1223 = vmatpush.msra.mxu0 %v1200
          %1224 = vmatpush.msra.mxu0 %v1191
          %1225 = vmatpush.msra.mxu0 %v1187
          %1226 = vmatpush.msra.mxu0 %v1183
          %1227 = vmatmul.f32.gmra.mxu0 %v1027
          %v1228 = vpop.f32.mrf.mxu0
          %v1229 = vadd.f32 0.0, %v1228
          %1230 = vmatmul.f32.gmra.mxu0 %v1030
          %v1231 = vpop.f32.mrf.mxu0
          %v1232 = vadd.f32 0.0, %v1231
          %1233 = vmatmul.f32.gmra.mxu0 %v1033
          %v1234 = vpop.f32.mrf.mxu0
          %v1235 = vadd.f32 0.0, %v1234
          %1236 = vmatmul.f32.gmra.mxu0 %v1036
          %v1237 = vpop.f32.mrf.mxu0
          %v1238 = vadd.f32 0.0, %v1237
          %1239 = vdwg.mxu0
          %1240 = vmatpush.msra.mxu0 0.0
          %1241 = vmatpush.msra.mxu0 0.0
          %1242 = vmatpush.msra.mxu0 0.0
          %1243 = vmatpush.msra.mxu0 0.0
          %1244 = vmatpush.msra.mxu0 0.0
          %1245 = vmatpush.msra.mxu0 0.0
          %1246 = vmatpush.msra.mxu0 0.0
          %1247 = vmatpush.msra.mxu0 0.0
          %1248 = vmatpush.msra.mxu0 0.0
          %1249 = vmatpush.msra.mxu0 0.0
          %1250 = vmatpush.msra.mxu0 0.0
          %1251 = vmatpush.msra.mxu0 0.0
          %1252 = vmatpush.msra.mxu0 %v1203
          %1253 = vmatpush.msra.mxu0 %v1192
          %1254 = vmatpush.msra.mxu0 %v1188
          %1255 = vmatpush.msra.mxu0 %v1184
          %1256 = vmatmul.f32.gmra.mxu0 %v1027
          %v1257 = vpop.f32.mrf.mxu0
          %v1258 = vadd.f32 0.0, %v1257
          %1259 = vmatmul.f32.gmra.mxu0 %v1030
          %v1260 = vpop.f32.mrf.mxu0
          %v1261 = vadd.f32 0.0, %v1260
          %1262 = vmatmul.f32.gmra.mxu0 %v1033
          %v1263 = vpop.f32.mrf.mxu0
          %v1264 = vadd.f32 0.0, %v1263
          %1265 = vmatmul.f32.gmra.mxu0 %v1036
          %v1266 = vpop.f32.mrf.mxu0
          %v1267 = vadd.f32 0.0, %v1266
          %1268 = vdwg.mxu0
          %1269 = vmatpush.msra.mxu0 0.0
          %1270 = vmatpush.msra.mxu0 0.0
          %1271 = vmatpush.msra.mxu0 0.0
          %1272 = vmatpush.msra.mxu0 0.0
          %1273 = vmatpush.msra.mxu0 0.0
          %1274 = vmatpush.msra.mxu0 0.0
          %1275 = vmatpush.msra.mxu0 0.0
          %1276 = vmatpush.msra.mxu0 0.0
          %1277 = vmatpush.msra.mxu0 0.0
          %1278 = vmatpush.msra.mxu0 0.0
          %1279 = vmatpush.msra.mxu0 0.0
          %1280 = vmatpush.msra.mxu0 0.0
          %1281 = vmatpush.msra.mxu0 %v1206
          %1282 = vmatpush.msra.mxu0 %v1193
          %1283 = vmatpush.msra.mxu0 %v1189
          %1284 = vmatpush.msra.mxu0 %v1185
          %1285 = vmatmul.f32.gmra.mxu0 %v1027
          %v1286 = vpop.f32.mrf.mxu0
          %v1287 = vadd.f32 0.0, %v1286
          %1288 = vmatmul.f32.gmra.mxu0 %v1030
          %v1289 = vpop.f32.mrf.mxu0
          %v1290 = vadd.f32 0.0, %v1289
          %1291 = vmatmul.f32.gmra.mxu0 %v1033
          %v1292 = vpop.f32.mrf.mxu0
          %v1293 = vadd.f32 0.0, %v1292
          %1294 = vmatmul.f32.gmra.mxu0 %v1036
          %v1295 = vpop.f32.mrf.mxu0
          %v1296 = vadd.f32 0.0, %v1295
          %1297 = vdwg.mxu0
          %1298 = vmatpush.msra.mxu0 0.0
          %1299 = vmatpush.msra.mxu0 0.0
          %1300 = vmatpush.msra.mxu0 0.0
          %1301 = vmatpush.msra.mxu0 0.0
          %1302 = vmatpush.msra.mxu0 0.0
          %1303 = vmatpush.msra.mxu0 0.0
          %1304 = vmatpush.msra.mxu0 0.0
          %1305 = vmatpush.msra.mxu0 0.0
          %1306 = vmatpush.msra.mxu0 0.0
          %1307 = vmatpush.msra.mxu0 0.0
          %1308 = vmatpush.msra.mxu0 0.0
          %1309 = vmatpush.msra.mxu0 0.0
          %1310 = vmatpush.msra.mxu0 %v1209
          %1311 = vmatpush.msra.mxu0 %v1194
          %1312 = vmatpush.msra.mxu0 %v1190
          %1313 = vmatpush.msra.mxu0 %v1186
          %1314 = vmatmul.f32.gmra.mxu0 %v1027
          %v1315 = vpop.f32.mrf.mxu0
          %v1316 = vadd.f32 0.0, %v1315
          %1317 = vmatmul.f32.gmra.mxu0 %v1030
          %v1318 = vpop.f32.mrf.mxu0
          %v1319 = vadd.f32 0.0, %v1318
          %1320 = vmatmul.f32.gmra.mxu0 %v1033
          %v1321 = vpop.f32.mrf.mxu0
          %v1322 = vadd.f32 0.0, %v1321
          %1323 = vmatmul.f32.gmra.mxu0 %v1036
          %v1324 = vpop.f32.mrf.mxu0
          %v1325 = vadd.f32 0.0, %v1324
          %1326 = vdwg.mxu0
          %v1327 = vadd.f32 %v907, %v1229
          %v1328 = vadd.f32 %v936, %v1258
          %v1329 = vadd.f32 %v965, %v1287
          %v1330 = vadd.f32 %v994, %v1316
          %v1331 = vadd.f32 %v910, %v1232
          %v1332 = vadd.f32 %v939, %v1261
          %v1333 = vadd.f32 %v968, %v1290
          %v1334 = vadd.f32 %v997, %v1319
          %v1335 = vadd.f32 %v913, %v1235
          %v1336 = vadd.f32 %v942, %v1264
          %v1337 = vadd.f32 %v971, %v1293
          %v1338 = vadd.f32 %v1000, %v1322
          %v1339 = vadd.f32 %v916, %v1238
          %v1340 = vadd.f32 %v945, %v1267
          %v1341 = vadd.f32 %v974, %v1296
          %v1342 = vadd.f32 %v1003, %v1325
          %v1344 = vperm.slane %v382, 0
          %v1345 = vperm.slane %v382, 1
          %v1346 = vperm.slane %v382, 2
          %v1347 = vperm.slane %v382, 3
          %v1352 = vmul.f32 %v1166, %v1344
          %v1353 = vmul.f32 %v1167, %v1345
          %v1354 = vmul.f32 %v1168, %v1346
          %v1355 = vmul.f32 %v1169, %v1347
          %v1356 = vmul.f32 %v1170, %v1344
          %v1357 = vmul.f32 %v1171, %v1345
          %v1358 = vmul.f32 %v1172, %v1346
          %v1359 = vmul.f32 %v1173, %v1347
          %v1360 = vmul.f32 %v1174, %v1344
          %v1361 = vmul.f32 %v1175, %v1345
          %v1362 = vmul.f32 %v1176, %v1346
          %v1363 = vmul.f32 %v1177, %v1347
          %v1364 = vmul.f32 %v1178, %v1344
          %v1365 = vmul.f32 %v1179, %v1345
          %v1366 = vmul.f32 %v1180, %v1346
          %v1367 = vmul.f32 %v1181, %v1347
          %v1369 = vperm.slane %v383, 0
          %v1370 = vperm.slane %v383, 1
          %v1371 = vperm.slane %v383, 2
          %v1372 = vperm.slane %v383, 3
          %v1377 = vadd.f32 %v1352, %v1369
          %v1378 = vadd.f32 %v1353, %v1370
          %v1379 = vadd.f32 %v1354, %v1371
          %v1380 = vadd.f32 %v1355, %v1372
          %v1381 = vadd.f32 %v1356, %v1369
          %v1382 = vadd.f32 %v1357, %v1370
          %v1383 = vadd.f32 %v1358, %v1371
          %v1384 = vadd.f32 %v1359, %v1372
          %v1385 = vadd.f32 %v1360, %v1369
          %v1386 = vadd.f32 %v1361, %v1370
          %v1387 = vadd.f32 %v1362, %v1371
          %v1388 = vadd.f32 %v1363, %v1372
          %v1389 = vadd.f32 %v1364, %v1369
          %v1390 = vadd.f32 %v1365, %v1370
          %v1391 = vadd.f32 %v1366, %v1371
          %v1392 = vadd.f32 %v1367, %v1372
          %v1393 = vmul.f32 %v1327, %v1344
          %v1394 = vmul.f32 %v1328, %v1345
          %v1395 = vmul.f32 %v1329, %v1346
          %v1396 = vmul.f32 %v1330, %v1347
          %v1397 = vmul.f32 %v1331, %v1344
          %v1398 = vmul.f32 %v1332, %v1345
          %v1399 = vmul.f32 %v1333, %v1346
          %v1400 = vmul.f32 %v1334, %v1347
          %v1401 = vmul.f32 %v1335, %v1344
          %v1402 = vmul.f32 %v1336, %v1345
          %v1403 = vmul.f32 %v1337, %v1346
          %v1404 = vmul.f32 %v1338, %v1347
          %v1405 = vmul.f32 %v1339, %v1344
          %v1406 = vmul.f32 %v1340, %v1345
          %v1407 = vmul.f32 %v1341, %v1346
          %v1408 = vmul.f32 %v1342, %v1347
          %v1409 = vadd.f32 %v1393, %v1369
          %v1410 = vadd.f32 %v1394, %v1370
          %v1411 = vadd.f32 %v1395, %v1371
          %v1412 = vadd.f32 %v1396, %v1372
          %v1413 = vadd.f32 %v1397, %v1369
          %v1414 = vadd.f32 %v1398, %v1370
          %v1415 = vadd.f32 %v1399, %v1371
          %v1416 = vadd.f32 %v1400, %v1372
          %v1417 = vadd.f32 %v1401, %v1369
          %v1418 = vadd.f32 %v1402, %v1370
          %v1419 = vadd.f32 %v1403, %v1371
          %v1420 = vadd.f32 %v1404, %v1372
          %v1421 = vadd.f32 %v1405, %v1369
          %v1422 = vadd.f32 %v1406, %v1370
          %v1423 = vadd.f32 %v1407, %v1371
          %v1424 = vadd.f32 %v1408, %v1372
          %v1425 = vmax.f32 %v1377, %v1409
          %v1426 = vmax.f32 %v1378, %v1410
          %v1427 = vmax.f32 %v1379, %v1411
          %v1428 = vmax.f32 %v1380, %v1412
          %v1429 = vmax.f32 %v1381, %v1413
          %v1430 = vmax.f32 %v1382, %v1414
          %v1431 = vmax.f32 %v1383, %v1415
          %v1432 = vmax.f32 %v1384, %v1416
          %v1433 = vmax.f32 %v1385, %v1417
          %v1434 = vmax.f32 %v1386, %v1418
          %v1435 = vmax.f32 %v1387, %v1419
          %v1436 = vmax.f32 %v1388, %v1420
          %v1437 = vmax.f32 %v1389, %v1421
          %v1438 = vmax.f32 %v1390, %v1422
          %v1439 = vmax.f32 %v1391, %v1423
          %v1440 = vmax.f32 %v1392, %v1424
          %v1441 = vmax.f32 %v1425, 0.0
          %v1442 = vmax.f32 %v1426, 0.0
          %v1443 = vmax.f32 %v1427, 0.0
          %v1444 = vmax.f32 %v1428, 0.0
          %v1445 = vmax.f32 %v1429, 0.0
          %v1446 = vmax.f32 %v1430, 0.0
          %v1447 = vmax.f32 %v1431, 0.0
          %v1448 = vmax.f32 %v1432, 0.0
          %v1449 = vmax.f32 %v1433, 0.0
          %v1450 = vmax.f32 %v1434, 0.0
          %v1451 = vmax.f32 %v1435, 0.0
          %v1452 = vmax.f32 %v1436, 0.0
          %v1453 = vmax.f32 %v1437, 0.0
          %v1454 = vmax.f32 %v1438, 0.0
          %v1455 = vmax.f32 %v1439, 0.0
          %v1456 = vmax.f32 %v1440, 0.0
          %v1473 = vrot.slane %v1442, 6
          %v1474 = vrot.slane %v1443, 4
          %v1475 = vrot.slane %v1444, 2
          %v1476 = vrot.slane %v1446, 6
          %v1477 = vrot.slane %v1447, 4
          %v1478 = vrot.slane %v1448, 2
          %v1479 = vrot.slane %v1450, 6
          %v1480 = vrot.slane %v1451, 4
          %v1481 = vrot.slane %v1452, 2
          %v1482 = vrot.slane %v1454, 6
          %v1483 = vrot.slane %v1455, 4
          %v1484 = vrot.slane %v1456, 2
          %vm1485 = vcmask 1041408
          %v1486 = vsel %vm1485, %v1441, %v1473
          %vm1487 = vcmask 1045508
          %v1488 = vsel %vm1487, %v1474, %v1475
          %vm1489 = vcmask 1043456
          %v1490 = vsel %vm1489, %v1486, %v1488
          %vm1491 = vcmask 1043458
          %v1492 = vsel %vm1491, %v1441, %v1473
          %v1493 = vsel %vm463, %v1475, %v1474
          %vm1494 = vcmask 1045506
          %v1495 = vsel %vm1494, %v1492, %v1493
          %v1496 = vrot.slane %v1495, 2
          %v1497 = vsel %vm1487, %v1441, %v1473
          %v1498 = vsel %vm1485, %v1474, %v1475
          %v1499 = vsel %vm1489, %v1498, %v1497
          %v1500 = vrot.slane %v1499, 4
          %v1501 = vsel %vm463, %v1473, %v1441
          %v1502 = vsel %vm1491, %v1474, %v1475
          %v1503 = vsel %vm1494, %v1502, %v1501
          %v1504 = vrot.slane %v1503, 6
          %v1505 = vsel %vm1485, %v1445, %v1476
          %v1506 = vsel %vm1487, %v1477, %v1478
          %v1507 = vsel %vm1489, %v1505, %v1506
          %v1508 = vsel %vm1491, %v1445, %v1476
          %v1509 = vsel %vm463, %v1478, %v1477
          %v1510 = vsel %vm1494, %v1508, %v1509
          %v1511 = vrot.slane %v1510, 2
          %v1512 = vsel %vm1487, %v1445, %v1476
          %v1513 = vsel %vm1485, %v1477, %v1478
          %v1514 = vsel %vm1489, %v1513, %v1512
          %v1515 = vrot.slane %v1514, 4
          %v1516 = vsel %vm463, %v1476, %v1445
          %v1517 = vsel %vm1491, %v1477, %v1478
          %v1518 = vsel %vm1494, %v1517, %v1516
          %v1519 = vrot.slane %v1518, 6
          %v1520 = vsel %vm1485, %v1449, %v1479
          %v1521 = vsel %vm1487, %v1480, %v1481
          %v1522 = vsel %vm1489, %v1520, %v1521
          %v1523 = vsel %vm1491, %v1449, %v1479
          %v1524 = vsel %vm463, %v1481, %v1480
          %v1525 = vsel %vm1494, %v1523, %v1524
          %v1526 = vrot.slane %v1525, 2
          %v1527 = vsel %vm1487, %v1449, %v1479
          %v1528 = vsel %vm1485, %v1480, %v1481
          %v1529 = vsel %vm1489, %v1528, %v1527
          %v1530 = vrot.slane %v1529, 4
          %v1531 = vsel %vm463, %v1479, %v1449
          %v1532 = vsel %vm1491, %v1480, %v1481
          %v1533 = vsel %vm1494, %v1532, %v1531
          %v1534 = vrot.slane %v1533, 6
          %v1535 = vsel %vm1485, %v1453, %v1482
          %v1536 = vsel %vm1487, %v1483, %v1484
          %v1537 = vsel %vm1489, %v1535, %v1536
          %v1538 = vsel %vm1491, %v1453, %v1482
          %v1539 = vsel %vm463, %v1484, %v1483
          %v1540 = vsel %vm1494, %v1538, %v1539
          %v1541 = vrot.slane %v1540, 2
          %1542 = vst [vmem:[#allocation1] ss:$4 sm:$0xff] %v1490
          %v1543 = vld.sshfl [vmem:[#allocation1] sm:$0xff pattern:$0x73625140]
          %v1544 = vld.sshfl [vmem:[#allocation1 + $0x8] sm:$0xff pattern:$0x73625140]
          %v1545 = vld.sshfl [vmem:[#allocation1 + $0x10] sm:$0xff pattern:$0x73625140]
          %v1546 = vld.sshfl [vmem:[#allocation1 + $0x18] sm:$0xff pattern:$0x73625140]
          %s1547 = scalar_lea.vmem [#allocation1], 32
          %1548 = vst [vmem:[%s1547] ss:$4 sm:$0xff] %v1496
          %v1549 = vld.sshfl [vmem:[#allocation1 + $0x20] sm:$0xff pattern:$0x73625140]
          %v1550 = vld.sshfl [vmem:[#allocation1 + $0x28] sm:$0xff pattern:$0x73625140]
          %v1551 = vld.sshfl [vmem:[#allocation1 + $0x30] sm:$0xff pattern:$0x73625140]
          %v1552 = vld.sshfl [vmem:[#allocation1 + $0x38] sm:$0xff pattern:$0x73625140]
          %1553 = vst [vmem:[#allocation1] ss:$4 sm:$0xff] %v1500
          %v1554 = vld.sshfl [vmem:[#allocation1] sm:$0xff pattern:$0x73625140]
          %v1555 = vld.sshfl [vmem:[#allocation1 + $0x8] sm:$0xff pattern:$0x73625140]
          %v1556 = vld.sshfl [vmem:[#allocation1 + $0x10] sm:$0xff pattern:$0x73625140]
          %v1557 = vld.sshfl [vmem:[#allocation1 + $0x18] sm:$0xff pattern:$0x73625140]
          %1558 = vst [vmem:[%s1547] ss:$4 sm:$0xff] %v1504
          %v1559 = vld.sshfl [vmem:[#allocation1 + $0x20] sm:$0xff pattern:$0x73625140]
          %v1560 = vld.sshfl [vmem:[#allocation1 + $0x28] sm:$0xff pattern:$0x73625140]
          %v1561 = vld.sshfl [vmem:[#allocation1 + $0x30] sm:$0xff pattern:$0x73625140]
          %v1562 = vld.sshfl [vmem:[#allocation1 + $0x38] sm:$0xff pattern:$0x73625140]
          %1563 = vst [vmem:[#allocation1] ss:$4 sm:$0xff] %v1507
          %v1564 = vld.sshfl [vmem:[#allocation1] sm:$0xff pattern:$0x73625140]
          %v1565 = vld.sshfl [vmem:[#allocation1 + $0x8] sm:$0xff pattern:$0x73625140]
          %v1566 = vld.sshfl [vmem:[#allocation1 + $0x10] sm:$0xff pattern:$0x73625140]
          %v1567 = vld.sshfl [vmem:[#allocation1 + $0x18] sm:$0xff pattern:$0x73625140]
          %1568 = vst [vmem:[%s1547] ss:$4 sm:$0xff] %v1511
          %v1569 = vld.sshfl [vmem:[#allocation1 + $0x20] sm:$0xff pattern:$0x73625140]
          %v1570 = vld.sshfl [vmem:[#allocation1 + $0x28] sm:$0xff pattern:$0x73625140]
          %v1571 = vld.sshfl [vmem:[#allocation1 + $0x30] sm:$0xff pattern:$0x73625140]
          %v1572 = vld.sshfl [vmem:[#allocation1 + $0x38] sm:$0xff pattern:$0x73625140]
          %1573 = vst [vmem:[#allocation1] ss:$4 sm:$0xff] %v1515
          %v1574 = vld.sshfl [vmem:[#allocation1] sm:$0xff pattern:$0x73625140]
          %v1575 = vld.sshfl [vmem:[#allocation1 + $0x8] sm:$0xff pattern:$0x73625140]
          %v1576 = vld.sshfl [vmem:[#allocation1 + $0x10] sm:$0xff pattern:$0x73625140]
          %v1577 = vld.sshfl [vmem:[#allocation1 + $0x18] sm:$0xff pattern:$0x73625140]
          %1578 = vst [vmem:[%s1547] ss:$4 sm:$0xff] %v1519
          %v1579 = vld.sshfl [vmem:[#allocation1 + $0x20] sm:$0xff pattern:$0x73625140]
          %v1580 = vld.sshfl [vmem:[#allocation1 + $0x28] sm:$0xff pattern:$0x73625140]
          %v1581 = vld.sshfl [vmem:[#allocation1 + $0x30] sm:$0xff pattern:$0x73625140]
          %v1582 = vld.sshfl [vmem:[#allocation1 + $0x38] sm:$0xff pattern:$0x73625140]
          %1583 = vst [vmem:[#allocation1] ss:$4 sm:$0xff] %v1522
          %v1584 = vld.sshfl [vmem:[#allocation1] sm:$0xff pattern:$0x73625140]
          %v1585 = vld.sshfl [vmem:[#allocation1 + $0x8] sm:$0xff pattern:$0x73625140]
          %v1586 = vld.sshfl [vmem:[#allocation1 + $0x10] sm:$0xff pattern:$0x73625140]
          %v1587 = vld.sshfl [vmem:[#allocation1 + $0x18] sm:$0xff pattern:$0x73625140]
          %1588 = vst [vmem:[%s1547] ss:$4 sm:$0xff] %v1526
          %v1589 = vld.sshfl [vmem:[#allocation1 + $0x20] sm:$0xff pattern:$0x73625140]
          %v1590 = vld.sshfl [vmem:[#allocation1 + $0x28] sm:$0xff pattern:$0x73625140]
          %v1591 = vld.sshfl [vmem:[#allocation1 + $0x30] sm:$0xff pattern:$0x73625140]
          %v1592 = vld.sshfl [vmem:[#allocation1 + $0x38] sm:$0xff pattern:$0x73625140]
          %1593 = vst [vmem:[#allocation1] ss:$4 sm:$0xff] %v1530
          %v1594 = vld.sshfl [vmem:[#allocation1] sm:$0xff pattern:$0x73625140]
          %v1595 = vld.sshfl [vmem:[#allocation1 + $0x8] sm:$0xff pattern:$0x73625140]
          %v1596 = vld.sshfl [vmem:[#allocation1 + $0x10] sm:$0xff pattern:$0x73625140]
          %v1597 = vld.sshfl [vmem:[#allocation1 + $0x18] sm:$0xff pattern:$0x73625140]
          %1598 = vst [vmem:[%s1547] ss:$4 sm:$0xff] %v1534
          %v1599 = vld.sshfl [vmem:[#allocation1 + $0x20] sm:$0xff pattern:$0x73625140]
          %v1600 = vld.sshfl [vmem:[#allocation1 + $0x28] sm:$0xff pattern:$0x73625140]
          %v1601 = vld.sshfl [vmem:[#allocation1 + $0x30] sm:$0xff pattern:$0x73625140]
          %v1602 = vld.sshfl [vmem:[#allocation1 + $0x38] sm:$0xff pattern:$0x73625140]
          %1603 = vst [vmem:[#allocation1] ss:$4 sm:$0xff] %v1537
          %v1604 = vld.sshfl [vmem:[#allocation1] sm:$0xff pattern:$0x73625140]
          %v1605 = vld.sshfl [vmem:[#allocation1 + $0x8] sm:$0xff pattern:$0x73625140]
          %v1606 = vld.sshfl [vmem:[#allocation1 + $0x10] sm:$0xff pattern:$0x73625140]
          %v1607 = vld.sshfl [vmem:[#allocation1 + $0x18] sm:$0xff pattern:$0x73625140]
          %1608 = vst [vmem:[%s1547] ss:$4 sm:$0xff] %v1541
          %v1609 = vld.sshfl [vmem:[#allocation1 + $0x20] sm:$0xff pattern:$0x73625140]
          %v1610 = vld.sshfl [vmem:[#allocation1 + $0x28] sm:$0xff pattern:$0x73625140]
          %v1611 = vld.sshfl [vmem:[#allocation1 + $0x30] sm:$0xff pattern:$0x73625140]
          %v1612 = vld.sshfl [vmem:[#allocation1 + $0x38] sm:$0xff pattern:$0x73625140]
          %v1669 = vsel %vm1485, %v1543, -inf
          %v1670 = vrot.slane %v1669, 4
          %v1671 = vmax.f32 %v1669, %v1670
          %v1672 = vrot.slane %v1671, 2
          %v1673 = vmax.f32 %v1671, %v1672
          %v1674 = vrot.slane %v1673, 1
          %v1675 = vmax.f32 %v1673, %v1674
          %v1676 = vsel %vm1485, %v1544, -inf
          %v1677 = vrot.slane %v1676, 4
          %v1678 = vmax.f32 %v1676, %v1677
          %v1679 = vrot.slane %v1678, 2
          %v1680 = vmax.f32 %v1678, %v1679
          %v1681 = vrot.slane %v1680, 1
          %v1682 = vmax.f32 %v1680, %v1681
          %v1683 = vsel %vm1485, %v1545, -inf
          %v1684 = vrot.slane %v1683, 4
          %v1685 = vmax.f32 %v1683, %v1684
          %v1686 = vrot.slane %v1685, 2
          %v1687 = vmax.f32 %v1685, %v1686
          %v1688 = vrot.slane %v1687, 1
          %v1689 = vmax.f32 %v1687, %v1688
          %vm1690 = vcmask 517120
          %v1691 = vsel %vm1690, %v1546, -inf
          %v1692 = vrot.slane %v1691, 4
          %v1693 = vmax.f32 %v1691, %v1692
          %v1694 = vrot.slane %v1693, 2
          %v1695 = vmax.f32 %v1693, %v1694
          %v1696 = vrot.slane %v1695, 1
          %v1697 = vmax.f32 %v1695, %v1696
          %v1698 = vsel %vm1485, %v1549, -inf
          %v1699 = vrot.slane %v1698, 4
          %v1700 = vmax.f32 %v1698, %v1699
          %v1701 = vrot.slane %v1700, 2
          %v1702 = vmax.f32 %v1700, %v1701
          %v1703 = vrot.slane %v1702, 1
          %v1704 = vmax.f32 %v1702, %v1703
          %v1705 = vsel %vm1485, %v1550, -inf
          %v1706 = vrot.slane %v1705, 4
          %v1707 = vmax.f32 %v1705, %v1706
          %v1708 = vrot.slane %v1707, 2
          %v1709 = vmax.f32 %v1707, %v1708
          %v1710 = vrot.slane %v1709, 1
          %v1711 = vmax.f32 %v1709, %v1710
          %v1712 = vsel %vm1485, %v1551, -inf
          %v1713 = vrot.slane %v1712, 4
          %v1714 = vmax.f32 %v1712, %v1713
          %v1715 = vrot.slane %v1714, 2
          %v1716 = vmax.f32 %v1714, %v1715
          %v1717 = vrot.slane %v1716, 1
          %v1718 = vmax.f32 %v1716, %v1717
          %v1719 = vsel %vm1690, %v1552, -inf
          %v1720 = vrot.slane %v1719, 4
          %v1721 = vmax.f32 %v1719, %v1720
          %v1722 = vrot.slane %v1721, 2
          %v1723 = vmax.f32 %v1721, %v1722
          %v1724 = vrot.slane %v1723, 1
          %v1725 = vmax.f32 %v1723, %v1724
          %v1726 = vsel %vm1485, %v1554, -inf
          %v1727 = vrot.slane %v1726, 4
          %v1728 = vmax.f32 %v1726, %v1727
          %v1729 = vrot.slane %v1728, 2
          %v1730 = vmax.f32 %v1728, %v1729
          %v1731 = vrot.slane %v1730, 1
          %v1732 = vmax.f32 %v1730, %v1731
          %v1733 = vsel %vm1485, %v1555, -inf
          %v1734 = vrot.slane %v1733, 4
          %v1735 = vmax.f32 %v1733, %v1734
          %v1736 = vrot.slane %v1735, 2
          %v1737 = vmax.f32 %v1735, %v1736
          %v1738 = vrot.slane %v1737, 1
          %v1739 = vmax.f32 %v1737, %v1738
          %v1740 = vsel %vm1485, %v1556, -inf
          %v1741 = vrot.slane %v1740, 4
          %v1742 = vmax.f32 %v1740, %v1741
          %v1743 = vrot.slane %v1742, 2
          %v1744 = vmax.f32 %v1742, %v1743
          %v1745 = vrot.slane %v1744, 1
          %v1746 = vmax.f32 %v1744, %v1745
          %v1747 = vsel %vm1690, %v1557, -inf
          %v1748 = vrot.slane %v1747, 4
          %v1749 = vmax.f32 %v1747, %v1748
          %v1750 = vrot.slane %v1749, 2
          %v1751 = vmax.f32 %v1749, %v1750
          %v1752 = vrot.slane %v1751, 1
          %v1753 = vmax.f32 %v1751, %v1752
          %v1754 = vsel %vm1485, %v1559, -inf
          %v1755 = vrot.slane %v1754, 4
          %v1756 = vmax.f32 %v1754, %v1755
          %v1757 = vrot.slane %v1756, 2
          %v1758 = vmax.f32 %v1756, %v1757
          %v1759 = vrot.slane %v1758, 1
          %v1760 = vmax.f32 %v1758, %v1759
          %v1761 = vsel %vm1485, %v1560, -inf
          %v1762 = vrot.slane %v1761, 4
          %v1763 = vmax.f32 %v1761, %v1762
          %v1764 = vrot.slane %v1763, 2
          %v1765 = vmax.f32 %v1763, %v1764
          %v1766 = vrot.slane %v1765, 1
          %v1767 = vmax.f32 %v1765, %v1766
          %v1768 = vsel %vm1485, %v1561, -inf
          %v1769 = vrot.slane %v1768, 4
          %v1770 = vmax.f32 %v1768, %v1769
          %v1771 = vrot.slane %v1770, 2
          %v1772 = vmax.f32 %v1770, %v1771
          %v1773 = vrot.slane %v1772, 1
          %v1774 = vmax.f32 %v1772, %v1773
          %v1775 = vsel %vm1690, %v1562, -inf
          %v1776 = vrot.slane %v1775, 4
          %v1777 = vmax.f32 %v1775, %v1776
          %v1778 = vrot.slane %v1777, 2
          %v1779 = vmax.f32 %v1777, %v1778
          %v1780 = vrot.slane %v1779, 1
          %v1781 = vmax.f32 %v1779, %v1780
          %v1782 = vsel %vm1485, %v1564, -inf
          %v1783 = vrot.slane %v1782, 4
          %v1784 = vmax.f32 %v1782, %v1783
          %v1785 = vrot.slane %v1784, 2
          %v1786 = vmax.f32 %v1784, %v1785
          %v1787 = vrot.slane %v1786, 1
          %v1788 = vmax.f32 %v1786, %v1787
          %v1789 = vsel %vm1485, %v1565, -inf
          %v1790 = vrot.slane %v1789, 4
          %v1791 = vmax.f32 %v1789, %v1790
          %v1792 = vrot.slane %v1791, 2
          %v1793 = vmax.f32 %v1791, %v1792
          %v1794 = vrot.slane %v1793, 1
          %v1795 = vmax.f32 %v1793, %v1794
          %v1796 = vsel %vm1485, %v1566, -inf
          %v1797 = vrot.slane %v1796, 4
          %v1798 = vmax.f32 %v1796, %v1797
          %v1799 = vrot.slane %v1798, 2
          %v1800 = vmax.f32 %v1798, %v1799
          %v1801 = vrot.slane %v1800, 1
          %v1802 = vmax.f32 %v1800, %v1801
          %v1803 = vsel %vm1690, %v1567, -inf
          %v1804 = vrot.slane %v1803, 4
          %v1805 = vmax.f32 %v1803, %v1804
          %v1806 = vrot.slane %v1805, 2
          %v1807 = vmax.f32 %v1805, %v1806
          %v1808 = vrot.slane %v1807, 1
          %v1809 = vmax.f32 %v1807, %v1808
          %v1810 = vsel %vm1485, %v1569, -inf
          %v1811 = vrot.slane %v1810, 4
          %v1812 = vmax.f32 %v1810, %v1811
          %v1813 = vrot.slane %v1812, 2
          %v1814 = vmax.f32 %v1812, %v1813
          %v1815 = vrot.slane %v1814, 1
          %v1816 = vmax.f32 %v1814, %v1815
          %v1817 = vsel %vm1485, %v1570, -inf
          %v1818 = vrot.slane %v1817, 4
          %v1819 = vmax.f32 %v1817, %v1818
          %v1820 = vrot.slane %v1819, 2
          %v1821 = vmax.f32 %v1819, %v1820
          %v1822 = vrot.slane %v1821, 1
          %v1823 = vmax.f32 %v1821, %v1822
          %v1824 = vsel %vm1485, %v1571, -inf
          %v1825 = vrot.slane %v1824, 4
          %v1826 = vmax.f32 %v1824, %v1825
          %v1827 = vrot.slane %v1826, 2
          %v1828 = vmax.f32 %v1826, %v1827
          %v1829 = vrot.slane %v1828, 1
          %v1830 = vmax.f32 %v1828, %v1829
          %v1831 = vsel %vm1690, %v1572, -inf
          %v1832 = vrot.slane %v1831, 4
          %v1833 = vmax.f32 %v1831, %v1832
          %v1834 = vrot.slane %v1833, 2
          %v1835 = vmax.f32 %v1833, %v1834
          %v1836 = vrot.slane %v1835, 1
          %v1837 = vmax.f32 %v1835, %v1836
          %v1838 = vsel %vm1485, %v1574, -inf
          %v1839 = vrot.slane %v1838, 4
          %v1840 = vmax.f32 %v1838, %v1839
          %v1841 = vrot.slane %v1840, 2
          %v1842 = vmax.f32 %v1840, %v1841
          %v1843 = vrot.slane %v1842, 1
          %v1844 = vmax.f32 %v1842, %v1843
          %v1845 = vsel %vm1485, %v1575, -inf
          %v1846 = vrot.slane %v1845, 4
          %v1847 = vmax.f32 %v1845, %v1846
          %v1848 = vrot.slane %v1847, 2
          %v1849 = vmax.f32 %v1847, %v1848
          %v1850 = vrot.slane %v1849, 1
          %v1851 = vmax.f32 %v1849, %v1850
          %v1852 = vsel %vm1485, %v1576, -inf
          %v1853 = vrot.slane %v1852, 4
          %v1854 = vmax.f32 %v1852, %v1853
          %v1855 = vrot.slane %v1854, 2
          %v1856 = vmax.f32 %v1854, %v1855
          %v1857 = vrot.slane %v1856, 1
          %v1858 = vmax.f32 %v1856, %v1857
          %v1859 = vsel %vm1690, %v1577, -inf
          %v1860 = vrot.slane %v1859, 4
          %v1861 = vmax.f32 %v1859, %v1860
          %v1862 = vrot.slane %v1861, 2
          %v1863 = vmax.f32 %v1861, %v1862
          %v1864 = vrot.slane %v1863, 1
          %v1865 = vmax.f32 %v1863, %v1864
          %v1866 = vsel %vm1485, %v1579, -inf
          %v1867 = vrot.slane %v1866, 4
          %v1868 = vmax.f32 %v1866, %v1867
          %v1869 = vrot.slane %v1868, 2
          %v1870 = vmax.f32 %v1868, %v1869
          %v1871 = vrot.slane %v1870, 1
          %v1872 = vmax.f32 %v1870, %v1871
          %v1873 = vsel %vm1485, %v1580, -inf
          %v1874 = vrot.slane %v1873, 4
          %v1875 = vmax.f32 %v1873, %v1874
          %v1876 = vrot.slane %v1875, 2
          %v1877 = vmax.f32 %v1875, %v1876
          %v1878 = vrot.slane %v1877, 1
          %v1879 = vmax.f32 %v1877, %v1878
          %v1880 = vsel %vm1485, %v1581, -inf
          %v1881 = vrot.slane %v1880, 4
          %v1882 = vmax.f32 %v1880, %v1881
          %v1883 = vrot.slane %v1882, 2
          %v1884 = vmax.f32 %v1882, %v1883
          %v1885 = vrot.slane %v1884, 1
          %v1886 = vmax.f32 %v1884, %v1885
          %v1887 = vsel %vm1690, %v1582, -inf
          %v1888 = vrot.slane %v1887, 4
          %v1889 = vmax.f32 %v1887, %v1888
          %v1890 = vrot.slane %v1889, 2
          %v1891 = vmax.f32 %v1889, %v1890
          %v1892 = vrot.slane %v1891, 1
          %v1893 = vmax.f32 %v1891, %v1892
          %v1894 = vsel %vm1485, %v1584, -inf
          %v1895 = vrot.slane %v1894, 4
          %v1896 = vmax.f32 %v1894, %v1895
          %v1897 = vrot.slane %v1896, 2
          %v1898 = vmax.f32 %v1896, %v1897
          %v1899 = vrot.slane %v1898, 1
          %v1900 = vmax.f32 %v1898, %v1899
          %v1901 = vsel %vm1485, %v1585, -inf
          %v1902 = vrot.slane %v1901, 4
          %v1903 = vmax.f32 %v1901, %v1902
          %v1904 = vrot.slane %v1903, 2
          %v1905 = vmax.f32 %v1903, %v1904
          %v1906 = vrot.slane %v1905, 1
          %v1907 = vmax.f32 %v1905, %v1906
          %v1908 = vsel %vm1485, %v1586, -inf
          %v1909 = vrot.slane %v1908, 4
          %v1910 = vmax.f32 %v1908, %v1909
          %v1911 = vrot.slane %v1910, 2
          %v1912 = vmax.f32 %v1910, %v1911
          %v1913 = vrot.slane %v1912, 1
          %v1914 = vmax.f32 %v1912, %v1913
          %v1915 = vsel %vm1690, %v1587, -inf
          %v1916 = vrot.slane %v1915, 4
          %v1917 = vmax.f32 %v1915, %v1916
          %v1918 = vrot.slane %v1917, 2
          %v1919 = vmax.f32 %v1917, %v1918
          %v1920 = vrot.slane %v1919, 1
          %v1921 = vmax.f32 %v1919, %v1920
          %v1922 = vsel %vm1485, %v1589, -inf
          %v1923 = vrot.slane %v1922, 4
          %v1924 = vmax.f32 %v1922, %v1923
          %v1925 = vrot.slane %v1924, 2
          %v1926 = vmax.f32 %v1924, %v1925
          %v1927 = vrot.slane %v1926, 1
          %v1928 = vmax.f32 %v1926, %v1927
          %v1929 = vsel %vm1485, %v1590, -inf
          %v1930 = vrot.slane %v1929, 4
          %v1931 = vmax.f32 %v1929, %v1930
          %v1932 = vrot.slane %v1931, 2
          %v1933 = vmax.f32 %v1931, %v1932
          %v1934 = vrot.slane %v1933, 1
          %v1935 = vmax.f32 %v1933, %v1934
          %v1936 = vsel %vm1485, %v1591, -inf
          %v1937 = vrot.slane %v1936, 4
          %v1938 = vmax.f32 %v1936, %v1937
          %v1939 = vrot.slane %v1938, 2
          %v1940 = vmax.f32 %v1938, %v1939
          %v1941 = vrot.slane %v1940, 1
          %v1942 = vmax.f32 %v1940, %v1941
          %v1943 = vsel %vm1690, %v1592, -inf
          %v1944 = vrot.slane %v1943, 4
          %v1945 = vmax.f32 %v1943, %v1944
          %v1946 = vrot.slane %v1945, 2
          %v1947 = vmax.f32 %v1945, %v1946
          %v1948 = vrot.slane %v1947, 1
          %v1949 = vmax.f32 %v1947, %v1948
          %v1950 = vsel %vm1485, %v1594, -inf
          %v1951 = vrot.slane %v1950, 4
          %v1952 = vmax.f32 %v1950, %v1951
          %v1953 = vrot.slane %v1952, 2
          %v1954 = vmax.f32 %v1952, %v1953
          %v1955 = vrot.slane %v1954, 1
          %v1956 = vmax.f32 %v1954, %v1955
          %v1957 = vsel %vm1485, %v1595, -inf
          %v1958 = vrot.slane %v1957, 4
          %v1959 = vmax.f32 %v1957, %v1958
          %v1960 = vrot.slane %v1959, 2
          %v1961 = vmax.f32 %v1959, %v1960
          %v1962 = vrot.slane %v1961, 1
          %v1963 = vmax.f32 %v1961, %v1962
          %v1964 = vsel %vm1485, %v1596, -inf
          %v1965 = vrot.slane %v1964, 4
          %v1966 = vmax.f32 %v1964, %v1965
          %v1967 = vrot.slane %v1966, 2
          %v1968 = vmax.f32 %v1966, %v1967
          %v1969 = vrot.slane %v1968, 1
          %v1970 = vmax.f32 %v1968, %v1969
          %v1971 = vsel %vm1690, %v1597, -inf
          %v1972 = vrot.slane %v1971, 4
          %v1973 = vmax.f32 %v1971, %v1972
          %v1974 = vrot.slane %v1973, 2
          %v1975 = vmax.f32 %v1973, %v1974
          %v1976 = vrot.slane %v1975, 1
          %v1977 = vmax.f32 %v1975, %v1976
          %v1978 = vsel %vm1485, %v1599, -inf
          %v1979 = vrot.slane %v1978, 4
          %v1980 = vmax.f32 %v1978, %v1979
          %v1981 = vrot.slane %v1980, 2
          %v1982 = vmax.f32 %v1980, %v1981
          %v1983 = vrot.slane %v1982, 1
          %v1984 = vmax.f32 %v1982, %v1983
          %v1985 = vsel %vm1485, %v1600, -inf
          %v1986 = vrot.slane %v1985, 4
          %v1987 = vmax.f32 %v1985, %v1986
          %v1988 = vrot.slane %v1987, 2
          %v1989 = vmax.f32 %v1987, %v1988
          %v1990 = vrot.slane %v1989, 1
          %v1991 = vmax.f32 %v1989, %v1990
          %v1992 = vsel %vm1485, %v1601, -inf
          %v1993 = vrot.slane %v1992, 4
          %v1994 = vmax.f32 %v1992, %v1993
          %v1995 = vrot.slane %v1994, 2
          %v1996 = vmax.f32 %v1994, %v1995
          %v1997 = vrot.slane %v1996, 1
          %v1998 = vmax.f32 %v1996, %v1997
          %v1999 = vsel %vm1690, %v1602, -inf
          %v2000 = vrot.slane %v1999, 4
          %v2001 = vmax.f32 %v1999, %v2000
          %v2002 = vrot.slane %v2001, 2
          %v2003 = vmax.f32 %v2001, %v2002
          %v2004 = vrot.slane %v2003, 1
          %v2005 = vmax.f32 %v2003, %v2004
          %v2006 = vsel %vm1485, %v1604, -inf
          %v2007 = vrot.slane %v2006, 4
          %v2008 = vmax.f32 %v2006, %v2007
          %v2009 = vrot.slane %v2008, 2
          %v2010 = vmax.f32 %v2008, %v2009
          %v2011 = vrot.slane %v2010, 1
          %v2012 = vmax.f32 %v2010, %v2011
          %v2013 = vsel %vm1485, %v1605, -inf
          %v2014 = vrot.slane %v2013, 4
          %v2015 = vmax.f32 %v2013, %v2014
          %v2016 = vrot.slane %v2015, 2
          %v2017 = vmax.f32 %v2015, %v2016
          %v2018 = vrot.slane %v2017, 1
          %v2019 = vmax.f32 %v2017, %v2018
          %v2020 = vsel %vm1485, %v1606, -inf
          %v2021 = vrot.slane %v2020, 4
          %v2022 = vmax.f32 %v2020, %v2021
          %v2023 = vrot.slane %v2022, 2
          %v2024 = vmax.f32 %v2022, %v2023
          %v2025 = vrot.slane %v2024, 1
          %v2026 = vmax.f32 %v2024, %v2025
          %v2027 = vsel %vm1690, %v1607, -inf
          %v2028 = vrot.slane %v2027, 4
          %v2029 = vmax.f32 %v2027, %v2028
          %v2030 = vrot.slane %v2029, 2
          %v2031 = vmax.f32 %v2029, %v2030
          %v2032 = vrot.slane %v2031, 1
          %v2033 = vmax.f32 %v2031, %v2032
          %v2034 = vsel %vm1485, %v1609, -inf
          %v2035 = vrot.slane %v2034, 4
          %v2036 = vmax.f32 %v2034, %v2035
          %v2037 = vrot.slane %v2036, 2
          %v2038 = vmax.f32 %v2036, %v2037
          %v2039 = vrot.slane %v2038, 1
          %v2040 = vmax.f32 %v2038, %v2039
          %v2041 = vsel %vm1485, %v1610, -inf
          %v2042 = vrot.slane %v2041, 4
          %v2043 = vmax.f32 %v2041, %v2042
          %v2044 = vrot.slane %v2043, 2
          %v2045 = vmax.f32 %v2043, %v2044
          %v2046 = vrot.slane %v2045, 1
          %v2047 = vmax.f32 %v2045, %v2046
          %v2048 = vsel %vm1485, %v1611, -inf
          %v2049 = vrot.slane %v2048, 4
          %v2050 = vmax.f32 %v2048, %v2049
          %v2051 = vrot.slane %v2050, 2
          %v2052 = vmax.f32 %v2050, %v2051
          %v2053 = vrot.slane %v2052, 1
          %v2054 = vmax.f32 %v2052, %v2053
          %v2055 = vsel %vm1690, %v1612, -inf
          %v2056 = vrot.slane %v2055, 4
          %v2057 = vmax.f32 %v2055, %v2056
          %v2058 = vrot.slane %v2057, 2
          %v2059 = vmax.f32 %v2057, %v2058
          %v2060 = vrot.slane %v2059, 1
          %v2061 = vmax.f32 %v2059, %v2060
          %2076 = vrot.lane.b32.xlu0 %v1675, 96
          %v2077 = vpop.permute.xlu0 %2076
          %2078 = vrot.lane.b32.xlu0 %v1704, 96
          %v2079 = vpop.permute.xlu0 %2078
          %2080 = vrot.lane.b32.xlu0 %v1732, 96
          %v2081 = vpop.permute.xlu0 %2080
          %2082 = vrot.lane.b32.xlu0 %v1760, 96
          %v2083 = vpop.permute.xlu0 %2082
          %2084 = vrot.lane.b32.xlu0 %v1788, 96
          %v2085 = vpop.permute.xlu0 %2084
          %2086 = vrot.lane.b32.xlu0 %v1816, 96
          %v2087 = vpop.permute.xlu0 %2086
          %2088 = vrot.lane.b32.xlu0 %v1844, 96
          %v2089 = vpop.permute.xlu0 %2088
          %2090 = vrot.lane.b32.xlu0 %v1872, 96
          %v2091 = vpop.permute.xlu0 %2090
          %2092 = vrot.lane.b32.xlu0 %v1900, 96
          %v2093 = vpop.permute.xlu0 %2092
          %2094 = vrot.lane.b32.xlu0 %v1928, 96
          %v2095 = vpop.permute.xlu0 %2094
          %2096 = vrot.lane.b32.xlu0 %v1956, 96
          %v2097 = vpop.permute.xlu0 %2096
          %2098 = vrot.lane.b32.xlu0 %v1984, 96
          %v2099 = vpop.permute.xlu0 %2098
          %2100 = vrot.lane.b32.xlu0 %v2012, 96
          %v2101 = vpop.permute.xlu0 %2100
          %2102 = vrot.lane.b32.xlu0 %v2040, 96
          %v2103 = vpop.permute.xlu0 %2102
          %2104 = vrot.lane.b32.xlu0 %v1675, 64
          %v2105 = vpop.permute.xlu0 %2104
          %2106 = vrot.lane.b32.xlu0 %v1704, 64
          %v2107 = vpop.permute.xlu0 %2106
          %2108 = vrot.lane.b32.xlu0 %v1732, 64
          %v2109 = vpop.permute.xlu0 %2108
          %2110 = vrot.lane.b32.xlu0 %v1760, 64
          %v2111 = vpop.permute.xlu0 %2110
          %2112 = vrot.lane.b32.xlu0 %v1788, 64
          %v2113 = vpop.permute.xlu0 %2112
          %2114 = vrot.lane.b32.xlu0 %v1816, 64
          %v2115 = vpop.permute.xlu0 %2114
          %2116 = vrot.lane.b32.xlu0 %v1844, 64
          %v2117 = vpop.permute.xlu0 %2116
          %2118 = vrot.lane.b32.xlu0 %v1872, 64
          %v2119 = vpop.permute.xlu0 %2118
          %2120 = vrot.lane.b32.xlu0 %v1900, 64
          %v2121 = vpop.permute.xlu0 %2120
          %2122 = vrot.lane.b32.xlu0 %v1928, 64
          %v2123 = vpop.permute.xlu0 %2122
          %2124 = vrot.lane.b32.xlu0 %v1956, 64
          %v2125 = vpop.permute.xlu0 %2124
          %2126 = vrot.lane.b32.xlu0 %v1984, 64
          %v2127 = vpop.permute.xlu0 %2126
          %2128 = vrot.lane.b32.xlu0 %v2012, 64
          %v2129 = vpop.permute.xlu0 %2128
          %2130 = vrot.lane.b32.xlu0 %v2040, 64
          %v2131 = vpop.permute.xlu0 %2130
          %2132 = vrot.lane.b32.xlu0 %v1675, 32
          %v2133 = vpop.permute.xlu0 %2132
          %2134 = vrot.lane.b32.xlu0 %v1704, 32
          %v2135 = vpop.permute.xlu0 %2134
          %2136 = vrot.lane.b32.xlu0 %v1732, 32
          %v2137 = vpop.permute.xlu0 %2136
          %2138 = vrot.lane.b32.xlu0 %v1760, 32
          %v2139 = vpop.permute.xlu0 %2138
          %2140 = vrot.lane.b32.xlu0 %v1788, 32
          %v2141 = vpop.permute.xlu0 %2140
          %2142 = vrot.lane.b32.xlu0 %v1816, 32
          %v2143 = vpop.permute.xlu0 %2142
          %2144 = vrot.lane.b32.xlu0 %v1844, 32
          %v2145 = vpop.permute.xlu0 %2144
          %2146 = vrot.lane.b32.xlu0 %v1872, 32
          %v2147 = vpop.permute.xlu0 %2146
          %2148 = vrot.lane.b32.xlu0 %v1900, 32
          %v2149 = vpop.permute.xlu0 %2148
          %2150 = vrot.lane.b32.xlu0 %v1928, 32
          %v2151 = vpop.permute.xlu0 %2150
          %2152 = vrot.lane.b32.xlu0 %v1956, 32
          %v2153 = vpop.permute.xlu0 %2152
          %2154 = vrot.lane.b32.xlu0 %v1984, 32
          %v2155 = vpop.permute.xlu0 %2154
          %2156 = vrot.lane.b32.xlu0 %v2012, 32
          %v2157 = vpop.permute.xlu0 %2156
          %2158 = vrot.lane.b32.xlu0 %v2040, 32
          %v2159 = vpop.permute.xlu0 %2158
          %2174 = vrot.lane.b32.xlu0 %v1682, 96
          %v2175 = vpop.permute.xlu0 %2174
          %2176 = vrot.lane.b32.xlu0 %v1711, 96
          %v2177 = vpop.permute.xlu0 %2176
          %2178 = vrot.lane.b32.xlu0 %v1739, 96
          %v2179 = vpop.permute.xlu0 %2178
          %2180 = vrot.lane.b32.xlu0 %v1767, 96
          %v2181 = vpop.permute.xlu0 %2180
          %2182 = vrot.lane.b32.xlu0 %v1795, 96
          %v2183 = vpop.permute.xlu0 %2182
          %2184 = vrot.lane.b32.xlu0 %v1823, 96
          %v2185 = vpop.permute.xlu0 %2184
          %2186 = vrot.lane.b32.xlu0 %v1851, 96
          %v2187 = vpop.permute.xlu0 %2186
          %2188 = vrot.lane.b32.xlu0 %v1879, 96
          %v2189 = vpop.permute.xlu0 %2188
          %2190 = vrot.lane.b32.xlu0 %v1907, 96
          %v2191 = vpop.permute.xlu0 %2190
          %2192 = vrot.lane.b32.xlu0 %v1935, 96
          %v2193 = vpop.permute.xlu0 %2192
          %2194 = vrot.lane.b32.xlu0 %v1963, 96
          %v2195 = vpop.permute.xlu0 %2194
          %2196 = vrot.lane.b32.xlu0 %v1991, 96
          %v2197 = vpop.permute.xlu0 %2196
          %2198 = vrot.lane.b32.xlu0 %v2019, 96
          %v2199 = vpop.permute.xlu0 %2198
          %2200 = vrot.lane.b32.xlu0 %v2047, 96
          %v2201 = vpop.permute.xlu0 %2200
          %2202 = vrot.lane.b32.xlu0 %v1682, 64
          %v2203 = vpop.permute.xlu0 %2202
          %2204 = vrot.lane.b32.xlu0 %v1711, 64
          %v2205 = vpop.permute.xlu0 %2204
          %2206 = vrot.lane.b32.xlu0 %v1739, 64
          %v2207 = vpop.permute.xlu0 %2206
          %2208 = vrot.lane.b32.xlu0 %v1767, 64
          %v2209 = vpop.permute.xlu0 %2208
          %2210 = vrot.lane.b32.xlu0 %v1795, 64
          %v2211 = vpop.permute.xlu0 %2210
          %2212 = vrot.lane.b32.xlu0 %v1823, 64
          %v2213 = vpop.permute.xlu0 %2212
          %2214 = vrot.lane.b32.xlu0 %v1851, 64
          %v2215 = vpop.permute.xlu0 %2214
          %2216 = vrot.lane.b32.xlu0 %v1879, 64
          %v2217 = vpop.permute.xlu0 %2216
          %2218 = vrot.lane.b32.xlu0 %v1907, 64
          %v2219 = vpop.permute.xlu0 %2218
          %2220 = vrot.lane.b32.xlu0 %v1935, 64
          %v2221 = vpop.permute.xlu0 %2220
          %2222 = vrot.lane.b32.xlu0 %v1963, 64
          %v2223 = vpop.permute.xlu0 %2222
          %2224 = vrot.lane.b32.xlu0 %v1991, 64
          %v2225 = vpop.permute.xlu0 %2224
          %2226 = vrot.lane.b32.xlu0 %v2019, 64
          %v2227 = vpop.permute.xlu0 %2226
          %2228 = vrot.lane.b32.xlu0 %v2047, 64
          %v2229 = vpop.permute.xlu0 %2228
          %2230 = vrot.lane.b32.xlu0 %v1682, 32
          %v2231 = vpop.permute.xlu0 %2230
          %2232 = vrot.lane.b32.xlu0 %v1711, 32
          %v2233 = vpop.permute.xlu0 %2232
          %2234 = vrot.lane.b32.xlu0 %v1739, 32
          %v2235 = vpop.permute.xlu0 %2234
          %2236 = vrot.lane.b32.xlu0 %v1767, 32
          %v2237 = vpop.permute.xlu0 %2236
          %2238 = vrot.lane.b32.xlu0 %v1795, 32
          %v2239 = vpop.permute.xlu0 %2238
          %2240 = vrot.lane.b32.xlu0 %v1823, 32
          %v2241 = vpop.permute.xlu0 %2240
          %2242 = vrot.lane.b32.xlu0 %v1851, 32
          %v2243 = vpop.permute.xlu0 %2242
          %2244 = vrot.lane.b32.xlu0 %v1879, 32
          %v2245 = vpop.permute.xlu0 %2244
          %2246 = vrot.lane.b32.xlu0 %v1907, 32
          %v2247 = vpop.permute.xlu0 %2246
          %2248 = vrot.lane.b32.xlu0 %v1935, 32
          %v2249 = vpop.permute.xlu0 %2248
          %2250 = vrot.lane.b32.xlu0 %v1963, 32
          %v2251 = vpop.permute.xlu0 %2250
          %2252 = vrot.lane.b32.xlu0 %v1991, 32
          %v2253 = vpop.permute.xlu0 %2252
          %2254 = vrot.lane.b32.xlu0 %v2019, 32
          %v2255 = vpop.permute.xlu0 %2254
          %2256 = vrot.lane.b32.xlu0 %v2047, 32
          %v2257 = vpop.permute.xlu0 %2256
          %2272 = vrot.lane.b32.xlu0 %v1689, 96
          %v2273 = vpop.permute.xlu0 %2272
          %2274 = vrot.lane.b32.xlu0 %v1718, 96
          %v2275 = vpop.permute.xlu0 %2274
          %2276 = vrot.lane.b32.xlu0 %v1746, 96
          %v2277 = vpop.permute.xlu0 %2276
          %2278 = vrot.lane.b32.xlu0 %v1774, 96
          %v2279 = vpop.permute.xlu0 %2278
          %2280 = vrot.lane.b32.xlu0 %v1802, 96
          %v2281 = vpop.permute.xlu0 %2280
          %2282 = vrot.lane.b32.xlu0 %v1830, 96
          %v2283 = vpop.permute.xlu0 %2282
          %2284 = vrot.lane.b32.xlu0 %v1858, 96
          %v2285 = vpop.permute.xlu0 %2284
          %2286 = vrot.lane.b32.xlu0 %v1886, 96
          %v2287 = vpop.permute.xlu0 %2286
          %2288 = vrot.lane.b32.xlu0 %v1914, 96
          %v2289 = vpop.permute.xlu0 %2288
          %2290 = vrot.lane.b32.xlu0 %v1942, 96
          %v2291 = vpop.permute.xlu0 %2290
          %2292 = vrot.lane.b32.xlu0 %v1970, 96
          %v2293 = vpop.permute.xlu0 %2292
          %2294 = vrot.lane.b32.xlu0 %v1998, 96
          %v2295 = vpop.permute.xlu0 %2294
          %2296 = vrot.lane.b32.xlu0 %v2026, 96
          %v2297 = vpop.permute.xlu0 %2296
          %2298 = vrot.lane.b32.xlu0 %v2054, 96
          %v2299 = vpop.permute.xlu0 %2298
          %2300 = vrot.lane.b32.xlu0 %v1689, 64
          %v2301 = vpop.permute.xlu0 %2300
          %2302 = vrot.lane.b32.xlu0 %v1718, 64
          %v2303 = vpop.permute.xlu0 %2302
          %2304 = vrot.lane.b32.xlu0 %v1746, 64
          %v2305 = vpop.permute.xlu0 %2304
          %2306 = vrot.lane.b32.xlu0 %v1774, 64
          %v2307 = vpop.permute.xlu0 %2306
          %2308 = vrot.lane.b32.xlu0 %v1802, 64
          %v2309 = vpop.permute.xlu0 %2308
          %2310 = vrot.lane.b32.xlu0 %v1830, 64
          %v2311 = vpop.permute.xlu0 %2310
          %2312 = vrot.lane.b32.xlu0 %v1858, 64
          %v2313 = vpop.permute.xlu0 %2312
          %2314 = vrot.lane.b32.xlu0 %v1886, 64
          %v2315 = vpop.permute.xlu0 %2314
          %2316 = vrot.lane.b32.xlu0 %v1914, 64
          %v2317 = vpop.permute.xlu0 %2316
          %2318 = vrot.lane.b32.xlu0 %v1942, 64
          %v2319 = vpop.permute.xlu0 %2318
          %2320 = vrot.lane.b32.xlu0 %v1970, 64
          %v2321 = vpop.permute.xlu0 %2320
          %2322 = vrot.lane.b32.xlu0 %v1998, 64
          %v2323 = vpop.permute.xlu0 %2322
          %2324 = vrot.lane.b32.xlu0 %v2026, 64
          %v2325 = vpop.permute.xlu0 %2324
          %2326 = vrot.lane.b32.xlu0 %v2054, 64
          %v2327 = vpop.permute.xlu0 %2326
          %2328 = vrot.lane.b32.xlu0 %v1689, 32
          %v2329 = vpop.permute.xlu0 %2328
          %2330 = vrot.lane.b32.xlu0 %v1718, 32
          %v2331 = vpop.permute.xlu0 %2330
          %2332 = vrot.lane.b32.xlu0 %v1746, 32
          %v2333 = vpop.permute.xlu0 %2332
          %2334 = vrot.lane.b32.xlu0 %v1774, 32
          %v2335 = vpop.permute.xlu0 %2334
          %2336 = vrot.lane.b32.xlu0 %v1802, 32
          %v2337 = vpop.permute.xlu0 %2336
          %2338 = vrot.lane.b32.xlu0 %v1830, 32
          %v2339 = vpop.permute.xlu0 %2338
          %2340 = vrot.lane.b32.xlu0 %v1858, 32
          %v2341 = vpop.permute.xlu0 %2340
          %2342 = vrot.lane.b32.xlu0 %v1886, 32
          %v2343 = vpop.permute.xlu0 %2342
          %2344 = vrot.lane.b32.xlu0 %v1914, 32
          %v2345 = vpop.permute.xlu0 %2344
          %2346 = vrot.lane.b32.xlu0 %v1942, 32
          %v2347 = vpop.permute.xlu0 %2346
          %2348 = vrot.lane.b32.xlu0 %v1970, 32
          %v2349 = vpop.permute.xlu0 %2348
          %2350 = vrot.lane.b32.xlu0 %v1998, 32
          %v2351 = vpop.permute.xlu0 %2350
          %2352 = vrot.lane.b32.xlu0 %v2026, 32
          %v2353 = vpop.permute.xlu0 %2352
          %2354 = vrot.lane.b32.xlu0 %v2054, 32
          %v2355 = vpop.permute.xlu0 %2354
          %2370 = vrot.lane.b32.xlu0 %v1697, 96
          %v2371 = vpop.permute.xlu0 %2370
          %2372 = vrot.lane.b32.xlu0 %v1725, 96
          %v2373 = vpop.permute.xlu0 %2372
          %2374 = vrot.lane.b32.xlu0 %v1753, 96
          %v2375 = vpop.permute.xlu0 %2374
          %2376 = vrot.lane.b32.xlu0 %v1781, 96
          %v2377 = vpop.permute.xlu0 %2376
          %2378 = vrot.lane.b32.xlu0 %v1809, 96
          %v2379 = vpop.permute.xlu0 %2378
          %2380 = vrot.lane.b32.xlu0 %v1837, 96
          %v2381 = vpop.permute.xlu0 %2380
          %2382 = vrot.lane.b32.xlu0 %v1865, 96
          %v2383 = vpop.permute.xlu0 %2382
          %2384 = vrot.lane.b32.xlu0 %v1893, 96
          %v2385 = vpop.permute.xlu0 %2384
          %2386 = vrot.lane.b32.xlu0 %v1921, 96
          %v2387 = vpop.permute.xlu0 %2386
          %2388 = vrot.lane.b32.xlu0 %v1949, 96
          %v2389 = vpop.permute.xlu0 %2388
          %2390 = vrot.lane.b32.xlu0 %v1977, 96
          %v2391 = vpop.permute.xlu0 %2390
          %2392 = vrot.lane.b32.xlu0 %v2005, 96
          %v2393 = vpop.permute.xlu0 %2392
          %2394 = vrot.lane.b32.xlu0 %v2033, 96
          %v2395 = vpop.permute.xlu0 %2394
          %2396 = vrot.lane.b32.xlu0 %v2061, 96
          %v2397 = vpop.permute.xlu0 %2396
          %v2398 = vrot.slane %v1704, 7
          %vm2399 = vcmask 1041409
          %v2400 = vsel %vm2399, %v2398, %v1675
          %v2401 = vrot.slane %v1732, 6
          %vm2402 = vcmask 1042434
          %v2403 = vsel %vm2402, %v2401, %v2400
          %v2404 = vrot.slane %v1760, 5
          %vm2405 = vcmask 1043459
          %v2406 = vsel %vm2405, %v2404, %v2403
          %v2407 = vrot.slane %v1788, 4
          %vm2408 = vcmask 1044484
          %v2409 = vsel %vm2408, %v2407, %v2406
          %v2410 = vrot.slane %v1816, 3
          %vm2411 = vcmask 1045509
          %v2412 = vsel %vm2411, %v2410, %v2409
          %v2413 = vrot.slane %v1844, 2
          %vm2414 = vcmask 1046534
          %v2415 = vsel %vm2414, %v2413, %v2412
          %v2416 = vrot.slane %v1872, 1
          %vm2417 = vcmask 1047559
          %v2418 = vsel %vm2417, %v2416, %v2415
          %v2419 = vrot.slane %v1928, 7
          %v2420 = vsel %vm2399, %v2419, %v1900
          %v2421 = vrot.slane %v1956, 6
          %v2422 = vsel %vm2402, %v2421, %v2420
          %v2423 = vrot.slane %v1984, 5
          %v2424 = vsel %vm2405, %v2423, %v2422
          %v2425 = vrot.slane %v2012, 4
          %v2426 = vsel %vm2408, %v2425, %v2424
          %v2427 = vrot.slane %v2040, 3
          %v2428 = vsel %vm2411, %v2427, %v2426
          %v2429 = vrot.slane %v2079, 7
          %v2430 = vsel %vm2399, %v2429, %v2077
          %v2431 = vrot.slane %v2081, 6
          %v2432 = vsel %vm2402, %v2431, %v2430
          %v2433 = vrot.slane %v2083, 5
          %v2434 = vsel %vm2405, %v2433, %v2432
          %v2435 = vrot.slane %v2085, 4
          %v2436 = vsel %vm2408, %v2435, %v2434
          %v2437 = vrot.slane %v2087, 3
          %v2438 = vsel %vm2411, %v2437, %v2436
          %v2439 = vrot.slane %v2089, 2
          %v2440 = vsel %vm2414, %v2439, %v2438
          %v2441 = vrot.slane %v2091, 1
          %v2442 = vsel %vm2417, %v2441, %v2440
          %v2443 = vrot.slane %v2095, 7
          %v2444 = vsel %vm2399, %v2443, %v2093
          %v2445 = vrot.slane %v2097, 6
          %v2446 = vsel %vm2402, %v2445, %v2444
          %v2447 = vrot.slane %v2099, 5
          %v2448 = vsel %vm2405, %v2447, %v2446
          %v2449 = vrot.slane %v2101, 4
          %v2450 = vsel %vm2408, %v2449, %v2448
          %v2451 = vrot.slane %v2103, 3
          %v2452 = vsel %vm2411, %v2451, %v2450
          %v2453 = vrot.slane %v2107, 7
          %v2454 = vsel %vm2399, %v2453, %v2105
          %v2455 = vrot.slane %v2109, 6
          %v2456 = vsel %vm2402, %v2455, %v2454
          %v2457 = vrot.slane %v2111, 5
          %v2458 = vsel %vm2405, %v2457, %v2456
          %v2459 = vrot.slane %v2113, 4
          %v2460 = vsel %vm2408, %v2459, %v2458
          %v2461 = vrot.slane %v2115, 3
          %v2462 = vsel %vm2411, %v2461, %v2460
          %v2463 = vrot.slane %v2117, 2
          %v2464 = vsel %vm2414, %v2463, %v2462
          %v2465 = vrot.slane %v2119, 1
          %v2466 = vsel %vm2417, %v2465, %v2464
          %v2467 = vrot.slane %v2123, 7
          %v2468 = vsel %vm2399, %v2467, %v2121
          %v2469 = vrot.slane %v2125, 6
          %v2470 = vsel %vm2402, %v2469, %v2468
          %v2471 = vrot.slane %v2127, 5
          %v2472 = vsel %vm2405, %v2471, %v2470
          %v2473 = vrot.slane %v2129, 4
          %v2474 = vsel %vm2408, %v2473, %v2472
          %v2475 = vrot.slane %v2131, 3
          %v2476 = vsel %vm2411, %v2475, %v2474
          %v2477 = vrot.slane %v2135, 7
          %v2478 = vsel %vm2399, %v2477, %v2133
          %v2479 = vrot.slane %v2137, 6
          %v2480 = vsel %vm2402, %v2479, %v2478
          %v2481 = vrot.slane %v2139, 5
          %v2482 = vsel %vm2405, %v2481, %v2480
          %v2483 = vrot.slane %v2141, 4
          %v2484 = vsel %vm2408, %v2483, %v2482
          %v2485 = vrot.slane %v2143, 3
          %v2486 = vsel %vm2411, %v2485, %v2484
          %v2487 = vrot.slane %v2145, 2
          %v2488 = vsel %vm2414, %v2487, %v2486
          %v2489 = vrot.slane %v2147, 1
          %v2490 = vsel %vm2417, %v2489, %v2488
          %v2491 = vrot.slane %v2151, 7
          %v2492 = vsel %vm2399, %v2491, %v2149
          %v2493 = vrot.slane %v2153, 6
          %v2494 = vsel %vm2402, %v2493, %v2492
          %v2495 = vrot.slane %v2155, 5
          %v2496 = vsel %vm2405, %v2495, %v2494
          %v2497 = vrot.slane %v2157, 4
          %v2498 = vsel %vm2408, %v2497, %v2496
          %v2499 = vrot.slane %v2159, 3
          %v2500 = vsel %vm2411, %v2499, %v2498
          %v2501 = vrot.slane %v1711, 7
          %v2502 = vsel %vm2399, %v2501, %v1682
          %v2503 = vrot.slane %v1739, 6
          %v2504 = vsel %vm2402, %v2503, %v2502
          %v2505 = vrot.slane %v1767, 5
          %v2506 = vsel %vm2405, %v2505, %v2504
          %v2507 = vrot.slane %v1795, 4
          %v2508 = vsel %vm2408, %v2507, %v2506
          %v2509 = vrot.slane %v1823, 3
          %v2510 = vsel %vm2411, %v2509, %v2508
          %v2511 = vrot.slane %v1851, 2
          %v2512 = vsel %vm2414, %v2511, %v2510
          %v2513 = vrot.slane %v1879, 1
          %v2514 = vsel %vm2417, %v2513, %v2512
          %v2515 = vrot.slane %v1935, 7
          %v2516 = vsel %vm2399, %v2515, %v1907
          %v2517 = vrot.slane %v1963, 6
          %v2518 = vsel %vm2402, %v2517, %v2516
          %v2519 = vrot.slane %v1991, 5
          %v2520 = vsel %vm2405, %v2519, %v2518
          %v2521 = vrot.slane %v2019, 4
          %v2522 = vsel %vm2408, %v2521, %v2520
          %v2523 = vrot.slane %v2047, 3
          %v2524 = vsel %vm2411, %v2523, %v2522
          %v2525 = vrot.slane %v2177, 7
          %v2526 = vsel %vm2399, %v2525, %v2175
          %v2527 = vrot.slane %v2179, 6
          %v2528 = vsel %vm2402, %v2527, %v2526
          %v2529 = vrot.slane %v2181, 5
          %v2530 = vsel %vm2405, %v2529, %v2528
          %v2531 = vrot.slane %v2183, 4
          %v2532 = vsel %vm2408, %v2531, %v2530
          %v2533 = vrot.slane %v2185, 3
          %v2534 = vsel %vm2411, %v2533, %v2532
          %v2535 = vrot.slane %v2187, 2
          %v2536 = vsel %vm2414, %v2535, %v2534
          %v2537 = vrot.slane %v2189, 1
          %v2538 = vsel %vm2417, %v2537, %v2536
          %v2539 = vrot.slane %v2193, 7
          %v2540 = vsel %vm2399, %v2539, %v2191
          %v2541 = vrot.slane %v2195, 6
          %v2542 = vsel %vm2402, %v2541, %v2540
          %v2543 = vrot.slane %v2197, 5
          %v2544 = vsel %vm2405, %v2543, %v2542
          %v2545 = vrot.slane %v2199, 4
          %v2546 = vsel %vm2408, %v2545, %v2544
          %v2547 = vrot.slane %v2201, 3
          %v2548 = vsel %vm2411, %v2547, %v2546
          %v2549 = vrot.slane %v2205, 7
          %v2550 = vsel %vm2399, %v2549, %v2203
          %v2551 = vrot.slane %v2207, 6
          %v2552 = vsel %vm2402, %v2551, %v2550
          %v2553 = vrot.slane %v2209, 5
          %v2554 = vsel %vm2405, %v2553, %v2552
          %v2555 = vrot.slane %v2211, 4
          %v2556 = vsel %vm2408, %v2555, %v2554
          %v2557 = vrot.slane %v2213, 3
          %v2558 = vsel %vm2411, %v2557, %v2556
          %v2559 = vrot.slane %v2215, 2
          %v2560 = vsel %vm2414, %v2559, %v2558
          %v2561 = vrot.slane %v2217, 1
          %v2562 = vsel %vm2417, %v2561, %v2560
          %v2563 = vrot.slane %v2221, 7
          %v2564 = vsel %vm2399, %v2563, %v2219
          %v2565 = vrot.slane %v2223, 6
          %v2566 = vsel %vm2402, %v2565, %v2564
          %v2567 = vrot.slane %v2225, 5
          %v2568 = vsel %vm2405, %v2567, %v2566
          %v2569 = vrot.slane %v2227, 4
          %v2570 = vsel %vm2408, %v2569, %v2568
          %v2571 = vrot.slane %v2229, 3
          %v2572 = vsel %vm2411, %v2571, %v2570
          %v2573 = vrot.slane %v2233, 7
          %v2574 = vsel %vm2399, %v2573, %v2231
          %v2575 = vrot.slane %v2235, 6
          %v2576 = vsel %vm2402, %v2575, %v2574
          %v2577 = vrot.slane %v2237, 5
          %v2578 = vsel %vm2405, %v2577, %v2576
          %v2579 = vrot.slane %v2239, 4
          %v2580 = vsel %vm2408, %v2579, %v2578
          %v2581 = vrot.slane %v2241, 3
          %v2582 = vsel %vm2411, %v2581, %v2580
          %v2583 = vrot.slane %v2243, 2
          %v2584 = vsel %vm2414, %v2583, %v2582
          %v2585 = vrot.slane %v2245, 1
          %v2586 = vsel %vm2417, %v2585, %v2584
          %v2587 = vrot.slane %v2249, 7
          %v2588 = vsel %vm2399, %v2587, %v2247
          %v2589 = vrot.slane %v2251, 6
          %v2590 = vsel %vm2402, %v2589, %v2588
          %v2591 = vrot.slane %v2253, 5
          %v2592 = vsel %vm2405, %v2591, %v2590
          %v2593 = vrot.slane %v2255, 4
          %v2594 = vsel %vm2408, %v2593, %v2592
          %v2595 = vrot.slane %v2257, 3
          %v2596 = vsel %vm2411, %v2595, %v2594
          %v2597 = vrot.slane %v1718, 7
          %v2598 = vsel %vm2399, %v2597, %v1689
          %v2599 = vrot.slane %v1746, 6
          %v2600 = vsel %vm2402, %v2599, %v2598
          %v2601 = vrot.slane %v1774, 5
          %v2602 = vsel %vm2405, %v2601, %v2600
          %v2603 = vrot.slane %v1802, 4
          %v2604 = vsel %vm2408, %v2603, %v2602
          %v2605 = vrot.slane %v1830, 3
          %v2606 = vsel %vm2411, %v2605, %v2604
          %v2607 = vrot.slane %v1858, 2
          %v2608 = vsel %vm2414, %v2607, %v2606
          %v2609 = vrot.slane %v1886, 1
          %v2610 = vsel %vm2417, %v2609, %v2608
          %v2611 = vrot.slane %v1942, 7
          %v2612 = vsel %vm2399, %v2611, %v1914
          %v2613 = vrot.slane %v1970, 6
          %v2614 = vsel %vm2402, %v2613, %v2612
          %v2615 = vrot.slane %v1998, 5
          %v2616 = vsel %vm2405, %v2615, %v2614
          %v2617 = vrot.slane %v2026, 4
          %v2618 = vsel %vm2408, %v2617, %v2616
          %v2619 = vrot.slane %v2054, 3
          %v2620 = vsel %vm2411, %v2619, %v2618
          %v2621 = vrot.slane %v2275, 7
          %v2622 = vsel %vm2399, %v2621, %v2273
          %v2623 = vrot.slane %v2277, 6
          %v2624 = vsel %vm2402, %v2623, %v2622
          %v2625 = vrot.slane %v2279, 5
          %v2626 = vsel %vm2405, %v2625, %v2624
          %v2627 = vrot.slane %v2281, 4
          %v2628 = vsel %vm2408, %v2627, %v2626
          %v2629 = vrot.slane %v2283, 3
          %v2630 = vsel %vm2411, %v2629, %v2628
          %v2631 = vrot.slane %v2285, 2
          %v2632 = vsel %vm2414, %v2631, %v2630
          %v2633 = vrot.slane %v2287, 1
          %v2634 = vsel %vm2417, %v2633, %v2632
          %v2635 = vrot.slane %v2291, 7
          %v2636 = vsel %vm2399, %v2635, %v2289
          %v2637 = vrot.slane %v2293, 6
          %v2638 = vsel %vm2402, %v2637, %v2636
          %v2639 = vrot.slane %v2295, 5
          %v2640 = vsel %vm2405, %v2639, %v2638
          %v2641 = vrot.slane %v2297, 4
          %v2642 = vsel %vm2408, %v2641, %v2640
          %v2643 = vrot.slane %v2299, 3
          %v2644 = vsel %vm2411, %v2643, %v2642
          %v2645 = vrot.slane %v2303, 7
          %v2646 = vsel %vm2399, %v2645, %v2301
          %v2647 = vrot.slane %v2305, 6
          %v2648 = vsel %vm2402, %v2647, %v2646
          %v2649 = vrot.slane %v2307, 5
          %v2650 = vsel %vm2405, %v2649, %v2648
          %v2651 = vrot.slane %v2309, 4
          %v2652 = vsel %vm2408, %v2651, %v2650
          %v2653 = vrot.slane %v2311, 3
          %v2654 = vsel %vm2411, %v2653, %v2652
          %v2655 = vrot.slane %v2313, 2
          %v2656 = vsel %vm2414, %v2655, %v2654
          %v2657 = vrot.slane %v2315, 1
          %v2658 = vsel %vm2417, %v2657, %v2656
          %v2659 = vrot.slane %v2319, 7
          %v2660 = vsel %vm2399, %v2659, %v2317
          %v2661 = vrot.slane %v2321, 6
          %v2662 = vsel %vm2402, %v2661, %v2660
          %v2663 = vrot.slane %v2323, 5
          %v2664 = vsel %vm2405, %v2663, %v2662
          %v2665 = vrot.slane %v2325, 4
          %v2666 = vsel %vm2408, %v2665, %v2664
          %v2667 = vrot.slane %v2327, 3
          %v2668 = vsel %vm2411, %v2667, %v2666
          %v2669 = vrot.slane %v2331, 7
          %v2670 = vsel %vm2399, %v2669, %v2329
          %v2671 = vrot.slane %v2333, 6
          %v2672 = vsel %vm2402, %v2671, %v2670
          %v2673 = vrot.slane %v2335, 5
          %v2674 = vsel %vm2405, %v2673, %v2672
          %v2675 = vrot.slane %v2337, 4
          %v2676 = vsel %vm2408, %v2675, %v2674
          %v2677 = vrot.slane %v2339, 3
          %v2678 = vsel %vm2411, %v2677, %v2676
          %v2679 = vrot.slane %v2341, 2
          %v2680 = vsel %vm2414, %v2679, %v2678
          %v2681 = vrot.slane %v2343, 1
          %v2682 = vsel %vm2417, %v2681, %v2680
          %v2683 = vrot.slane %v2347, 7
          %v2684 = vsel %vm2399, %v2683, %v2345
          %v2685 = vrot.slane %v2349, 6
          %v2686 = vsel %vm2402, %v2685, %v2684
          %v2687 = vrot.slane %v2351, 5
          %v2688 = vsel %vm2405, %v2687, %v2686
          %v2689 = vrot.slane %v2353, 4
          %v2690 = vsel %vm2408, %v2689, %v2688
          %v2691 = vrot.slane %v2355, 3
          %v2692 = vsel %vm2411, %v2691, %v2690
          %v2693 = vrot.slane %v1725, 7
          %v2694 = vsel %vm2399, %v2693, %v1697
          %v2695 = vrot.slane %v1753, 6
          %v2696 = vsel %vm2402, %v2695, %v2694
          %v2697 = vrot.slane %v1781, 5
          %v2698 = vsel %vm2405, %v2697, %v2696
          %v2699 = vrot.slane %v1809, 4
          %v2700 = vsel %vm2408, %v2699, %v2698
          %v2701 = vrot.slane %v1837, 3
          %v2702 = vsel %vm2411, %v2701, %v2700
          %v2703 = vrot.slane %v1865, 2
          %v2704 = vsel %vm2414, %v2703, %v2702
          %v2705 = vrot.slane %v1893, 1
          %v2706 = vsel %vm2417, %v2705, %v2704
          %v2707 = vrot.slane %v1949, 7
          %v2708 = vsel %vm2399, %v2707, %v1921
          %v2709 = vrot.slane %v1977, 6
          %v2710 = vsel %vm2402, %v2709, %v2708
          %v2711 = vrot.slane %v2005, 5
          %v2712 = vsel %vm2405, %v2711, %v2710
          %v2713 = vrot.slane %v2033, 4
          %v2714 = vsel %vm2408, %v2713, %v2712
          %v2715 = vrot.slane %v2061, 3
          %v2716 = vsel %vm2411, %v2715, %v2714
          %v2717 = vrot.slane %v2373, 7
          %v2718 = vsel %vm2399, %v2717, %v2371
          %v2719 = vrot.slane %v2375, 6
          %v2720 = vsel %vm2402, %v2719, %v2718
          %v2721 = vrot.slane %v2377, 5
          %v2722 = vsel %vm2405, %v2721, %v2720
          %v2723 = vrot.slane %v2379, 4
          %v2724 = vsel %vm2408, %v2723, %v2722
          %v2725 = vrot.slane %v2381, 3
          %v2726 = vsel %vm2411, %v2725, %v2724
          %v2727 = vrot.slane %v2383, 2
          %v2728 = vsel %vm2414, %v2727, %v2726
          %v2729 = vrot.slane %v2385, 1
          %v2730 = vsel %vm2417, %v2729, %v2728
          %v2731 = vrot.slane %v2389, 7
          %v2732 = vsel %vm2399, %v2731, %v2387
          %v2733 = vrot.slane %v2391, 6
          %v2734 = vsel %vm2402, %v2733, %v2732
          %v2735 = vrot.slane %v2393, 5
          %v2736 = vsel %vm2405, %v2735, %v2734
          %v2737 = vrot.slane %v2395, 4
          %v2738 = vsel %vm2408, %v2737, %v2736
          %v2739 = vrot.slane %v2397, 3
          %v2740 = vsel %vm2411, %v2739, %v2738
          %v2769 = vrot.slane %v2466, 4
          %vm2770 = vcmask 1047556
          %v2771 = vsel %vm2770, %v2769, %v2418
          %v2772 = vrot.slane %v2418, 4
          %v2773 = vsel %vm2770, %v2466, %v2772
          %v2775 = vunpack.c.l.s4 1983009808
          %v2776 = vunpack.c.0.s8 %v2775
          %v2777 = vperm.slane %v2771, %v2776
          %v2779 = vunpack.c.l.s4 1983009808
          %v2780 = vunpack.c.0.s8 %v2779
          %v2781 = vperm.slane %v2773, %v2780
          %v2782 = vrot.slane %v2490, 4
          %v2783 = vsel %vm2770, %v2782, %v2442
          %v2784 = vrot.slane %v2442, 4
          %v2785 = vsel %vm2770, %v2490, %v2784
          %v2787 = vunpack.c.l.s4 1983009808
          %v2788 = vunpack.c.0.s8 %v2787
          %v2789 = vperm.slane %v2783, %v2788
          %v2791 = vunpack.c.l.s4 1983009808
          %v2792 = vunpack.c.0.s8 %v2791
          %v2793 = vperm.slane %v2785, %v2792
          %v2794 = vrot.slane %v2562, 4
          %v2795 = vsel %vm2770, %v2794, %v2514
          %v2796 = vrot.slane %v2514, 4
          %v2797 = vsel %vm2770, %v2562, %v2796
          %v2799 = vunpack.c.l.s4 1983009808
          %v2800 = vunpack.c.0.s8 %v2799
          %v2801 = vperm.slane %v2795, %v2800
          %v2803 = vunpack.c.l.s4 1983009808
          %v2804 = vunpack.c.0.s8 %v2803
          %v2805 = vperm.slane %v2797, %v2804
          %v2806 = vrot.slane %v2586, 4
          %v2807 = vsel %vm2770, %v2806, %v2538
          %v2808 = vrot.slane %v2538, 4
          %v2809 = vsel %vm2770, %v2586, %v2808
          %v2811 = vunpack.c.l.s4 1983009808
          %v2812 = vunpack.c.0.s8 %v2811
          %v2813 = vperm.slane %v2807, %v2812
          %v2815 = vunpack.c.l.s4 1983009808
          %v2816 = vunpack.c.0.s8 %v2815
          %v2817 = vperm.slane %v2809, %v2816
          %v2818 = vrot.slane %v2789, 4
          %v2819 = vsel %vm2770, %v2818, %v2777
          %v2820 = vrot.slane %v2777, 4
          %v2821 = vsel %vm2770, %v2789, %v2820
          %v2823 = vunpack.c.l.s4 1934713408
          %v2824 = vunpack.c.0.s8 %v2823
          %v2825 = vperm.slane %v2819, %v2824
          %v2827 = vunpack.c.l.s4 1934713408
          %v2828 = vunpack.c.0.s8 %v2827
          %v2829 = vperm.slane %v2821, %v2828
          %v2830 = vrot.slane %v2793, 4
          %v2831 = vsel %vm2770, %v2830, %v2781
          %v2832 = vrot.slane %v2781, 4
          %v2833 = vsel %vm2770, %v2793, %v2832
          %v2835 = vunpack.c.l.s4 1934713408
          %v2836 = vunpack.c.0.s8 %v2835
          %v2837 = vperm.slane %v2831, %v2836
          %v2839 = vunpack.c.l.s4 1934713408
          %v2840 = vunpack.c.0.s8 %v2839
          %v2841 = vperm.slane %v2833, %v2840
          %v2842 = vrot.slane %v2813, 4
          %v2843 = vsel %vm2770, %v2842, %v2801
          %v2844 = vrot.slane %v2801, 4
          %v2845 = vsel %vm2770, %v2813, %v2844
          %v2847 = vunpack.c.l.s4 1934713408
          %v2848 = vunpack.c.0.s8 %v2847
          %v2849 = vperm.slane %v2843, %v2848
          %v2851 = vunpack.c.l.s4 1934713408
          %v2852 = vunpack.c.0.s8 %v2851
          %v2853 = vperm.slane %v2845, %v2852
          %v2854 = vrot.slane %v2817, 4
          %v2855 = vsel %vm2770, %v2854, %v2805
          %v2856 = vrot.slane %v2805, 4
          %v2857 = vsel %vm2770, %v2817, %v2856
          %v2859 = vunpack.c.l.s4 1934713408
          %v2860 = vunpack.c.0.s8 %v2859
          %v2861 = vperm.slane %v2855, %v2860
          %v2863 = vunpack.c.l.s4 1934713408
          %v2864 = vunpack.c.0.s8 %v2863
          %v2865 = vperm.slane %v2857, %v2864
          %v2866 = vrot.slane %v2849, 4
          %v2867 = vsel %vm2770, %v2866, %v2825
          %v2868 = vrot.slane %v2825, 4
          %v2869 = vsel %vm2770, %v2849, %v2868
          %v2870 = vrot.slane %v2853, 4
          %v2871 = vsel %vm2770, %v2870, %v2829
          %v2872 = vrot.slane %v2829, 4
          %v2873 = vsel %vm2770, %v2853, %v2872
          %v2874 = vrot.slane %v2861, 4
          %v2875 = vsel %vm2770, %v2874, %v2837
          %v2876 = vrot.slane %v2837, 4
          %v2877 = vsel %vm2770, %v2861, %v2876
          %v2878 = vrot.slane %v2865, 4
          %v2879 = vsel %vm2770, %v2878, %v2841
          %v2880 = vrot.slane %v2841, 4
          %v2881 = vsel %vm2770, %v2865, %v2880
          %v2882 = vrot.slane %v2658, 4
          %v2883 = vsel %vm2770, %v2882, %v2610
          %v2884 = vrot.slane %v2610, 4
          %v2885 = vsel %vm2770, %v2658, %v2884
          %v2887 = vunpack.c.l.s4 1983009808
          %v2888 = vunpack.c.0.s8 %v2887
          %v2889 = vperm.slane %v2883, %v2888
          %v2891 = vunpack.c.l.s4 1983009808
          %v2892 = vunpack.c.0.s8 %v2891
          %v2893 = vperm.slane %v2885, %v2892
          %v2894 = vrot.slane %v2682, 4
          %v2895 = vsel %vm2770, %v2894, %v2634
          %v2896 = vrot.slane %v2634, 4
          %v2897 = vsel %vm2770, %v2682, %v2896
          %v2899 = vunpack.c.l.s4 1983009808
          %v2900 = vunpack.c.0.s8 %v2899
          %v2901 = vperm.slane %v2895, %v2900
          %v2903 = vunpack.c.l.s4 1983009808
          %v2904 = vunpack.c.0.s8 %v2903
          %v2905 = vperm.slane %v2897, %v2904
          %v2906 = vrot.slane %v2706, 4
          %v2907 = vsel %vm2770, 0.0, %v2906
          %v2909 = vunpack.c.l.s4 1983009808
          %v2910 = vunpack.c.0.s8 %v2909
          %v2911 = vperm.slane %v2706, %v2910
          %v2913 = vunpack.c.l.s4 1983009808
          %v2914 = vunpack.c.0.s8 %v2913
          %v2915 = vperm.slane %v2907, %v2914
          %v2916 = vrot.slane %v2730, 4
          %v2917 = vsel %vm2770, 0.0, %v2916
          %v2919 = vunpack.c.l.s4 1983009808
          %v2920 = vunpack.c.0.s8 %v2919
          %v2921 = vperm.slane %v2730, %v2920
          %v2923 = vunpack.c.l.s4 1983009808
          %v2924 = vunpack.c.0.s8 %v2923
          %v2925 = vperm.slane %v2917, %v2924
          %v2926 = vrot.slane %v2901, 4
          %v2927 = vsel %vm2770, %v2926, %v2889
          %v2928 = vrot.slane %v2889, 4
          %v2929 = vsel %vm2770, %v2901, %v2928
          %v2931 = vunpack.c.l.s4 1934713408
          %v2932 = vunpack.c.0.s8 %v2931
          %v2933 = vperm.slane %v2927, %v2932
          %v2935 = vunpack.c.l.s4 1934713408
          %v2936 = vunpack.c.0.s8 %v2935
          %v2937 = vperm.slane %v2929, %v2936
          %v2938 = vrot.slane %v2905, 4
          %v2939 = vsel %vm2770, %v2938, %v2893
          %v2940 = vrot.slane %v2893, 4
          %v2941 = vsel %vm2770, %v2905, %v2940
          %v2943 = vunpack.c.l.s4 1934713408
          %v2944 = vunpack.c.0.s8 %v2943
          %v2945 = vperm.slane %v2939, %v2944
          %v2947 = vunpack.c.l.s4 1934713408
          %v2948 = vunpack.c.0.s8 %v2947
          %v2949 = vperm.slane %v2941, %v2948
          %v2950 = vrot.slane %v2921, 4
          %v2951 = vsel %vm2770, %v2950, %v2911
          %v2952 = vrot.slane %v2911, 4
          %v2953 = vsel %vm2770, %v2921, %v2952
          %v2955 = vunpack.c.l.s4 1934713408
          %v2956 = vunpack.c.0.s8 %v2955
          %v2957 = vperm.slane %v2951, %v2956
          %v2959 = vunpack.c.l.s4 1934713408
          %v2960 = vunpack.c.0.s8 %v2959
          %v2961 = vperm.slane %v2953, %v2960
          %v2962 = vrot.slane %v2925, 4
          %v2963 = vsel %vm2770, %v2962, %v2915
          %v2964 = vrot.slane %v2915, 4
          %v2965 = vsel %vm2770, %v2925, %v2964
          %v2967 = vunpack.c.l.s4 1934713408
          %v2968 = vunpack.c.0.s8 %v2967
          %v2969 = vperm.slane %v2963, %v2968
          %v2971 = vunpack.c.l.s4 1934713408
          %v2972 = vunpack.c.0.s8 %v2971
          %v2973 = vperm.slane %v2965, %v2972
          %v2974 = vrot.slane %v2957, 4
          %v2975 = vsel %vm2770, %v2974, %v2933
          %v2976 = vrot.slane %v2933, 4
          %v2977 = vsel %vm2770, %v2957, %v2976
          %v2978 = vrot.slane %v2961, 4
          %v2979 = vsel %vm2770, %v2978, %v2937
          %v2980 = vrot.slane %v2937, 4
          %v2981 = vsel %vm2770, %v2961, %v2980
          %v2982 = vrot.slane %v2969, 4
          %v2983 = vsel %vm2770, %v2982, %v2945
          %v2984 = vrot.slane %v2945, 4
          %v2985 = vsel %vm2770, %v2969, %v2984
          %v2986 = vrot.slane %v2973, 4
          %v2987 = vsel %vm2770, %v2986, %v2949
          %v2988 = vrot.slane %v2949, 4
          %v2989 = vsel %vm2770, %v2973, %v2988
          %v2990 = vrot.slane %v2476, 4
          %v2991 = vsel %vm2770, %v2990, %v2428
          %v2992 = vrot.slane %v2428, 4
          %v2993 = vsel %vm2770, %v2476, %v2992
          %v2995 = vunpack.c.l.s4 1983009808
          %v2996 = vunpack.c.0.s8 %v2995
          %v2997 = vperm.slane %v2991, %v2996
          %v2999 = vunpack.c.l.s4 1983009808
          %v3000 = vunpack.c.0.s8 %v2999
          %v3001 = vperm.slane %v2993, %v3000
          %v3002 = vrot.slane %v2500, 4
          %v3003 = vsel %vm2770, %v3002, %v2452
          %v3004 = vrot.slane %v2452, 4
          %v3005 = vsel %vm2770, %v2500, %v3004
          %v3007 = vunpack.c.l.s4 1983009808
          %v3008 = vunpack.c.0.s8 %v3007
          %v3009 = vperm.slane %v3003, %v3008
          %v3011 = vunpack.c.l.s4 1983009808
          %v3012 = vunpack.c.0.s8 %v3011
          %v3013 = vperm.slane %v3005, %v3012
          %v3014 = vrot.slane %v2572, 4
          %v3015 = vsel %vm2770, %v3014, %v2524
          %v3016 = vrot.slane %v2524, 4
          %v3017 = vsel %vm2770, %v2572, %v3016
          %v3019 = vunpack.c.l.s4 1983009808
          %v3020 = vunpack.c.0.s8 %v3019
          %v3021 = vperm.slane %v3015, %v3020
          %v3023 = vunpack.c.l.s4 1983009808
          %v3024 = vunpack.c.0.s8 %v3023
          %v3025 = vperm.slane %v3017, %v3024
          %v3026 = vrot.slane %v2596, 4
          %v3027 = vsel %vm2770, %v3026, %v2548
          %v3028 = vrot.slane %v2548, 4
          %v3029 = vsel %vm2770, %v2596, %v3028
          %v3031 = vunpack.c.l.s4 1983009808
          %v3032 = vunpack.c.0.s8 %v3031
          %v3033 = vperm.slane %v3027, %v3032
          %v3035 = vunpack.c.l.s4 1983009808
          %v3036 = vunpack.c.0.s8 %v3035
          %v3037 = vperm.slane %v3029, %v3036
          %v3038 = vrot.slane %v3009, 4
          %v3039 = vsel %vm2770, %v3038, %v2997
          %v3040 = vrot.slane %v2997, 4
          %v3041 = vsel %vm2770, %v3009, %v3040
          %v3043 = vunpack.c.l.s4 1934713408
          %v3044 = vunpack.c.0.s8 %v3043
          %v3045 = vperm.slane %v3039, %v3044
          %v3047 = vunpack.c.l.s4 1934713408
          %v3048 = vunpack.c.0.s8 %v3047
          %v3049 = vperm.slane %v3041, %v3048
          %v3050 = vrot.slane %v3013, 4
          %v3051 = vsel %vm2770, %v3050, %v3001
          %v3053 = vunpack.c.l.s4 1934713408
          %v3054 = vunpack.c.0.s8 %v3053
          %v3055 = vperm.slane %v3051, %v3054
          %v3056 = vrot.slane %v3033, 4
          %v3057 = vsel %vm2770, %v3056, %v3021
          %v3058 = vrot.slane %v3021, 4
          %v3059 = vsel %vm2770, %v3033, %v3058
          %v3061 = vunpack.c.l.s4 1934713408
          %v3062 = vunpack.c.0.s8 %v3061
          %v3063 = vperm.slane %v3057, %v3062
          %v3065 = vunpack.c.l.s4 1934713408
          %v3066 = vunpack.c.0.s8 %v3065
          %v3067 = vperm.slane %v3059, %v3066
          %v3068 = vrot.slane %v3037, 4
          %v3069 = vsel %vm2770, %v3068, %v3025
          %v3071 = vunpack.c.l.s4 1934713408
          %v3072 = vunpack.c.0.s8 %v3071
          %v3073 = vperm.slane %v3069, %v3072
          %v3074 = vrot.slane %v3063, 4
          %v3075 = vsel %vm2770, %v3074, %v3045
          %v3076 = vrot.slane %v3045, 4
          %v3077 = vsel %vm2770, %v3063, %v3076
          %v3078 = vrot.slane %v3067, 4
          %v3079 = vsel %vm2770, %v3078, %v3049
          %v3080 = vrot.slane %v3049, 4
          %v3081 = vsel %vm2770, %v3067, %v3080
          %v3082 = vrot.slane %v3073, 4
          %v3083 = vsel %vm2770, %v3082, %v3055
          %v3084 = vrot.slane %v3055, 4
          %v3085 = vsel %vm2770, %v3073, %v3084
          %v3086 = vrot.slane %v2668, 4
          %v3087 = vsel %vm2770, %v3086, %v2620
          %v3088 = vrot.slane %v2620, 4
          %v3089 = vsel %vm2770, %v2668, %v3088
          %v3091 = vunpack.c.l.s4 1983009808
          %v3092 = vunpack.c.0.s8 %v3091
          %v3093 = vperm.slane %v3087, %v3092
          %v3095 = vunpack.c.l.s4 1983009808
          %v3096 = vunpack.c.0.s8 %v3095
          %v3097 = vperm.slane %v3089, %v3096
          %v3098 = vrot.slane %v2692, 4
          %v3099 = vsel %vm2770, %v3098, %v2644
          %v3100 = vrot.slane %v2644, 4
          %v3101 = vsel %vm2770, %v2692, %v3100
          %v3103 = vunpack.c.l.s4 1983009808
          %v3104 = vunpack.c.0.s8 %v3103
          %v3105 = vperm.slane %v3099, %v3104
          %v3107 = vunpack.c.l.s4 1983009808
          %v3108 = vunpack.c.0.s8 %v3107
          %v3109 = vperm.slane %v3101, %v3108
          %v3111 = vunpack.c.l.s4 1983009808
          %v3112 = vunpack.c.0.s8 %v3111
          %v3113 = vperm.slane %v2716, %v3112
          %v3114 = vrot.slane %v2716, 4
          %v3115 = vsel %vm2770, 0.0, %v3114
          %v3117 = vunpack.c.l.s4 1983009808
          %v3118 = vunpack.c.0.s8 %v3117
          %v3119 = vperm.slane %v2740, %v3118
          %v3120 = vrot.slane %v2740, 4
          %v3121 = vsel %vm2770, 0.0, %v3120
          %v3122 = vrot.slane %v3105, 4
          %v3123 = vsel %vm2770, %v3122, %v3093
          %v3124 = vrot.slane %v3093, 4
          %v3125 = vsel %vm2770, %v3105, %v3124
          %v3127 = vunpack.c.l.s4 1934713408
          %v3128 = vunpack.c.0.s8 %v3127
          %v3129 = vperm.slane %v3123, %v3128
          %v3131 = vunpack.c.l.s4 1934713408
          %v3132 = vunpack.c.0.s8 %v3131
          %v3133 = vperm.slane %v3125, %v3132
          %v3134 = vrot.slane %v3109, 4
          %v3135 = vsel %vm2770, %v3134, %v3097
          %v3137 = vunpack.c.l.s4 1934713408
          %v3138 = vunpack.c.0.s8 %v3137
          %v3139 = vperm.slane %v3135, %v3138
          %v3140 = vrot.slane %v3119, 4
          %v3141 = vsel %vm2770, %v3140, %v3113
          %v3142 = vrot.slane %v3113, 4
          %v3143 = vsel %vm2770, %v3119, %v3142
          %v3145 = vunpack.c.l.s4 1934713408
          %v3146 = vunpack.c.0.s8 %v3145
          %v3147 = vperm.slane %v3141, %v3146
          %v3149 = vunpack.c.l.s4 1934713408
          %v3150 = vunpack.c.0.s8 %v3149
          %v3151 = vperm.slane %v3143, %v3150
          %v3152 = vrot.slane %v3121, 4
          %v3153 = vsel %vm2770, %v3152, %v3115
          %v3155 = vunpack.c.l.s4 1934713408
          %v3156 = vunpack.c.0.s8 %v3155
          %v3157 = vperm.slane %v3153, %v3156
          %v3158 = vrot.slane %v3147, 4
          %v3159 = vsel %vm2770, %v3158, %v3129
          %v3160 = vrot.slane %v3129, 4
          %v3161 = vsel %vm2770, %v3147, %v3160
          %v3162 = vrot.slane %v3151, 4
          %v3163 = vsel %vm2770, %v3162, %v3133
          %v3164 = vrot.slane %v3133, 4
          %v3165 = vsel %vm2770, %v3151, %v3164
          %v3166 = vrot.slane %v3157, 4
          %v3167 = vsel %vm2770, %v3166, %v3139
          %v3168 = vrot.slane %v3139, 4
          %v3169 = vsel %vm2770, %v3157, %v3168
          %v3170 = vpack.c.bf16 %v2867, %v2867
          %v3171 = vpack.c.bf16 %v2975, %v2975
          %v3172 = vpack.c.bf16 %v2869, %v2869
          %v3173 = vpack.c.bf16 %v2977, %v2977
          %v3174 = vpack.c.bf16 %v2871, %v2871
          %v3175 = vpack.c.bf16 %v2979, %v2979
          %v3176 = vpack.c.bf16 %v2873, %v2873
          %v3177 = vpack.c.bf16 %v2981, %v2981
          %v3178 = vpack.c.bf16 %v2875, %v2875
          %v3179 = vpack.c.bf16 %v2983, %v2983
          %v3180 = vpack.c.bf16 %v2877, %v2877
          %v3181 = vpack.c.bf16 %v2985, %v2985
          %v3182 = vpack.c.bf16 %v2879, %v2879
          %v3183 = vpack.c.bf16 %v2987, %v2987
          %v3184 = vpack.c.bf16 %v2881, %v2881
          %v3185 = vpack.c.bf16 %v2989, %v2989
          %v3186 = vpack.c.bf16 %v3075, %v3075
          %v3187 = vpack.c.bf16 %v3159, %v3159
          %v3188 = vpack.c.bf16 %v3077, %v3077
          %v3189 = vpack.c.bf16 %v3161, %v3161
          %v3190 = vpack.c.bf16 %v3079, %v3079
          %v3191 = vpack.c.bf16 %v3163, %v3163
          %v3192 = vpack.c.bf16 %v3081, %v3081
          %v3193 = vpack.c.bf16 %v3165, %v3165
          %v3194 = vpack.c.bf16 %v3083, %v3083
          %v3195 = vpack.c.bf16 %v3167, %v3167
          %v3196 = vpack.c.bf16 %v3085, %v3085
          %v3197 = vpack.c.bf16 %v3169, %v3169
          %vm3198 = vsmask.f32 256
          %vm3199 = vsmask.f32 4368
          %vm3200 = vmor %vm3198, %vm3199
          %v3202 = vshrl.u32 %v3170, 16
          %v3204 = vrot.slane %v3202, 7
          %v3205 = vshll.u32 %v3170, 16
          %v3207 = vor.u32 %v3204, %v3205
          %v3208 = vrot.slane %v3204, 4
          %v3210 = vshrl.u32 %v3171, 16
          %v3212 = vrot.slane %v3210, 7
          %v3213 = vshll.u32 %v3171, 16
          %v3215 = vor.u32 %v3212, %v3213
          %v3216 = vsel %vm3200, %v3208, %v3215
          %v3218 = vshrl.u32 %v3172, 16
          %v3220 = vrot.slane %v3218, 7
          %v3221 = vshll.u32 %v3172, 16
          %v3223 = vor.u32 %v3220, %v3221
          %v3224 = vrot.slane %v3220, 4
          %v3226 = vshrl.u32 %v3173, 16
          %v3228 = vrot.slane %v3226, 7
          %v3229 = vshll.u32 %v3173, 16
          %v3231 = vor.u32 %v3228, %v3229
          %v3232 = vsel %vm3200, %v3224, %v3231
          %v3234 = vshrl.u32 %v3174, 16
          %v3236 = vrot.slane %v3234, 7
          %v3237 = vshll.u32 %v3174, 16
          %v3239 = vor.u32 %v3236, %v3237
          %v3240 = vrot.slane %v3236, 4
          %v3242 = vshrl.u32 %v3175, 16
          %v3244 = vrot.slane %v3242, 7
          %v3245 = vshll.u32 %v3175, 16
          %v3247 = vor.u32 %v3244, %v3245
          %v3248 = vsel %vm3200, %v3240, %v3247
          %v3250 = vshrl.u32 %v3176, 16
          %v3252 = vrot.slane %v3250, 7
          %v3253 = vshll.u32 %v3176, 16
          %v3255 = vor.u32 %v3252, %v3253
          %v3256 = vrot.slane %v3252, 4
          %v3258 = vshrl.u32 %v3177, 16
          %v3260 = vrot.slane %v3258, 7
          %v3261 = vshll.u32 %v3177, 16
          %v3263 = vor.u32 %v3260, %v3261
          %v3264 = vsel %vm3200, %v3256, %v3263
          %v3266 = vshrl.u32 %v3178, 16
          %v3268 = vrot.slane %v3266, 7
          %v3269 = vshll.u32 %v3178, 16
          %v3271 = vor.u32 %v3268, %v3269
          %v3272 = vrot.slane %v3268, 4
          %v3274 = vshrl.u32 %v3179, 16
          %v3276 = vrot.slane %v3274, 7
          %v3277 = vshll.u32 %v3179, 16
          %v3279 = vor.u32 %v3276, %v3277
          %v3280 = vsel %vm3200, %v3272, %v3279
          %v3282 = vshrl.u32 %v3180, 16
          %v3284 = vrot.slane %v3282, 7
          %v3285 = vshll.u32 %v3180, 16
          %v3287 = vor.u32 %v3284, %v3285
          %v3288 = vrot.slane %v3284, 4
          %v3290 = vshrl.u32 %v3181, 16
          %v3292 = vrot.slane %v3290, 7
          %v3293 = vshll.u32 %v3181, 16
          %v3295 = vor.u32 %v3292, %v3293
          %v3296 = vsel %vm3200, %v3288, %v3295
          %v3298 = vshrl.u32 %v3182, 16
          %v3300 = vrot.slane %v3298, 7
          %v3301 = vshll.u32 %v3182, 16
          %v3303 = vor.u32 %v3300, %v3301
          %v3304 = vrot.slane %v3300, 4
          %v3306 = vshrl.u32 %v3183, 16
          %v3308 = vrot.slane %v3306, 7
          %v3309 = vshll.u32 %v3183, 16
          %v3311 = vor.u32 %v3308, %v3309
          %v3312 = vsel %vm3200, %v3304, %v3311
          %v3314 = vshrl.u32 %v3184, 16
          %v3316 = vrot.slane %v3314, 7
          %v3317 = vshll.u32 %v3184, 16
          %v3319 = vor.u32 %v3316, %v3317
          %v3320 = vrot.slane %v3316, 4
          %v3322 = vshrl.u32 %v3185, 16
          %v3324 = vrot.slane %v3322, 7
          %v3325 = vshll.u32 %v3185, 16
          %v3327 = vor.u32 %v3324, %v3325
          %v3328 = vsel %vm3200, %v3320, %v3327
          %v3330 = vshrl.u32 %v3186, 16
          %v3332 = vrot.slane %v3330, 7
          %v3333 = vshll.u32 %v3186, 16
          %v3335 = vor.u32 %v3332, %v3333
          %v3336 = vrot.slane %v3332, 4
          %v3338 = vshrl.u32 %v3187, 16
          %v3340 = vrot.slane %v3338, 7
          %v3341 = vshll.u32 %v3187, 16
          %v3343 = vor.u32 %v3340, %v3341
          %v3344 = vsel %vm3200, %v3336, %v3343
          %v3346 = vshrl.u32 %v3188, 16
          %v3348 = vrot.slane %v3346, 7
          %v3349 = vshll.u32 %v3188, 16
          %v3351 = vor.u32 %v3348, %v3349
          %v3352 = vrot.slane %v3348, 4
          %v3354 = vshrl.u32 %v3189, 16
          %v3356 = vrot.slane %v3354, 7
          %v3357 = vshll.u32 %v3189, 16
          %v3359 = vor.u32 %v3356, %v3357
          %v3360 = vsel %vm3200, %v3352, %v3359
          %v3362 = vshrl.u32 %v3190, 16
          %v3364 = vrot.slane %v3362, 7
          %v3365 = vshll.u32 %v3190, 16
          %v3367 = vor.u32 %v3364, %v3365
          %v3368 = vrot.slane %v3364, 4
          %v3370 = vshrl.u32 %v3191, 16
          %v3372 = vrot.slane %v3370, 7
          %v3373 = vshll.u32 %v3191, 16
          %v3375 = vor.u32 %v3372, %v3373
          %v3376 = vsel %vm3200, %v3368, %v3375
          %v3378 = vshrl.u32 %v3192, 16
          %v3380 = vrot.slane %v3378, 7
          %v3381 = vshll.u32 %v3192, 16
          %v3383 = vor.u32 %v3380, %v3381
          %v3384 = vrot.slane %v3380, 4
          %v3386 = vshrl.u32 %v3193, 16
          %v3388 = vrot.slane %v3386, 7
          %v3389 = vshll.u32 %v3193, 16
          %v3391 = vor.u32 %v3388, %v3389
          %v3392 = vsel %vm3200, %v3384, %v3391
          %v3394 = vshrl.u32 %v3194, 16
          %v3396 = vrot.slane %v3394, 7
          %v3397 = vshll.u32 %v3194, 16
          %v3399 = vor.u32 %v3396, %v3397
          %v3400 = vrot.slane %v3396, 4
          %v3402 = vshrl.u32 %v3195, 16
          %v3404 = vrot.slane %v3402, 7
          %v3405 = vshll.u32 %v3195, 16
          %v3407 = vor.u32 %v3404, %v3405
          %v3408 = vsel %vm3200, %v3400, %v3407
          %v3410 = vshrl.u32 %v3196, 16
          %v3412 = vrot.slane %v3410, 7
          %v3413 = vshll.u32 %v3196, 16
          %v3415 = vor.u32 %v3412, %v3413
          %v3416 = vrot.slane %v3412, 4
          %v3418 = vshrl.u32 %v3197, 16
          %v3420 = vrot.slane %v3418, 7
          %v3421 = vshll.u32 %v3197, 16
          %v3423 = vor.u32 %v3420, %v3421
          %v3424 = vsel %vm3200, %v3416, %v3423
          %s3453 = sadd.s32 2, %s390
          %s3454 = smul.addr %s3453, 4
          %s3455 = scalar_lea.vmem %s250, %s3454
          %vm3456 = vcmask 257024
          %vm3457 = vsmask.f32 7938
          %vm3458 = vmand %vm3456, %vm3457
          %v3459 = vld [vmem:[%s3455] sm:$0xf]
          %v3460 = vsel %vm3458, %v3207, %v3459
          %3461 = vst [vmem:[%s3455] sm:$0xf] %v3460
          %vm3462 = vsmask.f32 3328
          %vm3463 = vmand %vm3456, %vm3462
          %v3464 = vld [vmem:[%s3455 + $0x4] sm:$0xf]
          %v3465 = vsel %vm3463, %v3216, %v3464
          %3466 = vst [vmem:[%s3455 + $0x4] sm:$0xf] %v3465
          %v3467 = vld [vmem:[%s3455 + $0x8] sm:$0xf]
          %v3468 = vsel %vm3458, %v3223, %v3467
          %3469 = vst [vmem:[%s3455 + $0x8] sm:$0xf] %v3468
          %v3470 = vld [vmem:[%s3455 + $0xc] sm:$0xf]
          %v3471 = vsel %vm3463, %v3232, %v3470
          %3472 = vst [vmem:[%s3455 + $0xc] sm:$0xf] %v3471
          %v3473 = vld [vmem:[%s3455 + $0x10] sm:$0xf]
          %v3474 = vsel %vm3458, %v3239, %v3473
          %3475 = vst [vmem:[%s3455 + $0x10] sm:$0xf] %v3474
          %v3476 = vld [vmem:[%s3455 + $0x14] sm:$0xf]
          %v3477 = vsel %vm3463, %v3248, %v3476
          %3478 = vst [vmem:[%s3455 + $0x14] sm:$0xf] %v3477
          %v3479 = vld [vmem:[%s3455 + $0x18] sm:$0xf]
          %v3480 = vsel %vm3458, %v3255, %v3479
          %3481 = vst [vmem:[%s3455 + $0x18] sm:$0xf] %v3480
          %v3482 = vld [vmem:[%s3455 + $0x1c] sm:$0xf]
          %v3483 = vsel %vm3463, %v3264, %v3482
          %3484 = vst [vmem:[%s3455 + $0x1c] sm:$0xf] %v3483
          %v3485 = vld [vmem:[%s3455 + $0x20] sm:$0xf]
          %v3486 = vsel %vm3458, %v3271, %v3485
          %3487 = vst [vmem:[%s3455 + $0x20] sm:$0xf] %v3486
          %v3488 = vld [vmem:[%s3455 + $0x24] sm:$0xf]
          %v3489 = vsel %vm3463, %v3280, %v3488
          %3490 = vst [vmem:[%s3455 + $0x24] sm:$0xf] %v3489
          %v3491 = vld [vmem:[%s3455 + $0x28] sm:$0xf]
          %v3492 = vsel %vm3458, %v3287, %v3491
          %3493 = vst [vmem:[%s3455 + $0x28] sm:$0xf] %v3492
          %v3494 = vld [vmem:[%s3455 + $0x2c] sm:$0xf]
          %v3495 = vsel %vm3463, %v3296, %v3494
          %3496 = vst [vmem:[%s3455 + $0x2c] sm:$0xf] %v3495
          %v3497 = vld [vmem:[%s3455 + $0x30] sm:$0xf]
          %v3498 = vsel %vm3458, %v3303, %v3497
          %3499 = vst [vmem:[%s3455 + $0x30] sm:$0xf] %v3498
          %v3500 = vld [vmem:[%s3455 + $0x34] sm:$0xf]
          %v3501 = vsel %vm3463, %v3312, %v3500
          %3502 = vst [vmem:[%s3455 + $0x34] sm:$0xf] %v3501
          %v3503 = vld [vmem:[%s3455 + $0x38] sm:$0xf]
          %v3504 = vsel %vm3458, %v3319, %v3503
          %3505 = vst [vmem:[%s3455 + $0x38] sm:$0xf] %v3504
          %v3506 = vld [vmem:[%s3455 + $0x3c] sm:$0xf]
          %v3507 = vsel %vm3463, %v3328, %v3506
          %3508 = vst [vmem:[%s3455 + $0x3c] sm:$0xf] %v3507
          %v3509 = vld [vmem:[%s3455 + $0x40] sm:$0xf]
          %v3510 = vsel %vm3458, %v3335, %v3509
          %3511 = vst [vmem:[%s3455 + $0x40] sm:$0xf] %v3510
          %v3512 = vld [vmem:[%s3455 + $0x44] sm:$0xf]
          %v3513 = vsel %vm3463, %v3344, %v3512
          %3514 = vst [vmem:[%s3455 + $0x44] sm:$0xf] %v3513
          %v3515 = vld [vmem:[%s3455 + $0x48] sm:$0xf]
          %v3516 = vsel %vm3458, %v3351, %v3515
          %3517 = vst [vmem:[%s3455 + $0x48] sm:$0xf] %v3516
          %v3518 = vld [vmem:[%s3455 + $0x4c] sm:$0xf]
          %v3519 = vsel %vm3463, %v3360, %v3518
          %3520 = vst [vmem:[%s3455 + $0x4c] sm:$0xf] %v3519
          %v3521 = vld [vmem:[%s3455 + $0x50] sm:$0xf]
          %v3522 = vsel %vm3458, %v3367, %v3521
          %3523 = vst [vmem:[%s3455 + $0x50] sm:$0xf] %v3522
          %v3524 = vld [vmem:[%s3455 + $0x54] sm:$0xf]
          %v3525 = vsel %vm3463, %v3376, %v3524
          %3526 = vst [vmem:[%s3455 + $0x54] sm:$0xf] %v3525
          %v3527 = vld [vmem:[%s3455 + $0x58] sm:$0xf]
          %v3528 = vsel %vm3458, %v3383, %v3527
          %3529 = vst [vmem:[%s3455 + $0x58] sm:$0xf] %v3528
          %v3530 = vld [vmem:[%s3455 + $0x5c] sm:$0xf]
          %v3531 = vsel %vm3463, %v3392, %v3530
          %3532 = vst [vmem:[%s3455 + $0x5c] sm:$0xf] %v3531
          %v3533 = vld [vmem:[%s3455 + $0x60] sm:$0xf]
          %v3534 = vsel %vm3458, %v3399, %v3533
          %3535 = vst [vmem:[%s3455 + $0x60] sm:$0xf] %v3534
          %v3536 = vld [vmem:[%s3455 + $0x64] sm:$0xf]
          %v3537 = vsel %vm3463, %v3408, %v3536
          %3538 = vst [vmem:[%s3455 + $0x64] sm:$0xf] %v3537
          %v3539 = vld [vmem:[%s3455 + $0x68] sm:$0xf]
          %v3540 = vsel %vm3458, %v3415, %v3539
          %3541 = vst [vmem:[%s3455 + $0x68] sm:$0xf] %v3540
          %v3542 = vld [vmem:[%s3455 + $0x6c] sm:$0xf]
          %v3543 = vsel %vm3463, %v3424, %v3542
          %3544 = vst [vmem:[%s3455 + $0x6c] sm:$0xf] %v3543
        $region53: #{moindrot_cnn_forward.3} parent=35 // loop_footer
          %s389 = sadd.s32 1, %s385
        $region54: #{moindrot_cnn_forward.3} parent=35 // loop_footer_branch
          %384 = sbr.rel target = $region50
        $region55: #{moindrot_cnn_forward.3} parent=35 // loop_exit
          _
        %s3545 = smul.u32 4, %s17
        %p3546 = scmp.lt.s32.totalorder %s3545, 7
        %s3547 = scalar_select %p3546, %s3545, 7
        %s3548 = smul.addr %s3547, 32
        %s3549 = smul.addr %s3548, 4
        %s3550 = scalar_lea.vmem %s4, %s3549
        // Predicated region
        $region56: #{moindrot_cnn_forward.3} parent=35 // pred_check
          %p3551 = pneg %p124
        $region57: #{moindrot_cnn_forward.3} parent=35 // pred_check_branch
          %3553 = sbr.rel (%p3551) target = $region59
        $region58: #{moindrot_cnn_forward.3} parent=35 // pred_region
          %s3554 = smul.u32 4, %s17
        $region59: #{moindrot_cnn_forward.3} parent=35 // pred_fallthru
          _
      $region36: #{moindrot_cnn_forward.3} parent=5 // pred_fallthru
        _
      %p3555 = scmp.le.s32.totalorder 2, %s12
      // Predicated region
      $region60: #{moindrot_cnn_forward.3} parent=5 // pred_check
        %p3556 = pneg %p3555
      $region61: #{moindrot_cnn_forward.3} parent=5 // pred_check_branch
        %3558 = sbr.rel (%p3556) target = $region63
      $region62: #{moindrot_cnn_forward.3} parent=5 // pred_region
        %s3559 = ssub.s32 %s12, 2
        // Predicated region
        $region64: #{moindrot_cnn_forward.3} parent=62 // pred_check
          %p3560 = pneg %p130
        $region65: #{moindrot_cnn_forward.3} parent=62 // pred_check_branch
          %3562 = sbr.rel (%p3560) target = $region67
        $region66: #{moindrot_cnn_forward.3} parent=62 // pred_region
          %s3563 = smul.u32 4, %s18
          %p3564 = scmp.lt.s32.totalorder %s3563, 7
          %s3565 = scalar_select %p3564, %s3563, 7
          %s3566 = smul.addr %s3565, 32
          %s3567 = smul.addr %s3566, 4
          %s3568 = scalar_lea.vmem %s4, %s3567
        $region67: #{moindrot_cnn_forward.3} parent=62 // pred_fallthru
          _
      $region63: #{moindrot_cnn_forward.3} parent=5 // pred_fallthru
        _
    $region6: #{moindrot_cnn_forward.3} parent=1 // loop_footer
      %s16 = sadd.s32 1, %s12
    $region7: #{moindrot_cnn_forward.3} parent=1 // loop_footer_branch
      %11 = sbr.rel target = $region3
    $region8: #{moindrot_cnn_forward.3} parent=1 // loop_exit
      _
    %3569 = vsyncpa [#allocation3], 1
    %s3570 = scalar_lea.sflag [#allocation3], 1
    %3571 = vsyncpa %s3570, 1
    %3572 = vsyncpa [#allocation5], 1

// kernel: moindrot_cnn_forward.4
$region0: #{moindrot_cnn_forward.4}
  #allocation0 [shape = 'u32[]', space=smem, size = 0x4, offset = 0x4, fixed_abs, tag = 'smem constant byte address 0x4 - core index']
  #allocation1 [shape = 'u32[72,128]{1,0:T(1,128)}', space=vmem, size = 0x9000, scoped, tag = 'internal scratch']
  %s0 = inlined_call_operand.vmem [shape: bf16[8,16,16,32], index: 0, kind: input, shape index: {}]
  %s1 = inlined_call_operand.vmem [shape: bf16[288,64], index: 1, kind: input, shape index: {}]
  %s2 = inlined_call_operand.hbm [shape: f32[1,64], index: 2, kind: input, shape index: {}]
  %s3 = inlined_call_operand.vmem [shape: f32[1,64], index: 3, kind: input, shape index: {}]
  %s4 = inlined_call_operand.vmem [shape: bf16[8,7,7,64], index: 4, kind: output, shape index: {}]
  %s5 = sld [smem:[#allocation0]]
  $region60: #{moindrot_cnn_forward.4} parent=0
    _
  %s7 = ssub.s32 1, %s5
  %s8 = scalar_select 0, %s7, %s5
  $region1: #{moindrot_cnn_forward.4} parent=0
    #allocation2 [shape = 'u8[512]{0}', space=vmem, size = 0x400, scoped, tag = 'input window, operand 2, single buffered']
    #allocation3 [shape = 's32[2]{0}', space=sflag, size = 0x8, scoped, tag = 'scoped memory for moindrot_cnn_forward.4']
    %9 = vsyncpa [#allocation3], 0
    loop: start=0, step=1, limit=4
    $region2: #{moindrot_cnn_forward.4} parent=1 // loop_pre_header
      _
    $region3: #{moindrot_cnn_forward.4} parent=1 // loop_header
      %s11 = sphi 0, %s15
      %p12 = scmp.ge.s32.totalorder %s11, 4
      %s21 = sphi 0, %s23
      %s24 = sphi 0, %s21
      %s25 = sphi 0, %s24
      %s41 = sphi 0, %s25
      %s45 = sphi 0, %s45
      %s47 = sphi 0, %s45
      %s48 = sphi 0, %s47
      %s62 = sphi 0, %s48
      %s66 = sphi 0, %s66
      %s68 = sphi 0, %s66
      %s69 = sphi 0, %s68
      %s83 = sphi 0, %s69
      %s87 = sphi 0, %s87
      %s89 = sphi 0, %s87
      %s90 = sphi 0, %s89
      %s104 = sphi 0, %s90
      %s110 = sphi 0, %s112
      %s113 = sphi 0, %s110
      %s114 = sphi 0, %s113
      %s130 = sphi 0, %s114
    $region4: #{moindrot_cnn_forward.4} parent=1 // loop_header_branch
      %14 = sbr.rel (%p12) target = $region8
    $region5: #{moindrot_cnn_forward.4} parent=1 // loop_body
      %s16 = ssub.s32 %s11, 1
      %s17 = ssub.s32 %s11, 2
      %s18 = sadd.s32 %s11, 1
      %s19 = ssub.s32 %s11, %s18
      %p20 = scmp.eq.s32.totalorder %s19, 0
      %s22 = sadd.s32 %s21, 1
      %s23 = scalar_select %p20, %s21, %s22
      %p26 = pneg %p20
      %p27 = scmp.eq.s32.totalorder %s11, 1
      %p28 = por %p26, %p27
      %p29 = scmp.ne.s32.totalorder %s21, %s24
      %p30 = scmp.eq.s32.totalorder %s11, 0
      %p31 = por %p29, %p30
      %p32 = scmp.ne.s32.totalorder %s21, %s24
      %p33 = scmp.eq.s32.totalorder %s16, 1
      %p34 = por %p32, %p33
      %p35 = scmp.ne.s32.totalorder %s24, %s25
      %p36 = scmp.eq.s32.totalorder %s16, 0
      %p37 = por %p35, %p36
      %p38 = scmp.ne.s32.totalorder %s24, %s25
      %p39 = scmp.eq.s32.totalorder %s17, 1
      %p40 = por %p38, %p39
      %p42 = scmp.ne.s32.totalorder %s25, %s41
      %p43 = scmp.eq.s32.totalorder %s17, 0
      %p44 = por %p42, %p43
      %s46 = sadd.s32 %s45, 1
      %p49 = scmp.eq.s32.totalorder %s11, 1
      %p50 = scmp.ne.s32.totalorder %s45, %s47
      %p51 = scmp.eq.s32.totalorder %s11, 0
      %p52 = por %p50, %p51
      %p53 = scmp.ne.s32.totalorder %s45, %s47
      %p54 = scmp.eq.s32.totalorder %s16, 1
      %p55 = por %p53, %p54
      %p56 = scmp.ne.s32.totalorder %s47, %s48
      %p57 = scmp.eq.s32.totalorder %s16, 0
      %p58 = por %p56, %p57
      %p59 = scmp.ne.s32.totalorder %s47, %s48
      %p60 = scmp.eq.s32.totalorder %s17, 1
      %p61 = por %p59, %p60
      %p63 = scmp.ne.s32.totalorder %s48, %s62
      %p64 = scmp.eq.s32.totalorder %s17, 0
      %p65 = por %p63, %p64
      %s67 = sadd.s32 %s66, 1
      %p70 = scmp.eq.s32.totalorder %s11, 1
      %p71 = scmp.ne.s32.totalorder %s66, %s68
      %p72 = scmp.eq.s32.totalorder %s11, 0
      %p73 = por %p71, %p72
      %p74 = scmp.ne.s32.totalorder %s66, %s68
      %p75 = scmp.eq.s32.totalorder %s16, 1
      %p76 = por %p74, %p75
      %p77 = scmp.ne.s32.totalorder %s68, %s69
      %p78 = scmp.eq.s32.totalorder %s16, 0
      %p79 = por %p77, %p78
      %p80 = scmp.ne.s32.totalorder %s68, %s69
      %p81 = scmp.eq.s32.totalorder %s17, 1
      %p82 = por %p80, %p81
      %p84 = scmp.ne.s32.totalorder %s69, %s83
      %p85 = scmp.eq.s32.totalorder %s17, 0
      %p86 = por %p84, %p85
      %s88 = sadd.s32 %s87, 1
      %p91 = scmp.eq.s32.totalorder %s11, 1
      %p92 = scmp.ne.s32.totalorder %s87, %s89
      %p93 = scmp.eq.s32.totalorder %s11, 0
      %p94 = por %p92, %p93
      %p95 = scmp.ne.s32.totalorder %s87, %s89
      %p96 = scmp.eq.s32.totalorder %s16, 1
      %p97 = por %p95, %p96
      %p98 = scmp.ne.s32.totalorder %s89, %s90
      %p99 = scmp.eq.s32.totalorder %s16, 0
      %p100 = por %p98, %p99
      %p101 = scmp.ne.s32.totalorder %s89, %s90
      %p102 = scmp.eq.s32.totalorder %s17, 1
      %p103 = por %p101, %p102
      %p105 = scmp.ne.s32.totalorder %s90, %s104
      %p106 = scmp.eq.s32.totalorder %s17, 0
      %p107 = por %p105, %p106
      %s108 = ssub.s32 %s11, %s18
      %p109 = scmp.eq.s32.totalorder %s108, 0
      %s111 = sadd.s32 %s110, 1
      %s112 = scalar_select %p109, %s110, %s111
      %p115 = pneg %p109
      %p116 = scmp.eq.s32.totalorder %s11, 1
      %p117 = por %p115, %p116
      %p118 = scmp.ne.s32.totalorder %s110, %s113
      %p119 = scmp.eq.s32.totalorder %s11, 0
      %p120 = por %p118, %p119
      %p121 = scmp.ne.s32.totalorder %s110, %s113
      %p122 = scmp.eq.s32.totalorder %s16, 1
      %p123 = por %p121, %p122
      %p124 = scmp.ne.s32.totalorder %s113, %s114
      %p125 = scmp.eq.s32.totalorder %s16, 0
      %p126 = por %p124, %p125
      %p127 = scmp.ne.s32.totalorder %s113, %s114
      %p128 = scmp.eq.s32.totalorder %s17, 1
      %p129 = por %p127, %p128
      %p131 = scmp.ne.s32.totalorder %s114, %s130
      %p132 = scmp.eq.s32.totalorder %s17, 0
      %p133 = por %p131, %p132
      %p134 = scmp.le.s32.totalorder 1, %s11
      %p135 = scmp.lt.s32.totalorder %s11, 3
      %p136 = pnand %p134, %p135
      %p137 = pneg %p136
      // Predicated region
      $region9: #{moindrot_cnn_forward.4} parent=5 // pred_check
        _
      $region10: #{moindrot_cnn_forward.4} parent=5 // pred_check_branch
        %139 = sbr.rel (%p136) target = $region12
      $region11: #{moindrot_cnn_forward.4} parent=5 // pred_region
        %s140 = ssub.s32 %s11, 1
        // Predicated region
        $region13: #{moindrot_cnn_forward.4} parent=11 // pred_check
          %p141 = pneg %p58
        $region14: #{moindrot_cnn_forward.4} parent=11 // pred_check_branch
          %143 = sbr.rel (%p141) target = $region16
        $region15: #{moindrot_cnn_forward.4} parent=11 // pred_region
          _
        $region16: #{moindrot_cnn_forward.4} parent=11 // pred_fallthru
          _
        // Predicated region
        $region17: #{moindrot_cnn_forward.4} parent=11 // pred_check
          %p144 = pneg %p79
        $region18: #{moindrot_cnn_forward.4} parent=11 // pred_check_branch
          %146 = sbr.rel (%p144) target = $region20
        $region19: #{moindrot_cnn_forward.4} parent=11 // pred_region
          %148 = vsyncadd [#allocation3], 0
          %s150 = sshll.u32 %s2, 4
          %s151 = int_to_ptr.hbm [resolvable:$true] %s150
          %s152 = sshll.u32 [#allocation2], 4
          %s153 = int_to_ptr.vmem [resolvable:$true] %s152
          %155 = dma.hbm_to_vmem [thread:$0]  %s151, 16, %s153, [#allocation3]
        $region20: #{moindrot_cnn_forward.4} parent=11 // pred_fallthru
          _
        // Predicated region
        $region21: #{moindrot_cnn_forward.4} parent=11 // pred_check
          %p156 = pneg %p100
        $region22: #{moindrot_cnn_forward.4} parent=11 // pred_check_branch
          %158 = sbr.rel (%p156) target = $region24
        $region23: #{moindrot_cnn_forward.4} parent=11 // pred_region
          _
        $region24: #{moindrot_cnn_forward.4} parent=11 // pred_fallthru
          _
      $region12: #{moindrot_cnn_forward.4} parent=5 // pred_fallthru
        _
      %p159 = scmp.lt.s32.totalorder %s11, 2
      // Predicated region
      $region25: #{moindrot_cnn_forward.4} parent=5 // pred_check
        %p160 = pneg %p159
      $region26: #{moindrot_cnn_forward.4} parent=5 // pred_check_branch
        %162 = sbr.rel (%p160) target = $region28
      $region27: #{moindrot_cnn_forward.4} parent=5 // pred_region
        // Predicated region
        $region29: #{moindrot_cnn_forward.4} parent=27 // pred_check
          %p163 = pneg %p31
        $region30: #{moindrot_cnn_forward.4} parent=27 // pred_check_branch
          %165 = sbr.rel (%p163) target = $region32
        $region31: #{moindrot_cnn_forward.4} parent=27 // pred_region
          %s166 = smul.u32 4, %s11
          %p167 = scmp.lt.s32.totalorder %s166, 7
          %s168 = scalar_select %p167, %s166, 7
          %s169 = smul.addr %s168, 32
          %s170 = smul.addr %s169, 4
          %s171 = scalar_lea.vmem %s0, %s170
          %s172 = smul.u32 4, %s11
        $region32: #{moindrot_cnn_forward.4} parent=27 // pred_fallthru
          _
      $region28: #{moindrot_cnn_forward.4} parent=5 // pred_fallthru
        _
      %p173 = scmp.le.s32.totalorder 1, %s11
      %p174 = scmp.lt.s32.totalorder %s11, 3
      %p175 = pnand %p173, %p174
      %p176 = pneg %p175
      // Predicated region
      $region33: #{moindrot_cnn_forward.4} parent=5 // pred_check
        _
      $region34: #{moindrot_cnn_forward.4} parent=5 // pred_check_branch
        %178 = sbr.rel (%p175) target = $region36
      $region35: #{moindrot_cnn_forward.4} parent=5 // pred_region
        %s179 = ssub.s32 %s11, 1
        // Predicated region
        $region37: #{moindrot_cnn_forward.4} parent=35 // pred_check
          %p180 = pneg %p79
        $region38: #{moindrot_cnn_forward.4} parent=35 // pred_check_branch
          %182 = sbr.rel (%p180) target = $region40
        $region39: #{moindrot_cnn_forward.4} parent=35 // pred_region
          %184 = dma.done [#allocation3], 16
        $region40: #{moindrot_cnn_forward.4} parent=35 // pred_fallthru
          _
        %s185 = smul.u32 4, %s16
        %p186 = scmp.lt.s32.totalorder %s185, 7
        %s187 = scalar_select %p186, %s185, 7
        %s188 = smul.addr %s187, 32
        %s189 = smul.addr %s188, 4
        %s190 = scalar_lea.vmem %s0, %s189
        %p191 = pneg %p37
        %p192 = pneg %p34
        %p193 = pneg %p58
        %p194 = pneg %p55
        %p195 = pneg %p79
        %p196 = pneg %p76
        %p197 = pneg %p100
        %p198 = pneg %p97
        %p199 = pneg %p126
        %p200 = pneg %p123
        %s201 = smul.u32 4, %s16
        %p202 = scmp.lt.s32.totalorder %s201, 7
        %s203 = scalar_select %p202, %s201, 7
        %s204 = smul.addr %s203, 7
        %s205 = smul.addr %s204, 4
        %s206 = scalar_lea.vmem %s4, %s205
        %s207 = smul.u32 4, %s16
        %p208 = scmp.lt.s32.totalorder %s207, 7
        %s209 = scalar_select %p208, %s207, 7
        %s210 = smul.addr %s209, 32
        %s211 = smul.addr %s210, 4
        %s212 = scalar_lea.vmem %s0, %s211
        %s213 = smul.u32 4, %s16
        %s214 = smul.u32 4, %s16
        %p215 = scmp.lt.s32.totalorder %s214, 7
        %s216 = scalar_select %p215, %s214, 7
        %s217 = smul.addr %s216, 7
        %s218 = smul.addr %s217, 4
        %s219 = scalar_lea.vmem %s4, %s218
        %s220 = smul.u32 4, %s16
        %v222 = vld [vmem:[#allocation2] sm:$0x1]
        %v223 = vld [vmem:[%s3] sm:$0x1]
        %v224 = vld [vmem:[%s1] sm:$0xf]
        %v225 = vld [vmem:[%s1 + $0x4] sm:$0xf]
        %v226 = vld [vmem:[%s1 + $0x8] sm:$0xf]
        %v227 = vld [vmem:[%s1 + $0xc] sm:$0xf]
        %v228 = vld [vmem:[%s1 + $0x10] sm:$0xf]
        %v229 = vld [vmem:[%s1 + $0x14] sm:$0xf]
        %v230 = vld [vmem:[%s1 + $0x18] sm:$0xf]
        %v231 = vld [vmem:[%s1 + $0x1c] sm:$0xf]
        %v232 = vld [vmem:[%s1 + $0x20] sm:$0xf]
        %v233 = vld [vmem:[%s1 + $0x24] sm:$0xf]
        %v234 = vld [vmem:[%s1 + $0x28] sm:$0xf]
        %v235 = vld [vmem:[%s1 + $0x2c] sm:$0xf]
        %v236 = vld [vmem:[%s1 + $0x30] sm:$0xf]
        %v237 = vld [vmem:[%s1 + $0x34] sm:$0xf]
        %v238 = vld [vmem:[%s1 + $0x38] sm:$0xf]
        %v239 = vld [vmem:[%s1 + $0x3c] sm:$0xf]
        %v240 = vld [vmem:[%s1 + $0x40] sm:$0xf]
        %v241 = vld [vmem:[%s1 + $0x44] sm:$0xf]
        %v242 = vld [vmem:[%s1 + $0x48] sm:$0xf]
        %v243 = vld [vmem:[%s1 + $0x4c] sm:$0xf]
        %v244 = vld [vmem:[%s1 + $0x50] sm:$0xf]
        %v245 = vld [vmem:[%s1 + $0x54] sm:$0xf]
        %v246 = vld [vmem:[%s1 + $0x58] sm:$0xf]
        %v247 = vld [vmem:[%s1 + $0x5c] sm:$0xf]
        %v248 = vld [vmem:[%s1 + $0x60] sm:$0xf]
        %v249 = vld [vmem:[%s1 + $0x64] sm:$0xf]
        %v250 = vld [vmem:[%s1 + $0x68] sm:$0xf]
        %v251 = vld [vmem:[%s1 + $0x6c] sm:$0xf]
        %v252 = vld [vmem:[%s1 + $0x70] sm:$0xf]
        %v253 = vld [vmem:[%s1 + $0x74] sm:$0xf]
        %v254 = vld [vmem:[%s1 + $0x78] sm:$0xf]
        %v255 = vld [vmem:[%s1 + $0x7c] sm:$0xf]
        %v256 = vld [vmem:[%s1 + $0x80] sm:$0xf]
        %v257 = vld [vmem:[%s1 + $0x84] sm:$0xf]
        %v258 = vld [vmem:[%s1 + $0x88] sm:$0xf]
        %v259 = vld [vmem:[%s1 + $0x8c] sm:$0xf]
        loop: start=0, step=1, limit=4
        $region41: #{moindrot_cnn_forward.4} parent=35 // loop_pre_header
          _
        $region42: #{moindrot_cnn_forward.4} parent=35 // loop_header
          %s261 = sphi 0, %s265
          %p262 = scmp.ge.s32.totalorder %s261, 4
        $region43: #{moindrot_cnn_forward.4} parent=35 // loop_header_branch
          %264 = sbr.rel (%p262) target = $region47
        $region44: #{moindrot_cnn_forward.4} parent=35 // loop_body
          %s266 = smul.u32 %s261, 32
          %s267 = smul.addr %s266, 4
          %s268 = scalar_lea.vmem %s212, %s267
          %v269 = vld [vmem:[%s268] sm:$0xf]
          %v270 = vld [vmem:[%s268 + $0x4] sm:$0x7]
          %v271 = vld [vmem:[%s268 + $0x8] sm:$0xf]
          %v272 = vld [vmem:[%s268 + $0xc] sm:$0x7]
          %v273 = vld [vmem:[%s268 + $0x10] sm:$0xf]
          %v274 = vld [vmem:[%s268 + $0x14] sm:$0x7]
          %v275 = vld [vmem:[%s268 + $0x18] sm:$0xf]
          %v276 = vld [vmem:[%s268 + $0x1c] sm:$0x7]
          %v277 = vld [vmem:[%s268 + $0x20] sm:$0xf]
          %v278 = vld [vmem:[%s268 + $0x24] sm:$0x7]
          %v279 = vld [vmem:[%s268 + $0x28] sm:$0xf]
          %v280 = vld [vmem:[%s268 + $0x2c] sm:$0x7]
          %v281 = vld [vmem:[%s268 + $0x30] sm:$0xf]
          %v282 = vld [vmem:[%s268 + $0x34] sm:$0x7]
          %v283 = vld [vmem:[%s268 + $0x38] sm:$0xf]
          %v284 = vld [vmem:[%s268 + $0x3c] sm:$0x7]
          %v285 = vld [vmem:[%s268 + $0x40] sm:$0xf]
          %v286 = vld [vmem:[%s268 + $0x44] sm:$0x7]
          %v287 = vld [vmem:[%s268 + $0x48] sm:$0xf]
          %v288 = vld [vmem:[%s268 + $0x4c] sm:$0x7]
          %v289 = vld [vmem:[%s268 + $0x50] sm:$0xf]
          %v290 = vld [vmem:[%s268 + $0x54] sm:$0x7]
          %v291 = vld [vmem:[%s268 + $0x58] sm:$0xf]
          %v292 = vld [vmem:[%s268 + $0x5c] sm:$0x7]
          %v293 = vld [vmem:[%s268 + $0x60] sm:$0xf]
          %v294 = vld [vmem:[%s268 + $0x64] sm:$0x7]
          %v295 = vld [vmem:[%s268 + $0x68] sm:$0xf]
          %v296 = vld [vmem:[%s268 + $0x6c] sm:$0x7]
          %v297 = vld [vmem:[%s268 + $0x4] sm:$0xf]
          %v298 = vld [vmem:[%s268 + $0xc] sm:$0xf]
          %v299 = vld [vmem:[%s268 + $0x14] sm:$0xf]
          %v300 = vld [vmem:[%s268 + $0x1c] sm:$0xf]
          %v301 = vld [vmem:[%s268 + $0x24] sm:$0xf]
          %v302 = vld [vmem:[%s268 + $0x2c] sm:$0xf]
          %v303 = vld [vmem:[%s268 + $0x34] sm:$0xf]
          %v304 = vld [vmem:[%s268 + $0x3c] sm:$0xf]
          %v305 = vld [vmem:[%s268 + $0x44] sm:$0xf]
          %v306 = vld [vmem:[%s268 + $0x4c] sm:$0xf]
          %v307 = vld [vmem:[%s268 + $0x54] sm:$0xf]
          %v308 = vld [vmem:[%s268 + $0x5c] sm:$0xf]
          %v309 = vld [vmem:[%s268 + $0x64] sm:$0xf]
          %v310 = vld [vmem:[%s268 + $0x6c] sm:$0xf]
          %v311 = vld [vmem:[%s268] sm:$0xe]
          %v312 = vld [vmem:[%s268 + $0x8] sm:$0xe]
          %v313 = vld [vmem:[%s268 + $0x10] sm:$0xe]
          %v314 = vld [vmem:[%s268 + $0x18] sm:$0xe]
          %v315 = vld [vmem:[%s268 + $0x20] sm:$0xe]
          %v316 = vld [vmem:[%s268 + $0x28] sm:$0xe]
          %v317 = vld [vmem:[%s268 + $0x30] sm:$0xe]
          %v318 = vld [vmem:[%s268 + $0x38] sm:$0xe]
          %v319 = vld [vmem:[%s268 + $0x40] sm:$0xe]
          %v320 = vld [vmem:[%s268 + $0x48] sm:$0xe]
          %v321 = vld [vmem:[%s268 + $0x50] sm:$0xe]
          %v322 = vld [vmem:[%s268 + $0x58] sm:$0xe]
          %v323 = vld [vmem:[%s268 + $0x60] sm:$0xe]
          %v324 = vld [vmem:[%s268 + $0x68] sm:$0xe]
          %s325 = sadd.s32 2, %s266
          %s326 = smul.addr %s325, 4
          %s327 = scalar_lea.vmem %s212, %s326
          %v328 = vld [vmem:[%s327] sm:$0xf]
          %v329 = vld [vmem:[%s327 + $0x4] sm:$0x7]
          %v330 = vld [vmem:[%s327 + $0x8] sm:$0xf]
          %v331 = vld [vmem:[%s327 + $0xc] sm:$0x7]
          %v332 = vld [vmem:[%s327 + $0x10] sm:$0xf]
          %v333 = vld [vmem:[%s327 + $0x14] sm:$0x7]
          %v334 = vld [vmem:[%s327 + $0x18] sm:$0xf]
          %v335 = vld [vmem:[%s327 + $0x1c] sm:$0x7]
          %v336 = vld [vmem:[%s327 + $0x20] sm:$0xf]
          %v337 = vld [vmem:[%s327 + $0x24] sm:$0x7]
          %v338 = vld [vmem:[%s327 + $0x28] sm:$0xf]
          %v339 = vld [vmem:[%s327 + $0x2c] sm:$0x7]
          %v340 = vld [vmem:[%s327 + $0x30] sm:$0xf]
          %v341 = vld [vmem:[%s327 + $0x34] sm:$0x7]
          %v342 = vld [vmem:[%s327 + $0x38] sm:$0xf]
          %v343 = vld [vmem:[%s327 + $0x3c] sm:$0x7]
          %v344 = vld [vmem:[%s327 + $0x40] sm:$0xf]
          %v345 = vld [vmem:[%s327 + $0x44] sm:$0x7]
          %v346 = vld [vmem:[%s327 + $0x48] sm:$0xf]
          %v347 = vld [vmem:[%s327 + $0x4c] sm:$0x7]
          %v348 = vld [vmem:[%s327 + $0x50] sm:$0xf]
          %v349 = vld [vmem:[%s327 + $0x54] sm:$0x7]
          %v350 = vld [vmem:[%s327 + $0x58] sm:$0xf]
          %v351 = vld [vmem:[%s327 + $0x5c] sm:$0x7]
          %v352 = vld [vmem:[%s327 + $0x60] sm:$0xf]
          %v353 = vld [vmem:[%s327 + $0x64] sm:$0x7]
          %v354 = vld [vmem:[%s327 + $0x68] sm:$0xf]
          %v355 = vld [vmem:[%s327 + $0x6c] sm:$0x7]
          %v356 = vld [vmem:[%s327 + $0x4] sm:$0xf]
          %v357 = vld [vmem:[%s327 + $0xc] sm:$0xf]
          %v358 = vld [vmem:[%s327 + $0x14] sm:$0xf]
          %v359 = vld [vmem:[%s327 + $0x1c] sm:$0xf]
          %v360 = vld [vmem:[%s327 + $0x24] sm:$0xf]
          %v361 = vld [vmem:[%s327 + $0x2c] sm:$0xf]
          %v362 = vld [vmem:[%s327 + $0x34] sm:$0xf]
          %v363 = vld [vmem:[%s327 + $0x3c] sm:$0xf]
          %v364 = vld [vmem:[%s327 + $0x44] sm:$0xf]
          %v365 = vld [vmem:[%s327 + $0x4c] sm:$0xf]
          %v366 = vld [vmem:[%s327 + $0x54] sm:$0xf]
          %v367 = vld [vmem:[%s327 + $0x5c] sm:$0xf]
          %v368 = vld [vmem:[%s327 + $0x64] sm:$0xf]
          %v369 = vld [vmem:[%s327 + $0x6c] sm:$0xf]
          %v370 = vld [vmem:[%s327] sm:$0xe]
          %v371 = vld [vmem:[%s327 + $0x8] sm:$0xe]
          %v372 = vld [vmem:[%s327 + $0x10] sm:$0xe]
          %v373 = vld [vmem:[%s327 + $0x18] sm:$0xe]
          %v374 = vld [vmem:[%s327 + $0x20] sm:$0xe]
          %v375 = vld [vmem:[%s327 + $0x28] sm:$0xe]
          %v376 = vld [vmem:[%s327 + $0x30] sm:$0xe]
          %v377 = vld [vmem:[%s327 + $0x38] sm:$0xe]
          %v378 = vld [vmem:[%s327 + $0x40] sm:$0xe]
          %v379 = vld [vmem:[%s327 + $0x48] sm:$0xe]
          %v380 = vld [vmem:[%s327 + $0x50] sm:$0xe]
          %v381 = vld [vmem:[%s327 + $0x58] sm:$0xe]
          %v382 = vld [vmem:[%s327 + $0x60] sm:$0xe]
          %v383 = vld [vmem:[%s327 + $0x68] sm:$0xe]
          %s384 = sadd.s32 4, %s266
          %s385 = smul.addr %s384, 4
          %s386 = scalar_lea.vmem %s212, %s385
          %v387 = vld [vmem:[%s386] sm:$0xf]
          %v388 = vld [vmem:[%s386 + $0x4] sm:$0x7]
          %v389 = vld [vmem:[%s386 + $0x8] sm:$0xf]
          %v390 = vld [vmem:[%s386 + $0xc] sm:$0x7]
          %v391 = vld [vmem:[%s386 + $0x10] sm:$0xf]
          %v392 = vld [vmem:[%s386 + $0x14] sm:$0x7]
          %v393 = vld [vmem:[%s386 + $0x18] sm:$0xf]
          %v394 = vld [vmem:[%s386 + $0x1c] sm:$0x7]
          %v395 = vld [vmem:[%s386 + $0x20] sm:$0xf]
          %v396 = vld [vmem:[%s386 + $0x24] sm:$0x7]
          %v397 = vld [vmem:[%s386 + $0x28] sm:$0xf]
          %v398 = vld [vmem:[%s386 + $0x2c] sm:$0x7]
          %v399 = vld [vmem:[%s386 + $0x30] sm:$0xf]
          %v400 = vld [vmem:[%s386 + $0x34] sm:$0x7]
          %v401 = vld [vmem:[%s386 + $0x38] sm:$0xf]
          %v402 = vld [vmem:[%s386 + $0x3c] sm:$0x7]
          %v403 = vld [vmem:[%s386 + $0x40] sm:$0xf]
          %v404 = vld [vmem:[%s386 + $0x44] sm:$0x7]
          %v405 = vld [vmem:[%s386 + $0x48] sm:$0xf]
          %v406 = vld [vmem:[%s386 + $0x4c] sm:$0x7]
          %v407 = vld [vmem:[%s386 + $0x50] sm:$0xf]
          %v408 = vld [vmem:[%s386 + $0x54] sm:$0x7]
          %v409 = vld [vmem:[%s386 + $0x58] sm:$0xf]
          %v410 = vld [vmem:[%s386 + $0x5c] sm:$0x7]
          %v411 = vld [vmem:[%s386 + $0x60] sm:$0xf]
          %v412 = vld [vmem:[%s386 + $0x64] sm:$0x7]
          %v413 = vld [vmem:[%s386 + $0x68] sm:$0xf]
          %v414 = vld [vmem:[%s386 + $0x6c] sm:$0x7]
          %v415 = vld [vmem:[%s386 + $0x4] sm:$0xf]
          %v416 = vld [vmem:[%s386 + $0xc] sm:$0xf]
          %v417 = vld [vmem:[%s386 + $0x14] sm:$0xf]
          %v418 = vld [vmem:[%s386 + $0x1c] sm:$0xf]
          %v419 = vld [vmem:[%s386 + $0x24] sm:$0xf]
          %v420 = vld [vmem:[%s386 + $0x2c] sm:$0xf]
          %v421 = vld [vmem:[%s386 + $0x34] sm:$0xf]
          %v422 = vld [vmem:[%s386 + $0x3c] sm:$0xf]
          %v423 = vld [vmem:[%s386 + $0x44] sm:$0xf]
          %v424 = vld [vmem:[%s386 + $0x4c] sm:$0xf]
          %v425 = vld [vmem:[%s386 + $0x54] sm:$0xf]
          %v426 = vld [vmem:[%s386 + $0x5c] sm:$0xf]
          %v427 = vld [vmem:[%s386 + $0x64] sm:$0xf]
          %v428 = vld [vmem:[%s386 + $0x6c] sm:$0xf]
          %v429 = vld [vmem:[%s386] sm:$0xe]
          %v430 = vld [vmem:[%s386 + $0x8] sm:$0xe]
          %v431 = vld [vmem:[%s386 + $0x10] sm:$0xe]
          %v432 = vld [vmem:[%s386 + $0x18] sm:$0xe]
          %v433 = vld [vmem:[%s386 + $0x20] sm:$0xe]
          %v434 = vld [vmem:[%s386 + $0x28] sm:$0xe]
          %v435 = vld [vmem:[%s386 + $0x30] sm:$0xe]
          %v436 = vld [vmem:[%s386 + $0x38] sm:$0xe]
          %v437 = vld [vmem:[%s386 + $0x40] sm:$0xe]
          %v438 = vld [vmem:[%s386 + $0x48] sm:$0xe]
          %v439 = vld [vmem:[%s386 + $0x50] sm:$0xe]
          %v440 = vld [vmem:[%s386 + $0x58] sm:$0xe]
          %v441 = vld [vmem:[%s386 + $0x60] sm:$0xe]
          %v442 = vld [vmem:[%s386 + $0x68] sm:$0xe]
          %v471 = vunpack.c.l.b16 %v269
          %v472 = vunpack.c.l.b16 %v270
          %v473 = vunpack.c.l.b16 %v271
          %v474 = vunpack.c.l.b16 %v272
          %v475 = vunpack.c.l.b16 %v273
          %v476 = vunpack.c.l.b16 %v274
          %v477 = vunpack.c.l.b16 %v275
          %v478 = vunpack.c.l.b16 %v276
          %v479 = vunpack.c.l.b16 %v277
          %v480 = vunpack.c.l.b16 %v278
          %v481 = vunpack.c.l.b16 %v279
          %v482 = vunpack.c.l.b16 %v280
          %v483 = vunpack.c.l.b16 %v281
          %v484 = vunpack.c.l.b16 %v282
          %v485 = vunpack.c.l.b16 %v283
          %v486 = vunpack.c.l.b16 %v284
          %v487 = vunpack.c.l.b16 %v285
          %v488 = vunpack.c.l.b16 %v286
          %v489 = vunpack.c.l.b16 %v287
          %v490 = vunpack.c.l.b16 %v288
          %v491 = vunpack.c.l.b16 %v289
          %v492 = vunpack.c.l.b16 %v290
          %v493 = vunpack.c.l.b16 %v291
          %v494 = vunpack.c.l.b16 %v292
          %v495 = vunpack.c.l.b16 %v293
          %v496 = vunpack.c.l.b16 %v294
          %v497 = vunpack.c.l.b16 %v295
          %v498 = vunpack.c.l.b16 %v296
          %v499 = vpack.c.b16 %v472, %v471
          %v500 = vpack.c.b16 %v474, %v473
          %v501 = vpack.c.b16 %v476, %v475
          %v502 = vpack.c.b16 %v478, %v477
          %v503 = vpack.c.b16 %v480, %v479
          %v504 = vpack.c.b16 %v482, %v481
          %v505 = vpack.c.b16 %v484, %v483
          %v506 = vpack.c.b16 %v486, %v485
          %v507 = vpack.c.b16 %v488, %v487
          %v508 = vpack.c.b16 %v490, %v489
          %v509 = vpack.c.b16 %v492, %v491
          %v510 = vpack.c.b16 %v494, %v493
          %v511 = vpack.c.b16 %v496, %v495
          %v512 = vpack.c.b16 %v498, %v497
          %v527 = vunpack.c.l.b16 %v297
          %v528 = vunpack.c.l.b16 %v298
          %v529 = vunpack.c.l.b16 %v299
          %v530 = vunpack.c.l.b16 %v300
          %v531 = vunpack.c.l.b16 %v301
          %v532 = vunpack.c.l.b16 %v302
          %v533 = vunpack.c.l.b16 %v303
          %v534 = vunpack.c.l.b16 %v304
          %v535 = vunpack.c.l.b16 %v305
          %v536 = vunpack.c.l.b16 %v306
          %v537 = vunpack.c.l.b16 %v307
          %v538 = vunpack.c.l.b16 %v308
          %v539 = vunpack.c.l.b16 %v309
          %v540 = vunpack.c.l.b16 %v310
          %v541 = vpack.c.b16 %v527, %v471
          %v542 = vpack.c.b16 %v528, %v473
          %v543 = vpack.c.b16 %v529, %v475
          %v544 = vpack.c.b16 %v530, %v477
          %v545 = vpack.c.b16 %v531, %v479
          %v546 = vpack.c.b16 %v532, %v481
          %v547 = vpack.c.b16 %v533, %v483
          %v548 = vpack.c.b16 %v534, %v485
          %v549 = vpack.c.b16 %v535, %v487
          %v550 = vpack.c.b16 %v536, %v489
          %v551 = vpack.c.b16 %v537, %v491
          %v552 = vpack.c.b16 %v538, %v493
          %v553 = vpack.c.b16 %v539, %v495
          %v554 = vpack.c.b16 %v540, %v497
          %v556 = vshrl.u32 %v541, 16
          %v558 = vshll.u32 %v541, 16
          %v560 = vrot.slane %v558, 1
          %v561 = vor.u32 %v556, %v560
          %v563 = vshrl.u32 %v542, 16
          %v565 = vshll.u32 %v542, 16
          %v567 = vrot.slane %v565, 1
          %v568 = vor.u32 %v563, %v567
          %v570 = vshrl.u32 %v543, 16
          %v572 = vshll.u32 %v543, 16
          %v574 = vrot.slane %v572, 1
          %v575 = vor.u32 %v570, %v574
          %v577 = vshrl.u32 %v544, 16
          %v579 = vshll.u32 %v544, 16
          %v581 = vrot.slane %v579, 1
          %v582 = vor.u32 %v577, %v581
          %v584 = vshrl.u32 %v545, 16
          %v586 = vshll.u32 %v545, 16
          %v588 = vrot.slane %v586, 1
          %v589 = vor.u32 %v584, %v588
          %v591 = vshrl.u32 %v546, 16
          %v593 = vshll.u32 %v546, 16
          %v595 = vrot.slane %v593, 1
          %v596 = vor.u32 %v591, %v595
          %v598 = vshrl.u32 %v547, 16
          %v600 = vshll.u32 %v547, 16
          %v602 = vrot.slane %v600, 1
          %v603 = vor.u32 %v598, %v602
          %v605 = vshrl.u32 %v548, 16
          %v607 = vshll.u32 %v548, 16
          %v609 = vrot.slane %v607, 1
          %v610 = vor.u32 %v605, %v609
          %v612 = vshrl.u32 %v549, 16
          %v614 = vshll.u32 %v549, 16
          %v616 = vrot.slane %v614, 1
          %v617 = vor.u32 %v612, %v616
          %v619 = vshrl.u32 %v550, 16
          %v621 = vshll.u32 %v550, 16
          %v623 = vrot.slane %v621, 1
          %v624 = vor.u32 %v619, %v623
          %v626 = vshrl.u32 %v551, 16
          %v628 = vshll.u32 %v551, 16
          %v630 = vrot.slane %v628, 1
          %v631 = vor.u32 %v626, %v630
          %v633 = vshrl.u32 %v552, 16
          %v635 = vshll.u32 %v552, 16
          %v637 = vrot.slane %v635, 1
          %v638 = vor.u32 %v633, %v637
          %v640 = vshrl.u32 %v553, 16
          %v642 = vshll.u32 %v553, 16
          %v644 = vrot.slane %v642, 1
          %v645 = vor.u32 %v640, %v644
          %v647 = vshrl.u32 %v554, 16
          %v649 = vshll.u32 %v554, 16
          %v651 = vrot.slane %v649, 1
          %v652 = vor.u32 %v647, %v651
          %653 = vrot.lane.b32.xlu0 %v561, 32
          %v654 = vpop.permute.xlu0 %653
          %655 = vrot.lane.b32.xlu0 %v568, 32
          %v656 = vpop.permute.xlu0 %655
          %657 = vrot.lane.b32.xlu0 %v575, 32
          %v658 = vpop.permute.xlu0 %657
          %659 = vrot.lane.b32.xlu0 %v582, 32
          %v660 = vpop.permute.xlu0 %659
          %661 = vrot.lane.b32.xlu0 %v589, 32
          %v662 = vpop.permute.xlu0 %661
          %663 = vrot.lane.b32.xlu0 %v596, 32
          %v664 = vpop.permute.xlu0 %663
          %665 = vrot.lane.b32.xlu0 %v603, 32
          %v666 = vpop.permute.xlu0 %665
          %667 = vrot.lane.b32.xlu0 %v610, 32
          %v668 = vpop.permute.xlu0 %667
          %669 = vrot.lane.b32.xlu0 %v617, 32
          %v670 = vpop.permute.xlu0 %669
          %671 = vrot.lane.b32.xlu0 %v624, 32
          %v672 = vpop.permute.xlu0 %671
          %673 = vrot.lane.b32.xlu0 %v631, 32
          %v674 = vpop.permute.xlu0 %673
          %675 = vrot.lane.b32.xlu0 %v638, 32
          %v676 = vpop.permute.xlu0 %675
          %677 = vrot.lane.b32.xlu0 %v645, 32
          %v678 = vpop.permute.xlu0 %677
          %679 = vrot.lane.b32.xlu0 %v652, 32
          %v680 = vpop.permute.xlu0 %679
          %v695 = vunpack.c.l.b16 %v311
          %v696 = vunpack.c.l.b16 %v312
          %v697 = vunpack.c.l.b16 %v313
          %v698 = vunpack.c.l.b16 %v314
          %v699 = vunpack.c.l.b16 %v315
          %v700 = vunpack.c.l.b16 %v316
          %v701 = vunpack.c.l.b16 %v317
          %v702 = vunpack.c.l.b16 %v318
          %v703 = vunpack.c.l.b16 %v319
          %v704 = vunpack.c.l.b16 %v320
          %v705 = vunpack.c.l.b16 %v321
          %v706 = vunpack.c.l.b16 %v322
          %v707 = vunpack.c.l.b16 %v323
          %v708 = vunpack.c.l.b16 %v324
          %v709 = vpack.c.b16 %v527, %v695
          %v710 = vpack.c.b16 %v528, %v696
          %v711 = vpack.c.b16 %v529, %v697
          %v712 = vpack.c.b16 %v530, %v698
          %v713 = vpack.c.b16 %v531, %v699
          %v714 = vpack.c.b16 %v532, %v700
          %v715 = vpack.c.b16 %v533, %v701
          %v716 = vpack.c.b16 %v534, %v702
          %v717 = vpack.c.b16 %v535, %v703
          %v718 = vpack.c.b16 %v536, %v704
          %v719 = vpack.c.b16 %v537, %v705
          %v720 = vpack.c.b16 %v538, %v706
          %v721 = vpack.c.b16 %v539, %v707
          %v722 = vpack.c.b16 %v540, %v708
          %v723 = vrot.slane %v709, 1
          %v724 = vrot.slane %v710, 1
          %v725 = vrot.slane %v711, 1
          %v726 = vrot.slane %v712, 1
          %v727 = vrot.slane %v713, 1
          %v728 = vrot.slane %v714, 1
          %v729 = vrot.slane %v715, 1
          %v730 = vrot.slane %v716, 1
          %v731 = vrot.slane %v717, 1
          %v732 = vrot.slane %v718, 1
          %v733 = vrot.slane %v719, 1
          %v734 = vrot.slane %v720, 1
          %v735 = vrot.slane %v721, 1
          %v736 = vrot.slane %v722, 1
          %737 = vrot.lane.b32.xlu0 %v723, 64
          %v738 = vpop.permute.xlu0 %737
          %739 = vrot.lane.b32.xlu0 %v724, 64
          %v740 = vpop.permute.xlu0 %739
          %741 = vrot.lane.b32.xlu0 %v725, 64
          %v742 = vpop.permute.xlu0 %741
          %743 = vrot.lane.b32.xlu0 %v726, 64
          %v744 = vpop.permute.xlu0 %743
          %745 = vrot.lane.b32.xlu0 %v727, 64
          %v746 = vpop.permute.xlu0 %745
          %747 = vrot.lane.b32.xlu0 %v728, 64
          %v748 = vpop.permute.xlu0 %747
          %749 = vrot.lane.b32.xlu0 %v729, 64
          %v750 = vpop.permute.xlu0 %749
          %751 = vrot.lane.b32.xlu0 %v730, 64
          %v752 = vpop.permute.xlu0 %751
          %753 = vrot.lane.b32.xlu0 %v731, 64
          %v754 = vpop.permute.xlu0 %753
          %755 = vrot.lane.b32.xlu0 %v732, 64
          %v756 = vpop.permute.xlu0 %755
          %757 = vrot.lane.b32.xlu0 %v733, 64
          %v758 = vpop.permute.xlu0 %757
          %759 = vrot.lane.b32.xlu0 %v734, 64
          %v760 = vpop.permute.xlu0 %759
          %761 = vrot.lane.b32.xlu0 %v735, 64
          %v762 = vpop.permute.xlu0 %761
          %763 = vrot.lane.b32.xlu0 %v736, 64
          %v764 = vpop.permute.xlu0 %763
          %v793 = vunpack.c.l.b16 %v328
          %v794 = vunpack.c.l.b16 %v329
          %v795 = vunpack.c.l.b16 %v330
          %v796 = vunpack.c.l.b16 %v331
          %v797 = vunpack.c.l.b16 %v332
          %v798 = vunpack.c.l.b16 %v333
          %v799 = vunpack.c.l.b16 %v334
          %v800 = vunpack.c.l.b16 %v335
          %v801 = vunpack.c.l.b16 %v336
          %v802 = vunpack.c.l.b16 %v337
          %v803 = vunpack.c.l.b16 %v338
          %v804 = vunpack.c.l.b16 %v339
          %v805 = vunpack.c.l.b16 %v340
          %v806 = vunpack.c.l.b16 %v341
          %v807 = vunpack.c.l.b16 %v342
          %v808 = vunpack.c.l.b16 %v343
          %v809 = vunpack.c.l.b16 %v344
          %v810 = vunpack.c.l.b16 %v345
          %v811 = vunpack.c.l.b16 %v346
          %v812 = vunpack.c.l.b16 %v347
          %v813 = vunpack.c.l.b16 %v348
          %v814 = vunpack.c.l.b16 %v349
          %v815 = vunpack.c.l.b16 %v350
          %v816 = vunpack.c.l.b16 %v351
          %v817 = vunpack.c.l.b16 %v352
          %v818 = vunpack.c.l.b16 %v353
          %v819 = vunpack.c.l.b16 %v354
          %v820 = vunpack.c.l.b16 %v355
          %v821 = vpack.c.b16 %v794, %v793
          %v822 = vpack.c.b16 %v796, %v795
          %v823 = vpack.c.b16 %v798, %v797
          %v824 = vpack.c.b16 %v800, %v799
          %v825 = vpack.c.b16 %v802, %v801
          %v826 = vpack.c.b16 %v804, %v803
          %v827 = vpack.c.b16 %v806, %v805
          %v828 = vpack.c.b16 %v808, %v807
          %v829 = vpack.c.b16 %v810, %v809
          %v830 = vpack.c.b16 %v812, %v811
          %v831 = vpack.c.b16 %v814, %v813
          %v832 = vpack.c.b16 %v816, %v815
          %v833 = vpack.c.b16 %v818, %v817
          %v834 = vpack.c.b16 %v820, %v819
          %835 = vrot.lane.b32.xlu0 %v821, 96
          %v836 = vpop.permute.xlu0 %835
          %837 = vrot.lane.b32.xlu0 %v822, 96
          %v838 = vpop.permute.xlu0 %837
          %839 = vrot.lane.b32.xlu0 %v823, 96
          %v840 = vpop.permute.xlu0 %839
          %841 = vrot.lane.b32.xlu0 %v824, 96
          %v842 = vpop.permute.xlu0 %841
          %843 = vrot.lane.b32.xlu0 %v825, 96
          %v844 = vpop.permute.xlu0 %843
          %845 = vrot.lane.b32.xlu0 %v826, 96
          %v846 = vpop.permute.xlu0 %845
          %847 = vrot.lane.b32.xlu0 %v827, 96
          %v848 = vpop.permute.xlu0 %847
          %849 = vrot.lane.b32.xlu0 %v828, 96
          %v850 = vpop.permute.xlu0 %849
          %851 = vrot.lane.b32.xlu0 %v829, 96
          %v852 = vpop.permute.xlu0 %851
          %853 = vrot.lane.b32.xlu0 %v830, 96
          %v854 = vpop.permute.xlu0 %853
          %855 = vrot.lane.b32.xlu0 %v831, 96
          %v856 = vpop.permute.xlu0 %855
          %857 = vrot.lane.b32.xlu0 %v832, 96
          %v858 = vpop.permute.xlu0 %857
          %859 = vrot.lane.b32.xlu0 %v833, 96
          %v860 = vpop.permute.xlu0 %859
          %861 = vrot.lane.b32.xlu0 %v834, 96
          %v862 = vpop.permute.xlu0 %861
          %v877 = vunpack.c.l.b16 %v356
          %v878 = vunpack.c.l.b16 %v357
          %v879 = vunpack.c.l.b16 %v358
          %v880 = vunpack.c.l.b16 %v359
          %v881 = vunpack.c.l.b16 %v360
          %v882 = vunpack.c.l.b16 %v361
          %v883 = vunpack.c.l.b16 %v362
          %v884 = vunpack.c.l.b16 %v363
          %v885 = vunpack.c.l.b16 %v364
          %v886 = vunpack.c.l.b16 %v365
          %v887 = vunpack.c.l.b16 %v366
          %v888 = vunpack.c.l.b16 %v367
          %v889 = vunpack.c.l.b16 %v368
          %v890 = vunpack.c.l.b16 %v369
          %v891 = vpack.c.b16 %v877, %v793
          %v892 = vpack.c.b16 %v878, %v795
          %v893 = vpack.c.b16 %v879, %v797
          %v894 = vpack.c.b16 %v880, %v799
          %v895 = vpack.c.b16 %v881, %v801
          %v896 = vpack.c.b16 %v882, %v803
          %v897 = vpack.c.b16 %v883, %v805
          %v898 = vpack.c.b16 %v884, %v807
          %v899 = vpack.c.b16 %v885, %v809
          %v900 = vpack.c.b16 %v886, %v811
          %v901 = vpack.c.b16 %v887, %v813
          %v902 = vpack.c.b16 %v888, %v815
          %v903 = vpack.c.b16 %v889, %v817
          %v904 = vpack.c.b16 %v890, %v819
          %v906 = vshrl.u32 %v891, 16
          %v908 = vshll.u32 %v891, 16
          %v910 = vrot.slane %v908, 1
          %v911 = vor.u32 %v906, %v910
          %v913 = vshrl.u32 %v892, 16
          %v915 = vshll.u32 %v892, 16
          %v917 = vrot.slane %v915, 1
          %v918 = vor.u32 %v913, %v917
          %v920 = vshrl.u32 %v893, 16
          %v922 = vshll.u32 %v893, 16
          %v924 = vrot.slane %v922, 1
          %v925 = vor.u32 %v920, %v924
          %v927 = vshrl.u32 %v894, 16
          %v929 = vshll.u32 %v894, 16
          %v931 = vrot.slane %v929, 1
          %v932 = vor.u32 %v927, %v931
          %v934 = vshrl.u32 %v895, 16
          %v936 = vshll.u32 %v895, 16
          %v938 = vrot.slane %v936, 1
          %v939 = vor.u32 %v934, %v938
          %v941 = vshrl.u32 %v896, 16
          %v943 = vshll.u32 %v896, 16
          %v945 = vrot.slane %v943, 1
          %v946 = vor.u32 %v941, %v945
          %v948 = vshrl.u32 %v897, 16
          %v950 = vshll.u32 %v897, 16
          %v952 = vrot.slane %v950, 1
          %v953 = vor.u32 %v948, %v952
          %v955 = vshrl.u32 %v898, 16
          %v957 = vshll.u32 %v898, 16
          %v959 = vrot.slane %v957, 1
          %v960 = vor.u32 %v955, %v959
          %v962 = vshrl.u32 %v899, 16
          %v964 = vshll.u32 %v899, 16
          %v966 = vrot.slane %v964, 1
          %v967 = vor.u32 %v962, %v966
          %v969 = vshrl.u32 %v900, 16
          %v971 = vshll.u32 %v900, 16
          %v973 = vrot.slane %v971, 1
          %v974 = vor.u32 %v969, %v973
          %v976 = vshrl.u32 %v901, 16
          %v978 = vshll.u32 %v901, 16
          %v980 = vrot.slane %v978, 1
          %v981 = vor.u32 %v976, %v980
          %v983 = vshrl.u32 %v902, 16
          %v985 = vshll.u32 %v902, 16
          %v987 = vrot.slane %v985, 1
          %v988 = vor.u32 %v983, %v987
          %v990 = vshrl.u32 %v903, 16
          %v992 = vshll.u32 %v903, 16
          %v994 = vrot.slane %v992, 1
          %v995 = vor.u32 %v990, %v994
          %v997 = vshrl.u32 %v904, 16
          %v999 = vshll.u32 %v904, 16
          %v1001 = vrot.slane %v999, 1
          %v1002 = vor.u32 %v997, %v1001
          %v1017 = vunpack.c.l.b16 %v370
          %v1018 = vunpack.c.l.b16 %v371
          %v1019 = vunpack.c.l.b16 %v372
          %v1020 = vunpack.c.l.b16 %v373
          %v1021 = vunpack.c.l.b16 %v374
          %v1022 = vunpack.c.l.b16 %v375
          %v1023 = vunpack.c.l.b16 %v376
          %v1024 = vunpack.c.l.b16 %v377
          %v1025 = vunpack.c.l.b16 %v378
          %v1026 = vunpack.c.l.b16 %v379
          %v1027 = vunpack.c.l.b16 %v380
          %v1028 = vunpack.c.l.b16 %v381
          %v1029 = vunpack.c.l.b16 %v382
          %v1030 = vunpack.c.l.b16 %v383
          %v1031 = vpack.c.b16 %v877, %v1017
          %v1032 = vpack.c.b16 %v878, %v1018
          %v1033 = vpack.c.b16 %v879, %v1019
          %v1034 = vpack.c.b16 %v880, %v1020
          %v1035 = vpack.c.b16 %v881, %v1021
          %v1036 = vpack.c.b16 %v882, %v1022
          %v1037 = vpack.c.b16 %v883, %v1023
          %v1038 = vpack.c.b16 %v884, %v1024
          %v1039 = vpack.c.b16 %v885, %v1025
          %v1040 = vpack.c.b16 %v886, %v1026
          %v1041 = vpack.c.b16 %v887, %v1027
          %v1042 = vpack.c.b16 %v888, %v1028
          %v1043 = vpack.c.b16 %v889, %v1029
          %v1044 = vpack.c.b16 %v890, %v1030
          %v1045 = vrot.slane %v1031, 1
          %v1046 = vrot.slane %v1032, 1
          %v1047 = vrot.slane %v1033, 1
          %v1048 = vrot.slane %v1034, 1
          %v1049 = vrot.slane %v1035, 1
          %v1050 = vrot.slane %v1036, 1
          %v1051 = vrot.slane %v1037, 1
          %v1052 = vrot.slane %v1038, 1
          %v1053 = vrot.slane %v1039, 1
          %v1054 = vrot.slane %v1040, 1
          %v1055 = vrot.slane %v1041, 1
          %v1056 = vrot.slane %v1042, 1
          %v1057 = vrot.slane %v1043, 1
          %v1058 = vrot.slane %v1044, 1
          %1059 = vrot.lane.b32.xlu0 %v1045, 32
          %v1060 = vpop.permute.xlu0 %1059
          %1061 = vrot.lane.b32.xlu0 %v1046, 32
          %v1062 = vpop.permute.xlu0 %1061
          %1063 = vrot.lane.b32.xlu0 %v1047, 32
          %v1064 = vpop.permute.xlu0 %1063
          %1065 = vrot.lane.b32.xlu0 %v1048, 32
          %v1066 = vpop.permute.xlu0 %1065
          %1067 = vrot.lane.b32.xlu0 %v1049, 32
          %v1068 = vpop.permute.xlu0 %1067
          %1069 = vrot.lane.b32.xlu0 %v1050, 32
          %v1070 = vpop.permute.xlu0 %1069
          %1071 = vrot.lane.b32.xlu0 %v1051, 32
          %v1072 = vpop.permute.xlu0 %1071
          %1073 = vrot.lane.b32.xlu0 %v1052, 32
          %v1074 = vpop.permute.xlu0 %1073
          %1075 = vrot.lane.b32.xlu0 %v1053, 32
          %v1076 = vpop.permute.xlu0 %1075
          %1077 = vrot.lane.b32.xlu0 %v1054, 32
          %v1078 = vpop.permute.xlu0 %1077
          %1079 = vrot.lane.b32.xlu0 %v1055, 32
          %v1080 = vpop.permute.xlu0 %1079
          %1081 = vrot.lane.b32.xlu0 %v1056, 32
          %v1082 = vpop.permute.xlu0 %1081
          %1083 = vrot.lane.b32.xlu0 %v1057, 32
          %v1084 = vpop.permute.xlu0 %1083
          %1085 = vrot.lane.b32.xlu0 %v1058, 32
          %v1086 = vpop.permute.xlu0 %1085
          %v1115 = vunpack.c.l.b16 %v387
          %v1116 = vunpack.c.l.b16 %v388
          %v1117 = vunpack.c.l.b16 %v389
          %v1118 = vunpack.c.l.b16 %v390
          %v1119 = vunpack.c.l.b16 %v391
          %v1120 = vunpack.c.l.b16 %v392
          %v1121 = vunpack.c.l.b16 %v393
          %v1122 = vunpack.c.l.b16 %v394
          %v1123 = vunpack.c.l.b16 %v395
          %v1124 = vunpack.c.l.b16 %v396
          %v1125 = vunpack.c.l.b16 %v397
          %v1126 = vunpack.c.l.b16 %v398
          %v1127 = vunpack.c.l.b16 %v399
          %v1128 = vunpack.c.l.b16 %v400
          %v1129 = vunpack.c.l.b16 %v401
          %v1130 = vunpack.c.l.b16 %v402
          %v1131 = vunpack.c.l.b16 %v403
          %v1132 = vunpack.c.l.b16 %v404
          %v1133 = vunpack.c.l.b16 %v405
          %v1134 = vunpack.c.l.b16 %v406
          %v1135 = vunpack.c.l.b16 %v407
          %v1136 = vunpack.c.l.b16 %v408
          %v1137 = vunpack.c.l.b16 %v409
          %v1138 = vunpack.c.l.b16 %v410
          %v1139 = vunpack.c.l.b16 %v411
          %v1140 = vunpack.c.l.b16 %v412
          %v1141 = vunpack.c.l.b16 %v413
          %v1142 = vunpack.c.l.b16 %v414
          %v1143 = vpack.c.b16 %v1116, %v1115
          %v1144 = vpack.c.b16 %v1118, %v1117
          %v1145 = vpack.c.b16 %v1120, %v1119
          %v1146 = vpack.c.b16 %v1122, %v1121
          %v1147 = vpack.c.b16 %v1124, %v1123
          %v1148 = vpack.c.b16 %v1126, %v1125
          %v1149 = vpack.c.b16 %v1128, %v1127
          %v1150 = vpack.c.b16 %v1130, %v1129
          %v1151 = vpack.c.b16 %v1132, %v1131
          %v1152 = vpack.c.b16 %v1134, %v1133
          %v1153 = vpack.c.b16 %v1136, %v1135
          %v1154 = vpack.c.b16 %v1138, %v1137
          %v1155 = vpack.c.b16 %v1140, %v1139
          %v1156 = vpack.c.b16 %v1142, %v1141
          %1157 = vrot.lane.b32.xlu0 %v1143, 64
          %v1158 = vpop.permute.xlu0 %1157
          %1159 = vrot.lane.b32.xlu0 %v1144, 64
          %v1160 = vpop.permute.xlu0 %1159
          %1161 = vrot.lane.b32.xlu0 %v1145, 64
          %v1162 = vpop.permute.xlu0 %1161
          %1163 = vrot.lane.b32.xlu0 %v1146, 64
          %v1164 = vpop.permute.xlu0 %1163
          %1165 = vrot.lane.b32.xlu0 %v1147, 64
          %v1166 = vpop.permute.xlu0 %1165
          %1167 = vrot.lane.b32.xlu0 %v1148, 64
          %v1168 = vpop.permute.xlu0 %1167
          %1169 = vrot.lane.b32.xlu0 %v1149, 64
          %v1170 = vpop.permute.xlu0 %1169
          %1171 = vrot.lane.b32.xlu0 %v1150, 64
          %v1172 = vpop.permute.xlu0 %1171
          %1173 = vrot.lane.b32.xlu0 %v1151, 64
          %v1174 = vpop.permute.xlu0 %1173
          %1175 = vrot.lane.b32.xlu0 %v1152, 64
          %v1176 = vpop.permute.xlu0 %1175
          %1177 = vrot.lane.b32.xlu0 %v1153, 64
          %v1178 = vpop.permute.xlu0 %1177
          %1179 = vrot.lane.b32.xlu0 %v1154, 64
          %v1180 = vpop.permute.xlu0 %1179
          %1181 = vrot.lane.b32.xlu0 %v1155, 64
          %v1182 = vpop.permute.xlu0 %1181
          %1183 = vrot.lane.b32.xlu0 %v1156, 64
          %v1184 = vpop.permute.xlu0 %1183
          %v1199 = vunpack.c.l.b16 %v415
          %v1200 = vunpack.c.l.b16 %v416
          %v1201 = vunpack.c.l.b16 %v417
          %v1202 = vunpack.c.l.b16 %v418
          %v1203 = vunpack.c.l.b16 %v419
          %v1204 = vunpack.c.l.b16 %v420
          %v1205 = vunpack.c.l.b16 %v421
          %v1206 = vunpack.c.l.b16 %v422
          %v1207 = vunpack.c.l.b16 %v423
          %v1208 = vunpack.c.l.b16 %v424
          %v1209 = vunpack.c.l.b16 %v425
          %v1210 = vunpack.c.l.b16 %v426
          %v1211 = vunpack.c.l.b16 %v427
          %v1212 = vunpack.c.l.b16 %v428
          %v1213 = vpack.c.b16 %v1199, %v1115
          %v1214 = vpack.c.b16 %v1200, %v1117
          %v1215 = vpack.c.b16 %v1201, %v1119
          %v1216 = vpack.c.b16 %v1202, %v1121
          %v1217 = vpack.c.b16 %v1203, %v1123
          %v1218 = vpack.c.b16 %v1204, %v1125
          %v1219 = vpack.c.b16 %v1205, %v1127
          %v1220 = vpack.c.b16 %v1206, %v1129
          %v1221 = vpack.c.b16 %v1207, %v1131
          %v1222 = vpack.c.b16 %v1208, %v1133
          %v1223 = vpack.c.b16 %v1209, %v1135
          %v1224 = vpack.c.b16 %v1210, %v1137
          %v1225 = vpack.c.b16 %v1211, %v1139
          %v1226 = vpack.c.b16 %v1212, %v1141
          %v1228 = vshrl.u32 %v1213, 16
          %v1230 = vshll.u32 %v1213, 16
          %v1232 = vrot.slane %v1230, 1
          %v1233 = vor.u32 %v1228, %v1232
          %v1235 = vshrl.u32 %v1214, 16
          %v1237 = vshll.u32 %v1214, 16
          %v1239 = vrot.slane %v1237, 1
          %v1240 = vor.u32 %v1235, %v1239
          %v1242 = vshrl.u32 %v1215, 16
          %v1244 = vshll.u32 %v1215, 16
          %v1246 = vrot.slane %v1244, 1
          %v1247 = vor.u32 %v1242, %v1246
          %v1249 = vshrl.u32 %v1216, 16
          %v1251 = vshll.u32 %v1216, 16
          %v1253 = vrot.slane %v1251, 1
          %v1254 = vor.u32 %v1249, %v1253
          %v1256 = vshrl.u32 %v1217, 16
          %v1258 = vshll.u32 %v1217, 16
          %v1260 = vrot.slane %v1258, 1
          %v1261 = vor.u32 %v1256, %v1260
          %v1263 = vshrl.u32 %v1218, 16
          %v1265 = vshll.u32 %v1218, 16
          %v1267 = vrot.slane %v1265, 1
          %v1268 = vor.u32 %v1263, %v1267
          %v1270 = vshrl.u32 %v1219, 16
          %v1272 = vshll.u32 %v1219, 16
          %v1274 = vrot.slane %v1272, 1
          %v1275 = vor.u32 %v1270, %v1274
          %v1277 = vshrl.u32 %v1220, 16
          %v1279 = vshll.u32 %v1220, 16
          %v1281 = vrot.slane %v1279, 1
          %v1282 = vor.u32 %v1277, %v1281
          %v1284 = vshrl.u32 %v1221, 16
          %v1286 = vshll.u32 %v1221, 16
          %v1288 = vrot.slane %v1286, 1
          %v1289 = vor.u32 %v1284, %v1288
          %v1291 = vshrl.u32 %v1222, 16
          %v1293 = vshll.u32 %v1222, 16
          %v1295 = vrot.slane %v1293, 1
          %v1296 = vor.u32 %v1291, %v1295
          %v1298 = vshrl.u32 %v1223, 16
          %v1300 = vshll.u32 %v1223, 16
          %v1302 = vrot.slane %v1300, 1
          %v1303 = vor.u32 %v1298, %v1302
          %v1305 = vshrl.u32 %v1224, 16
          %v1307 = vshll.u32 %v1224, 16
          %v1309 = vrot.slane %v1307, 1
          %v1310 = vor.u32 %v1305, %v1309
          %v1312 = vshrl.u32 %v1225, 16
          %v1314 = vshll.u32 %v1225, 16
          %v1316 = vrot.slane %v1314, 1
          %v1317 = vor.u32 %v1312, %v1316
          %v1319 = vshrl.u32 %v1226, 16
          %v1321 = vshll.u32 %v1226, 16
          %v1323 = vrot.slane %v1321, 1
          %v1324 = vor.u32 %v1319, %v1323
          %1325 = vrot.lane.b32.xlu0 %v1233, 96
          %v1326 = vpop.permute.xlu0 %1325
          %1327 = vrot.lane.b32.xlu0 %v1240, 96
          %v1328 = vpop.permute.xlu0 %1327
          %1329 = vrot.lane.b32.xlu0 %v1247, 96
          %v1330 = vpop.permute.xlu0 %1329
          %1331 = vrot.lane.b32.xlu0 %v1254, 96
          %v1332 = vpop.permute.xlu0 %1331
          %1333 = vrot.lane.b32.xlu0 %v1261, 96
          %v1334 = vpop.permute.xlu0 %1333
          %1335 = vrot.lane.b32.xlu0 %v1268, 96
          %v1336 = vpop.permute.xlu0 %1335
          %1337 = vrot.lane.b32.xlu0 %v1275, 96
          %v1338 = vpop.permute.xlu0 %1337
          %1339 = vrot.lane.b32.xlu0 %v1282, 96
          %v1340 = vpop.permute.xlu0 %1339
          %1341 = vrot.lane.b32.xlu0 %v1289, 96
          %v1342 = vpop.permute.xlu0 %1341
          %1343 = vrot.lane.b32.xlu0 %v1296, 96
          %v1344 = vpop.permute.xlu0 %1343
          %1345 = vrot.lane.b32.xlu0 %v1303, 96
          %v1346 = vpop.permute.xlu0 %1345
          %1347 = vrot.lane.b32.xlu0 %v1310, 96
          %v1348 = vpop.permute.xlu0 %1347
          %1349 = vrot.lane.b32.xlu0 %v1317, 96
          %v1350 = vpop.permute.xlu0 %1349
          %1351 = vrot.lane.b32.xlu0 %v1324, 96
          %v1352 = vpop.permute.xlu0 %1351
          %v1367 = vunpack.c.l.b16 %v429
          %v1368 = vunpack.c.l.b16 %v430
          %v1369 = vunpack.c.l.b16 %v431
          %v1370 = vunpack.c.l.b16 %v432
          %v1371 = vunpack.c.l.b16 %v433
          %v1372 = vunpack.c.l.b16 %v434
          %v1373 = vunpack.c.l.b16 %v435
          %v1374 = vunpack.c.l.b16 %v436
          %v1375 = vunpack.c.l.b16 %v437
          %v1376 = vunpack.c.l.b16 %v438
          %v1377 = vunpack.c.l.b16 %v439
          %v1378 = vunpack.c.l.b16 %v440
          %v1379 = vunpack.c.l.b16 %v441
          %v1380 = vunpack.c.l.b16 %v442
          %v1381 = vpack.c.b16 %v1199, %v1367
          %v1382 = vpack.c.b16 %v1200, %v1368
          %v1383 = vpack.c.b16 %v1201, %v1369
          %v1384 = vpack.c.b16 %v1202, %v1370
          %v1385 = vpack.c.b16 %v1203, %v1371
          %v1386 = vpack.c.b16 %v1204, %v1372
          %v1387 = vpack.c.b16 %v1205, %v1373
          %v1388 = vpack.c.b16 %v1206, %v1374
          %v1389 = vpack.c.b16 %v1207, %v1375
          %v1390 = vpack.c.b16 %v1208, %v1376
          %v1391 = vpack.c.b16 %v1209, %v1377
          %v1392 = vpack.c.b16 %v1210, %v1378
          %v1393 = vpack.c.b16 %v1211, %v1379
          %v1394 = vpack.c.b16 %v1212, %v1380
          %v1395 = vrot.slane %v1381, 1
          %v1396 = vrot.slane %v1382, 1
          %v1397 = vrot.slane %v1383, 1
          %v1398 = vrot.slane %v1384, 1
          %v1399 = vrot.slane %v1385, 1
          %v1400 = vrot.slane %v1386, 1
          %v1401 = vrot.slane %v1387, 1
          %v1402 = vrot.slane %v1388, 1
          %v1403 = vrot.slane %v1389, 1
          %v1404 = vrot.slane %v1390, 1
          %v1405 = vrot.slane %v1391, 1
          %v1406 = vrot.slane %v1392, 1
          %v1407 = vrot.slane %v1393, 1
          %v1408 = vrot.slane %v1394, 1
          %vm1409 = vcmask 261120
          %v1412 = vsel %vm1409, %v499, %v654
          %v1415 = vsel %vm1409, %v500, %v656
          %v1418 = vsel %vm1409, %v501, %v658
          %v1421 = vsel %vm1409, %v502, %v660
          %v1424 = vsel %vm1409, %v503, %v662
          %v1427 = vsel %vm1409, %v504, %v664
          %v1430 = vsel %vm1409, %v505, %v666
          %v1433 = vsel %vm1409, %v506, %v668
          %v1436 = vsel %vm1409, %v507, %v670
          %v1439 = vsel %vm1409, %v508, %v672
          %v1442 = vsel %vm1409, %v509, %v674
          %v1445 = vsel %vm1409, %v510, %v676
          %v1448 = vsel %vm1409, %v511, %v678
          %v1451 = vsel %vm1409, %v512, %v680
          %vm1452 = vcmask 523264
          %v1454 = vsel %vm1452, %v1412, %v738
          %v1456 = vsel %vm1452, %v1415, %v740
          %v1458 = vsel %vm1452, %v1418, %v742
          %v1460 = vsel %vm1452, %v1421, %v744
          %v1462 = vsel %vm1452, %v1424, %v746
          %v1464 = vsel %vm1452, %v1427, %v748
          %v1466 = vsel %vm1452, %v1430, %v750
          %v1468 = vsel %vm1452, %v1433, %v752
          %v1470 = vsel %vm1452, %v1436, %v754
          %v1472 = vsel %vm1452, %v1439, %v756
          %v1474 = vsel %vm1452, %v1442, %v758
          %v1476 = vsel %vm1452, %v1445, %v760
          %v1478 = vsel %vm1452, %v1448, %v762
          %v1480 = vsel %vm1452, %v1451, %v764
          %vm1481 = vcmask 785408
          %v1483 = vsel %vm1481, %v1454, %v836
          %v1485 = vsel %vm1481, %v1456, %v838
          %v1487 = vsel %vm1481, %v1458, %v840
          %v1489 = vsel %vm1481, %v1460, %v842
          %v1491 = vsel %vm1481, %v1462, %v844
          %v1493 = vsel %vm1481, %v1464, %v846
          %v1495 = vsel %vm1481, %v1466, %v848
          %v1497 = vsel %vm1481, %v1468, %v850
          %v1499 = vsel %vm1481, %v1470, %v852
          %v1501 = vsel %vm1481, %v1472, %v854
          %v1503 = vsel %vm1481, %v1474, %v856
          %v1505 = vsel %vm1481, %v1476, %v858
          %v1507 = vsel %vm1481, %v1478, %v860
          %v1509 = vsel %vm1481, %v1480, %v862
          %v1512 = vsel %vm1409, %v911, %v1060
          %v1515 = vsel %vm1409, %v918, %v1062
          %v1518 = vsel %vm1409, %v925, %v1064
          %v1521 = vsel %vm1409, %v932, %v1066
          %v1524 = vsel %vm1409, %v939, %v1068
          %v1527 = vsel %vm1409, %v946, %v1070
          %v1530 = vsel %vm1409, %v953, %v1072
          %v1533 = vsel %vm1409, %v960, %v1074
          %v1536 = vsel %vm1409, %v967, %v1076
          %v1539 = vsel %vm1409, %v974, %v1078
          %v1542 = vsel %vm1409, %v981, %v1080
          %v1545 = vsel %vm1409, %v988, %v1082
          %v1548 = vsel %vm1409, %v995, %v1084
          %v1551 = vsel %vm1409, %v1002, %v1086
          %v1553 = vsel %vm1452, %v1512, %v1158
          %v1555 = vsel %vm1452, %v1515, %v1160
          %v1557 = vsel %vm1452, %v1518, %v1162
          %v1559 = vsel %vm1452, %v1521, %v1164
          %v1561 = vsel %vm1452, %v1524, %v1166
          %v1563 = vsel %vm1452, %v1527, %v1168
          %v1565 = vsel %vm1452, %v1530, %v1170
          %v1567 = vsel %vm1452, %v1533, %v1172
          %v1569 = vsel %vm1452, %v1536, %v1174
          %v1571 = vsel %vm1452, %v1539, %v1176
          %v1573 = vsel %vm1452, %v1542, %v1178
          %v1575 = vsel %vm1452, %v1545, %v1180
          %v1577 = vsel %vm1452, %v1548, %v1182
          %v1579 = vsel %vm1452, %v1551, %v1184
          %v1581 = vsel %vm1481, %v1553, %v1326
          %v1583 = vsel %vm1481, %v1555, %v1328
          %v1585 = vsel %vm1481, %v1557, %v1330
          %v1587 = vsel %vm1481, %v1559, %v1332
          %v1589 = vsel %vm1481, %v1561, %v1334
          %v1591 = vsel %vm1481, %v1563, %v1336
          %v1593 = vsel %vm1481, %v1565, %v1338
          %v1595 = vsel %vm1481, %v1567, %v1340
          %v1597 = vsel %vm1481, %v1569, %v1342
          %v1599 = vsel %vm1481, %v1571, %v1344
          %v1601 = vsel %vm1481, %v1573, %v1346
          %v1603 = vsel %vm1481, %v1575, %v1348
          %v1605 = vsel %vm1481, %v1577, %v1350
          %v1607 = vsel %vm1481, %v1579, %v1352
          %v1622 = vrot.slane %v1581, 7
          %v1623 = vrot.slane %v1395, 6
          %v1624 = vrot.slane %v1583, 7
          %v1625 = vrot.slane %v1396, 6
          %v1626 = vrot.slane %v1585, 7
          %v1627 = vrot.slane %v1397, 6
          %v1628 = vrot.slane %v1587, 7
          %v1629 = vrot.slane %v1398, 6
          %v1630 = vrot.slane %v1589, 7
          %v1631 = vrot.slane %v1399, 6
          %v1632 = vrot.slane %v1591, 7
          %v1633 = vrot.slane %v1400, 6
          %v1634 = vrot.slane %v1593, 7
          %v1635 = vrot.slane %v1401, 6
          %v1636 = vrot.slane %v1595, 7
          %v1637 = vrot.slane %v1402, 6
          %v1638 = vrot.slane %v1597, 7
          %v1639 = vrot.slane %v1403, 6
          %v1640 = vrot.slane %v1599, 7
          %v1641 = vrot.slane %v1404, 6
          %v1642 = vrot.slane %v1601, 7
          %v1643 = vrot.slane %v1405, 6
          %v1644 = vrot.slane %v1603, 7
          %v1645 = vrot.slane %v1406, 6
          %v1646 = vrot.slane %v1605, 7
          %v1647 = vrot.slane %v1407, 6
          %v1648 = vrot.slane %v1607, 7
          %v1649 = vrot.slane %v1408, 6
          %vm1650 = vcmask 1040384
          %v1652 = vsel %vm1650, %v1483, %v1622
          %vm1653 = vcmask 1041408
          %v1655 = vsel %vm1653, %v1652, %v1623
          %vm1656 = vcmask 1041409
          %v1657 = vsel %vm1656, %v1483, %v1622
          %vm1658 = vcmask 1042433
          %v1659 = vsel %vm1658, %v1657, %v1623
          %v1661 = vrot.slane %v1659, 1
          %vm1662 = vcmask 1042434
          %v1663 = vsel %vm1662, %v1483, %v1622
          %vm1664 = vcmask 1043458
          %v1665 = vsel %vm1664, %v1663, %v1623
          %v1667 = vrot.slane %v1665, 2
          %vm1668 = vcmask 1043459
          %v1669 = vsel %vm1668, %v1483, %v1622
          %vm1670 = vcmask 1044483
          %v1671 = vsel %vm1670, %v1669, %v1623
          %v1673 = vrot.slane %v1671, 3
          %vm1674 = vcmask 1044484
          %v1675 = vsel %vm1674, %v1483, %v1622
          %vm1676 = vcmask 1045508
          %v1677 = vsel %vm1676, %v1675, %v1623
          %v1679 = vrot.slane %v1677, 4
          %vm1680 = vcmask 1045509
          %v1681 = vsel %vm1680, %v1483, %v1622
          %vm1682 = vcmask 1046533
          %v1683 = vsel %vm1682, %v1681, %v1623
          %v1685 = vrot.slane %v1683, 5
          %vm1686 = vcmask 1046534
          %v1687 = vsel %vm1686, %v1483, %v1622
          %vm1688 = vcmask 1045504
          %v1689 = vsel %vm1688, %v1623, %v1687
          %v1691 = vrot.slane %v1689, 6
          %v1693 = vsel %vm1650, %v1485, %v1624
          %v1695 = vsel %vm1653, %v1693, %v1625
          %v1696 = vsel %vm1656, %v1485, %v1624
          %v1697 = vsel %vm1658, %v1696, %v1625
          %v1699 = vrot.slane %v1697, 1
          %v1700 = vsel %vm1662, %v1485, %v1624
          %v1701 = vsel %vm1664, %v1700, %v1625
          %v1703 = vrot.slane %v1701, 2
          %v1704 = vsel %vm1668, %v1485, %v1624
          %v1705 = vsel %vm1670, %v1704, %v1625
          %v1707 = vrot.slane %v1705, 3
          %v1708 = vsel %vm1674, %v1485, %v1624
          %v1709 = vsel %vm1676, %v1708, %v1625
          %v1711 = vrot.slane %v1709, 4
          %v1712 = vsel %vm1680, %v1485, %v1624
          %v1713 = vsel %vm1682, %v1712, %v1625
          %v1715 = vrot.slane %v1713, 5
          %v1716 = vsel %vm1686, %v1485, %v1624
          %v1717 = vsel %vm1688, %v1625, %v1716
          %v1719 = vrot.slane %v1717, 6
          %v1721 = vsel %vm1650, %v1487, %v1626
          %v1723 = vsel %vm1653, %v1721, %v1627
          %v1724 = vsel %vm1656, %v1487, %v1626
          %v1725 = vsel %vm1658, %v1724, %v1627
          %v1727 = vrot.slane %v1725, 1
          %v1728 = vsel %vm1662, %v1487, %v1626
          %v1729 = vsel %vm1664, %v1728, %v1627
          %v1731 = vrot.slane %v1729, 2
          %v1732 = vsel %vm1668, %v1487, %v1626
          %v1733 = vsel %vm1670, %v1732, %v1627
          %v1735 = vrot.slane %v1733, 3
          %v1736 = vsel %vm1674, %v1487, %v1626
          %v1737 = vsel %vm1676, %v1736, %v1627
          %v1739 = vrot.slane %v1737, 4
          %v1740 = vsel %vm1680, %v1487, %v1626
          %v1741 = vsel %vm1682, %v1740, %v1627
          %v1743 = vrot.slane %v1741, 5
          %v1744 = vsel %vm1686, %v1487, %v1626
          %v1745 = vsel %vm1688, %v1627, %v1744
          %v1747 = vrot.slane %v1745, 6
          %v1749 = vsel %vm1650, %v1489, %v1628
          %v1751 = vsel %vm1653, %v1749, %v1629
          %v1752 = vsel %vm1656, %v1489, %v1628
          %v1753 = vsel %vm1658, %v1752, %v1629
          %v1755 = vrot.slane %v1753, 1
          %v1756 = vsel %vm1662, %v1489, %v1628
          %v1757 = vsel %vm1664, %v1756, %v1629
          %v1759 = vrot.slane %v1757, 2
          %v1760 = vsel %vm1668, %v1489, %v1628
          %v1761 = vsel %vm1670, %v1760, %v1629
          %v1763 = vrot.slane %v1761, 3
          %v1764 = vsel %vm1674, %v1489, %v1628
          %v1765 = vsel %vm1676, %v1764, %v1629
          %v1767 = vrot.slane %v1765, 4
          %v1768 = vsel %vm1680, %v1489, %v1628
          %v1769 = vsel %vm1682, %v1768, %v1629
          %v1771 = vrot.slane %v1769, 5
          %v1772 = vsel %vm1686, %v1489, %v1628
          %v1773 = vsel %vm1688, %v1629, %v1772
          %v1775 = vrot.slane %v1773, 6
          %v1777 = vsel %vm1650, %v1491, %v1630
          %v1779 = vsel %vm1653, %v1777, %v1631
          %v1780 = vsel %vm1656, %v1491, %v1630
          %v1781 = vsel %vm1658, %v1780, %v1631
          %v1783 = vrot.slane %v1781, 1
          %v1784 = vsel %vm1662, %v1491, %v1630
          %v1785 = vsel %vm1664, %v1784, %v1631
          %v1787 = vrot.slane %v1785, 2
          %v1788 = vsel %vm1668, %v1491, %v1630
          %v1789 = vsel %vm1670, %v1788, %v1631
          %v1791 = vrot.slane %v1789, 3
          %v1792 = vsel %vm1674, %v1491, %v1630
          %v1793 = vsel %vm1676, %v1792, %v1631
          %v1795 = vrot.slane %v1793, 4
          %v1796 = vsel %vm1680, %v1491, %v1630
          %v1797 = vsel %vm1682, %v1796, %v1631
          %v1799 = vrot.slane %v1797, 5
          %v1800 = vsel %vm1686, %v1491, %v1630
          %v1801 = vsel %vm1688, %v1631, %v1800
          %v1803 = vrot.slane %v1801, 6
          %v1805 = vsel %vm1650, %v1493, %v1632
          %v1807 = vsel %vm1653, %v1805, %v1633
          %v1808 = vsel %vm1656, %v1493, %v1632
          %v1809 = vsel %vm1658, %v1808, %v1633
          %v1811 = vrot.slane %v1809, 1
          %v1812 = vsel %vm1662, %v1493, %v1632
          %v1813 = vsel %vm1664, %v1812, %v1633
          %v1815 = vrot.slane %v1813, 2
          %v1816 = vsel %vm1668, %v1493, %v1632
          %v1817 = vsel %vm1670, %v1816, %v1633
          %v1819 = vrot.slane %v1817, 3
          %v1820 = vsel %vm1674, %v1493, %v1632
          %v1821 = vsel %vm1676, %v1820, %v1633
          %v1823 = vrot.slane %v1821, 4
          %v1824 = vsel %vm1680, %v1493, %v1632
          %v1825 = vsel %vm1682, %v1824, %v1633
          %v1827 = vrot.slane %v1825, 5
          %v1828 = vsel %vm1686, %v1493, %v1632
          %v1829 = vsel %vm1688, %v1633, %v1828
          %v1831 = vrot.slane %v1829, 6
          %v1833 = vsel %vm1650, %v1495, %v1634
          %v1835 = vsel %vm1653, %v1833, %v1635
          %v1836 = vsel %vm1656, %v1495, %v1634
          %v1837 = vsel %vm1658, %v1836, %v1635
          %v1839 = vrot.slane %v1837, 1
          %v1840 = vsel %vm1662, %v1495, %v1634
          %v1841 = vsel %vm1664, %v1840, %v1635
          %v1843 = vrot.slane %v1841, 2
          %v1844 = vsel %vm1668, %v1495, %v1634
          %v1845 = vsel %vm1670, %v1844, %v1635
          %v1847 = vrot.slane %v1845, 3
          %v1848 = vsel %vm1674, %v1495, %v1634
          %v1849 = vsel %vm1676, %v1848, %v1635
          %v1851 = vrot.slane %v1849, 4
          %v1852 = vsel %vm1680, %v1495, %v1634
          %v1853 = vsel %vm1682, %v1852, %v1635
          %v1855 = vrot.slane %v1853, 5
          %v1856 = vsel %vm1686, %v1495, %v1634
          %v1857 = vsel %vm1688, %v1635, %v1856
          %v1859 = vrot.slane %v1857, 6
          %v1861 = vsel %vm1650, %v1497, %v1636
          %v1863 = vsel %vm1653, %v1861, %v1637
          %v1864 = vsel %vm1656, %v1497, %v1636
          %v1865 = vsel %vm1658, %v1864, %v1637
          %v1867 = vrot.slane %v1865, 1
          %v1868 = vsel %vm1662, %v1497, %v1636
          %v1869 = vsel %vm1664, %v1868, %v1637
          %v1871 = vrot.slane %v1869, 2
          %v1872 = vsel %vm1668, %v1497, %v1636
          %v1873 = vsel %vm1670, %v1872, %v1637
          %v1875 = vrot.slane %v1873, 3
          %v1876 = vsel %vm1674, %v1497, %v1636
          %v1877 = vsel %vm1676, %v1876, %v1637
          %v1879 = vrot.slane %v1877, 4
          %v1880 = vsel %vm1680, %v1497, %v1636
          %v1881 = vsel %vm1682, %v1880, %v1637
          %v1883 = vrot.slane %v1881, 5
          %v1884 = vsel %vm1686, %v1497, %v1636
          %v1885 = vsel %vm1688, %v1637, %v1884
          %v1887 = vrot.slane %v1885, 6
          %v1889 = vsel %vm1650, %v1499, %v1638
          %v1891 = vsel %vm1653, %v1889, %v1639
          %v1892 = vsel %vm1656, %v1499, %v1638
          %v1893 = vsel %vm1658, %v1892, %v1639
          %v1895 = vrot.slane %v1893, 1
          %v1896 = vsel %vm1662, %v1499, %v1638
          %v1897 = vsel %vm1664, %v1896, %v1639
          %v1899 = vrot.slane %v1897, 2
          %v1900 = vsel %vm1668, %v1499, %v1638
          %v1901 = vsel %vm1670, %v1900, %v1639
          %v1903 = vrot.slane %v1901, 3
          %v1904 = vsel %vm1674, %v1499, %v1638
          %v1905 = vsel %vm1676, %v1904, %v1639
          %v1907 = vrot.slane %v1905, 4
          %v1908 = vsel %vm1680, %v1499, %v1638
          %v1909 = vsel %vm1682, %v1908, %v1639
          %v1911 = vrot.slane %v1909, 5
          %v1912 = vsel %vm1686, %v1499, %v1638
          %v1913 = vsel %vm1688, %v1639, %v1912
          %v1915 = vrot.slane %v1913, 6
          %v1917 = vsel %vm1650, %v1501, %v1640
          %v1919 = vsel %vm1653, %v1917, %v1641
          %v1920 = vsel %vm1656, %v1501, %v1640
          %v1921 = vsel %vm1658, %v1920, %v1641
          %v1923 = vrot.slane %v1921, 1
          %v1924 = vsel %vm1662, %v1501, %v1640
          %v1925 = vsel %vm1664, %v1924, %v1641
          %v1927 = vrot.slane %v1925, 2
          %v1928 = vsel %vm1668, %v1501, %v1640
          %v1929 = vsel %vm1670, %v1928, %v1641
          %v1931 = vrot.slane %v1929, 3
          %v1932 = vsel %vm1674, %v1501, %v1640
          %v1933 = vsel %vm1676, %v1932, %v1641
          %v1935 = vrot.slane %v1933, 4
          %v1936 = vsel %vm1680, %v1501, %v1640
          %v1937 = vsel %vm1682, %v1936, %v1641
          %v1939 = vrot.slane %v1937, 5
          %v1940 = vsel %vm1686, %v1501, %v1640
          %v1941 = vsel %vm1688, %v1641, %v1940
          %v1943 = vrot.slane %v1941, 6
          %v1945 = vsel %vm1650, %v1503, %v1642
          %v1947 = vsel %vm1653, %v1945, %v1643
          %v1948 = vsel %vm1656, %v1503, %v1642
          %v1949 = vsel %vm1658, %v1948, %v1643
          %v1951 = vrot.slane %v1949, 1
          %v1952 = vsel %vm1662, %v1503, %v1642
          %v1953 = vsel %vm1664, %v1952, %v1643
          %v1955 = vrot.slane %v1953, 2
          %v1956 = vsel %vm1668, %v1503, %v1642
          %v1957 = vsel %vm1670, %v1956, %v1643
          %v1959 = vrot.slane %v1957, 3
          %v1960 = vsel %vm1674, %v1503, %v1642
          %v1961 = vsel %vm1676, %v1960, %v1643
          %v1963 = vrot.slane %v1961, 4
          %v1964 = vsel %vm1680, %v1503, %v1642
          %v1965 = vsel %vm1682, %v1964, %v1643
          %v1967 = vrot.slane %v1965, 5
          %v1968 = vsel %vm1686, %v1503, %v1642
          %v1969 = vsel %vm1688, %v1643, %v1968
          %v1971 = vrot.slane %v1969, 6
          %v1973 = vsel %vm1650, %v1505, %v1644
          %v1975 = vsel %vm1653, %v1973, %v1645
          %v1976 = vsel %vm1656, %v1505, %v1644
          %v1977 = vsel %vm1658, %v1976, %v1645
          %v1979 = vrot.slane %v1977, 1
          %v1980 = vsel %vm1662, %v1505, %v1644
          %v1981 = vsel %vm1664, %v1980, %v1645
          %v1983 = vrot.slane %v1981, 2
          %v1984 = vsel %vm1668, %v1505, %v1644
          %v1985 = vsel %vm1670, %v1984, %v1645
          %v1987 = vrot.slane %v1985, 3
          %v1988 = vsel %vm1674, %v1505, %v1644
          %v1989 = vsel %vm1676, %v1988, %v1645
          %v1991 = vrot.slane %v1989, 4
          %v1992 = vsel %vm1680, %v1505, %v1644
          %v1993 = vsel %vm1682, %v1992, %v1645
          %v1995 = vrot.slane %v1993, 5
          %v1996 = vsel %vm1686, %v1505, %v1644
          %v1997 = vsel %vm1688, %v1645, %v1996
          %v1999 = vrot.slane %v1997, 6
          %v2001 = vsel %vm1650, %v1507, %v1646
          %v2003 = vsel %vm1653, %v2001, %v1647
          %v2004 = vsel %vm1656, %v1507, %v1646
          %v2005 = vsel %vm1658, %v2004, %v1647
          %v2007 = vrot.slane %v2005, 1
          %v2008 = vsel %vm1662, %v1507, %v1646
          %v2009 = vsel %vm1664, %v2008, %v1647
          %v2011 = vrot.slane %v2009, 2
          %v2012 = vsel %vm1668, %v1507, %v1646
          %v2013 = vsel %vm1670, %v2012, %v1647
          %v2015 = vrot.slane %v2013, 3
          %v2016 = vsel %vm1674, %v1507, %v1646
          %v2017 = vsel %vm1676, %v2016, %v1647
          %v2019 = vrot.slane %v2017, 4
          %v2020 = vsel %vm1680, %v1507, %v1646
          %v2021 = vsel %vm1682, %v2020, %v1647
          %v2023 = vrot.slane %v2021, 5
          %v2024 = vsel %vm1686, %v1507, %v1646
          %v2025 = vsel %vm1688, %v1647, %v2024
          %v2027 = vrot.slane %v2025, 6
          %v2029 = vsel %vm1650, %v1509, %v1648
          %v2031 = vsel %vm1653, %v2029, %v1649
          %v2032 = vsel %vm1656, %v1509, %v1648
          %v2033 = vsel %vm1658, %v2032, %v1649
          %v2035 = vrot.slane %v2033, 1
          %v2036 = vsel %vm1662, %v1509, %v1648
          %v2037 = vsel %vm1664, %v2036, %v1649
          %v2039 = vrot.slane %v2037, 2
          %v2040 = vsel %vm1668, %v1509, %v1648
          %v2041 = vsel %vm1670, %v2040, %v1649
          %v2043 = vrot.slane %v2041, 3
          %v2044 = vsel %vm1674, %v1509, %v1648
          %v2045 = vsel %vm1676, %v2044, %v1649
          %v2047 = vrot.slane %v2045, 4
          %v2048 = vsel %vm1680, %v1509, %v1648
          %v2049 = vsel %vm1682, %v2048, %v1649
          %v2051 = vrot.slane %v2049, 5
          %v2052 = vsel %vm1686, %v1509, %v1648
          %v2053 = vsel %vm1688, %v1649, %v2052
          %v2055 = vrot.slane %v2053, 6
          %2056 = vst [vmem:[#allocation1] ss:$9 sm:$0xff] %v1655
          %s2058 = scalar_lea.vmem [#allocation1], 1
          %2059 = vst [vmem:[%s2058] ss:$9 sm:$0xff] %v1661
          %s2061 = scalar_lea.vmem [#allocation1], 2
          %2062 = vst [vmem:[%s2061] ss:$9 sm:$0xff] %v1667
          %s2064 = scalar_lea.vmem [#allocation1], 3
          %2065 = vst [vmem:[%s2064] ss:$9 sm:$0xff] %v1673
          %s2067 = scalar_lea.vmem [#allocation1], 4
          %2068 = vst [vmem:[%s2067] ss:$9 sm:$0xff] %v1679
          %s2070 = scalar_lea.vmem [#allocation1], 5
          %2071 = vst [vmem:[%s2070] ss:$9 sm:$0xff] %v1685
          %s2073 = scalar_lea.vmem [#allocation1], 6
          %2074 = vst [vmem:[%s2073] ss:$9 sm:$0xff] %v1691
          %s2075 = scalar_lea.vmem [#allocation1], 7
          %2076 = vst [vmem:[%s2075] ss:$9 sm:$0xff] %v1695
          %v2077 = vld [vmem:[#allocation1] sm:$0xff]
          %v2078 = vld [vmem:[#allocation1 + $0x9] sm:$0xff]
          %v2079 = vld [vmem:[#allocation1 + $0x12] sm:$0xff]
          %2081 = vst [vmem:[#allocation1] ss:$9 sm:$0xff] %v1699
          %2083 = vst [vmem:[%s2058] ss:$9 sm:$0xff] %v1703
          %2085 = vst [vmem:[%s2061] ss:$9 sm:$0xff] %v1707
          %2087 = vst [vmem:[%s2064] ss:$9 sm:$0xff] %v1711
          %2089 = vst [vmem:[%s2067] ss:$9 sm:$0xff] %v1715
          %2091 = vst [vmem:[%s2070] ss:$9 sm:$0xff] %v1719
          %2092 = vst [vmem:[%s2073] ss:$9 sm:$0xff] %v1723
          %2094 = vst [vmem:[%s2075] ss:$9 sm:$0xff] %v1727
          %v2095 = vld [vmem:[#allocation1] sm:$0xff]
          %v2096 = vld [vmem:[#allocation1 + $0x9] sm:$0xff]
          %v2097 = vld [vmem:[#allocation1 + $0x12] sm:$0xff]
          %2099 = vst [vmem:[#allocation1] ss:$9 sm:$0xff] %v1731
          %2101 = vst [vmem:[%s2058] ss:$9 sm:$0xff] %v1735
          %2103 = vst [vmem:[%s2061] ss:$9 sm:$0xff] %v1739
          %2105 = vst [vmem:[%s2064] ss:$9 sm:$0xff] %v1743
          %2107 = vst [vmem:[%s2067] ss:$9 sm:$0xff] %v1747
          %2108 = vst [vmem:[%s2070] ss:$9 sm:$0xff] %v1751
          %2110 = vst [vmem:[%s2073] ss:$9 sm:$0xff] %v1755
          %2112 = vst [vmem:[%s2075] ss:$9 sm:$0xff] %v1759
          %v2113 = vld [vmem:[#allocation1] sm:$0xff]
          %v2114 = vld [vmem:[#allocation1 + $0x9] sm:$0xff]
          %v2115 = vld [vmem:[#allocation1 + $0x12] sm:$0xff]
          %2117 = vst [vmem:[#allocation1] ss:$9 sm:$0xff] %v1763
          %2119 = vst [vmem:[%s2058] ss:$9 sm:$0xff] %v1767
          %2121 = vst [vmem:[%s2061] ss:$9 sm:$0xff] %v1771
          %2123 = vst [vmem:[%s2064] ss:$9 sm:$0xff] %v1775
          %2124 = vst [vmem:[%s2067] ss:$9 sm:$0xff] %v1779
          %2126 = vst [vmem:[%s2070] ss:$9 sm:$0xff] %v1783
          %2128 = vst [vmem:[%s2073] ss:$9 sm:$0xff] %v1787
          %2130 = vst [vmem:[%s2075] ss:$9 sm:$0xff] %v1791
          %v2131 = vld [vmem:[#allocation1] sm:$0xff]
          %v2132 = vld [vmem:[#allocation1 + $0x9] sm:$0xff]
          %v2133 = vld [vmem:[#allocation1 + $0x12] sm:$0xff]
          %2135 = vst [vmem:[#allocation1] ss:$9 sm:$0xff] %v1795
          %2137 = vst [vmem:[%s2058] ss:$9 sm:$0xff] %v1799
          %2139 = vst [vmem:[%s2061] ss:$9 sm:$0xff] %v1803
          %2140 = vst [vmem:[%s2064] ss:$9 sm:$0xff] %v1807
          %2142 = vst [vmem:[%s2067] ss:$9 sm:$0xff] %v1811
          %2144 = vst [vmem:[%s2070] ss:$9 sm:$0xff] %v1815
          %2146 = vst [vmem:[%s2073] ss:$9 sm:$0xff] %v1819
          %2148 = vst [vmem:[%s2075] ss:$9 sm:$0xff] %v1823
          %v2149 = vld [vmem:[#allocation1] sm:$0xff]
          %v2150 = vld [vmem:[#allocation1 + $0x9] sm:$0xff]
          %v2151 = vld [vmem:[#allocation1 + $0x12] sm:$0xff]
          %2153 = vst [vmem:[#allocation1] ss:$9 sm:$0xff] %v1827
          %2155 = vst [vmem:[%s2058] ss:$9 sm:$0xff] %v1831
          %2156 = vst [vmem:[%s2061] ss:$9 sm:$0xff] %v1835
          %2158 = vst [vmem:[%s2064] ss:$9 sm:$0xff] %v1839
          %2160 = vst [vmem:[%s2067] ss:$9 sm:$0xff] %v1843
          %2162 = vst [vmem:[%s2070] ss:$9 sm:$0xff] %v1847
          %2164 = vst [vmem:[%s2073] ss:$9 sm:$0xff] %v1851
          %2166 = vst [vmem:[%s2075] ss:$9 sm:$0xff] %v1855
          %v2167 = vld [vmem:[#allocation1] sm:$0xff]
          %v2168 = vld [vmem:[#allocation1 + $0x9] sm:$0xff]
          %v2169 = vld [vmem:[#allocation1 + $0x12] sm:$0xff]
          %2171 = vst [vmem:[#allocation1] ss:$9 sm:$0xff] %v1859
          %2172 = vst [vmem:[%s2058] ss:$9 sm:$0xff] %v1863
          %2174 = vst [vmem:[%s2061] ss:$9 sm:$0xff] %v1867
          %2176 = vst [vmem:[%s2064] ss:$9 sm:$0xff] %v1871
          %2178 = vst [vmem:[%s2067] ss:$9 sm:$0xff] %v1875
          %2180 = vst [vmem:[%s2070] ss:$9 sm:$0xff] %v1879
          %2182 = vst [vmem:[%s2073] ss:$9 sm:$0xff] %v1883
          %2184 = vst [vmem:[%s2075] ss:$9 sm:$0xff] %v1887
          %v2185 = vld [vmem:[#allocation1] sm:$0xff]
          %v2186 = vld [vmem:[#allocation1 + $0x9] sm:$0xff]
          %v2187 = vld [vmem:[#allocation1 + $0x12] sm:$0xff]
          %2188 = vst [vmem:[#allocation1] ss:$9 sm:$0xff] %v1891
          %2190 = vst [vmem:[%s2058] ss:$9 sm:$0xff] %v1895
          %2192 = vst [vmem:[%s2061] ss:$9 sm:$0xff] %v1899
          %2194 = vst [vmem:[%s2064] ss:$9 sm:$0xff] %v1903
          %2196 = vst [vmem:[%s2067] ss:$9 sm:$0xff] %v1907
          %2198 = vst [vmem:[%s2070] ss:$9 sm:$0xff] %v1911
          %2200 = vst [vmem:[%s2073] ss:$9 sm:$0xff] %v1915
          %2201 = vst [vmem:[%s2075] ss:$9 sm:$0xff] %v1919
          %v2202 = vld [vmem:[#allocation1] sm:$0xff]
          %v2203 = vld [vmem:[#allocation1 + $0x9] sm:$0xff]
          %v2204 = vld [vmem:[#allocation1 + $0x12] sm:$0xff]
          %2206 = vst [vmem:[#allocation1] ss:$9 sm:$0xff] %v1923
          %2208 = vst [vmem:[%s2058] ss:$9 sm:$0xff] %v1927
          %2210 = vst [vmem:[%s2061] ss:$9 sm:$0xff] %v1931
          %2212 = vst [vmem:[%s2064] ss:$9 sm:$0xff] %v1935
          %2214 = vst [vmem:[%s2067] ss:$9 sm:$0xff] %v1939
          %2216 = vst [vmem:[%s2070] ss:$9 sm:$0xff] %v1943
          %2217 = vst [vmem:[%s2073] ss:$9 sm:$0xff] %v1947
          %2219 = vst [vmem:[%s2075] ss:$9 sm:$0xff] %v1951
          %v2220 = vld [vmem:[#allocation1] sm:$0xff]
          %v2221 = vld [vmem:[#allocation1 + $0x9] sm:$0xff]
          %v2222 = vld [vmem:[#allocation1 + $0x12] sm:$0xff]
          %2224 = vst [vmem:[#allocation1] ss:$9 sm:$0xff] %v1955
          %2226 = vst [vmem:[%s2058] ss:$9 sm:$0xff] %v1959
          %2228 = vst [vmem:[%s2061] ss:$9 sm:$0xff] %v1963
          %2230 = vst [vmem:[%s2064] ss:$9 sm:$0xff] %v1967
          %2232 = vst [vmem:[%s2067] ss:$9 sm:$0xff] %v1971
          %2233 = vst [vmem:[%s2070] ss:$9 sm:$0xff] %v1975
          %2235 = vst [vmem:[%s2073] ss:$9 sm:$0xff] %v1979
          %2237 = vst [vmem:[%s2075] ss:$9 sm:$0xff] %v1983
          %v2238 = vld [vmem:[#allocation1] sm:$0xff]
          %v2239 = vld [vmem:[#allocation1 + $0x9] sm:$0xff]
          %v2240 = vld [vmem:[#allocation1 + $0x12] sm:$0xff]
          %2242 = vst [vmem:[#allocation1] ss:$9 sm:$0xff] %v1987
          %2244 = vst [vmem:[%s2058] ss:$9 sm:$0xff] %v1991
          %2246 = vst [vmem:[%s2061] ss:$9 sm:$0xff] %v1995
          %2248 = vst [vmem:[%s2064] ss:$9 sm:$0xff] %v1999
          %2249 = vst [vmem:[%s2067] ss:$9 sm:$0xff] %v2003
          %2251 = vst [vmem:[%s2070] ss:$9 sm:$0xff] %v2007
          %2253 = vst [vmem:[%s2073] ss:$9 sm:$0xff] %v2011
          %2255 = vst [vmem:[%s2075] ss:$9 sm:$0xff] %v2015
          %v2256 = vld [vmem:[#allocation1] sm:$0xff]
          %v2257 = vld [vmem:[#allocation1 + $0x9] sm:$0xff]
          %v2258 = vld [vmem:[#allocation1 + $0x12] sm:$0xff]
          %2260 = vst [vmem:[#allocation1] ss:$9 sm:$0xff] %v2019
          %2262 = vst [vmem:[%s2058] ss:$9 sm:$0xff] %v2023
          %2264 = vst [vmem:[%s2061] ss:$9 sm:$0xff] %v2027
          %2265 = vst [vmem:[%s2064] ss:$9 sm:$0xff] %v2031
          %2267 = vst [vmem:[%s2067] ss:$9 sm:$0xff] %v2035
          %2269 = vst [vmem:[%s2070] ss:$9 sm:$0xff] %v2039
          %2271 = vst [vmem:[%s2073] ss:$9 sm:$0xff] %v2043
          %2273 = vst [vmem:[%s2075] ss:$9 sm:$0xff] %v2047
          %v2274 = vld [vmem:[#allocation1] sm:$0xff]
          %v2275 = vld [vmem:[#allocation1 + $0x9] sm:$0xff]
          %v2276 = vld [vmem:[#allocation1 + $0x12] sm:$0xff]
          %2278 = vst [vmem:[#allocation1] ss:$9 sm:$0xff] %v2051
          %2280 = vst [vmem:[%s2058] ss:$9 sm:$0xff] %v2055
          %v2281 = vld [vmem:[#allocation1] sm:$0xff]
          %v2282 = vld [vmem:[#allocation1 + $0x9] sm:$0xff]
          %v2283 = vld [vmem:[#allocation1 + $0x12] sm:$0xff]
          %v2346 = vunpack.c.l.b16 %v224
          %v2347 = vunpack.c.l.b16 %v225
          %v2348 = vunpack.c.l.b16 %v226
          %v2349 = vunpack.c.l.b16 %v227
          %v2350 = vunpack.c.l.b16 %v228
          %v2351 = vunpack.c.l.b16 %v229
          %v2352 = vunpack.c.l.b16 %v230
          %v2353 = vunpack.c.l.b16 %v231
          %v2354 = vunpack.c.l.b16 %v232
          %v2355 = vunpack.c.l.b16 %v233
          %v2356 = vunpack.c.l.b16 %v234
          %v2357 = vunpack.c.l.b16 %v235
          %v2358 = vunpack.c.l.b16 %v236
          %v2359 = vunpack.c.l.b16 %v237
          %v2360 = vunpack.c.l.b16 %v238
          %v2361 = vunpack.c.l.b16 %v239
          %v2362 = vunpack.c.l.b16 %v240
          %v2363 = vunpack.c.l.b16 %v241
          %v2364 = vunpack.c.l.b16 %v242
          %v2365 = vunpack.c.l.b16 %v243
          %v2366 = vunpack.c.l.b16 %v244
          %v2367 = vunpack.c.l.b16 %v245
          %v2368 = vunpack.c.l.b16 %v246
          %v2369 = vunpack.c.l.b16 %v247
          %v2370 = vunpack.c.l.b16 %v248
          %v2371 = vunpack.c.l.b16 %v249
          %v2372 = vunpack.c.l.b16 %v250
          %v2373 = vunpack.c.l.b16 %v251
          %v2374 = vunpack.c.l.b16 %v252
          %v2375 = vunpack.c.l.b16 %v253
          %v2376 = vunpack.c.l.b16 %v254
          %v2377 = vunpack.c.l.b16 %v255
          %v2378 = vunpack.c.l.b16 %v256
          %v2379 = vunpack.c.l.b16 %v257
          %v2380 = vunpack.c.l.b16 %v258
          %v2381 = vunpack.c.l.b16 %v259
          %v2382 = vpack.c.b16 %v2347, %v2346
          %v2383 = vpack.c.b16 %v2349, %v2348
          %v2384 = vpack.c.b16 %v2351, %v2350
          %v2385 = vpack.c.b16 %v2353, %v2352
          %v2386 = vpack.c.b16 %v2355, %v2354
          %v2387 = vpack.c.b16 %v2357, %v2356
          %v2388 = vpack.c.b16 %v2359, %v2358
          %v2389 = vpack.c.b16 %v2361, %v2360
          %v2390 = vpack.c.b16 %v2363, %v2362
          %v2391 = vpack.c.b16 %v2365, %v2364
          %v2392 = vpack.c.b16 %v2367, %v2366
          %v2393 = vpack.c.b16 %v2369, %v2368
          %v2394 = vpack.c.b16 %v2371, %v2370
          %v2395 = vpack.c.b16 %v2373, %v2372
          %v2396 = vpack.c.b16 %v2375, %v2374
          %v2397 = vpack.c.b16 %v2377, %v2376
          %v2398 = vpack.c.b16 %v2379, %v2378
          %v2399 = vpack.c.b16 %v2381, %v2380
          %v2418 = vsel %vm1409, %v2079, 0
          %v2420 = vsel %vm1409, %v2097, 0
          %v2422 = vsel %vm1409, %v2115, 0
          %v2424 = vsel %vm1409, %v2133, 0
          %v2426 = vsel %vm1409, %v2151, 0
          %v2428 = vsel %vm1409, %v2169, 0
          %v2430 = vsel %vm1409, %v2187, 0
          %v2432 = vsel %vm1409, %v2204, 0
          %v2434 = vsel %vm1409, %v2222, 0
          %v2436 = vsel %vm1409, %v2240, 0
          %v2438 = vsel %vm1409, %v2258, 0
          %v2440 = vsel %vm1409, %v2276, 0
          %v2442 = vsel %vm1409, %v2283, 0
          %2444 = vmatpush.bf16.msra.mxu0 %v2389
          %2445 = vmatpush.bf16.msra.mxu0 %v2388
          %2446 = vmatpush.bf16.msra.mxu0 %v2387
          %2447 = vmatpush.bf16.msra.mxu0 %v2386
          %2448 = vmatpush.bf16.msra.mxu0 %v2385
          %2449 = vmatpush.bf16.msra.mxu0 %v2384
          %2450 = vmatpush.bf16.msra.mxu0 %v2383
          %2451 = vmatpush.bf16.msra.mxu0 %v2382
          %2452 = vmatmul.bf16.gmra.mxu0 %v2077
          %v2453 = vpop.f32.mrf.mxu0
          %v2454 = vadd.f32 0.0, %v2453
          %v2455 = vpop.f32.mrf.mxu0
          %v2456 = vadd.f32 0.0, %v2455
          %2457 = vmatmul.bf16.gmra.mxu0 %v2095
          %v2458 = vpop.f32.mrf.mxu0
          %v2459 = vadd.f32 0.0, %v2458
          %v2460 = vpop.f32.mrf.mxu0
          %v2461 = vadd.f32 0.0, %v2460
          %2462 = vmatmul.bf16.gmra.mxu0 %v2113
          %v2463 = vpop.f32.mrf.mxu0
          %v2464 = vadd.f32 0.0, %v2463
          %v2465 = vpop.f32.mrf.mxu0
          %v2466 = vadd.f32 0.0, %v2465
          %2467 = vmatmul.bf16.gmra.mxu0 %v2131
          %v2468 = vpop.f32.mrf.mxu0
          %v2469 = vadd.f32 0.0, %v2468
          %v2470 = vpop.f32.mrf.mxu0
          %v2471 = vadd.f32 0.0, %v2470
          %2472 = vmatmul.bf16.gmra.mxu0 %v2149
          %v2473 = vpop.f32.mrf.mxu0
          %v2474 = vadd.f32 0.0, %v2473
          %v2475 = vpop.f32.mrf.mxu0
          %v2476 = vadd.f32 0.0, %v2475
          %2477 = vmatmul.bf16.gmra.mxu0 %v2167
          %v2478 = vpop.f32.mrf.mxu0
          %v2479 = vadd.f32 0.0, %v2478
          %v2480 = vpop.f32.mrf.mxu0
          %v2481 = vadd.f32 0.0, %v2480
          %2482 = vmatmul.bf16.gmra.mxu0 %v2185
          %v2483 = vpop.f32.mrf.mxu0
          %v2484 = vadd.f32 0.0, %v2483
          %v2485 = vpop.f32.mrf.mxu0
          %v2486 = vadd.f32 0.0, %v2485
          %2487 = vmatmul.bf16.gmra.mxu0 %v2202
          %v2488 = vpop.f32.mrf.mxu0
          %v2489 = vadd.f32 0.0, %v2488
          %v2490 = vpop.f32.mrf.mxu0
          %v2491 = vadd.f32 0.0, %v2490
          %2492 = vmatmul.bf16.gmra.mxu0 %v2220
          %v2493 = vpop.f32.mrf.mxu0
          %v2494 = vadd.f32 0.0, %v2493
          %v2495 = vpop.f32.mrf.mxu0
          %v2496 = vadd.f32 0.0, %v2495
          %2497 = vmatmul.bf16.gmra.mxu0 %v2238
          %v2498 = vpop.f32.mrf.mxu0
          %v2499 = vadd.f32 0.0, %v2498
          %v2500 = vpop.f32.mrf.mxu0
          %v2501 = vadd.f32 0.0, %v2500
          %2502 = vmatmul.bf16.gmra.mxu0 %v2256
          %v2503 = vpop.f32.mrf.mxu0
          %v2504 = vadd.f32 0.0, %v2503
          %v2505 = vpop.f32.mrf.mxu0
          %v2506 = vadd.f32 0.0, %v2505
          %2507 = vmatmul.bf16.gmra.mxu0 %v2274
          %v2508 = vpop.f32.mrf.mxu0
          %v2509 = vadd.f32 0.0, %v2508
          %v2510 = vpop.f32.mrf.mxu0
          %v2511 = vadd.f32 0.0, %v2510
          %2512 = vmatmul.bf16.gmra.mxu0 %v2281
          %v2513 = vpop.f32.mrf.mxu0
          %v2514 = vadd.f32 0.0, %v2513
          %v2515 = vpop.f32.mrf.mxu0
          %2516 = vdwg.mxu0
          %2517 = vmatpush.bf16.msra.mxu0 %v2397
          %2518 = vmatpush.bf16.msra.mxu0 %v2396
          %2519 = vmatpush.bf16.msra.mxu0 %v2395
          %2520 = vmatpush.bf16.msra.mxu0 %v2394
          %2521 = vmatpush.bf16.msra.mxu0 %v2393
          %2522 = vmatpush.bf16.msra.mxu0 %v2392
          %2523 = vmatpush.bf16.msra.mxu0 %v2391
          %2524 = vmatpush.bf16.msra.mxu0 %v2390
          %2525 = vmatmul.bf16.gmra.mxu0 %v2078
          %v2526 = vpop.f32.mrf.mxu0
          %v2527 = vadd.f32 %v2454, %v2526
          %v2528 = vpop.f32.mrf.mxu0
          %v2529 = vadd.f32 %v2456, %v2528
          %2530 = vmatmul.bf16.gmra.mxu0 %v2096
          %v2531 = vpop.f32.mrf.mxu0
          %v2532 = vadd.f32 %v2459, %v2531
          %v2533 = vpop.f32.mrf.mxu0
          %v2534 = vadd.f32 %v2461, %v2533
          %2535 = vmatmul.bf16.gmra.mxu0 %v2114
          %v2536 = vpop.f32.mrf.mxu0
          %v2537 = vadd.f32 %v2464, %v2536
          %v2538 = vpop.f32.mrf.mxu0
          %v2539 = vadd.f32 %v2466, %v2538
          %2540 = vmatmul.bf16.gmra.mxu0 %v2132
          %v2541 = vpop.f32.mrf.mxu0
          %v2542 = vadd.f32 %v2469, %v2541
          %v2543 = vpop.f32.mrf.mxu0
          %v2544 = vadd.f32 %v2471, %v2543
          %2545 = vmatmul.bf16.gmra.mxu0 %v2150
          %v2546 = vpop.f32.mrf.mxu0
          %v2547 = vadd.f32 %v2474, %v2546
          %v2548 = vpop.f32.mrf.mxu0
          %v2549 = vadd.f32 %v2476, %v2548
          %2550 = vmatmul.bf16.gmra.mxu0 %v2168
          %v2551 = vpop.f32.mrf.mxu0
          %v2552 = vadd.f32 %v2479, %v2551
          %v2553 = vpop.f32.mrf.mxu0
          %v2554 = vadd.f32 %v2481, %v2553
          %2555 = vmatmul.bf16.gmra.mxu0 %v2186
          %v2556 = vpop.f32.mrf.mxu0
          %v2557 = vadd.f32 %v2484, %v2556
          %v2558 = vpop.f32.mrf.mxu0
          %v2559 = vadd.f32 %v2486, %v2558
          %2560 = vmatmul.bf16.gmra.mxu0 %v2203
          %v2561 = vpop.f32.mrf.mxu0
          %v2562 = vadd.f32 %v2489, %v2561
          %v2563 = vpop.f32.mrf.mxu0
          %v2564 = vadd.f32 %v2491, %v2563
          %2565 = vmatmul.bf16.gmra.mxu0 %v2221
          %v2566 = vpop.f32.mrf.mxu0
          %v2567 = vadd.f32 %v2494, %v2566
          %v2568 = vpop.f32.mrf.mxu0
          %v2569 = vadd.f32 %v2496, %v2568
          %2570 = vmatmul.bf16.gmra.mxu0 %v2239
          %v2571 = vpop.f32.mrf.mxu0
          %v2572 = vadd.f32 %v2499, %v2571
          %v2573 = vpop.f32.mrf.mxu0
          %v2574 = vadd.f32 %v2501, %v2573
          %2575 = vmatmul.bf16.gmra.mxu0 %v2257
          %v2576 = vpop.f32.mrf.mxu0
          %v2577 = vadd.f32 %v2504, %v2576
          %v2578 = vpop.f32.mrf.mxu0
          %v2579 = vadd.f32 %v2506, %v2578
          %2580 = vmatmul.bf16.gmra.mxu0 %v2275
          %v2581 = vpop.f32.mrf.mxu0
          %v2582 = vadd.f32 %v2509, %v2581
          %v2583 = vpop.f32.mrf.mxu0
          %v2584 = vadd.f32 %v2511, %v2583
          %2585 = vmatmul.bf16.gmra.mxu0 %v2282
          %v2586 = vpop.f32.mrf.mxu0
          %v2587 = vadd.f32 %v2514, %v2586
          %v2588 = vpop.f32.mrf.mxu0
          %2589 = vdwg.mxu0
          %2590 = vmatpush.bf16.msra.mxu0 0
          %2591 = vmatpush.bf16.msra.mxu0 0
          %2592 = vmatpush.bf16.msra.mxu0 0
          %2593 = vmatpush.bf16.msra.mxu0 0
          %2594 = vmatpush.bf16.msra.mxu0 0
          %2595 = vmatpush.bf16.msra.mxu0 0
          %2596 = vmatpush.bf16.msra.mxu0 %v2399
          %2597 = vmatpush.bf16.msra.mxu0 %v2398
          %2598 = vmatmul.bf16.gmra.mxu0 %v2418
          %v2599 = vpop.f32.mrf.mxu0
          %v2600 = vadd.f32 %v2527, %v2599
          %v2601 = vpop.f32.mrf.mxu0
          %v2602 = vadd.f32 %v2529, %v2601
          %2603 = vmatmul.bf16.gmra.mxu0 %v2420
          %v2604 = vpop.f32.mrf.mxu0
          %v2605 = vadd.f32 %v2532, %v2604
          %v2606 = vpop.f32.mrf.mxu0
          %v2607 = vadd.f32 %v2534, %v2606
          %2608 = vmatmul.bf16.gmra.mxu0 %v2422
          %v2609 = vpop.f32.mrf.mxu0
          %v2610 = vadd.f32 %v2537, %v2609
          %v2611 = vpop.f32.mrf.mxu0
          %v2612 = vadd.f32 %v2539, %v2611
          %2613 = vmatmul.bf16.gmra.mxu0 %v2424
          %v2614 = vpop.f32.mrf.mxu0
          %v2615 = vadd.f32 %v2542, %v2614
          %v2616 = vpop.f32.mrf.mxu0
          %v2617 = vadd.f32 %v2544, %v2616
          %2618 = vmatmul.bf16.gmra.mxu0 %v2426
          %v2619 = vpop.f32.mrf.mxu0
          %v2620 = vadd.f32 %v2547, %v2619
          %v2621 = vpop.f32.mrf.mxu0
          %v2622 = vadd.f32 %v2549, %v2621
          %2623 = vmatmul.bf16.gmra.mxu0 %v2428
          %v2624 = vpop.f32.mrf.mxu0
          %v2625 = vadd.f32 %v2552, %v2624
          %v2626 = vpop.f32.mrf.mxu0
          %v2627 = vadd.f32 %v2554, %v2626
          %2628 = vmatmul.bf16.gmra.mxu0 %v2430
          %v2629 = vpop.f32.mrf.mxu0
          %v2630 = vadd.f32 %v2557, %v2629
          %v2631 = vpop.f32.mrf.mxu0
          %v2632 = vadd.f32 %v2559, %v2631
          %2633 = vmatmul.bf16.gmra.mxu0 %v2432
          %v2634 = vpop.f32.mrf.mxu0
          %v2635 = vadd.f32 %v2562, %v2634
          %v2636 = vpop.f32.mrf.mxu0
          %v2637 = vadd.f32 %v2564, %v2636
          %2638 = vmatmul.bf16.gmra.mxu0 %v2434
          %v2639 = vpop.f32.mrf.mxu0
          %v2640 = vadd.f32 %v2567, %v2639
          %v2641 = vpop.f32.mrf.mxu0
          %v2642 = vadd.f32 %v2569, %v2641
          %2643 = vmatmul.bf16.gmra.mxu0 %v2436
          %v2644 = vpop.f32.mrf.mxu0
          %v2645 = vadd.f32 %v2572, %v2644
          %v2646 = vpop.f32.mrf.mxu0
          %v2647 = vadd.f32 %v2574, %v2646
          %2648 = vmatmul.bf16.gmra.mxu0 %v2438
          %v2649 = vpop.f32.mrf.mxu0
          %v2650 = vadd.f32 %v2577, %v2649
          %v2651 = vpop.f32.mrf.mxu0
          %v2652 = vadd.f32 %v2579, %v2651
          %2653 = vmatmul.bf16.gmra.mxu0 %v2440
          %v2654 = vpop.f32.mrf.mxu0
          %v2655 = vadd.f32 %v2582, %v2654
          %v2656 = vpop.f32.mrf.mxu0
          %v2657 = vadd.f32 %v2584, %v2656
          %2658 = vmatmul.bf16.gmra.mxu0 %v2442
          %v2659 = vpop.f32.mrf.mxu0
          %v2660 = vadd.f32 %v2587, %v2659
          %v2661 = vpop.f32.mrf.mxu0
          %2662 = vdwg.mxu0
          %v2664 = vperm.slane %v222, 0
          %v2666 = vmul.f32 %v2600, %v2664
          %v2667 = vmul.f32 %v2602, %v2664
          %v2668 = vmul.f32 %v2605, %v2664
          %v2669 = vmul.f32 %v2607, %v2664
          %v2670 = vmul.f32 %v2610, %v2664
          %v2671 = vmul.f32 %v2612, %v2664
          %v2672 = vmul.f32 %v2615, %v2664
          %v2673 = vmul.f32 %v2617, %v2664
          %v2674 = vmul.f32 %v2620, %v2664
          %v2675 = vmul.f32 %v2622, %v2664
          %v2676 = vmul.f32 %v2625, %v2664
          %v2677 = vmul.f32 %v2627, %v2664
          %v2678 = vmul.f32 %v2630, %v2664
          %v2679 = vmul.f32 %v2632, %v2664
          %v2680 = vmul.f32 %v2635, %v2664
          %v2681 = vmul.f32 %v2637, %v2664
          %v2682 = vmul.f32 %v2640, %v2664
          %v2683 = vmul.f32 %v2642, %v2664
          %v2684 = vmul.f32 %v2645, %v2664
          %v2685 = vmul.f32 %v2647, %v2664
          %v2686 = vmul.f32 %v2650, %v2664
          %v2687 = vmul.f32 %v2652, %v2664
          %v2688 = vmul.f32 %v2655, %v2664
          %v2689 = vmul.f32 %v2657, %v2664
          %v2690 = vmul.f32 %v2660, %v2664
          %v2692 = vperm.slane %v223, 0
          %v2694 = vadd.f32 %v2666, %v2692
          %v2695 = vadd.f32 %v2667, %v2692
          %v2696 = vadd.f32 %v2668, %v2692
          %v2697 = vadd.f32 %v2669, %v2692
          %v2698 = vadd.f32 %v2670, %v2692
          %v2699 = vadd.f32 %v2671, %v2692
          %v2700 = vadd.f32 %v2672, %v2692
          %v2701 = vadd.f32 %v2673, %v2692
          %v2702 = vadd.f32 %v2674, %v2692
          %v2703 = vadd.f32 %v2675, %v2692
          %v2704 = vadd.f32 %v2676, %v2692
          %v2705 = vadd.f32 %v2677, %v2692
          %v2706 = vadd.f32 %v2678, %v2692
          %v2707 = vadd.f32 %v2679, %v2692
          %v2708 = vadd.f32 %v2680, %v2692
          %v2709 = vadd.f32 %v2681, %v2692
          %v2710 = vadd.f32 %v2682, %v2692
          %v2711 = vadd.f32 %v2683, %v2692
          %v2712 = vadd.f32 %v2684, %v2692
          %v2713 = vadd.f32 %v2685, %v2692
          %v2714 = vadd.f32 %v2686, %v2692
          %v2715 = vadd.f32 %v2687, %v2692
          %v2716 = vadd.f32 %v2688, %v2692
          %v2717 = vadd.f32 %v2689, %v2692
          %v2718 = vadd.f32 %v2690, %v2692
          %v2719 = vmax.f32 %v2694, 0.0
          %v2720 = vmax.f32 %v2695, 0.0
          %v2721 = vmax.f32 %v2696, 0.0
          %v2722 = vmax.f32 %v2697, 0.0
          %v2723 = vmax.f32 %v2698, 0.0
          %v2724 = vmax.f32 %v2699, 0.0
          %v2725 = vmax.f32 %v2700, 0.0
          %v2726 = vmax.f32 %v2701, 0.0
          %v2727 = vmax.f32 %v2702, 0.0
          %v2728 = vmax.f32 %v2703, 0.0
          %v2729 = vmax.f32 %v2704, 0.0
          %v2730 = vmax.f32 %v2705, 0.0
          %v2731 = vmax.f32 %v2706, 0.0
          %v2732 = vmax.f32 %v2707, 0.0
          %v2733 = vmax.f32 %v2708, 0.0
          %v2734 = vmax.f32 %v2709, 0.0
          %v2735 = vmax.f32 %v2710, 0.0
          %v2736 = vmax.f32 %v2711, 0.0
          %v2737 = vmax.f32 %v2712, 0.0
          %v2738 = vmax.f32 %v2713, 0.0
          %v2739 = vmax.f32 %v2714, 0.0
          %v2740 = vmax.f32 %v2715, 0.0
          %v2741 = vmax.f32 %v2716, 0.0
          %v2742 = vmax.f32 %v2717, 0.0
          %v2743 = vmax.f32 %v2718, 0.0
          %v2769 = vrot.slane %v2719, 2
          %v2770 = vrot.slane %v2719, 4
          %v2771 = vrot.slane %v2719, 6
          %v2772 = vrot.slane %v2720, 2
          %v2773 = vrot.slane %v2720, 4
          %v2774 = vrot.slane %v2720, 6
          %v2775 = vrot.slane %v2721, 2
          %v2776 = vrot.slane %v2721, 4
          %v2777 = vrot.slane %v2721, 6
          %v2778 = vrot.slane %v2722, 2
          %v2779 = vrot.slane %v2722, 4
          %v2780 = vrot.slane %v2722, 6
          %v2781 = vrot.slane %v2723, 2
          %v2782 = vrot.slane %v2723, 4
          %v2783 = vrot.slane %v2723, 6
          %v2784 = vrot.slane %v2724, 2
          %v2785 = vrot.slane %v2724, 4
          %v2786 = vrot.slane %v2724, 6
          %v2787 = vrot.slane %v2725, 2
          %v2788 = vrot.slane %v2725, 4
          %v2789 = vrot.slane %v2725, 6
          %v2790 = vrot.slane %v2726, 2
          %v2791 = vrot.slane %v2726, 4
          %v2792 = vrot.slane %v2726, 6
          %v2793 = vrot.slane %v2727, 2
          %v2794 = vrot.slane %v2727, 4
          %v2795 = vrot.slane %v2727, 6
          %v2796 = vrot.slane %v2728, 2
          %v2797 = vrot.slane %v2728, 4
          %v2798 = vrot.slane %v2728, 6
          %v2799 = vrot.slane %v2729, 2
          %v2800 = vrot.slane %v2729, 4
          %v2801 = vrot.slane %v2729, 6
          %v2802 = vrot.slane %v2730, 2
          %v2803 = vrot.slane %v2730, 4
          %v2804 = vrot.slane %v2730, 6
          %v2805 = vrot.slane %v2731, 2
          %v2806 = vrot.slane %v2731, 4
          %v2807 = vrot.slane %v2731, 6
          %v2808 = vrot.slane %v2732, 2
          %v2809 = vrot.slane %v2732, 4
          %v2810 = vrot.slane %v2732, 6
          %v2811 = vrot.slane %v2733, 2
          %v2812 = vrot.slane %v2733, 4
          %v2813 = vrot.slane %v2733, 6
          %v2814 = vrot.slane %v2734, 2
          %v2815 = vrot.slane %v2734, 4
          %v2816 = vrot.slane %v2734, 6
          %v2817 = vrot.slane %v2735, 2
          %v2818 = vrot.slane %v2735, 4
          %v2819 = vrot.slane %v2735, 6
          %v2820 = vrot.slane %v2736, 2
          %v2821 = vrot.slane %v2736, 4
          %v2822 = vrot.slane %v2736, 6
          %v2823 = vrot.slane %v2737, 2
          %v2824 = vrot.slane %v2737, 4
          %v2825 = vrot.slane %v2737, 6
          %v2826 = vrot.slane %v2738, 2
          %v2827 = vrot.slane %v2738, 4
          %v2828 = vrot.slane %v2738, 6
          %v2829 = vrot.slane %v2739, 2
          %v2830 = vrot.slane %v2739, 4
          %v2831 = vrot.slane %v2739, 6
          %v2832 = vrot.slane %v2740, 2
          %v2833 = vrot.slane %v2740, 4
          %v2834 = vrot.slane %v2740, 6
          %v2835 = vrot.slane %v2741, 2
          %v2836 = vrot.slane %v2741, 4
          %v2837 = vrot.slane %v2741, 6
          %v2838 = vrot.slane %v2742, 2
          %v2839 = vrot.slane %v2742, 4
          %v2840 = vrot.slane %v2742, 6
          %v2841 = vrot.slane %v2743, 2
          %vm2915 = vcmask 517120
          %v2916 = vsel %vm2915, %v2719, -inf
          %v2917 = vrot.slane %v2916, 4
          %v2918 = vmax.f32 %v2916, %v2917
          %v2919 = vrot.slane %v2918, 2
          %v2920 = vmax.f32 %v2918, %v2919
          %v2921 = vrot.slane %v2920, 1
          %v2922 = vmax.f32 %v2920, %v2921
          %v2923 = vsel %vm2915, %v2769, -inf
          %v2924 = vrot.slane %v2923, 4
          %v2925 = vmax.f32 %v2923, %v2924
          %v2926 = vrot.slane %v2925, 2
          %v2927 = vmax.f32 %v2925, %v2926
          %v2928 = vrot.slane %v2927, 1
          %v2929 = vmax.f32 %v2927, %v2928
          %v2930 = vsel %vm2915, %v2770, -inf
          %v2931 = vrot.slane %v2930, 4
          %v2932 = vmax.f32 %v2930, %v2931
          %v2933 = vrot.slane %v2932, 2
          %v2934 = vmax.f32 %v2932, %v2933
          %v2935 = vrot.slane %v2934, 1
          %v2936 = vmax.f32 %v2934, %v2935
          %v2937 = vsel %vm2915, %v2771, -inf
          %v2938 = vrot.slane %v2937, 4
          %v2939 = vmax.f32 %v2937, %v2938
          %v2940 = vrot.slane %v2939, 2
          %v2941 = vmax.f32 %v2939, %v2940
          %v2942 = vrot.slane %v2941, 1
          %v2943 = vmax.f32 %v2941, %v2942
          %v2944 = vsel %vm2915, %v2720, -inf
          %v2945 = vrot.slane %v2944, 4
          %v2946 = vmax.f32 %v2944, %v2945
          %v2947 = vrot.slane %v2946, 2
          %v2948 = vmax.f32 %v2946, %v2947
          %v2949 = vrot.slane %v2948, 1
          %v2950 = vmax.f32 %v2948, %v2949
          %v2951 = vsel %vm2915, %v2772, -inf
          %v2952 = vrot.slane %v2951, 4
          %v2953 = vmax.f32 %v2951, %v2952
          %v2954 = vrot.slane %v2953, 2
          %v2955 = vmax.f32 %v2953, %v2954
          %v2956 = vrot.slane %v2955, 1
          %v2957 = vmax.f32 %v2955, %v2956
          %v2958 = vsel %vm2915, %v2773, -inf
          %v2959 = vrot.slane %v2958, 4
          %v2960 = vmax.f32 %v2958, %v2959
          %v2961 = vrot.slane %v2960, 2
          %v2962 = vmax.f32 %v2960, %v2961
          %v2963 = vrot.slane %v2962, 1
          %v2964 = vmax.f32 %v2962, %v2963
          %v2965 = vsel %vm2915, %v2774, -inf
          %v2966 = vrot.slane %v2965, 4
          %v2967 = vmax.f32 %v2965, %v2966
          %v2968 = vrot.slane %v2967, 2
          %v2969 = vmax.f32 %v2967, %v2968
          %v2970 = vrot.slane %v2969, 1
          %v2971 = vmax.f32 %v2969, %v2970
          %v2972 = vsel %vm2915, %v2721, -inf
          %v2973 = vrot.slane %v2972, 4
          %v2974 = vmax.f32 %v2972, %v2973
          %v2975 = vrot.slane %v2974, 2
          %v2976 = vmax.f32 %v2974, %v2975
          %v2977 = vrot.slane %v2976, 1
          %v2978 = vmax.f32 %v2976, %v2977
          %v2979 = vsel %vm2915, %v2775, -inf
          %v2980 = vrot.slane %v2979, 4
          %v2981 = vmax.f32 %v2979, %v2980
          %v2982 = vrot.slane %v2981, 2
          %v2983 = vmax.f32 %v2981, %v2982
          %v2984 = vrot.slane %v2983, 1
          %v2985 = vmax.f32 %v2983, %v2984
          %v2986 = vsel %vm2915, %v2776, -inf
          %v2987 = vrot.slane %v2986, 4
          %v2988 = vmax.f32 %v2986, %v2987
          %v2989 = vrot.slane %v2988, 2
          %v2990 = vmax.f32 %v2988, %v2989
          %v2991 = vrot.slane %v2990, 1
          %v2992 = vmax.f32 %v2990, %v2991
          %v2993 = vsel %vm2915, %v2777, -inf
          %v2994 = vrot.slane %v2993, 4
          %v2995 = vmax.f32 %v2993, %v2994
          %v2996 = vrot.slane %v2995, 2
          %v2997 = vmax.f32 %v2995, %v2996
          %v2998 = vrot.slane %v2997, 1
          %v2999 = vmax.f32 %v2997, %v2998
          %v3000 = vsel %vm2915, %v2722, -inf
          %v3001 = vrot.slane %v3000, 4
          %v3002 = vmax.f32 %v3000, %v3001
          %v3003 = vrot.slane %v3002, 2
          %v3004 = vmax.f32 %v3002, %v3003
          %v3005 = vrot.slane %v3004, 1
          %v3006 = vmax.f32 %v3004, %v3005
          %v3007 = vsel %vm2915, %v2778, -inf
          %v3008 = vrot.slane %v3007, 4
          %v3009 = vmax.f32 %v3007, %v3008
          %v3010 = vrot.slane %v3009, 2
          %v3011 = vmax.f32 %v3009, %v3010
          %v3012 = vrot.slane %v3011, 1
          %v3013 = vmax.f32 %v3011, %v3012
          %v3014 = vsel %vm2915, %v2779, -inf
          %v3015 = vrot.slane %v3014, 4
          %v3016 = vmax.f32 %v3014, %v3015
          %v3017 = vrot.slane %v3016, 2
          %v3018 = vmax.f32 %v3016, %v3017
          %v3019 = vrot.slane %v3018, 1
          %v3020 = vmax.f32 %v3018, %v3019
          %v3021 = vsel %vm2915, %v2780, -inf
          %v3022 = vrot.slane %v3021, 4
          %v3023 = vmax.f32 %v3021, %v3022
          %v3024 = vrot.slane %v3023, 2
          %v3025 = vmax.f32 %v3023, %v3024
          %v3026 = vrot.slane %v3025, 1
          %v3027 = vmax.f32 %v3025, %v3026
          %v3028 = vsel %vm2915, %v2723, -inf
          %v3029 = vrot.slane %v3028, 4
          %v3030 = vmax.f32 %v3028, %v3029
          %v3031 = vrot.slane %v3030, 2
          %v3032 = vmax.f32 %v3030, %v3031
          %v3033 = vrot.slane %v3032, 1
          %v3034 = vmax.f32 %v3032, %v3033
          %v3035 = vsel %vm2915, %v2781, -inf
          %v3036 = vrot.slane %v3035, 4
          %v3037 = vmax.f32 %v3035, %v3036
          %v3038 = vrot.slane %v3037, 2
          %v3039 = vmax.f32 %v3037, %v3038
          %v3040 = vrot.slane %v3039, 1
          %v3041 = vmax.f32 %v3039, %v3040
          %v3042 = vsel %vm2915, %v2782, -inf
          %v3043 = vrot.slane %v3042, 4
          %v3044 = vmax.f32 %v3042, %v3043
          %v3045 = vrot.slane %v3044, 2
          %v3046 = vmax.f32 %v3044, %v3045
          %v3047 = vrot.slane %v3046, 1
          %v3048 = vmax.f32 %v3046, %v3047
          %v3049 = vsel %vm2915, %v2783, -inf
          %v3050 = vrot.slane %v3049, 4
          %v3051 = vmax.f32 %v3049, %v3050
          %v3052 = vrot.slane %v3051, 2
          %v3053 = vmax.f32 %v3051, %v3052
          %v3054 = vrot.slane %v3053, 1
          %v3055 = vmax.f32 %v3053, %v3054
          %v3056 = vsel %vm2915, %v2724, -inf
          %v3057 = vrot.slane %v3056, 4
          %v3058 = vmax.f32 %v3056, %v3057
          %v3059 = vrot.slane %v3058, 2
          %v3060 = vmax.f32 %v3058, %v3059
          %v3061 = vrot.slane %v3060, 1
          %v3062 = vmax.f32 %v3060, %v3061
          %v3063 = vsel %vm2915, %v2784, -inf
          %v3064 = vrot.slane %v3063, 4
          %v3065 = vmax.f32 %v3063, %v3064
          %v3066 = vrot.slane %v3065, 2
          %v3067 = vmax.f32 %v3065, %v3066
          %v3068 = vrot.slane %v3067, 1
          %v3069 = vmax.f32 %v3067, %v3068
          %v3070 = vsel %vm2915, %v2785, -inf
          %v3071 = vrot.slane %v3070, 4
          %v3072 = vmax.f32 %v3070, %v3071
          %v3073 = vrot.slane %v3072, 2
          %v3074 = vmax.f32 %v3072, %v3073
          %v3075 = vrot.slane %v3074, 1
          %v3076 = vmax.f32 %v3074, %v3075
          %v3077 = vsel %vm2915, %v2786, -inf
          %v3078 = vrot.slane %v3077, 4
          %v3079 = vmax.f32 %v3077, %v3078
          %v3080 = vrot.slane %v3079, 2
          %v3081 = vmax.f32 %v3079, %v3080
          %v3082 = vrot.slane %v3081, 1
          %v3083 = vmax.f32 %v3081, %v3082
          %v3084 = vsel %vm2915, %v2725, -inf
          %v3085 = vrot.slane %v3084, 4
          %v3086 = vmax.f32 %v3084, %v3085
          %v3087 = vrot.slane %v3086, 2
          %v3088 = vmax.f32 %v3086, %v3087
          %v3089 = vrot.slane %v3088, 1
          %v3090 = vmax.f32 %v3088, %v3089
          %v3091 = vsel %vm2915, %v2787, -inf
          %v3092 = vrot.slane %v3091, 4
          %v3093 = vmax.f32 %v3091, %v3092
          %v3094 = vrot.slane %v3093, 2
          %v3095 = vmax.f32 %v3093, %v3094
          %v3096 = vrot.slane %v3095, 1
          %v3097 = vmax.f32 %v3095, %v3096
          %v3098 = vsel %vm2915, %v2788, -inf
          %v3099 = vrot.slane %v3098, 4
          %v3100 = vmax.f32 %v3098, %v3099
          %v3101 = vrot.slane %v3100, 2
          %v3102 = vmax.f32 %v3100, %v3101
          %v3103 = vrot.slane %v3102, 1
          %v3104 = vmax.f32 %v3102, %v3103
          %v3105 = vsel %vm2915, %v2789, -inf
          %v3106 = vrot.slane %v3105, 4
          %v3107 = vmax.f32 %v3105, %v3106
          %v3108 = vrot.slane %v3107, 2
          %v3109 = vmax.f32 %v3107, %v3108
          %v3110 = vrot.slane %v3109, 1
          %v3111 = vmax.f32 %v3109, %v3110
          %v3112 = vsel %vm2915, %v2726, -inf
          %v3113 = vrot.slane %v3112, 4
          %v3114 = vmax.f32 %v3112, %v3113
          %v3115 = vrot.slane %v3114, 2
          %v3116 = vmax.f32 %v3114, %v3115
          %v3117 = vrot.slane %v3116, 1
          %v3118 = vmax.f32 %v3116, %v3117
          %v3119 = vsel %vm2915, %v2790, -inf
          %v3120 = vrot.slane %v3119, 4
          %v3121 = vmax.f32 %v3119, %v3120
          %v3122 = vrot.slane %v3121, 2
          %v3123 = vmax.f32 %v3121, %v3122
          %v3124 = vrot.slane %v3123, 1
          %v3125 = vmax.f32 %v3123, %v3124
          %v3126 = vsel %vm2915, %v2791, -inf
          %v3127 = vrot.slane %v3126, 4
          %v3128 = vmax.f32 %v3126, %v3127
          %v3129 = vrot.slane %v3128, 2
          %v3130 = vmax.f32 %v3128, %v3129
          %v3131 = vrot.slane %v3130, 1
          %v3132 = vmax.f32 %v3130, %v3131
          %v3133 = vsel %vm2915, %v2792, -inf
          %v3134 = vrot.slane %v3133, 4
          %v3135 = vmax.f32 %v3133, %v3134
          %v3136 = vrot.slane %v3135, 2
          %v3137 = vmax.f32 %v3135, %v3136
          %v3138 = vrot.slane %v3137, 1
          %v3139 = vmax.f32 %v3137, %v3138
          %v3140 = vsel %vm2915, %v2727, -inf
          %v3141 = vrot.slane %v3140, 4
          %v3142 = vmax.f32 %v3140, %v3141
          %v3143 = vrot.slane %v3142, 2
          %v3144 = vmax.f32 %v3142, %v3143
          %v3145 = vrot.slane %v3144, 1
          %v3146 = vmax.f32 %v3144, %v3145
          %v3147 = vsel %vm2915, %v2793, -inf
          %v3148 = vrot.slane %v3147, 4
          %v3149 = vmax.f32 %v3147, %v3148
          %v3150 = vrot.slane %v3149, 2
          %v3151 = vmax.f32 %v3149, %v3150
          %v3152 = vrot.slane %v3151, 1
          %v3153 = vmax.f32 %v3151, %v3152
          %v3154 = vsel %vm2915, %v2794, -inf
          %v3155 = vrot.slane %v3154, 4
          %v3156 = vmax.f32 %v3154, %v3155
          %v3157 = vrot.slane %v3156, 2
          %v3158 = vmax.f32 %v3156, %v3157
          %v3159 = vrot.slane %v3158, 1
          %v3160 = vmax.f32 %v3158, %v3159
          %v3161 = vsel %vm2915, %v2795, -inf
          %v3162 = vrot.slane %v3161, 4
          %v3163 = vmax.f32 %v3161, %v3162
          %v3164 = vrot.slane %v3163, 2
          %v3165 = vmax.f32 %v3163, %v3164
          %v3166 = vrot.slane %v3165, 1
          %v3167 = vmax.f32 %v3165, %v3166
          %v3168 = vsel %vm2915, %v2728, -inf
          %v3169 = vrot.slane %v3168, 4
          %v3170 = vmax.f32 %v3168, %v3169
          %v3171 = vrot.slane %v3170, 2
          %v3172 = vmax.f32 %v3170, %v3171
          %v3173 = vrot.slane %v3172, 1
          %v3174 = vmax.f32 %v3172, %v3173
          %v3175 = vsel %vm2915, %v2796, -inf
          %v3176 = vrot.slane %v3175, 4
          %v3177 = vmax.f32 %v3175, %v3176
          %v3178 = vrot.slane %v3177, 2
          %v3179 = vmax.f32 %v3177, %v3178
          %v3180 = vrot.slane %v3179, 1
          %v3181 = vmax.f32 %v3179, %v3180
          %v3182 = vsel %vm2915, %v2797, -inf
          %v3183 = vrot.slane %v3182, 4
          %v3184 = vmax.f32 %v3182, %v3183
          %v3185 = vrot.slane %v3184, 2
          %v3186 = vmax.f32 %v3184, %v3185
          %v3187 = vrot.slane %v3186, 1
          %v3188 = vmax.f32 %v3186, %v3187
          %v3189 = vsel %vm2915, %v2798, -inf
          %v3190 = vrot.slane %v3189, 4
          %v3191 = vmax.f32 %v3189, %v3190
          %v3192 = vrot.slane %v3191, 2
          %v3193 = vmax.f32 %v3191, %v3192
          %v3194 = vrot.slane %v3193, 1
          %v3195 = vmax.f32 %v3193, %v3194
          %v3196 = vsel %vm2915, %v2729, -inf
          %v3197 = vrot.slane %v3196, 4
          %v3198 = vmax.f32 %v3196, %v3197
          %v3199 = vrot.slane %v3198, 2
          %v3200 = vmax.f32 %v3198, %v3199
          %v3201 = vrot.slane %v3200, 1
          %v3202 = vmax.f32 %v3200, %v3201
          %v3203 = vsel %vm2915, %v2799, -inf
          %v3204 = vrot.slane %v3203, 4
          %v3205 = vmax.f32 %v3203, %v3204
          %v3206 = vrot.slane %v3205, 2
          %v3207 = vmax.f32 %v3205, %v3206
          %v3208 = vrot.slane %v3207, 1
          %v3209 = vmax.f32 %v3207, %v3208
          %v3210 = vsel %vm2915, %v2800, -inf
          %v3211 = vrot.slane %v3210, 4
          %v3212 = vmax.f32 %v3210, %v3211
          %v3213 = vrot.slane %v3212, 2
          %v3214 = vmax.f32 %v3212, %v3213
          %v3215 = vrot.slane %v3214, 1
          %v3216 = vmax.f32 %v3214, %v3215
          %v3217 = vsel %vm2915, %v2801, -inf
          %v3218 = vrot.slane %v3217, 4
          %v3219 = vmax.f32 %v3217, %v3218
          %v3220 = vrot.slane %v3219, 2
          %v3221 = vmax.f32 %v3219, %v3220
          %v3222 = vrot.slane %v3221, 1
          %v3223 = vmax.f32 %v3221, %v3222
          %v3224 = vsel %vm2915, %v2730, -inf
          %v3225 = vrot.slane %v3224, 4
          %v3226 = vmax.f32 %v3224, %v3225
          %v3227 = vrot.slane %v3226, 2
          %v3228 = vmax.f32 %v3226, %v3227
          %v3229 = vrot.slane %v3228, 1
          %v3230 = vmax.f32 %v3228, %v3229
          %v3231 = vsel %vm2915, %v2802, -inf
          %v3232 = vrot.slane %v3231, 4
          %v3233 = vmax.f32 %v3231, %v3232
          %v3234 = vrot.slane %v3233, 2
          %v3235 = vmax.f32 %v3233, %v3234
          %v3236 = vrot.slane %v3235, 1
          %v3237 = vmax.f32 %v3235, %v3236
          %v3238 = vsel %vm2915, %v2803, -inf
          %v3239 = vrot.slane %v3238, 4
          %v3240 = vmax.f32 %v3238, %v3239
          %v3241 = vrot.slane %v3240, 2
          %v3242 = vmax.f32 %v3240, %v3241
          %v3243 = vrot.slane %v3242, 1
          %v3244 = vmax.f32 %v3242, %v3243
          %v3245 = vsel %vm2915, %v2804, -inf
          %v3246 = vrot.slane %v3245, 4
          %v3247 = vmax.f32 %v3245, %v3246
          %v3248 = vrot.slane %v3247, 2
          %v3249 = vmax.f32 %v3247, %v3248
          %v3250 = vrot.slane %v3249, 1
          %v3251 = vmax.f32 %v3249, %v3250
          %v3252 = vsel %vm2915, %v2731, -inf
          %v3253 = vrot.slane %v3252, 4
          %v3254 = vmax.f32 %v3252, %v3253
          %v3255 = vrot.slane %v3254, 2
          %v3256 = vmax.f32 %v3254, %v3255
          %v3257 = vrot.slane %v3256, 1
          %v3258 = vmax.f32 %v3256, %v3257
          %v3259 = vsel %vm2915, %v2805, -inf
          %v3260 = vrot.slane %v3259, 4
          %v3261 = vmax.f32 %v3259, %v3260
          %v3262 = vrot.slane %v3261, 2
          %v3263 = vmax.f32 %v3261, %v3262
          %v3264 = vrot.slane %v3263, 1
          %v3265 = vmax.f32 %v3263, %v3264
          %v3266 = vsel %vm2915, %v2806, -inf
          %v3267 = vrot.slane %v3266, 4
          %v3268 = vmax.f32 %v3266, %v3267
          %v3269 = vrot.slane %v3268, 2
          %v3270 = vmax.f32 %v3268, %v3269
          %v3271 = vrot.slane %v3270, 1
          %v3272 = vmax.f32 %v3270, %v3271
          %v3273 = vsel %vm2915, %v2807, -inf
          %v3274 = vrot.slane %v3273, 4
          %v3275 = vmax.f32 %v3273, %v3274
          %v3276 = vrot.slane %v3275, 2
          %v3277 = vmax.f32 %v3275, %v3276
          %v3278 = vrot.slane %v3277, 1
          %v3279 = vmax.f32 %v3277, %v3278
          %v3280 = vsel %vm2915, %v2732, -inf
          %v3281 = vrot.slane %v3280, 4
          %v3282 = vmax.f32 %v3280, %v3281
          %v3283 = vrot.slane %v3282, 2
          %v3284 = vmax.f32 %v3282, %v3283
          %v3285 = vrot.slane %v3284, 1
          %v3286 = vmax.f32 %v3284, %v3285
          %v3287 = vsel %vm2915, %v2808, -inf
          %v3288 = vrot.slane %v3287, 4
          %v3289 = vmax.f32 %v3287, %v3288
          %v3290 = vrot.slane %v3289, 2
          %v3291 = vmax.f32 %v3289, %v3290
          %v3292 = vrot.slane %v3291, 1
          %v3293 = vmax.f32 %v3291, %v3292
          %v3294 = vsel %vm2915, %v2809, -inf
          %v3295 = vrot.slane %v3294, 4
          %v3296 = vmax.f32 %v3294, %v3295
          %v3297 = vrot.slane %v3296, 2
          %v3298 = vmax.f32 %v3296, %v3297
          %v3299 = vrot.slane %v3298, 1
          %v3300 = vmax.f32 %v3298, %v3299
          %v3301 = vsel %vm2915, %v2810, -inf
          %v3302 = vrot.slane %v3301, 4
          %v3303 = vmax.f32 %v3301, %v3302
          %v3304 = vrot.slane %v3303, 2
          %v3305 = vmax.f32 %v3303, %v3304
          %v3306 = vrot.slane %v3305, 1
          %v3307 = vmax.f32 %v3305, %v3306
          %v3308 = vsel %vm2915, %v2733, -inf
          %v3309 = vrot.slane %v3308, 4
          %v3310 = vmax.f32 %v3308, %v3309
          %v3311 = vrot.slane %v3310, 2
          %v3312 = vmax.f32 %v3310, %v3311
          %v3313 = vrot.slane %v3312, 1
          %v3314 = vmax.f32 %v3312, %v3313
          %v3315 = vsel %vm2915, %v2811, -inf
          %v3316 = vrot.slane %v3315, 4
          %v3317 = vmax.f32 %v3315, %v3316
          %v3318 = vrot.slane %v3317, 2
          %v3319 = vmax.f32 %v3317, %v3318
          %v3320 = vrot.slane %v3319, 1
          %v3321 = vmax.f32 %v3319, %v3320
          %v3322 = vsel %vm2915, %v2812, -inf
          %v3323 = vrot.slane %v3322, 4
          %v3324 = vmax.f32 %v3322, %v3323
          %v3325 = vrot.slane %v3324, 2
          %v3326 = vmax.f32 %v3324, %v3325
          %v3327 = vrot.slane %v3326, 1
          %v3328 = vmax.f32 %v3326, %v3327
          %v3329 = vsel %vm2915, %v2813, -inf
          %v3330 = vrot.slane %v3329, 4
          %v3331 = vmax.f32 %v3329, %v3330
          %v3332 = vrot.slane %v3331, 2
          %v3333 = vmax.f32 %v3331, %v3332
          %v3334 = vrot.slane %v3333, 1
          %v3335 = vmax.f32 %v3333, %v3334
          %v3336 = vsel %vm2915, %v2734, -inf
          %v3337 = vrot.slane %v3336, 4
          %v3338 = vmax.f32 %v3336, %v3337
          %v3339 = vrot.slane %v3338, 2
          %v3340 = vmax.f32 %v3338, %v3339
          %v3341 = vrot.slane %v3340, 1
          %v3342 = vmax.f32 %v3340, %v3341
          %v3343 = vsel %vm2915, %v2814, -inf
          %v3344 = vrot.slane %v3343, 4
          %v3345 = vmax.f32 %v3343, %v3344
          %v3346 = vrot.slane %v3345, 2
          %v3347 = vmax.f32 %v3345, %v3346
          %v3348 = vrot.slane %v3347, 1
          %v3349 = vmax.f32 %v3347, %v3348
          %v3350 = vsel %vm2915, %v2815, -inf
          %v3351 = vrot.slane %v3350, 4
          %v3352 = vmax.f32 %v3350, %v3351
          %v3353 = vrot.slane %v3352, 2
          %v3354 = vmax.f32 %v3352, %v3353
          %v3355 = vrot.slane %v3354, 1
          %v3356 = vmax.f32 %v3354, %v3355
          %v3357 = vsel %vm2915, %v2816, -inf
          %v3358 = vrot.slane %v3357, 4
          %v3359 = vmax.f32 %v3357, %v3358
          %v3360 = vrot.slane %v3359, 2
          %v3361 = vmax.f32 %v3359, %v3360
          %v3362 = vrot.slane %v3361, 1
          %v3363 = vmax.f32 %v3361, %v3362
          %v3364 = vsel %vm2915, %v2735, -inf
          %v3365 = vrot.slane %v3364, 4
          %v3366 = vmax.f32 %v3364, %v3365
          %v3367 = vrot.slane %v3366, 2
          %v3368 = vmax.f32 %v3366, %v3367
          %v3369 = vrot.slane %v3368, 1
          %v3370 = vmax.f32 %v3368, %v3369
          %v3371 = vsel %vm2915, %v2817, -inf
          %v3372 = vrot.slane %v3371, 4
          %v3373 = vmax.f32 %v3371, %v3372
          %v3374 = vrot.slane %v3373, 2
          %v3375 = vmax.f32 %v3373, %v3374
          %v3376 = vrot.slane %v3375, 1
          %v3377 = vmax.f32 %v3375, %v3376
          %v3378 = vsel %vm2915, %v2818, -inf
          %v3379 = vrot.slane %v3378, 4
          %v3380 = vmax.f32 %v3378, %v3379
          %v3381 = vrot.slane %v3380, 2
          %v3382 = vmax.f32 %v3380, %v3381
          %v3383 = vrot.slane %v3382, 1
          %v3384 = vmax.f32 %v3382, %v3383
          %v3385 = vsel %vm2915, %v2819, -inf
          %v3386 = vrot.slane %v3385, 4
          %v3387 = vmax.f32 %v3385, %v3386
          %v3388 = vrot.slane %v3387, 2
          %v3389 = vmax.f32 %v3387, %v3388
          %v3390 = vrot.slane %v3389, 1
          %v3391 = vmax.f32 %v3389, %v3390
          %v3392 = vsel %vm2915, %v2736, -inf
          %v3393 = vrot.slane %v3392, 4
          %v3394 = vmax.f32 %v3392, %v3393
          %v3395 = vrot.slane %v3394, 2
          %v3396 = vmax.f32 %v3394, %v3395
          %v3397 = vrot.slane %v3396, 1
          %v3398 = vmax.f32 %v3396, %v3397
          %v3399 = vsel %vm2915, %v2820, -inf
          %v3400 = vrot.slane %v3399, 4
          %v3401 = vmax.f32 %v3399, %v3400
          %v3402 = vrot.slane %v3401, 2
          %v3403 = vmax.f32 %v3401, %v3402
          %v3404 = vrot.slane %v3403, 1
          %v3405 = vmax.f32 %v3403, %v3404
          %v3406 = vsel %vm2915, %v2821, -inf
          %v3407 = vrot.slane %v3406, 4
          %v3408 = vmax.f32 %v3406, %v3407
          %v3409 = vrot.slane %v3408, 2
          %v3410 = vmax.f32 %v3408, %v3409
          %v3411 = vrot.slane %v3410, 1
          %v3412 = vmax.f32 %v3410, %v3411
          %v3413 = vsel %vm2915, %v2822, -inf
          %v3414 = vrot.slane %v3413, 4
          %v3415 = vmax.f32 %v3413, %v3414
          %v3416 = vrot.slane %v3415, 2
          %v3417 = vmax.f32 %v3415, %v3416
          %v3418 = vrot.slane %v3417, 1
          %v3419 = vmax.f32 %v3417, %v3418
          %v3420 = vsel %vm2915, %v2737, -inf
          %v3421 = vrot.slane %v3420, 4
          %v3422 = vmax.f32 %v3420, %v3421
          %v3423 = vrot.slane %v3422, 2
          %v3424 = vmax.f32 %v3422, %v3423
          %v3425 = vrot.slane %v3424, 1
          %v3426 = vmax.f32 %v3424, %v3425
          %v3427 = vsel %vm2915, %v2823, -inf
          %v3428 = vrot.slane %v3427, 4
          %v3429 = vmax.f32 %v3427, %v3428
          %v3430 = vrot.slane %v3429, 2
          %v3431 = vmax.f32 %v3429, %v3430
          %v3432 = vrot.slane %v3431, 1
          %v3433 = vmax.f32 %v3431, %v3432
          %v3434 = vsel %vm2915, %v2824, -inf
          %v3435 = vrot.slane %v3434, 4
          %v3436 = vmax.f32 %v3434, %v3435
          %v3437 = vrot.slane %v3436, 2
          %v3438 = vmax.f32 %v3436, %v3437
          %v3439 = vrot.slane %v3438, 1
          %v3440 = vmax.f32 %v3438, %v3439
          %v3441 = vsel %vm2915, %v2825, -inf
          %v3442 = vrot.slane %v3441, 4
          %v3443 = vmax.f32 %v3441, %v3442
          %v3444 = vrot.slane %v3443, 2
          %v3445 = vmax.f32 %v3443, %v3444
          %v3446 = vrot.slane %v3445, 1
          %v3447 = vmax.f32 %v3445, %v3446
          %v3448 = vsel %vm2915, %v2738, -inf
          %v3449 = vrot.slane %v3448, 4
          %v3450 = vmax.f32 %v3448, %v3449
          %v3451 = vrot.slane %v3450, 2
          %v3452 = vmax.f32 %v3450, %v3451
          %v3453 = vrot.slane %v3452, 1
          %v3454 = vmax.f32 %v3452, %v3453
          %v3455 = vsel %vm2915, %v2826, -inf
          %v3456 = vrot.slane %v3455, 4
          %v3457 = vmax.f32 %v3455, %v3456
          %v3458 = vrot.slane %v3457, 2
          %v3459 = vmax.f32 %v3457, %v3458
          %v3460 = vrot.slane %v3459, 1
          %v3461 = vmax.f32 %v3459, %v3460
          %v3462 = vsel %vm2915, %v2827, -inf
          %v3463 = vrot.slane %v3462, 4
          %v3464 = vmax.f32 %v3462, %v3463
          %v3465 = vrot.slane %v3464, 2
          %v3466 = vmax.f32 %v3464, %v3465
          %v3467 = vrot.slane %v3466, 1
          %v3468 = vmax.f32 %v3466, %v3467
          %v3469 = vsel %vm2915, %v2828, -inf
          %v3470 = vrot.slane %v3469, 4
          %v3471 = vmax.f32 %v3469, %v3470
          %v3472 = vrot.slane %v3471, 2
          %v3473 = vmax.f32 %v3471, %v3472
          %v3474 = vrot.slane %v3473, 1
          %v3475 = vmax.f32 %v3473, %v3474
          %v3476 = vsel %vm2915, %v2739, -inf
          %v3477 = vrot.slane %v3476, 4
          %v3478 = vmax.f32 %v3476, %v3477
          %v3479 = vrot.slane %v3478, 2
          %v3480 = vmax.f32 %v3478, %v3479
          %v3481 = vrot.slane %v3480, 1
          %v3482 = vmax.f32 %v3480, %v3481
          %v3483 = vsel %vm2915, %v2829, -inf
          %v3484 = vrot.slane %v3483, 4
          %v3485 = vmax.f32 %v3483, %v3484
          %v3486 = vrot.slane %v3485, 2
          %v3487 = vmax.f32 %v3485, %v3486
          %v3488 = vrot.slane %v3487, 1
          %v3489 = vmax.f32 %v3487, %v3488
          %v3490 = vsel %vm2915, %v2830, -inf
          %v3491 = vrot.slane %v3490, 4
          %v3492 = vmax.f32 %v3490, %v3491
          %v3493 = vrot.slane %v3492, 2
          %v3494 = vmax.f32 %v3492, %v3493
          %v3495 = vrot.slane %v3494, 1
          %v3496 = vmax.f32 %v3494, %v3495
          %v3497 = vsel %vm2915, %v2831, -inf
          %v3498 = vrot.slane %v3497, 4
          %v3499 = vmax.f32 %v3497, %v3498
          %v3500 = vrot.slane %v3499, 2
          %v3501 = vmax.f32 %v3499, %v3500
          %v3502 = vrot.slane %v3501, 1
          %v3503 = vmax.f32 %v3501, %v3502
          %v3504 = vsel %vm2915, %v2740, -inf
          %v3505 = vrot.slane %v3504, 4
          %v3506 = vmax.f32 %v3504, %v3505
          %v3507 = vrot.slane %v3506, 2
          %v3508 = vmax.f32 %v3506, %v3507
          %v3509 = vrot.slane %v3508, 1
          %v3510 = vmax.f32 %v3508, %v3509
          %v3511 = vsel %vm2915, %v2832, -inf
          %v3512 = vrot.slane %v3511, 4
          %v3513 = vmax.f32 %v3511, %v3512
          %v3514 = vrot.slane %v3513, 2
          %v3515 = vmax.f32 %v3513, %v3514
          %v3516 = vrot.slane %v3515, 1
          %v3517 = vmax.f32 %v3515, %v3516
          %v3518 = vsel %vm2915, %v2833, -inf
          %v3519 = vrot.slane %v3518, 4
          %v3520 = vmax.f32 %v3518, %v3519
          %v3521 = vrot.slane %v3520, 2
          %v3522 = vmax.f32 %v3520, %v3521
          %v3523 = vrot.slane %v3522, 1
          %v3524 = vmax.f32 %v3522, %v3523
          %v3525 = vsel %vm2915, %v2834, -inf
          %v3526 = vrot.slane %v3525, 4
          %v3527 = vmax.f32 %v3525, %v3526
          %v3528 = vrot.slane %v3527, 2
          %v3529 = vmax.f32 %v3527, %v3528
          %v3530 = vrot.slane %v3529, 1
          %v3531 = vmax.f32 %v3529, %v3530
          %v3532 = vsel %vm2915, %v2741, -inf
          %v3533 = vrot.slane %v3532, 4
          %v3534 = vmax.f32 %v3532, %v3533
          %v3535 = vrot.slane %v3534, 2
          %v3536 = vmax.f32 %v3534, %v3535
          %v3537 = vrot.slane %v3536, 1
          %v3538 = vmax.f32 %v3536, %v3537
          %v3539 = vsel %vm2915, %v2835, -inf
          %v3540 = vrot.slane %v3539, 4
          %v3541 = vmax.f32 %v3539, %v3540
          %v3542 = vrot.slane %v3541, 2
          %v3543 = vmax.f32 %v3541, %v3542
          %v3544 = vrot.slane %v3543, 1
          %v3545 = vmax.f32 %v3543, %v3544
          %v3546 = vsel %vm2915, %v2836, -inf
          %v3547 = vrot.slane %v3546, 4
          %v3548 = vmax.f32 %v3546, %v3547
          %v3549 = vrot.slane %v3548, 2
          %v3550 = vmax.f32 %v3548, %v3549
          %v3551 = vrot.slane %v3550, 1
          %v3552 = vmax.f32 %v3550, %v3551
          %v3553 = vsel %vm2915, %v2837, -inf
          %v3554 = vrot.slane %v3553, 4
          %v3555 = vmax.f32 %v3553, %v3554
          %v3556 = vrot.slane %v3555, 2
          %v3557 = vmax.f32 %v3555, %v3556
          %v3558 = vrot.slane %v3557, 1
          %v3559 = vmax.f32 %v3557, %v3558
          %v3560 = vsel %vm2915, %v2742, -inf
          %v3561 = vrot.slane %v3560, 4
          %v3562 = vmax.f32 %v3560, %v3561
          %v3563 = vrot.slane %v3562, 2
          %v3564 = vmax.f32 %v3562, %v3563
          %v3565 = vrot.slane %v3564, 1
          %v3566 = vmax.f32 %v3564, %v3565
          %v3567 = vsel %vm2915, %v2838, -inf
          %v3568 = vrot.slane %v3567, 4
          %v3569 = vmax.f32 %v3567, %v3568
          %v3570 = vrot.slane %v3569, 2
          %v3571 = vmax.f32 %v3569, %v3570
          %v3572 = vrot.slane %v3571, 1
          %v3573 = vmax.f32 %v3571, %v3572
          %v3574 = vsel %vm2915, %v2839, -inf
          %v3575 = vrot.slane %v3574, 4
          %v3576 = vmax.f32 %v3574, %v3575
          %v3577 = vrot.slane %v3576, 2
          %v3578 = vmax.f32 %v3576, %v3577
          %v3579 = vrot.slane %v3578, 1
          %v3580 = vmax.f32 %v3578, %v3579
          %v3581 = vsel %vm2915, %v2840, -inf
          %v3582 = vrot.slane %v3581, 4
          %v3583 = vmax.f32 %v3581, %v3582
          %v3584 = vrot.slane %v3583, 2
          %v3585 = vmax.f32 %v3583, %v3584
          %v3586 = vrot.slane %v3585, 1
          %v3587 = vmax.f32 %v3585, %v3586
          %v3588 = vsel %vm2915, %v2743, -inf
          %v3589 = vrot.slane %v3588, 4
          %v3590 = vmax.f32 %v3588, %v3589
          %v3591 = vrot.slane %v3590, 2
          %v3592 = vmax.f32 %v3590, %v3591
          %v3593 = vrot.slane %v3592, 1
          %v3594 = vmax.f32 %v3592, %v3593
          %v3595 = vsel %vm2915, %v2841, -inf
          %v3596 = vrot.slane %v3595, 4
          %v3597 = vmax.f32 %v3595, %v3596
          %v3598 = vrot.slane %v3597, 2
          %v3599 = vmax.f32 %v3597, %v3598
          %v3600 = vrot.slane %v3599, 1
          %v3601 = vmax.f32 %v3599, %v3600
          %v3602 = vsel %vm1452, %v2922, -inf
          %v3603 = vsel %vm1452, %v2971, -inf
          %v3604 = vmax.f32 %v3602, %v3603
          %v3605 = vsel %vm1452, %v2929, -inf
          %v3606 = vsel %vm1452, %v2978, -inf
          %v3607 = vmax.f32 %v3605, %v3606
          %v3608 = vsel %vm1452, %v2936, -inf
          %v3609 = vsel %vm1452, %v2985, -inf
          %v3610 = vmax.f32 %v3608, %v3609
          %v3611 = vsel %vm1452, %v2943, -inf
          %v3612 = vsel %vm1452, %v2992, -inf
          %v3613 = vmax.f32 %v3611, %v3612
          %v3614 = vsel %vm1452, %v2950, -inf
          %v3615 = vsel %vm1452, %v2999, -inf
          %v3616 = vmax.f32 %v3614, %v3615
          %v3617 = vsel %vm1452, %v2957, -inf
          %v3618 = vsel %vm1452, %v3006, -inf
          %v3619 = vmax.f32 %v3617, %v3618
          %v3620 = vsel %vm1452, %v2964, -inf
          %v3621 = vsel %vm1452, %v3013, -inf
          %v3622 = vmax.f32 %v3620, %v3621
          %v3623 = vsel %vm1452, %v3020, -inf
          %v3624 = vsel %vm1452, %v3069, -inf
          %v3625 = vmax.f32 %v3623, %v3624
          %v3626 = vsel %vm1452, %v3027, -inf
          %v3627 = vsel %vm1452, %v3076, -inf
          %v3628 = vmax.f32 %v3626, %v3627
          %v3629 = vsel %vm1452, %v3034, -inf
          %v3630 = vsel %vm1452, %v3083, -inf
          %v3631 = vmax.f32 %v3629, %v3630
          %v3632 = vsel %vm1452, %v3041, -inf
          %v3633 = vsel %vm1452, %v3090, -inf
          %v3634 = vmax.f32 %v3632, %v3633
          %v3635 = vsel %vm1452, %v3048, -inf
          %v3636 = vsel %vm1452, %v3097, -inf
          %v3637 = vmax.f32 %v3635, %v3636
          %v3638 = vsel %vm1452, %v3055, -inf
          %v3639 = vsel %vm1452, %v3104, -inf
          %v3640 = vmax.f32 %v3638, %v3639
          %v3641 = vsel %vm1452, %v3062, -inf
          %v3642 = vsel %vm1452, %v3111, -inf
          %v3643 = vmax.f32 %v3641, %v3642
          %v3644 = vsel %vm1452, %v3118, -inf
          %v3645 = vsel %vm1452, %v3167, -inf
          %v3646 = vmax.f32 %v3644, %v3645
          %v3647 = vsel %vm1452, %v3125, -inf
          %v3648 = vsel %vm1452, %v3174, -inf
          %v3649 = vmax.f32 %v3647, %v3648
          %v3650 = vsel %vm1452, %v3132, -inf
          %v3651 = vsel %vm1452, %v3181, -inf
          %v3652 = vmax.f32 %v3650, %v3651
          %v3653 = vsel %vm1452, %v3139, -inf
          %v3654 = vsel %vm1452, %v3188, -inf
          %v3655 = vmax.f32 %v3653, %v3654
          %v3656 = vsel %vm1452, %v3146, -inf
          %v3657 = vsel %vm1452, %v3195, -inf
          %v3658 = vmax.f32 %v3656, %v3657
          %v3659 = vsel %vm1452, %v3153, -inf
          %v3660 = vsel %vm1452, %v3202, -inf
          %v3661 = vmax.f32 %v3659, %v3660
          %v3662 = vsel %vm1452, %v3160, -inf
          %v3663 = vsel %vm1452, %v3209, -inf
          %v3664 = vmax.f32 %v3662, %v3663
          %v3665 = vsel %vm1452, %v3216, -inf
          %v3666 = vsel %vm1452, %v3265, -inf
          %v3667 = vmax.f32 %v3665, %v3666
          %v3668 = vsel %vm1452, %v3223, -inf
          %v3669 = vsel %vm1452, %v3272, -inf
          %v3670 = vmax.f32 %v3668, %v3669
          %v3671 = vsel %vm1452, %v3230, -inf
          %v3672 = vsel %vm1452, %v3279, -inf
          %v3673 = vmax.f32 %v3671, %v3672
          %v3674 = vsel %vm1452, %v3237, -inf
          %v3675 = vsel %vm1452, %v3286, -inf
          %v3676 = vmax.f32 %v3674, %v3675
          %v3677 = vsel %vm1452, %v3244, -inf
          %v3678 = vsel %vm1452, %v3293, -inf
          %v3679 = vmax.f32 %v3677, %v3678
          %v3680 = vsel %vm1452, %v3251, -inf
          %v3681 = vsel %vm1452, %v3300, -inf
          %v3682 = vmax.f32 %v3680, %v3681
          %v3683 = vsel %vm1452, %v3258, -inf
          %v3684 = vsel %vm1452, %v3307, -inf
          %v3685 = vmax.f32 %v3683, %v3684
          %v3686 = vsel %vm1452, %v3314, -inf
          %v3687 = vsel %vm1452, %v3363, -inf
          %v3688 = vmax.f32 %v3686, %v3687
          %v3689 = vsel %vm1452, %v3321, -inf
          %v3690 = vsel %vm1452, %v3370, -inf
          %v3691 = vmax.f32 %v3689, %v3690
          %v3692 = vsel %vm1452, %v3328, -inf
          %v3693 = vsel %vm1452, %v3377, -inf
          %v3694 = vmax.f32 %v3692, %v3693
          %v3695 = vsel %vm1452, %v3335, -inf
          %v3696 = vsel %vm1452, %v3384, -inf
          %v3697 = vmax.f32 %v3695, %v3696
          %v3698 = vsel %vm1452, %v3342, -inf
          %v3699 = vsel %vm1452, %v3391, -inf
          %v3700 = vmax.f32 %v3698, %v3699
          %v3701 = vsel %vm1452, %v3349, -inf
          %v3702 = vsel %vm1452, %v3398, -inf
          %v3703 = vmax.f32 %v3701, %v3702
          %v3704 = vsel %vm1452, %v3356, -inf
          %v3705 = vsel %vm1452, %v3405, -inf
          %v3706 = vmax.f32 %v3704, %v3705
          %v3707 = vsel %vm1452, %v3412, -inf
          %v3708 = vsel %vm1452, %v3461, -inf
          %v3709 = vmax.f32 %v3707, %v3708
          %v3710 = vsel %vm1452, %v3419, -inf
          %v3711 = vsel %vm1452, %v3468, -inf
          %v3712 = vmax.f32 %v3710, %v3711
          %v3713 = vsel %vm1452, %v3426, -inf
          %v3714 = vsel %vm1452, %v3475, -inf
          %v3715 = vmax.f32 %v3713, %v3714
          %v3716 = vsel %vm1452, %v3433, -inf
          %v3717 = vsel %vm1452, %v3482, -inf
          %v3718 = vmax.f32 %v3716, %v3717
          %v3719 = vsel %vm1452, %v3440, -inf
          %v3720 = vsel %vm1452, %v3489, -inf
          %v3721 = vmax.f32 %v3719, %v3720
          %v3722 = vsel %vm1452, %v3447, -inf
          %v3723 = vsel %vm1452, %v3496, -inf
          %v3724 = vmax.f32 %v3722, %v3723
          %v3725 = vsel %vm1452, %v3454, -inf
          %v3726 = vsel %vm1452, %v3503, -inf
          %v3727 = vmax.f32 %v3725, %v3726
          %v3728 = vsel %vm1452, %v3510, -inf
          %v3729 = vsel %vm1452, %v3559, -inf
          %v3730 = vmax.f32 %v3728, %v3729
          %v3731 = vsel %vm1452, %v3517, -inf
          %v3732 = vsel %vm1452, %v3566, -inf
          %v3733 = vmax.f32 %v3731, %v3732
          %v3734 = vsel %vm1452, %v3524, -inf
          %v3735 = vsel %vm1452, %v3573, -inf
          %v3736 = vmax.f32 %v3734, %v3735
          %v3737 = vsel %vm1452, %v3531, -inf
          %v3738 = vsel %vm1452, %v3580, -inf
          %v3739 = vmax.f32 %v3737, %v3738
          %v3740 = vsel %vm1452, %v3538, -inf
          %v3741 = vsel %vm1452, %v3587, -inf
          %v3742 = vmax.f32 %v3740, %v3741
          %v3743 = vsel %vm1452, %v3545, -inf
          %v3744 = vsel %vm1452, %v3594, -inf
          %v3745 = vmax.f32 %v3743, %v3744
          %v3746 = vsel %vm1452, %v3552, -inf
          %v3747 = vsel %vm1452, %v3601, -inf
          %v3748 = vmax.f32 %v3746, %v3747
          %v3749 = vpack.c.bf16 %v3604, %v3604
          %v3750 = vpack.c.bf16 %v3607, %v3607
          %v3751 = vpack.c.bf16 %v3610, %v3610
          %v3752 = vpack.c.bf16 %v3613, %v3613
          %v3753 = vpack.c.bf16 %v3616, %v3616
          %v3754 = vpack.c.bf16 %v3619, %v3619
          %v3755 = vpack.c.bf16 %v3622, %v3622
          %v3756 = vpack.c.bf16 %v3625, %v3625
          %v3757 = vpack.c.bf16 %v3628, %v3628
          %v3758 = vpack.c.bf16 %v3631, %v3631
          %v3759 = vpack.c.bf16 %v3634, %v3634
          %v3760 = vpack.c.bf16 %v3637, %v3637
          %v3761 = vpack.c.bf16 %v3640, %v3640
          %v3762 = vpack.c.bf16 %v3643, %v3643
          %v3763 = vpack.c.bf16 %v3646, %v3646
          %v3764 = vpack.c.bf16 %v3649, %v3649
          %v3765 = vpack.c.bf16 %v3652, %v3652
          %v3766 = vpack.c.bf16 %v3655, %v3655
          %v3767 = vpack.c.bf16 %v3658, %v3658
          %v3768 = vpack.c.bf16 %v3661, %v3661
          %v3769 = vpack.c.bf16 %v3664, %v3664
          %v3770 = vpack.c.bf16 %v3667, %v3667
          %v3771 = vpack.c.bf16 %v3670, %v3670
          %v3772 = vpack.c.bf16 %v3673, %v3673
          %v3773 = vpack.c.bf16 %v3676, %v3676
          %v3774 = vpack.c.bf16 %v3679, %v3679
          %v3775 = vpack.c.bf16 %v3682, %v3682
          %v3776 = vpack.c.bf16 %v3685, %v3685
          %v3777 = vpack.c.bf16 %v3688, %v3688
          %v3778 = vpack.c.bf16 %v3691, %v3691
          %v3779 = vpack.c.bf16 %v3694, %v3694
          %v3780 = vpack.c.bf16 %v3697, %v3697
          %v3781 = vpack.c.bf16 %v3700, %v3700
          %v3782 = vpack.c.bf16 %v3703, %v3703
          %v3783 = vpack.c.bf16 %v3706, %v3706
          %v3784 = vpack.c.bf16 %v3709, %v3709
          %v3785 = vpack.c.bf16 %v3712, %v3712
          %v3786 = vpack.c.bf16 %v3715, %v3715
          %v3787 = vpack.c.bf16 %v3718, %v3718
          %v3788 = vpack.c.bf16 %v3721, %v3721
          %v3789 = vpack.c.bf16 %v3724, %v3724
          %v3790 = vpack.c.bf16 %v3727, %v3727
          %v3791 = vpack.c.bf16 %v3730, %v3730
          %v3792 = vpack.c.bf16 %v3733, %v3733
          %v3793 = vpack.c.bf16 %v3736, %v3736
          %v3794 = vpack.c.bf16 %v3739, %v3739
          %v3795 = vpack.c.bf16 %v3742, %v3742
          %v3796 = vpack.c.bf16 %v3745, %v3745
          %v3797 = vpack.c.bf16 %v3748, %v3748
          %v3847 = vunpack.c.l.b16 %v3749
          %v3848 = vunpack.c.l.b16 %v3750
          %v3849 = vunpack.c.l.b16 %v3751
          %v3850 = vunpack.c.l.b16 %v3752
          %v3851 = vunpack.c.l.b16 %v3753
          %v3852 = vunpack.c.l.b16 %v3754
          %v3853 = vunpack.c.l.b16 %v3755
          %v3854 = vunpack.c.l.b16 %v3756
          %v3855 = vunpack.c.l.b16 %v3757
          %v3856 = vunpack.c.l.b16 %v3758
          %v3857 = vunpack.c.l.b16 %v3759
          %v3858 = vunpack.c.l.b16 %v3760
          %v3859 = vunpack.c.l.b16 %v3761
          %v3860 = vunpack.c.l.b16 %v3762
          %v3861 = vunpack.c.l.b16 %v3763
          %v3862 = vunpack.c.l.b16 %v3764
          %v3863 = vunpack.c.l.b16 %v3765
          %v3864 = vunpack.c.l.b16 %v3766
          %v3865 = vunpack.c.l.b16 %v3767
          %v3866 = vunpack.c.l.b16 %v3768
          %v3867 = vunpack.c.l.b16 %v3769
          %v3868 = vunpack.c.l.b16 %v3770
          %v3869 = vunpack.c.l.b16 %v3771
          %v3870 = vunpack.c.l.b16 %v3772
          %v3871 = vunpack.c.l.b16 %v3773
          %v3872 = vunpack.c.l.b16 %v3774
          %v3873 = vunpack.c.l.b16 %v3775
          %v3874 = vunpack.c.l.b16 %v3776
          %v3875 = vunpack.c.l.b16 %v3777
          %v3876 = vunpack.c.l.b16 %v3778
          %v3877 = vunpack.c.l.b16 %v3779
          %v3878 = vunpack.c.l.b16 %v3780
          %v3879 = vunpack.c.l.b16 %v3781
          %v3880 = vunpack.c.l.b16 %v3782
          %v3881 = vunpack.c.l.b16 %v3783
          %v3882 = vunpack.c.l.b16 %v3784
          %v3883 = vunpack.c.l.b16 %v3785
          %v3884 = vunpack.c.l.b16 %v3786
          %v3885 = vunpack.c.l.b16 %v3787
          %v3886 = vunpack.c.l.b16 %v3788
          %v3887 = vunpack.c.l.b16 %v3789
          %v3888 = vunpack.c.l.b16 %v3790
          %v3889 = vunpack.c.l.b16 %v3791
          %v3890 = vunpack.c.l.b16 %v3792
          %v3891 = vunpack.c.l.b16 %v3793
          %v3892 = vunpack.c.l.b16 %v3794
          %v3893 = vunpack.c.l.b16 %v3795
          %v3894 = vunpack.c.l.b16 %v3796
          %v3895 = vunpack.c.l.b16 %v3797
          %v3896 = vsel %vm1656, %v3848, %v3847
          %v3897 = vsel %vm1662, %v3849, %v3896
          %v3898 = vsel %vm1668, %v3850, %v3897
          %v3899 = vsel %vm1674, %v3851, %v3898
          %v3900 = vsel %vm1680, %v3852, %v3899
          %v3901 = vsel %vm1686, %v3853, %v3900
          %v3902 = vsel %vm1656, %v3855, %v3854
          %v3903 = vsel %vm1662, %v3856, %v3902
          %v3904 = vsel %vm1668, %v3857, %v3903
          %v3905 = vsel %vm1674, %v3858, %v3904
          %v3906 = vsel %vm1680, %v3859, %v3905
          %v3907 = vsel %vm1686, %v3860, %v3906
          %v3908 = vsel %vm1656, %v3862, %v3861
          %v3909 = vsel %vm1662, %v3863, %v3908
          %v3910 = vsel %vm1668, %v3864, %v3909
          %v3911 = vsel %vm1674, %v3865, %v3910
          %v3912 = vsel %vm1680, %v3866, %v3911
          %v3913 = vsel %vm1686, %v3867, %v3912
          %v3914 = vsel %vm1656, %v3869, %v3868
          %v3915 = vsel %vm1662, %v3870, %v3914
          %v3916 = vsel %vm1668, %v3871, %v3915
          %v3917 = vsel %vm1674, %v3872, %v3916
          %v3918 = vsel %vm1680, %v3873, %v3917
          %v3919 = vsel %vm1686, %v3874, %v3918
          %v3920 = vsel %vm1656, %v3876, %v3875
          %v3921 = vsel %vm1662, %v3877, %v3920
          %v3922 = vsel %vm1668, %v3878, %v3921
          %v3923 = vsel %vm1674, %v3879, %v3922
          %v3924 = vsel %vm1680, %v3880, %v3923
          %v3925 = vsel %vm1686, %v3881, %v3924
          %v3926 = vsel %vm1656, %v3883, %v3882
          %v3927 = vsel %vm1662, %v3884, %v3926
          %v3928 = vsel %vm1668, %v3885, %v3927
          %v3929 = vsel %vm1674, %v3886, %v3928
          %v3930 = vsel %vm1680, %v3887, %v3929
          %v3931 = vsel %vm1686, %v3888, %v3930
          %v3932 = vsel %vm1656, %v3890, %v3889
          %v3933 = vsel %vm1662, %v3891, %v3932
          %v3934 = vsel %vm1668, %v3892, %v3933
          %v3935 = vsel %vm1674, %v3893, %v3934
          %v3936 = vsel %vm1680, %v3894, %v3935
          %v3937 = vsel %vm1686, %v3895, %v3936
          %v3938 = vpack.c.b16 %v3901, %v3901
          %v3939 = vpack.c.b16 %v3907, %v3907
          %v3940 = vpack.c.b16 %v3913, %v3913
          %v3941 = vpack.c.b16 %v3919, %v3919
          %v3942 = vpack.c.b16 %v3925, %v3925
          %v3943 = vpack.c.b16 %v3931, %v3931
          %v3944 = vpack.c.b16 %v3937, %v3937
          %s3952 = smul.u32 %s261, 7
          %s3953 = smul.addr %s3952, 4
          %s3954 = scalar_lea.vmem %s219, %s3953
          %vm3955 = vcmask 519168
          %vm3956 = vsmask.f32 3328
          %vm3957 = vmand %vm3955, %vm3956
          %v3958 = vld [vmem:[%s3954] sm:$0xf]
          %v3959 = vsel %vm3957, %v3938, %v3958
          %3960 = vst [vmem:[%s3954] sm:$0xf] %v3959
          %v3961 = vld [vmem:[%s3954 + $0x4] sm:$0xf]
          %v3962 = vsel %vm3957, %v3939, %v3961
          %3963 = vst [vmem:[%s3954 + $0x4] sm:$0xf] %v3962
          %v3964 = vld [vmem:[%s3954 + $0x8] sm:$0xf]
          %v3965 = vsel %vm3957, %v3940, %v3964
          %3966 = vst [vmem:[%s3954 + $0x8] sm:$0xf] %v3965
          %v3967 = vld [vmem:[%s3954 + $0xc] sm:$0xf]
          %v3968 = vsel %vm3957, %v3941, %v3967
          %3969 = vst [vmem:[%s3954 + $0xc] sm:$0xf] %v3968
          %v3970 = vld [vmem:[%s3954 + $0x10] sm:$0xf]
          %v3971 = vsel %vm3957, %v3942, %v3970
          %3972 = vst [vmem:[%s3954 + $0x10] sm:$0xf] %v3971
          %v3973 = vld [vmem:[%s3954 + $0x14] sm:$0xf]
          %v3974 = vsel %vm3957, %v3943, %v3973
          %3975 = vst [vmem:[%s3954 + $0x14] sm:$0xf] %v3974
          %v3976 = vld [vmem:[%s3954 + $0x18] sm:$0xf]
          %v3977 = vsel %vm3957, %v3944, %v3976
          %3978 = vst [vmem:[%s3954 + $0x18] sm:$0xf] %v3977
        $region45: #{moindrot_cnn_forward.4} parent=35 // loop_footer
          %s265 = sadd.s32 1, %s261
        $region46: #{moindrot_cnn_forward.4} parent=35 // loop_footer_branch
          %260 = sbr.rel target = $region42
        $region47: #{moindrot_cnn_forward.4} parent=35 // loop_exit
          _
        %s3979 = smul.u32 4, %s16
        %p3980 = scmp.lt.s32.totalorder %s3979, 7
        %s3981 = scalar_select %p3980, %s3979, 7
        %s3982 = smul.addr %s3981, 7
        %s3983 = smul.addr %s3982, 4
        %s3984 = scalar_lea.vmem %s4, %s3983
        // Predicated region
        $region48: #{moindrot_cnn_forward.4} parent=35 // pred_check
          %p3985 = pneg %p123
        $region49: #{moindrot_cnn_forward.4} parent=35 // pred_check_branch
          %3987 = sbr.rel (%p3985) target = $region51
        $region50: #{moindrot_cnn_forward.4} parent=35 // pred_region
          %s3988 = smul.u32 4, %s16
        $region51: #{moindrot_cnn_forward.4} parent=35 // pred_fallthru
          _
      $region36: #{moindrot_cnn_forward.4} parent=5 // pred_fallthru
        _
      %p3989 = scmp.le.s32.totalorder 2, %s11
      // Predicated region
      $region52: #{moindrot_cnn_forward.4} parent=5 // pred_check
        %p3990 = pneg %p3989
      $region53: #{moindrot_cnn_forward.4} parent=5 // pred_check_branch
        %3992 = sbr.rel (%p3990) target = $region55
      $region54: #{moindrot_cnn_forward.4} parent=5 // pred_region
        %s3993 = ssub.s32 %s11, 2
        // Predicated region
        $region56: #{moindrot_cnn_forward.4} parent=54 // pred_check
          %p3994 = pneg %p129
        $region57: #{moindrot_cnn_forward.4} parent=54 // pred_check_branch
          %3996 = sbr.rel (%p3994) target = $region59
        $region58: #{moindrot_cnn_forward.4} parent=54 // pred_region
          %s3997 = smul.u32 4, %s17
          %p3998 = scmp.lt.s32.totalorder %s3997, 7
          %s3999 = scalar_select %p3998, %s3997, 7
          %s4000 = smul.addr %s3999, 7
          %s4001 = smul.addr %s4000, 4
          %s4002 = scalar_lea.vmem %s4, %s4001
        $region59: #{moindrot_cnn_forward.4} parent=54 // pred_fallthru
          _
      $region55: #{moindrot_cnn_forward.4} parent=5 // pred_fallthru
        _
    $region6: #{moindrot_cnn_forward.4} parent=1 // loop_footer
      %s15 = sadd.s32 1, %s11
    $region7: #{moindrot_cnn_forward.4} parent=1 // loop_footer_branch
      %10 = sbr.rel target = $region3
    $region8: #{moindrot_cnn_forward.4} parent=1 // loop_exit
      _
    %4003 = vsyncpa [#allocation3], 1
    %s4004 = scalar_lea.sflag [#allocation3], 1
    %4005 = vsyncpa %s4004, 1

</llo_original>
